<compile_context>
chip_gen: v7x
topology: tpu7x:2x2x1
jax: 0.10.0
libtpu: 0.0.40
codegen_flags: <defaults>
</compile_context>

<pallas_src>
import functools
import math

import jax
import jax.numpy as jnp
from jax.experimental import pallas as pl
from jax.experimental.pallas import tpu as pltpu

# ---------------- MagFace config (typical defaults) ----------------
MARGIN_AM = 0.0
SCALE = 32.0
L_A = 10.0
U_A = 110.0
L_MARGIN = 0.45
U_MARGIN = 0.8
LAMDA = 20.0

NEG_INF = -1e30

# Demo shapes (small but exercise both grid axes).
EMBEDDING_SIZE = 64
NUM_CLASSES = 2048
BATCH = 256
TILE_B = 128   # batch rows per kernel step (fills MXU rows)
TILE_C = 512   # classes per kernel step (lane-dense weight/logit tiles)


def magface_kernel(feats_ref, weight_ref, labels_ref, loss_ref,
                   m_ref, l_ref, t_ref, fn_ref, cm_ref, sm_ref, lg_ref):
    j = pl.program_id(1)
    n_c = pl.num_programs(1)

    # ---- first class tile of this batch tile: init accumulators + per-row math ----
    @pl.when(j == 0)
    def _init():
        feats = feats_ref[...]                                      # (TB, E) f32
        sq = jnp.sum(feats * feats, axis=1, keepdims=True)          # (TB, 1)
        x_norm = jnp.clip(jnp.sqrt(sq), L_A, U_A)
        ada_margin = (U_MARGIN - L_MARGIN) / (U_A - L_A) * (x_norm - L_A) + L_MARGIN
        cm_ref[...] = jnp.cos(ada_margin)
        sm_ref[...] = jnp.sin(ada_margin)
        # MagFace g-regularizer (per row).
        lg_ref[...] = (1.0 / (U_A * U_A)) * x_norm + pl.reciprocal(x_norm, approx=True)
        # L2 normalize feats rows (rsqrt * mul, EUP path), cache as bf16 for the MXU.
        inv_fnorm = jax.lax.rsqrt(jnp.maximum(sq, 1e-24))
        fn_ref[...] = (feats * inv_fnorm).astype(jnp.bfloat16)
        # online-LSE accumulators
        m_ref[...] = jnp.full(m_ref.shape, NEG_INF, jnp.float32)
        l_ref[...] = jnp.zeros(l_ref.shape, jnp.float32)
        t_ref[...] = jnp.zeros(t_ref.shape, jnp.float32)

    # ---- L2 normalize this weight tile's columns (dim=0), keep bf16 for MXU ----
    wf = weight_ref[...].astype(jnp.float32)                        # (E, TC)
    inv_wnorm = jax.lax.rsqrt(
        jnp.maximum(jnp.sum(wf * wf, axis=0, keepdims=True), 1e-24))
    kernel_norm = (wf * inv_wnorm).astype(jnp.bfloat16)

    # ---- cosine logits on the MXU (bf16 inputs, f32 accumulate) ----
    cos_theta = jnp.dot(fn_ref[...], kernel_norm,
                        preferred_element_type=jnp.float32)          # (TB, TC)
    cos_theta = jnp.clip(cos_theta, -1.0, 1.0)

    cm = cm_ref[...]                                                 # (TB, 1)
    sm = sm_ref[...]
    sin_theta = jnp.sqrt(1.0 - cos_theta * cos_theta)                # safe: clipped above
    cos_theta_m = cos_theta * cm - sin_theta * sm
    # cos(pi - m) == -cos(m)
    cos_theta_m = jnp.where(cos_theta > -cm, cos_theta_m, cos_theta - MARGIN_AM)

    # ---- margin injection at the (globally offset) label column ----
    tc = cos_theta.shape[1]
    col = jax.lax.broadcasted_iota(jnp.int32, cos_theta.shape, 1) + j * tc
    onehot = col == labels_ref[...]                                  # (TB, TC) bool
    out = jnp.where(onehot, cos_theta_m, cos_theta) * SCALE

    # ---- online log-sum-exp + target-logit accumulation ----
    m_prev = m_ref[...]
    m_new = jnp.maximum(m_prev, jnp.max(out, axis=1, keepdims=True))
    alpha = jnp.exp(m_prev - m_new)
    p = jnp.exp(out - m_new)
    l_ref[...] = l_ref[...] * alpha + jnp.sum(p, axis=1, keepdims=True)
    # target accumulator holds the raw logit (not exp-space) -> no rescale needed
    t_ref[...] = t_ref[...] + jnp.sum(jnp.where(onehot, out, 0.0), axis=1, keepdims=True)
    m_ref[...] = m_new

    # ---- last class tile: finalize per-row loss ----
    @pl.when(j == n_c - 1)
    def _finalize():
        lse = jnp.log(l_ref[...]) + m_ref[...]
        loss_ref[...] = (lse - t_ref[...]) + LAMDA * lg_ref[...]


@functools.partial(jax.jit, static_argnames=("tile_b", "tile_c"))
def magface_loss(feats, weight, labels, *, tile_b=TILE_B, tile_c=TILE_C):
    """feats: (B, E) f32, weight: (E, C) f32, labels: (B,) int -> scalar f32 loss."""
    B, E = feats.shape
    Ew, C = weight.shape
    assert Ew == E
    tile_b = min(tile_b, B)
    tile_c = min(tile_c, C)
    assert B % tile_b == 0 and (tile_b == B or tile_b % 8 == 0)
    assert C % tile_c == 0 and (tile_c == C or tile_c % 128 == 0)

    labels2d = labels.reshape(B, 1).astype(jnp.int32)
    weight_bf16 = weight.astype(jnp.bfloat16)   # halve weight DMA bytes (f32 accum in MXU)

    grid = (B // tile_b, C // tile_c)
    row_loss = pl.pallas_call(
        magface_kernel,
        out_shape=jax.ShapeDtypeStruct((B, 1), jnp.float32),
        grid_spec=pltpu.PrefetchScalarGridSpec(
            num_scalar_prefetch=0,
            grid=grid,
            in_specs=[
                pl.BlockSpec((tile_b, E), lambda i, j: (i, 0)),      # feats (resident over j)
                pl.BlockSpec((E, tile_c), lambda i, j: (0, j)),      # weight tile (streamed)
                pl.BlockSpec((tile_b, 1), lambda i, j: (i, 0)),      # labels
            ],
            out_specs=pl.BlockSpec((tile_b, 1), lambda i, j: (i, 0)),
            scratch_shapes=[
                pltpu.VMEM((tile_b, 1), jnp.float32),     # m  (running row max)
                pltpu.VMEM((tile_b, 1), jnp.float32),     # l  (running exp-sum)
                pltpu.VMEM((tile_b, 1), jnp.float32),     # t  (target logit)
                pltpu.VMEM((tile_b, E), jnp.bfloat16),    # normalized feats (bf16)
                pltpu.VMEM((tile_b, 1), jnp.float32),     # cos_m
                pltpu.VMEM((tile_b, 1), jnp.float32),     # sin_m
                pltpu.VMEM((tile_b, 1), jnp.float32),     # loss_g
            ],
        ),
        compiler_params=pltpu.CompilerParams(
            dimension_semantics=("parallel", "arbitrary"),
        ),
    )(feats, weight_bf16, labels2d)

    # mean(CE) + mean(lamda * loss_g) == mean over rows of (CE_row + lamda*loss_g_row)
    return jnp.mean(row_loss)


def magface_loss_ref(feats, weight, labels):
    """Pure-JAX reference mirroring the PyTorch forward (f32)."""
    fnorm = jnp.linalg.norm(feats, axis=1, keepdims=True)
    x_norm = jnp.clip(fnorm, L_A, U_A)
    ada_margin = (U_MARGIN - L_MARGIN) / (U_A - L_A) * (x_norm - L_A) + L_MARGIN
    cos_m, sin_m = jnp.cos(ada_margin), jnp.sin(ada_margin)
    loss_g = 1.0 / (U_A ** 2) * x_norm + 1.0 / x_norm
    kernel_norm = weight / jnp.maximum(jnp.linalg.norm(weight, axis=0, keepdims=True), 1e-12)
    feats_n = feats / jnp.maximum(fnorm, 1e-12)
    cos_theta = jnp.clip(feats_n @ kernel_norm, -1.0, 1.0)
    sin_theta = jnp.sqrt(1.0 - cos_theta * cos_theta)
    ctm = cos_theta * cos_m - sin_theta * sin_m
    ctm = jnp.where(cos_theta > jnp.cos(math.pi - ada_margin), ctm, cos_theta - MARGIN_AM)
    onehot = jax.nn.one_hot(labels, weight.shape[1], dtype=bool)
    out = jnp.where(onehot, ctm, cos_theta) * SCALE
    lse = jax.scipy.special.logsumexp(out, axis=1)
    tgt = jnp.sum(jnp.where(onehot, out, 0.0), axis=1)
    return jnp.mean(lse - tgt) + jnp.mean(LAMDA * loss_g)


def init_weight(key, embedding_size, num_classes):
    # Mirrors: weight.uniform_(-1, 1).renorm_(2, 1, 1e-05).mul_(100000.0)
    w = jax.random.uniform(key, (embedding_size, num_classes),
                           minval=-1.0, maxval=1.0, dtype=jnp.float32)
    col_norm = jnp.linalg.norm(w, axis=0, keepdims=True)
    return w / jnp.maximum(col_norm, 1e-12) * 1e-5 * 1e5


if __name__ == "__main__":
    key = jax.random.PRNGKey(0)
    k_feat, k_w, k_lbl = jax.random.split(key, 3)

    feats = jax.random.normal(k_feat, (BATCH, EMBEDDING_SIZE), dtype=jnp.float32) * 5.0
    weight = init_weight(k_w, EMBEDDING_SIZE, NUM_CLASSES)
    labels = jax.random.randint(k_lbl, (BATCH,), 0, NUM_CLASSES, dtype=jnp.int32)

    loss = magface_loss(feats, weight, labels)
    jax.block_until_ready(loss)
    assert loss.shape == () and bool(jnp.isfinite(loss))

    # Correctness check against the f32 JAX reference (same bf16-quantized weight,
    # loose tolerance to cover the bf16 MXU operands).
    w_q = weight.astype(jnp.bfloat16).astype(jnp.float32)
    ref = magface_loss_ref(feats, w_q, labels)
    assert jnp.allclose(loss, ref, rtol=5e-2, atol=5e-1), (loss, ref)

    print("KERNEL_OK")
</pallas_src>

<mosaic_0001>
module attributes {stable_mosaic.version = 11 : i64} {
  func.func @magface_kernel(%arg0: i32, %arg1: i32, %arg2: memref<128x64xf32, #tpu.memory_space<vmem>>, %arg3: memref<64x512xbf16, #tpu.memory_space<vmem>>, %arg4: memref<128x1xi32, #tpu.memory_space<vmem>>, %arg5: memref<128x1xf32, #tpu.memory_space<vmem>>, %arg6: memref<128x1xf32, #tpu.memory_space<vmem>>, %arg7: memref<128x1xf32, #tpu.memory_space<vmem>>, %arg8: memref<128x1xf32, #tpu.memory_space<vmem>>, %arg9: memref<128x64xbf16, #tpu.memory_space<vmem>>, %arg10: memref<128x1xf32, #tpu.memory_space<vmem>>, %arg11: memref<128x1xf32, #tpu.memory_space<vmem>>, %arg12: memref<128x1xf32, #tpu.memory_space<vmem>>) attributes {dimension_semantics = [#tpu.dimension_semantics<parallel>, #tpu.dimension_semantics<arbitrary>], iteration_bounds = array<i64: 2, 4>, scalar_prefetch = 0 : i64, scratch_operands = 7 : i64, tpu.core_type = #tpu.core_type<tc>, window_params = [{transform_indices = @transform_0, window_bounds = array<i64: 128, 64>}, {transform_indices = @transform_1, window_bounds = array<i64: 64, 512>}, {transform_indices = @transform_2, window_bounds = array<i64: 128, 1>}, {transform_indices = @transform_3, window_bounds = array<i64: 128, 1>}]} {
    %c0_i32 = arith.constant 0 : i32
    %0 = arith.cmpi eq, %arg1, %c0_i32 : i32
    %1 = arith.extui %0 : i1 to i32
    %c0_i32_0 = arith.constant 0 : i32
    %2 = arith.cmpi ne, %1, %c0_i32_0 : i32
    scf.if %2 {
      %c0_35 = arith.constant 0 : index
      %c0_36 = arith.constant 0 : index
      %74 = vector.load %arg2[%c0_35, %c0_36] : memref<128x64xf32, #tpu.memory_space<vmem>>, vector<128x64xf32>
      %75 = arith.mulf %74, %74 : vector<128x64xf32>
      %cst_37 = arith.constant dense<0.000000e+00> : vector<128xf32>
      %76 = vector.multi_reduction <add>, %75, %cst_37 [1] : vector<128x64xf32> to vector<128xf32>
      %77 = vector.shape_cast %76 : vector<128xf32> to vector<128x1xf32>
      %78 = math.sqrt %77 : vector<128x1xf32>
      %cst_38 = arith.constant 1.000000e+01 : f32
      %cst_39 = arith.constant 1.100000e+02 : f32
      %79 = vector.broadcast %cst_38 : f32 to vector<128x1xf32>
      %80 = arith.maximumf %79, %78 : vector<128x1xf32>
      %81 = vector.broadcast %cst_39 : f32 to vector<128x1xf32>
      %82 = arith.minimumf %81, %80 : vector<128x1xf32>
      %cst_40 = arith.constant 1.000000e+01 : f32
      %83 = vector.broadcast %cst_40 : f32 to vector<128x1xf32>
      %84 = arith.subf %82, %83 : vector<128x1xf32>
      %cst_41 = arith.constant 3.500000e-03 : f32
      %85 = vector.broadcast %cst_41 : f32 to vector<128x1xf32>
      %86 = arith.mulf %85, %84 : vector<128x1xf32>
      %cst_42 = arith.constant 4.500000e-01 : f32
      %87 = vector.broadcast %cst_42 : f32 to vector<128x1xf32>
      %88 = arith.addf %86, %87 : vector<128x1xf32>
      %89 = math.cos %88 : vector<128x1xf32>
      %c0_43 = arith.constant 0 : index
      %c0_44 = arith.constant 0 : index
      %90 = vector.load %arg10[%c0_43, %c0_44] : memref<128x1xf32, #tpu.memory_space<vmem>>, vector<128x1xf32>
      tpu.vector_store %arg10[%c0_43, %c0_44], %89 {strides = array<i32>} : memref<128x1xf32, #tpu.memory_space<vmem>>, vector<128x1xf32>,
      %91 = math.sin %88 : vector<128x1xf32>
      %c0_45 = arith.constant 0 : index
      %c0_46 = arith.constant 0 : index
      %92 = vector.load %arg11[%c0_45, %c0_46] : memref<128x1xf32, #tpu.memory_space<vmem>>, vector<128x1xf32>
      tpu.vector_store %arg11[%c0_45, %c0_46], %91 {strides = array<i32>} : memref<128x1xf32, #tpu.memory_space<vmem>>, vector<128x1xf32>,
      %cst_47 = arith.constant 8.26446266E-5 : f32
      %93 = vector.broadcast %cst_47 : f32 to vector<128x1xf32>
      %94 = arith.mulf %93, %82 : vector<128x1xf32>
      %95 = tpu.reciprocal %82 {approx = true} : vector<128x1xf32> -> vector<128x1xf32>
      %96 = arith.addf %94, %95 : vector<128x1xf32>
      %c0_48 = arith.constant 0 : index
      %c0_49 = arith.constant 0 : index
      %97 = vector.load %arg12[%c0_48, %c0_49] : memref<128x1xf32, #tpu.memory_space<vmem>>, vector<128x1xf32>
      tpu.vector_store %arg12[%c0_48, %c0_49], %96 {strides = array<i32>} : memref<128x1xf32, #tpu.memory_space<vmem>>, vector<128x1xf32>,
      %cst_50 = arith.constant 1.000000e-24 : f32
      %98 = vector.broadcast %cst_50 : f32 to vector<128x1xf32>
      %99 = arith.maximumf %77, %98 : vector<128x1xf32>
      %100 = math.rsqrt %99 : vector<128x1xf32>
      %101 = vector.broadcast %100 : vector<128x1xf32> to vector<128x64xf32>
      %102 = arith.mulf %74, %101 : vector<128x64xf32>
      %103 = arith.truncf %102 : vector<128x64xf32> to vector<128x64xbf16>
      %c0_51 = arith.constant 0 : index
      %c0_52 = arith.constant 0 : index
      %104 = vector.load %arg9[%c0_51, %c0_52] : memref<128x64xbf16, #tpu.memory_space<vmem>>, vector<128x64xbf16>
      tpu.vector_store %arg9[%c0_51, %c0_52], %103 {strides = array<i32>} : memref<128x64xbf16, #tpu.memory_space<vmem>>, vector<128x64xbf16>,
      %cst_53 = arith.constant -1.000000e+30 : f32
      %105 = vector.broadcast %cst_53 : f32 to vector<128x1xf32>
      %c0_54 = arith.constant 0 : index
      %c0_55 = arith.constant 0 : index
      %106 = vector.load %arg6[%c0_54, %c0_55] : memref<128x1xf32, #tpu.memory_space<vmem>>, vector<128x1xf32>
      tpu.vector_store %arg6[%c0_54, %c0_55], %105 {strides = array<i32>} : memref<128x1xf32, #tpu.memory_space<vmem>>, vector<128x1xf32>,
      %cst_56 = arith.constant 0.000000e+00 : f32
      %107 = vector.broadcast %cst_56 : f32 to vector<128x1xf32>
      %c0_57 = arith.constant 0 : index
      %c0_58 = arith.constant 0 : index
      %108 = vector.load %arg7[%c0_57, %c0_58] : memref<128x1xf32, #tpu.memory_space<vmem>>, vector<128x1xf32>
      tpu.vector_store %arg7[%c0_57, %c0_58], %107 {strides = array<i32>} : memref<128x1xf32, #tpu.memory_space<vmem>>, vector<128x1xf32>,
      %cst_59 = arith.constant 0.000000e+00 : f32
      %109 = vector.broadcast %cst_59 : f32 to vector<128x1xf32>
      %c0_60 = arith.constant 0 : index
      %c0_61 = arith.constant 0 : index
      %110 = vector.load %arg8[%c0_60, %c0_61] : memref<128x1xf32, #tpu.memory_space<vmem>>, vector<128x1xf32>
      tpu.vector_store %arg8[%c0_60, %c0_61], %109 {strides = array<i32>} : memref<128x1xf32, #tpu.memory_space<vmem>>, vector<128x1xf32>,
    } else {
    }
    %c0 = arith.constant 0 : index
    %c0_1 = arith.constant 0 : index
    %3 = vector.load %arg3[%c0, %c0_1] : memref<64x512xbf16, #tpu.memory_space<vmem>>, vector<64x512xbf16>
    %4 = arith.extf %3 : vector<64x512xbf16> to vector<64x512xf32>
    %5 = arith.mulf %4, %4 : vector<64x512xf32>
    %cst = arith.constant dense<0.000000e+00> : vector<512xf32>
    %6 = vector.multi_reduction <add>, %5, %cst [0] : vector<64x512xf32> to vector<512xf32>
    %7 = vector.shape_cast %6 : vector<512xf32> to vector<1x512xf32>
    %cst_2 = arith.constant 1.000000e-24 : f32
    %8 = vector.broadcast %cst_2 : f32 to vector<1x512xf32>
    %9 = arith.maximumf %7, %8 : vector<1x512xf32>
    %10 = math.rsqrt %9 : vector<1x512xf32>
    %11 = vector.broadcast %10 : vector<1x512xf32> to vector<64x512xf32>
    %12 = arith.mulf %4, %11 : vector<64x512xf32>
    %13 = arith.truncf %12 : vector<64x512xf32> to vector<64x512xbf16>
    %c0_3 = arith.constant 0 : index
    %c0_4 = arith.constant 0 : index
    %14 = vector.load %arg9[%c0_3, %c0_4] : memref<128x64xbf16, #tpu.memory_space<vmem>>, vector<128x64xbf16>
    %cst_5 = arith.constant dense<0.000000e+00> : vector<128x512xf32>
    %15 = tpu.matmul %14, %13, %cst_5 {dimension_numbers = #tpu.dot_dimension_numbers<[1], [0], [0], [1], [0, 0, 1, 1], [], []>} : vector<128x64xbf16>, vector<64x512xbf16>, vector<128x512xf32> -> vector<128x512xf32>
    %cst_6 = arith.constant -1.000000e+00 : f32
    %cst_7 = arith.constant 1.000000e+00 : f32
    %16 = vector.broadcast %cst_6 : f32 to vector<128x512xf32>
    %17 = arith.maximumf %16, %15 : vector<128x512xf32>
    %18 = vector.broadcast %cst_7 : f32 to vector<128x512xf32>
    %19 = arith.minimumf %18, %17 : vector<128x512xf32>
    %c0_8 = arith.constant 0 : index
    %c0_9 = arith.constant 0 : index
    %20 = vector.load %arg10[%c0_8, %c0_9] : memref<128x1xf32, #tpu.memory_space<vmem>>, vector<128x1xf32>
    %c0_10 = arith.constant 0 : index
    %c0_11 = arith.constant 0 : index
    %21 = vector.load %arg11[%c0_10, %c0_11] : memref<128x1xf32, #tpu.memory_space<vmem>>, vector<128x1xf32>
    %22 = arith.mulf %19, %19 : vector<128x512xf32>
    %cst_12 = arith.constant 1.000000e+00 : f32
    %23 = vector.broadcast %cst_12 : f32 to vector<128x512xf32>
    %24 = arith.subf %23, %22 : vector<128x512xf32>
    %25 = math.sqrt %24 : vector<128x512xf32>
    %26 = vector.broadcast %20 : vector<128x1xf32> to vector<128x512xf32>
    %27 = arith.mulf %19, %26 : vector<128x512xf32>
    %28 = vector.broadcast %21 : vector<128x1xf32> to vector<128x512xf32>
    %29 = arith.mulf %25, %28 : vector<128x512xf32>
    %30 = arith.subf %27, %29 : vector<128x512xf32>
    %cst_13 = arith.constant 0.000000e+00 : f32
    %31 = vector.broadcast %cst_13 : f32 to vector<128x1xf32>
    %32 = arith.subf %31, %20 : vector<128x1xf32>
    %33 = vector.broadcast %32 : vector<128x1xf32> to vector<128x512xf32>
    %34 = arith.cmpf ogt, %19, %33 : vector<128x512xf32>
    %cst_14 = arith.constant 0.000000e+00 : f32
    %35 = vector.broadcast %cst_14 : f32 to vector<128x512xf32>
    %36 = arith.subf %19, %35 : vector<128x512xf32>
    %37 = arith.select %34, %30, %36 : vector<128x512xi1>, vector<128x512xf32>
    %38 = tpu.iota {dimensions = array<i32: 1>} : vector<128x512xi32>
    %c512_i32 = arith.constant 512 : i32
    %39 = arith.muli %arg1, %c512_i32 : i32
    %40 = vector.broadcast %39 : i32 to vector<128x512xi32>
    %41 = arith.addi %38, %40 : vector<128x512xi32>
    %c0_15 = arith.constant 0 : index
    %c0_16 = arith.constant 0 : index
    %42 = vector.load %arg4[%c0_15, %c0_16] : memref<128x1xi32, #tpu.memory_space<vmem>>, vector<128x1xi32>
    %43 = vector.broadcast %42 : vector<128x1xi32> to vector<128x512xi32>
    %44 = arith.cmpi eq, %41, %43 : vector<128x512xi32>
    %45 = arith.select %44, %37, %19 : vector<128x512xi1>, vector<128x512xf32>
    %cst_17 = arith.constant 3.200000e+01 : f32
    %46 = vector.broadcast %cst_17 : f32 to vector<128x512xf32>
    %47 = arith.mulf %45, %46 : vector<128x512xf32>
    %c0_18 = arith.constant 0 : index
    %c0_19 = arith.constant 0 : index
    %48 = vector.load %arg6[%c0_18, %c0_19] : memref<128x1xf32, #tpu.memory_space<vmem>>, vector<128x1xf32>
    %cst_20 = arith.constant dense<0xFF800000> : vector<128xf32>
    %49 = vector.multi_reduction <maximumf>, %47, %cst_20 [1] : vector<128x512xf32> to vector<128xf32>
    %50 = vector.shape_cast %49 : vector<128xf32> to vector<128x1xf32>
    %51 = arith.maximumf %48, %50 : vector<128x1xf32>
    %52 = arith.subf %48, %51 : vector<128x1xf32>
    %53 = math.exp %52 : vector<128x1xf32>
    %54 = vector.broadcast %51 : vector<128x1xf32> to vector<128x512xf32>
    %55 = arith.subf %47, %54 : vector<128x512xf32>
    %56 = math.exp %55 : vector<128x512xf32>
    %c0_21 = arith.constant 0 : index
    %c0_22 = arith.constant 0 : index
    %57 = vector.load %arg7[%c0_21, %c0_22] : memref<128x1xf32, #tpu.memory_space<vmem>>, vector<128x1xf32>
    %58 = arith.mulf %57, %53 : vector<128x1xf32>
    %cst_23 = arith.constant dense<0.000000e+00> : vector<128xf32>
    %59 = vector.multi_reduction <add>, %56, %cst_23 [1] : vector<128x512xf32> to vector<128xf32>
    %60 = vector.shape_cast %59 : vector<128xf32> to vector<128x1xf32>
    %61 = arith.addf %58, %60 : vector<128x1xf32>
    %c0_24 = arith.constant 0 : index
    %c0_25 = arith.constant 0 : index
    %62 = vector.load %arg7[%c0_24, %c0_25] : memref<128x1xf32, #tpu.memory_space<vmem>>, vector<128x1xf32>
    tpu.vector_store %arg7[%c0_24, %c0_25], %61 {strides = array<i32>} : memref<128x1xf32, #tpu.memory_space<vmem>>, vector<128x1xf32>,
    %c0_26 = arith.constant 0 : index
    %c0_27 = arith.constant 0 : index
    %63 = vector.load %arg8[%c0_26, %c0_27] : memref<128x1xf32, #tpu.memory_space<vmem>>, vector<128x1xf32>
    %cst_28 = arith.constant 0.000000e+00 : f32
    %64 = vector.broadcast %cst_28 : f32 to vector<128x512xf32>
    %65 = arith.select %44, %47, %64 : vector<128x512xi1>, vector<128x512xf32>
    %cst_29 = arith.constant dense<0.000000e+00> : vector<128xf32>
    %66 = vector.multi_reduction <add>, %65, %cst_29 [1] : vector<128x512xf32> to vector<128xf32>
    %67 = vector.shape_cast %66 : vector<128xf32> to vector<128x1xf32>
    %68 = arith.addf %63, %67 : vector<128x1xf32>
    %c0_30 = arith.constant 0 : index
    %c0_31 = arith.constant 0 : index
    %69 = vector.load %arg8[%c0_30, %c0_31] : memref<128x1xf32, #tpu.memory_space<vmem>>, vector<128x1xf32>
    tpu.vector_store %arg8[%c0_30, %c0_31], %68 {strides = array<i32>} : memref<128x1xf32, #tpu.memory_space<vmem>>, vector<128x1xf32>,
    %c0_32 = arith.constant 0 : index
    %c0_33 = arith.constant 0 : index
    %70 = vector.load %arg6[%c0_32, %c0_33] : memref<128x1xf32, #tpu.memory_space<vmem>>, vector<128x1xf32>
    tpu.vector_store %arg6[%c0_32, %c0_33], %51 {strides = array<i32>} : memref<128x1xf32, #tpu.memory_space<vmem>>, vector<128x1xf32>,
    %c3_i32 = arith.constant 3 : i32
    %71 = arith.cmpi eq, %arg1, %c3_i32 : i32
    %72 = arith.extui %71 : i1 to i32
    %c0_i32_34 = arith.constant 0 : i32
    %73 = arith.cmpi ne, %72, %c0_i32_34 : i32
    scf.if %73 {
      %c0_35 = arith.constant 0 : index
      %c0_36 = arith.constant 0 : index
      %74 = vector.load %arg7[%c0_35, %c0_36] : memref<128x1xf32, #tpu.memory_space<vmem>>, vector<128x1xf32>
      %75 = math.log %74 : vector<128x1xf32>
      %c0_37 = arith.constant 0 : index
      %c0_38 = arith.constant 0 : index
      %76 = vector.load %arg6[%c0_37, %c0_38] : memref<128x1xf32, #tpu.memory_space<vmem>>, vector<128x1xf32>
      %77 = arith.addf %75, %76 : vector<128x1xf32>
      %c0_39 = arith.constant 0 : index
      %c0_40 = arith.constant 0 : index
      %78 = vector.load %arg8[%c0_39, %c0_40] : memref<128x1xf32, #tpu.memory_space<vmem>>, vector<128x1xf32>
      %79 = arith.subf %77, %78 : vector<128x1xf32>
      %c0_41 = arith.constant 0 : index
      %c0_42 = arith.constant 0 : index
      %80 = vector.load %arg12[%c0_41, %c0_42] : memref<128x1xf32, #tpu.memory_space<vmem>>, vector<128x1xf32>
      %cst_43 = arith.constant 2.000000e+01 : f32
      %81 = vector.broadcast %cst_43 : f32 to vector<128x1xf32>
      %82 = arith.mulf %81, %80 : vector<128x1xf32>
      %83 = arith.addf %79, %82 : vector<128x1xf32>
      %c0_44 = arith.constant 0 : index
      %c0_45 = arith.constant 0 : index
      %84 = vector.load %arg5[%c0_44, %c0_45] : memref<128x1xf32, #tpu.memory_space<vmem>>, vector<128x1xf32>
      tpu.vector_store %arg5[%c0_44, %c0_45], %83 {strides = array<i32>} : memref<128x1xf32, #tpu.memory_space<vmem>>, vector<128x1xf32>,
    } else {
    }
    return
  }
  func.func @transform_0(%arg0: i32, %arg1: i32) -> (i32, i32) {
    %c0_i32 = arith.constant 0 : i32
    %c0_i32_0 = arith.constant 0 : i32
    return %arg0, %c0_i32 : i32, i32
  }
  func.func @transform_1(%arg0: i32, %arg1: i32) -> (i32, i32) {
    %c0_i32 = arith.constant 0 : i32
    %c0_i32_0 = arith.constant 0 : i32
    return %c0_i32, %arg1 : i32, i32
  }
  func.func @transform_2(%arg0: i32, %arg1: i32) -> (i32, i32) {
    %c0_i32 = arith.constant 0 : i32
    %c0_i32_0 = arith.constant 0 : i32
    return %arg0, %c0_i32 : i32, i32
  }
  func.func @transform_3(%arg0: i32, %arg1: i32) -> (i32, i32) {
    %c0_i32 = arith.constant 0 : i32
    %c0_i32_0 = arith.constant 0 : i32
    return %arg0, %c0_i32 : i32, i32
  }
}

</mosaic_0001>

<llo_original>
// kernel: magface_loss.1
$region0: #{magface_loss.1}
  #allocation0 [shape = 'u32[]', space=smem, size = 0x4, offset = 0x4, fixed_abs, tag = 'smem constant byte address 0x4 - core index']
  #allocation1 [shape = 'u32[144,128]{1,0:T(1,128)}', space=vmem, size = 0x12000, scoped, tag = 'internal scratch']
  #allocation2 [shape = 'f32[128,1]{1,0:T(8,128)}', space=vmem, size = 0x10000, scoped, tag = 'scratch operand']
  #allocation3 [shape = 'f32[128,1]{1,0:T(8,128)}', space=vmem, size = 0x10000, scoped, tag = 'scratch operand']
  #allocation4 [shape = 'f32[128,1]{1,0:T(8,128)}', space=vmem, size = 0x10000, scoped, tag = 'scratch operand']
  #allocation5 [shape = 'bf16[128,64]{1,0:T(16,128)(2,1)}', space=vmem, size = 0x8000, scoped, tag = 'scratch operand']
  #allocation6 [shape = 'f32[128,1]{1,0:T(8,128)}', space=vmem, size = 0x10000, scoped, tag = 'scratch operand']
  #allocation7 [shape = 'f32[128,1]{1,0:T(8,128)}', space=vmem, size = 0x10000, scoped, tag = 'scratch operand']
  #allocation8 [shape = 'f32[128,1]{1,0:T(8,128)}', space=vmem, size = 0x10000, scoped, tag = 'scratch operand']
  %s0 = inlined_call_operand.vmem [shape: f32[256,64], index: 0, kind: input, shape index: {}]
  %s1 = inlined_call_operand.vmem [shape: bf16[64,2048], index: 1, kind: input, shape index: {}]
  %s2 = inlined_call_operand.vmem [shape: s32[256,1], index: 2, kind: input, shape index: {}]
  %s3 = inlined_call_operand.vmem [shape: f32[256,1], index: 3, kind: output, shape index: {}]
  %s4 = sld [smem:[#allocation0]]
  $region76: #{magface_loss.1} parent=0
    _
  %s6 = ssub.s32 1, %s4
  %s7 = scalar_select 0, %s6, %s4
  $region1: #{magface_loss.1} parent=0
    #allocation9 [shape = 'u8[131072]{0}', space=vmem, size = 0x20000, scoped, tag = 'input window, operand 1']
    loop: start=0, step=1, limit=10
    $region2: #{magface_loss.1} parent=1 // loop_pre_header
      _
    $region3: #{magface_loss.1} parent=1 // loop_header
      %s9 = sphi 0, %s13
      %p10 = scmp.ge.s32.totalorder %s9, 10
      %s16 = sphi 0, %s28
      %s17 = sphi 0, %s24
      %s18 = sphi 0, %s16
      %s19 = sphi 0, %s17
      %s20 = sphi 0, %s18
      %s21 = sphi 0, %s19
      %s31 = sphi 0, %s33
      %s34 = sphi 0, %s31
      %s35 = sphi 0, %s34
      %s51 = sphi 0, %s35
      %s57 = sphi 0, %s59
      %s60 = sphi 0, %s57
      %s61 = sphi 0, %s60
      %s77 = sphi 0, %s61
      %s83 = sphi 0, %s85
      %s86 = sphi 0, %s83
      %s87 = sphi 0, %s86
      %s103 = sphi 0, %s87
      %s109 = sphi 0, %s111
      %s112 = sphi 0, %s109
      %s113 = sphi 0, %s112
      %s129 = sphi 0, %s113
    $region4: #{magface_loss.1} parent=1 // loop_header_branch
      %12 = sbr.rel (%p10) target = $region8
    $region5: #{magface_loss.1} parent=1 // loop_body
      %s14 = ssub.s32 %s9, 1
      %s15 = ssub.s32 %s9, 2
      %s22 = sadd.s32 1, %s17
      %p23 = scmp.ge.s32.totalorder %s22, 4
      %s24 = scalar_select %p23, 0, %s22
      %s25 = sadd.s32 1, %s16
      %s26 = scalar_select %p23, %s25, %s16
      %p27 = scmp.ge.s32.totalorder %s26, 2
      %s28 = scalar_select %p27, 0, %s26
      %s29 = ssub.s32 %s16, %s28
      %p30 = scmp.eq.s32.totalorder %s29, 0
      %s32 = sadd.s32 %s31, 1
      %s33 = scalar_select %p30, %s31, %s32
      %p36 = pneg %p30
      %p37 = scmp.eq.s32.totalorder %s9, 7
      %p38 = por %p36, %p37
      %p39 = scmp.ne.s32.totalorder %s31, %s34
      %p40 = scmp.eq.s32.totalorder %s9, 0
      %p41 = por %p39, %p40
      %p42 = scmp.ne.s32.totalorder %s31, %s34
      %p43 = scmp.eq.s32.totalorder %s14, 7
      %p44 = por %p42, %p43
      %p45 = scmp.ne.s32.totalorder %s34, %s35
      %p46 = scmp.eq.s32.totalorder %s14, 0
      %p47 = por %p45, %p46
      %p48 = scmp.ne.s32.totalorder %s34, %s35
      %p49 = scmp.eq.s32.totalorder %s15, 7
      %p50 = por %p48, %p49
      %p52 = scmp.ne.s32.totalorder %s35, %s51
      %p53 = scmp.eq.s32.totalorder %s15, 0
      %p54 = por %p52, %p53
      %s55 = ssub.s32 %s17, %s24
      %p56 = scmp.eq.s32.totalorder %s55, 0
      %s58 = sadd.s32 %s57, 1
      %s59 = scalar_select %p56, %s57, %s58
      %p62 = pneg %p56
      %p63 = scmp.eq.s32.totalorder %s9, 7
      %p64 = por %p62, %p63
      %p65 = scmp.ne.s32.totalorder %s57, %s60
      %p66 = scmp.eq.s32.totalorder %s9, 0
      %p67 = por %p65, %p66
      %p68 = scmp.ne.s32.totalorder %s57, %s60
      %p69 = scmp.eq.s32.totalorder %s14, 7
      %p70 = por %p68, %p69
      %p71 = scmp.ne.s32.totalorder %s60, %s61
      %p72 = scmp.eq.s32.totalorder %s14, 0
      %p73 = por %p71, %p72
      %p74 = scmp.ne.s32.totalorder %s60, %s61
      %p75 = scmp.eq.s32.totalorder %s15, 7
      %p76 = por %p74, %p75
      %p78 = scmp.ne.s32.totalorder %s61, %s77
      %p79 = scmp.eq.s32.totalorder %s15, 0
      %p80 = por %p78, %p79
      %s81 = ssub.s32 %s16, %s28
      %p82 = scmp.eq.s32.totalorder %s81, 0
      %s84 = sadd.s32 %s83, 1
      %s85 = scalar_select %p82, %s83, %s84
      %p88 = pneg %p82
      %p89 = scmp.eq.s32.totalorder %s9, 7
      %p90 = por %p88, %p89
      %p91 = scmp.ne.s32.totalorder %s83, %s86
      %p92 = scmp.eq.s32.totalorder %s9, 0
      %p93 = por %p91, %p92
      %p94 = scmp.ne.s32.totalorder %s83, %s86
      %p95 = scmp.eq.s32.totalorder %s14, 7
      %p96 = por %p94, %p95
      %p97 = scmp.ne.s32.totalorder %s86, %s87
      %p98 = scmp.eq.s32.totalorder %s14, 0
      %p99 = por %p97, %p98
      %p100 = scmp.ne.s32.totalorder %s86, %s87
      %p101 = scmp.eq.s32.totalorder %s15, 7
      %p102 = por %p100, %p101
      %p104 = scmp.ne.s32.totalorder %s87, %s103
      %p105 = scmp.eq.s32.totalorder %s15, 0
      %p106 = por %p104, %p105
      %s107 = ssub.s32 %s16, %s28
      %p108 = scmp.eq.s32.totalorder %s107, 0
      %s110 = sadd.s32 %s109, 1
      %s111 = scalar_select %p108, %s109, %s110
      %p114 = pneg %p108
      %p115 = scmp.eq.s32.totalorder %s9, 7
      %p116 = por %p114, %p115
      %p117 = scmp.ne.s32.totalorder %s109, %s112
      %p118 = scmp.eq.s32.totalorder %s9, 0
      %p119 = por %p117, %p118
      %p120 = scmp.ne.s32.totalorder %s109, %s112
      %p121 = scmp.eq.s32.totalorder %s14, 7
      %p122 = por %p120, %p121
      %p123 = scmp.ne.s32.totalorder %s112, %s113
      %p124 = scmp.eq.s32.totalorder %s14, 0
      %p125 = por %p123, %p124
      %p126 = scmp.ne.s32.totalorder %s112, %s113
      %p127 = scmp.eq.s32.totalorder %s15, 7
      %p128 = por %p126, %p127
      %p130 = scmp.ne.s32.totalorder %s113, %s129
      %p131 = scmp.eq.s32.totalorder %s15, 0
      %p132 = por %p130, %p131
      %p133 = scmp.le.s32.totalorder 1, %s9
      %p134 = scmp.lt.s32.totalorder %s9, 9
      %p135 = pnand %p133, %p134
      %p136 = pneg %p135
      // Predicated region
      $region9: #{magface_loss.1} parent=5 // pred_check
        _
      $region10: #{magface_loss.1} parent=5 // pred_check_branch
        %138 = sbr.rel (%p135) target = $region12
      $region11: #{magface_loss.1} parent=5 // pred_region
        %s139 = ssub.s32 %s9, 1
      $region12: #{magface_loss.1} parent=5 // pred_fallthru
        _
      %p140 = scmp.lt.s32.totalorder %s9, 8
      // Predicated region
      $region13: #{magface_loss.1} parent=5 // pred_check
        %p141 = pneg %p140
      $region14: #{magface_loss.1} parent=5 // pred_check_branch
        %143 = sbr.rel (%p141) target = $region16
      $region15: #{magface_loss.1} parent=5 // pred_region
        // Predicated region
        $region17: #{magface_loss.1} parent=15 // pred_check
          %p144 = pneg %p41
        $region18: #{magface_loss.1} parent=15 // pred_check_branch
          %146 = sbr.rel (%p144) target = $region20
        $region19: #{magface_loss.1} parent=15 // pred_region
          %s147 = smul.u32 16, %s16
          %p148 = scmp.lt.s32.totalorder %s147, 31
          %s149 = scalar_select %p148, %s147, 31
          %s150 = smul.addr %s149, 8
          %s151 = scalar_lea.vmem %s0, %s150
          %s152 = smul.u32 16, %s16
        $region20: #{magface_loss.1} parent=15 // pred_fallthru
          _
        // Predicated region
        $region21: #{magface_loss.1} parent=15 // pred_check
          %p153 = pneg %p67
        $region22: #{magface_loss.1} parent=15 // pred_check_branch
          %155 = sbr.rel (%p153) target = $region24
        $region23: #{magface_loss.1} parent=15 // pred_region
          %s156 = sand.u32 %s57, 1
          %s157 = sand.u32 %s57, 1
          %s158 = smul.addr %s157, 128
          %s159 = scalar_lea.vmem [#allocation9], %s158
          %s160 = smul.u32 4, %s17
          %s161 = smul.addr %s160, 4
          %s162 = scalar_lea.vmem %s1, %s161
          // Predicated region
          $region25: #{magface_loss.1} parent=23 // pred_check
            _
          $region26: #{magface_loss.1} parent=23 // pred_check_branch
            %164 = sbr.rel (0) target = $region28
          $region27: #{magface_loss.1} parent=23 // pred_region
            // Predicated region
            $region29: #{magface_loss.1} parent=27 // pred_check
              _
            $region30: #{magface_loss.1} parent=27 // pred_check_branch
              %166 = sbr.rel (0) target = $region32
            $region31: #{magface_loss.1} parent=27 // pred_region
              loop: start=0, step=1, limit=1
              $region33: #{magface_loss.1} parent=31 // loop_pre_header
                _
              $region34: #{magface_loss.1} parent=31 // loop_header
                %s168 = sphi 0, %s172
                %p169 = scmp.ge.s32.totalorder %s168, 1
                %s173 = sphi %s162, %s162
                %s174 = sphi %s159, %s159
              $region35: #{magface_loss.1} parent=31 // loop_header_branch
                %171 = sbr.rel (%p169) target = $region39
              $region36: #{magface_loss.1} parent=31 // loop_body
                %v175 = vld [vmem:[%s173] sm:$0xff]
                %176 = vst [vmem:[%s174] sm:$0xff] %v175
                %v177 = vld [vmem:[%s173 + $0x8] sm:$0xff]
                %178 = vst [vmem:[%s174 + $0x8] sm:$0xff] %v177
                %v179 = vld [vmem:[%s173 + $0x40] sm:$0xff]
                %180 = vst [vmem:[%s174 + $0x10] sm:$0xff] %v179
                %v181 = vld [vmem:[%s173 + $0x48] sm:$0xff]
                %182 = vst [vmem:[%s174 + $0x18] sm:$0xff] %v181
                %v183 = vld [vmem:[%s173 + $0x80] sm:$0xff]
                %184 = vst [vmem:[%s174 + $0x20] sm:$0xff] %v183
                %v185 = vld [vmem:[%s173 + $0x88] sm:$0xff]
                %186 = vst [vmem:[%s174 + $0x28] sm:$0xff] %v185
                %v187 = vld [vmem:[%s173 + $0xc0] sm:$0xff]
                %188 = vst [vmem:[%s174 + $0x30] sm:$0xff] %v187
                %v189 = vld [vmem:[%s173 + $0xc8] sm:$0xff]
                %190 = vst [vmem:[%s174 + $0x38] sm:$0xff] %v189
                %v191 = vld [vmem:[%s173 + $0x100] sm:$0xff]
                %192 = vst [vmem:[%s174 + $0x40] sm:$0xff] %v191
                %v193 = vld [vmem:[%s173 + $0x108] sm:$0xff]
                %194 = vst [vmem:[%s174 + $0x48] sm:$0xff] %v193
                %v195 = vld [vmem:[%s173 + $0x140] sm:$0xff]
                %196 = vst [vmem:[%s174 + $0x50] sm:$0xff] %v195
                %v197 = vld [vmem:[%s173 + $0x148] sm:$0xff]
                %198 = vst [vmem:[%s174 + $0x58] sm:$0xff] %v197
                %v199 = vld [vmem:[%s173 + $0x180] sm:$0xff]
                %200 = vst [vmem:[%s174 + $0x60] sm:$0xff] %v199
                %v201 = vld [vmem:[%s173 + $0x188] sm:$0xff]
                %202 = vst [vmem:[%s174 + $0x68] sm:$0xff] %v201
                %v203 = vld [vmem:[%s173 + $0x1c0] sm:$0xff]
                %204 = vst [vmem:[%s174 + $0x70] sm:$0xff] %v203
                %v205 = vld [vmem:[%s173 + $0x1c8] sm:$0xff]
                %206 = vst [vmem:[%s174 + $0x78] sm:$0xff] %v205
              $region37: #{magface_loss.1} parent=31 // loop_footer
                %s172 = sadd.s32 1, %s168
              $region38: #{magface_loss.1} parent=31 // loop_footer_branch
                %167 = sbr.rel target = $region34
              $region39: #{magface_loss.1} parent=31 // loop_exit
                _
            $region32: #{magface_loss.1} parent=27 // pred_fallthru
              _
            // Predicated region
            $region40: #{magface_loss.1} parent=27 // pred_check
              _
            $region41: #{magface_loss.1} parent=27 // pred_check_branch
              %208 = sbr.rel target = $region43
            $region42: #{magface_loss.1} parent=27 // pred_region
              _
            $region43: #{magface_loss.1} parent=27 // pred_fallthru
              _
          $region28: #{magface_loss.1} parent=23 // pred_fallthru
            _
          %209 = vnop
        $region24: #{magface_loss.1} parent=15 // pred_fallthru
          _
        // Predicated region
        $region44: #{magface_loss.1} parent=15 // pred_check
          %p210 = pneg %p93
        $region45: #{magface_loss.1} parent=15 // pred_check_branch
          %212 = sbr.rel (%p210) target = $region47
        $region46: #{magface_loss.1} parent=15 // pred_region
          %s213 = smul.u32 16, %s16
          %p214 = scmp.lt.s32.totalorder %s213, 31
          %s215 = scalar_select %p214, %s213, 31
          %s216 = smul.addr %s215, 8
          %s217 = scalar_lea.vmem %s2, %s216
          %s218 = smul.u32 16, %s16
        $region47: #{magface_loss.1} parent=15 // pred_fallthru
          _
      $region16: #{magface_loss.1} parent=5 // pred_fallthru
        _
      %p219 = scmp.le.s32.totalorder 1, %s9
      %p220 = scmp.lt.s32.totalorder %s9, 9
      %p221 = pnand %p219, %p220
      %p222 = pneg %p221
      // Predicated region
      $region48: #{magface_loss.1} parent=5 // pred_check
        _
      $region49: #{magface_loss.1} parent=5 // pred_check_branch
        %224 = sbr.rel (%p221) target = $region51
      $region50: #{magface_loss.1} parent=5 // pred_region
        %s225 = ssub.s32 %s9, 1
        %s226 = sand.u32 %s60, 1
        %s227 = sand.u32 %s60, 1
        %s228 = smul.addr %s227, 128
        %s229 = scalar_lea.vmem [#allocation9], %s228
        // Predicated region
        $region52: #{magface_loss.1} parent=50 // pred_check
          %p230 = pneg %p73
        $region53: #{magface_loss.1} parent=50 // pred_check_branch
          %232 = sbr.rel (%p230) target = $region55
        $region54: #{magface_loss.1} parent=50 // pred_region
          _
        $region55: #{magface_loss.1} parent=50 // pred_fallthru
          _
        %s233 = smul.u32 16, %s18
        %p234 = scmp.lt.s32.totalorder %s233, 31
        %s235 = scalar_select %p234, %s233, 31
        %s236 = smul.addr %s235, 8
        %s237 = scalar_lea.vmem %s0, %s236
        %p238 = pneg %p47
        %p239 = pneg %p44
        %s240 = sand.u32 %s60, 1
        %s241 = sand.u32 %s60, 1
        %s242 = smul.addr %s241, 128
        %s243 = scalar_lea.vmem [#allocation9], %s242
        %p244 = pneg %p73
        %p245 = pneg %p70
        %s246 = smul.u32 16, %s18
        %p247 = scmp.lt.s32.totalorder %s246, 31
        %s248 = scalar_select %p247, %s246, 31
        %s249 = smul.addr %s248, 8
        %s250 = scalar_lea.vmem %s2, %s249
        %p251 = pneg %p99
        %p252 = pneg %p96
        %p253 = pneg %p125
        %p254 = pneg %p122
        %s255 = smul.u32 16, %s18
        %p256 = scmp.lt.s32.totalorder %s255, 31
        %s257 = scalar_select %p256, %s255, 31
        %s258 = smul.addr %s257, 8
        %s259 = scalar_lea.vmem %s3, %s258
        %s260 = smul.u32 16, %s18
        %p261 = scmp.lt.s32.totalorder %s260, 31
        %s262 = scalar_select %p261, %s260, 31
        %s263 = smul.addr %s262, 8
        %s264 = scalar_lea.vmem %s0, %s263
        %s265 = smul.u32 16, %s18
        %s266 = smul.u32 4, %s19
        %s267 = smul.u32 16, %s18
        %p268 = scmp.lt.s32.totalorder %s267, 31
        %s269 = scalar_select %p268, %s267, 31
        %s270 = smul.addr %s269, 8
        %s271 = scalar_lea.vmem %s2, %s270
        %s272 = smul.u32 16, %s18
        %s273 = smul.u32 16, %s18
        %p274 = scmp.lt.s32.totalorder %s273, 31
        %s275 = scalar_select %p274, %s273, 31
        %s276 = smul.addr %s275, 8
        %s277 = scalar_lea.vmem %s3, %s276
        %s278 = smul.u32 16, %s18
        %p280 = scmp.eq.s32.totalorder %s19, 0
        // Predicated region
        $region56: #{magface_loss.1} parent=50 // pred_check
          %p281 = pneg %p280
        $region57: #{magface_loss.1} parent=50 // pred_check_branch
          %283 = sbr.rel (%p281) target = $region59
        $region58: #{magface_loss.1} parent=50 // pred_region
          %v284 = vld [vmem:[%s264] sm:$0xff]
          %v285 = vld [vmem:[%s264 + $0x8] sm:$0xff]
          %v286 = vld [vmem:[%s264 + $0x10] sm:$0xff]
          %v287 = vld [vmem:[%s264 + $0x18] sm:$0xff]
          %v288 = vld [vmem:[%s264 + $0x20] sm:$0xff]
          %v289 = vld [vmem:[%s264 + $0x28] sm:$0xff]
          %v290 = vld [vmem:[%s264 + $0x30] sm:$0xff]
          %v291 = vld [vmem:[%s264 + $0x38] sm:$0xff]
          %v292 = vld [vmem:[%s264 + $0x40] sm:$0xff]
          %v293 = vld [vmem:[%s264 + $0x48] sm:$0xff]
          %v294 = vld [vmem:[%s264 + $0x50] sm:$0xff]
          %v295 = vld [vmem:[%s264 + $0x58] sm:$0xff]
          %v296 = vld [vmem:[%s264 + $0x60] sm:$0xff]
          %v297 = vld [vmem:[%s264 + $0x68] sm:$0xff]
          %v298 = vld [vmem:[%s264 + $0x70] sm:$0xff]
          %v299 = vld [vmem:[%s264 + $0x78] sm:$0xff]
          %v300 = vmul.f32 %v284, %v284
          %v301 = vmul.f32 %v285, %v285
          %v302 = vmul.f32 %v286, %v286
          %v303 = vmul.f32 %v287, %v287
          %v304 = vmul.f32 %v288, %v288
          %v305 = vmul.f32 %v289, %v289
          %v306 = vmul.f32 %v290, %v290
          %v307 = vmul.f32 %v291, %v291
          %v308 = vmul.f32 %v292, %v292
          %v309 = vmul.f32 %v293, %v293
          %v310 = vmul.f32 %v294, %v294
          %v311 = vmul.f32 %v295, %v295
          %v312 = vmul.f32 %v296, %v296
          %v313 = vmul.f32 %v297, %v297
          %v314 = vmul.f32 %v298, %v298
          %v315 = vmul.f32 %v299, %v299
          %vm316 = vcmask 523264
          %v317 = vsel %vm316, %v300, 0.0
          %318 = vadd.xlane.f32.xlu0 %v317
          %v319 = vpop.xlane.xlu0 %318
          %v320 = vsel %vm316, %v301, 0.0
          %321 = vadd.xlane.f32.xlu0 %v320
          %v322 = vpop.xlane.xlu0 %321
          %v323 = vsel %vm316, %v302, 0.0
          %324 = vadd.xlane.f32.xlu0 %v323
          %v325 = vpop.xlane.xlu0 %324
          %v326 = vsel %vm316, %v303, 0.0
          %327 = vadd.xlane.f32.xlu0 %v326
          %v328 = vpop.xlane.xlu0 %327
          %v329 = vsel %vm316, %v304, 0.0
          %330 = vadd.xlane.f32.xlu0 %v329
          %v331 = vpop.xlane.xlu0 %330
          %v332 = vsel %vm316, %v305, 0.0
          %333 = vadd.xlane.f32.xlu0 %v332
          %v334 = vpop.xlane.xlu0 %333
          %v335 = vsel %vm316, %v306, 0.0
          %336 = vadd.xlane.f32.xlu0 %v335
          %v337 = vpop.xlane.xlu0 %336
          %v338 = vsel %vm316, %v307, 0.0
          %339 = vadd.xlane.f32.xlu0 %v338
          %v340 = vpop.xlane.xlu0 %339
          %v341 = vsel %vm316, %v308, 0.0
          %342 = vadd.xlane.f32.xlu0 %v341
          %v343 = vpop.xlane.xlu0 %342
          %v344 = vsel %vm316, %v309, 0.0
          %345 = vadd.xlane.f32.xlu0 %v344
          %v346 = vpop.xlane.xlu0 %345
          %v347 = vsel %vm316, %v310, 0.0
          %348 = vadd.xlane.f32.xlu0 %v347
          %v349 = vpop.xlane.xlu0 %348
          %v350 = vsel %vm316, %v311, 0.0
          %351 = vadd.xlane.f32.xlu0 %v350
          %v352 = vpop.xlane.xlu0 %351
          %v353 = vsel %vm316, %v312, 0.0
          %354 = vadd.xlane.f32.xlu0 %v353
          %v355 = vpop.xlane.xlu0 %354
          %v356 = vsel %vm316, %v313, 0.0
          %357 = vadd.xlane.f32.xlu0 %v356
          %v358 = vpop.xlane.xlu0 %357
          %v359 = vsel %vm316, %v314, 0.0
          %360 = vadd.xlane.f32.xlu0 %v359
          %v361 = vpop.xlane.xlu0 %360
          %v362 = vsel %vm316, %v315, 0.0
          %363 = vadd.xlane.f32.xlu0 %v362
          %v364 = vpop.xlane.xlu0 %363
          %v365 = vrsqrt.pop %v319
          %v366 = vmul.f32 %v319, %v365
          %vm367 = vcmp.eq.f32.partialorder %v319, inf
          %v368 = vsel %vm367, %v319, %v366
          %vm369 = vcmp.eq.f32.partialorder %v319, 0.0
          %v370 = vand.u32 %v319, 2147483648
          %v371 = vsel %vm369, %v370, %v368
          %v372 = vrsqrt.pop %v322
          %v373 = vmul.f32 %v322, %v372
          %vm374 = vcmp.eq.f32.partialorder %v322, inf
          %v375 = vsel %vm374, %v322, %v373
          %vm376 = vcmp.eq.f32.partialorder %v322, 0.0
          %v377 = vand.u32 %v322, 2147483648
          %v378 = vsel %vm376, %v377, %v375
          %v379 = vrsqrt.pop %v325
          %v380 = vmul.f32 %v325, %v379
          %vm381 = vcmp.eq.f32.partialorder %v325, inf
          %v382 = vsel %vm381, %v325, %v380
          %vm383 = vcmp.eq.f32.partialorder %v325, 0.0
          %v384 = vand.u32 %v325, 2147483648
          %v385 = vsel %vm383, %v384, %v382
          %v386 = vrsqrt.pop %v328
          %v387 = vmul.f32 %v328, %v386
          %vm388 = vcmp.eq.f32.partialorder %v328, inf
          %v389 = vsel %vm388, %v328, %v387
          %vm390 = vcmp.eq.f32.partialorder %v328, 0.0
          %v391 = vand.u32 %v328, 2147483648
          %v392 = vsel %vm390, %v391, %v389
          %v393 = vrsqrt.pop %v331
          %v394 = vmul.f32 %v331, %v393
          %vm395 = vcmp.eq.f32.partialorder %v331, inf
          %v396 = vsel %vm395, %v331, %v394
          %vm397 = vcmp.eq.f32.partialorder %v331, 0.0
          %v398 = vand.u32 %v331, 2147483648
          %v399 = vsel %vm397, %v398, %v396
          %v400 = vrsqrt.pop %v334
          %v401 = vmul.f32 %v334, %v400
          %vm402 = vcmp.eq.f32.partialorder %v334, inf
          %v403 = vsel %vm402, %v334, %v401
          %vm404 = vcmp.eq.f32.partialorder %v334, 0.0
          %v405 = vand.u32 %v334, 2147483648
          %v406 = vsel %vm404, %v405, %v403
          %v407 = vrsqrt.pop %v337
          %v408 = vmul.f32 %v337, %v407
          %vm409 = vcmp.eq.f32.partialorder %v337, inf
          %v410 = vsel %vm409, %v337, %v408
          %vm411 = vcmp.eq.f32.partialorder %v337, 0.0
          %v412 = vand.u32 %v337, 2147483648
          %v413 = vsel %vm411, %v412, %v410
          %v414 = vrsqrt.pop %v340
          %v415 = vmul.f32 %v340, %v414
          %vm416 = vcmp.eq.f32.partialorder %v340, inf
          %v417 = vsel %vm416, %v340, %v415
          %vm418 = vcmp.eq.f32.partialorder %v340, 0.0
          %v419 = vand.u32 %v340, 2147483648
          %v420 = vsel %vm418, %v419, %v417
          %v421 = vrsqrt.pop %v343
          %v422 = vmul.f32 %v343, %v421
          %vm423 = vcmp.eq.f32.partialorder %v343, inf
          %v424 = vsel %vm423, %v343, %v422
          %vm425 = vcmp.eq.f32.partialorder %v343, 0.0
          %v426 = vand.u32 %v343, 2147483648
          %v427 = vsel %vm425, %v426, %v424
          %v428 = vrsqrt.pop %v346
          %v429 = vmul.f32 %v346, %v428
          %vm430 = vcmp.eq.f32.partialorder %v346, inf
          %v431 = vsel %vm430, %v346, %v429
          %vm432 = vcmp.eq.f32.partialorder %v346, 0.0
          %v433 = vand.u32 %v346, 2147483648
          %v434 = vsel %vm432, %v433, %v431
          %v435 = vrsqrt.pop %v349
          %v436 = vmul.f32 %v349, %v435
          %vm437 = vcmp.eq.f32.partialorder %v349, inf
          %v438 = vsel %vm437, %v349, %v436
          %vm439 = vcmp.eq.f32.partialorder %v349, 0.0
          %v440 = vand.u32 %v349, 2147483648
          %v441 = vsel %vm439, %v440, %v438
          %v442 = vrsqrt.pop %v352
          %v443 = vmul.f32 %v352, %v442
          %vm444 = vcmp.eq.f32.partialorder %v352, inf
          %v445 = vsel %vm444, %v352, %v443
          %vm446 = vcmp.eq.f32.partialorder %v352, 0.0
          %v447 = vand.u32 %v352, 2147483648
          %v448 = vsel %vm446, %v447, %v445
          %v449 = vrsqrt.pop %v355
          %v450 = vmul.f32 %v355, %v449
          %vm451 = vcmp.eq.f32.partialorder %v355, inf
          %v452 = vsel %vm451, %v355, %v450
          %vm453 = vcmp.eq.f32.partialorder %v355, 0.0
          %v454 = vand.u32 %v355, 2147483648
          %v455 = vsel %vm453, %v454, %v452
          %v456 = vrsqrt.pop %v358
          %v457 = vmul.f32 %v358, %v456
          %vm458 = vcmp.eq.f32.partialorder %v358, inf
          %v459 = vsel %vm458, %v358, %v457
          %vm460 = vcmp.eq.f32.partialorder %v358, 0.0
          %v461 = vand.u32 %v358, 2147483648
          %v462 = vsel %vm460, %v461, %v459
          %v463 = vrsqrt.pop %v361
          %v464 = vmul.f32 %v361, %v463
          %vm465 = vcmp.eq.f32.partialorder %v361, inf
          %v466 = vsel %vm465, %v361, %v464
          %vm467 = vcmp.eq.f32.partialorder %v361, 0.0
          %v468 = vand.u32 %v361, 2147483648
          %v469 = vsel %vm467, %v468, %v466
          %v470 = vrsqrt.pop %v364
          %v471 = vmul.f32 %v364, %v470
          %vm472 = vcmp.eq.f32.partialorder %v364, inf
          %v473 = vsel %vm472, %v364, %v471
          %vm474 = vcmp.eq.f32.partialorder %v364, 0.0
          %v475 = vand.u32 %v364, 2147483648
          %v476 = vsel %vm474, %v475, %v473
          %v477 = vmax.f32 %v371, 10.0
          %v478 = vmax.f32 %v378, 10.0
          %v479 = vmax.f32 %v385, 10.0
          %v480 = vmax.f32 %v392, 10.0
          %v481 = vmax.f32 %v399, 10.0
          %v482 = vmax.f32 %v406, 10.0
          %v483 = vmax.f32 %v413, 10.0
          %v484 = vmax.f32 %v420, 10.0
          %v485 = vmax.f32 %v427, 10.0
          %v486 = vmax.f32 %v434, 10.0
          %v487 = vmax.f32 %v441, 10.0
          %v488 = vmax.f32 %v448, 10.0
          %v489 = vmax.f32 %v455, 10.0
          %v490 = vmax.f32 %v462, 10.0
          %v491 = vmax.f32 %v469, 10.0
          %v492 = vmax.f32 %v476, 10.0
          %v493 = vmin.f32 %v477, 110.0
          %v494 = vmin.f32 %v478, 110.0
          %v495 = vmin.f32 %v479, 110.0
          %v496 = vmin.f32 %v480, 110.0
          %v497 = vmin.f32 %v481, 110.0
          %v498 = vmin.f32 %v482, 110.0
          %v499 = vmin.f32 %v483, 110.0
          %v500 = vmin.f32 %v484, 110.0
          %v501 = vmin.f32 %v485, 110.0
          %v502 = vmin.f32 %v486, 110.0
          %v503 = vmin.f32 %v487, 110.0
          %v504 = vmin.f32 %v488, 110.0
          %v505 = vmin.f32 %v489, 110.0
          %v506 = vmin.f32 %v490, 110.0
          %v507 = vmin.f32 %v491, 110.0
          %v508 = vmin.f32 %v492, 110.0
          %v509 = vsub.f32 %v493, 10.0
          %v510 = vsub.f32 %v494, 10.0
          %v511 = vsub.f32 %v495, 10.0
          %v512 = vsub.f32 %v496, 10.0
          %v513 = vsub.f32 %v497, 10.0
          %v514 = vsub.f32 %v498, 10.0
          %v515 = vsub.f32 %v499, 10.0
          %v516 = vsub.f32 %v500, 10.0
          %v517 = vsub.f32 %v501, 10.0
          %v518 = vsub.f32 %v502, 10.0
          %v519 = vsub.f32 %v503, 10.0
          %v520 = vsub.f32 %v504, 10.0
          %v521 = vsub.f32 %v505, 10.0
          %v522 = vsub.f32 %v506, 10.0
          %v523 = vsub.f32 %v507, 10.0
          %v524 = vsub.f32 %v508, 10.0
          %v525 = vmul.f32 %v509, 0.0035
          %v526 = vmul.f32 %v510, 0.0035
          %v527 = vmul.f32 %v511, 0.0035
          %v528 = vmul.f32 %v512, 0.0035
          %v529 = vmul.f32 %v513, 0.0035
          %v530 = vmul.f32 %v514, 0.0035
          %v531 = vmul.f32 %v515, 0.0035
          %v532 = vmul.f32 %v516, 0.0035
          %v533 = vmul.f32 %v517, 0.0035
          %v534 = vmul.f32 %v518, 0.0035
          %v535 = vmul.f32 %v519, 0.0035
          %v536 = vmul.f32 %v520, 0.0035
          %v537 = vmul.f32 %v521, 0.0035
          %v538 = vmul.f32 %v522, 0.0035
          %v539 = vmul.f32 %v523, 0.0035
          %v540 = vmul.f32 %v524, 0.0035
          %v541 = vadd.f32 %v525, 0.45
          %v542 = vadd.f32 %v526, 0.45
          %v543 = vadd.f32 %v527, 0.45
          %v544 = vadd.f32 %v528, 0.45
          %v545 = vadd.f32 %v529, 0.45
          %v546 = vadd.f32 %v530, 0.45
          %v547 = vadd.f32 %v531, 0.45
          %v548 = vadd.f32 %v532, 0.45
          %v549 = vadd.f32 %v533, 0.45
          %v550 = vadd.f32 %v534, 0.45
          %v551 = vadd.f32 %v535, 0.45
          %v552 = vadd.f32 %v536, 0.45
          %v553 = vadd.f32 %v537, 0.45
          %v554 = vadd.f32 %v538, 0.45
          %v555 = vadd.f32 %v539, 0.45
          %v556 = vadd.f32 %v540, 0.45
          %v557 = vand.u32 2147483647, %v541
          %vm558 = vcmp.le.f32.partialorder %v557, 0.7853982
          %vm559 = vcmp.lt.s32.totalorder %v541, 0
          %v560 = vand.u32 %v541, 2139095040
          %v561 = vshrl.u32 %v560, 23
          %v562 = vsub.s32 %v561, 127
          %v563 = vand.u32 2147483647, %v541
          %v564 = vand.u32 %v563, 8388607
          %v565 = vor.u32 %v564, 8388608
          %v566 = vsub.s32 0, %v565
          %v567 = vadd.s32 %v562, 1
          %vm568 = vcmp.gt.s32.totalorder %v567, 0
          %v569 = vsel %vm568, %v567, 0
          %v570 = vshrl.u32 %v569, 5
          %v571 = vand.u32 %v569, 31
          %v572 = vsub.s32 32, %v571
          %v573 = vshrl.u32 683565275, %v572
          %v574 = vshll.u32 683565275, %v571
          %v575 = vshrl.u32 2475754826, %v572
          %v576 = vor.u32 %v574, %v575
          %v577 = vshll.u32 2475754826, %v571
          %v578 = vshrl.u32 2131351028, %v572
          %v579 = vor.u32 %v577, %v578
          %v580 = vshll.u32 2131351028, %v571
          %v581 = vshrl.u32 2102212464, %v572
          %v582 = vor.u32 %v580, %v581
          %v583 = vshll.u32 2102212464, %v571
          %v584 = vshrl.u32 920167782, %v572
          %v585 = vor.u32 %v583, %v584
          %v586 = vshll.u32 920167782, %v571
          %v587 = vshrl.u32 1326507024, %v572
          %v588 = vor.u32 %v586, %v587
          %vm589 = vcmp.lt.s32.totalorder %v570, 1
          %vm590 = vcmp.lt.s32.totalorder %v570, 2
          %vm591 = vcmp.lt.s32.totalorder %v570, 3
          %vm592 = vcmp.lt.s32.totalorder %v570, 4
          %v593 = vsel %vm589, %v573, %v576
          %v594 = vsel %vm592, %v582, 2102212464
          %v595 = vsel %vm591, %v579, %v594
          %v596 = vsel %vm590, %v593, %v595
          %v597 = vsel %vm589, %v576, %v579
          %v598 = vsel %vm592, %v585, 920167782
          %v599 = vsel %vm591, %v582, %v598
          %v600 = vsel %vm590, %v597, %v599
          %v601 = vsel %vm589, %v579, %v582
          %v602 = vsel %vm592, %v588, 1326507024
          %v603 = vsel %vm591, %v585, %v602
          %v604 = vsel %vm590, %v601, %v603
          %v605 = vshll.u32 %v565, 8
          %v606 = vmul.u32.u64.compose %v605, %v604
          %v607 = vextract.low.u32 %v606
          %v608 = vextract.high.u32 %v606
          %v609 = vmul.u32.u64.compose %v605, %v600
          %v610 = vextract.low.u32 %v609
          %v611 = vextract.high.u32 %v609
          %v612 = vmul.u32 %v605, %v596
          %v613 = vadd.s32 %v608, %v610
          %vm614 = vc.u32 %v608, %v610
          %v615 = vadd.s32 %v611, 1
          %v616 = vsel %vm614, %v615, %v611
          %v617 = vadd.s32 %v612, %v616
          %v618 = vadd.s32 %v617, 536870912
          %v619 = vshrl.u32 %v618, 30
          %v620 = vshll.u32 %v619, 30
          %v621 = vsub.s32 %v617, %v620
          %vm622 = vcmp.lt.s32.totalorder %v621, 0
          %v623 = vsub.s32 0, %v621
          %v624 = vsel %vm622, %v623, %v621
          %v625 = vclz %v624
          %v626 = vsub.s32 %v625, 2
          %vm627 = vcmp.gt.s32.totalorder 0, %v626
          %v628 = vsel %vm627, 0, %v626
          %v629 = vsub.s32 32, %v628
          %v630 = vshll.u32 %v621, %v628
          %v631 = vshrl.u32 %v613, %v629
          %v632 = vor.u32 %v630, %v631
          %v633 = vsub.s32 4294967266, %v628
          %v634 = vadd.s32 %v633, 127
          %v635 = vshll.u32 %v634, 23
          %v636 = vor.u32 4788187, %v635
          %v637 = vand.u32 2147483647, %v636
          %v639 = vcvt.s32.f32 %v632
          %v640 = vmul.f32 %v639, %v637
          %v641 = vxor.u32 %v640, 2147483648
          %v642 = vsel %vm559, %v641, %v640
          %v643 = vsub.s32 4, %v619
          %v644 = vsel %vm559, %v643, %v619
          %v645 = vsel %vm558, %v541, %v642
          %v646 = vsel %vm558, 0, %v644
          %v647 = vcosq.f32.pop %v645
          %v648 = vsinq.f32.pop %v645
          %vm649 = vweird.f32 %v541
          %v650 = vand.u32 %v646, 3
          %vm651 = vcmp.lt.s32.totalorder %v650, 2
          %vm652 = vcmp.eq.s32.totalorder %v650, 0
          %v653 = vxor.u32 %v648, 2147483648
          %v654 = vsel %vm652, %v647, %v653
          %vm655 = vcmp.eq.s32.totalorder %v650, 2
          %v656 = vxor.u32 %v647, 2147483648
          %v657 = vsel %vm655, %v656, %v648
          %v658 = vsel %vm651, %v654, %v657
          %v659 = vsel %vm649, nan, %v658
          %v660 = vand.u32 2147483647, %v542
          %vm661 = vcmp.le.f32.partialorder %v660, 0.7853982
          %vm662 = vcmp.lt.s32.totalorder %v542, 0
          %v663 = vand.u32 %v542, 2139095040
          %v664 = vshrl.u32 %v663, 23
          %v665 = vsub.s32 %v664, 127
          %v666 = vand.u32 2147483647, %v542
          %v667 = vand.u32 %v666, 8388607
          %v668 = vor.u32 %v667, 8388608
          %v669 = vsub.s32 0, %v668
          %v670 = vadd.s32 %v665, 1
          %vm671 = vcmp.gt.s32.totalorder %v670, 0
          %v672 = vsel %vm671, %v670, 0
          %v673 = vshrl.u32 %v672, 5
          %v674 = vand.u32 %v672, 31
          %v675 = vsub.s32 32, %v674
          %v676 = vshrl.u32 683565275, %v675
          %v677 = vshll.u32 683565275, %v674
          %v678 = vshrl.u32 2475754826, %v675
          %v679 = vor.u32 %v677, %v678
          %v680 = vshll.u32 2475754826, %v674
          %v681 = vshrl.u32 2131351028, %v675
          %v682 = vor.u32 %v680, %v681
          %v683 = vshll.u32 2131351028, %v674
          %v684 = vshrl.u32 2102212464, %v675
          %v685 = vor.u32 %v683, %v684
          %v686 = vshll.u32 2102212464, %v674
          %v687 = vshrl.u32 920167782, %v675
          %v688 = vor.u32 %v686, %v687
          %v689 = vshll.u32 920167782, %v674
          %v690 = vshrl.u32 1326507024, %v675
          %v691 = vor.u32 %v689, %v690
          %vm692 = vcmp.lt.s32.totalorder %v673, 1
          %vm693 = vcmp.lt.s32.totalorder %v673, 2
          %vm694 = vcmp.lt.s32.totalorder %v673, 3
          %vm695 = vcmp.lt.s32.totalorder %v673, 4
          %v696 = vsel %vm692, %v676, %v679
          %v697 = vsel %vm695, %v685, 2102212464
          %v698 = vsel %vm694, %v682, %v697
          %v699 = vsel %vm693, %v696, %v698
          %v700 = vsel %vm692, %v679, %v682
          %v701 = vsel %vm695, %v688, 920167782
          %v702 = vsel %vm694, %v685, %v701
          %v703 = vsel %vm693, %v700, %v702
          %v704 = vsel %vm692, %v682, %v685
          %v705 = vsel %vm695, %v691, 1326507024
          %v706 = vsel %vm694, %v688, %v705
          %v707 = vsel %vm693, %v704, %v706
          %v708 = vshll.u32 %v668, 8
          %v709 = vmul.u32.u64.compose %v708, %v707
          %v710 = vextract.low.u32 %v709
          %v711 = vextract.high.u32 %v709
          %v712 = vmul.u32.u64.compose %v708, %v703
          %v713 = vextract.low.u32 %v712
          %v714 = vextract.high.u32 %v712
          %v715 = vmul.u32 %v708, %v699
          %v716 = vadd.s32 %v711, %v713
          %vm717 = vc.u32 %v711, %v713
          %v718 = vadd.s32 %v714, 1
          %v719 = vsel %vm717, %v718, %v714
          %v720 = vadd.s32 %v715, %v719
          %v721 = vadd.s32 %v720, 536870912
          %v722 = vshrl.u32 %v721, 30
          %v723 = vshll.u32 %v722, 30
          %v724 = vsub.s32 %v720, %v723
          %vm725 = vcmp.lt.s32.totalorder %v724, 0
          %v726 = vsub.s32 0, %v724
          %v727 = vsel %vm725, %v726, %v724
          %v728 = vclz %v727
          %v729 = vsub.s32 %v728, 2
          %vm730 = vcmp.gt.s32.totalorder 0, %v729
          %v731 = vsel %vm730, 0, %v729
          %v732 = vsub.s32 32, %v731
          %v733 = vshll.u32 %v724, %v731
          %v734 = vshrl.u32 %v716, %v732
          %v735 = vor.u32 %v733, %v734
          %v736 = vsub.s32 4294967266, %v731
          %v737 = vadd.s32 %v736, 127
          %v738 = vshll.u32 %v737, 23
          %v739 = vor.u32 4788187, %v738
          %v740 = vand.u32 2147483647, %v739
          %v742 = vcvt.s32.f32 %v735
          %v743 = vmul.f32 %v742, %v740
          %v744 = vxor.u32 %v743, 2147483648
          %v745 = vsel %vm662, %v744, %v743
          %v746 = vsub.s32 4, %v722
          %v747 = vsel %vm662, %v746, %v722
          %v748 = vsel %vm661, %v542, %v745
          %v749 = vsel %vm661, 0, %v747
          %v750 = vcosq.f32.pop %v748
          %v751 = vsinq.f32.pop %v748
          %vm752 = vweird.f32 %v542
          %v753 = vand.u32 %v749, 3
          %vm754 = vcmp.lt.s32.totalorder %v753, 2
          %vm755 = vcmp.eq.s32.totalorder %v753, 0
          %v756 = vxor.u32 %v751, 2147483648
          %v757 = vsel %vm755, %v750, %v756
          %vm758 = vcmp.eq.s32.totalorder %v753, 2
          %v759 = vxor.u32 %v750, 2147483648
          %v760 = vsel %vm758, %v759, %v751
          %v761 = vsel %vm754, %v757, %v760
          %v762 = vsel %vm752, nan, %v761
          %v763 = vand.u32 2147483647, %v543
          %vm764 = vcmp.le.f32.partialorder %v763, 0.7853982
          %vm765 = vcmp.lt.s32.totalorder %v543, 0
          %v766 = vand.u32 %v543, 2139095040
          %v767 = vshrl.u32 %v766, 23
          %v768 = vsub.s32 %v767, 127
          %v769 = vand.u32 2147483647, %v543
          %v770 = vand.u32 %v769, 8388607
          %v771 = vor.u32 %v770, 8388608
          %v772 = vsub.s32 0, %v771
          %v773 = vadd.s32 %v768, 1
          %vm774 = vcmp.gt.s32.totalorder %v773, 0
          %v775 = vsel %vm774, %v773, 0
          %v776 = vshrl.u32 %v775, 5
          %v777 = vand.u32 %v775, 31
          %v778 = vsub.s32 32, %v777
          %v779 = vshrl.u32 683565275, %v778
          %v780 = vshll.u32 683565275, %v777
          %v781 = vshrl.u32 2475754826, %v778
          %v782 = vor.u32 %v780, %v781
          %v783 = vshll.u32 2475754826, %v777
          %v784 = vshrl.u32 2131351028, %v778
          %v785 = vor.u32 %v783, %v784
          %v786 = vshll.u32 2131351028, %v777
          %v787 = vshrl.u32 2102212464, %v778
          %v788 = vor.u32 %v786, %v787
          %v789 = vshll.u32 2102212464, %v777
          %v790 = vshrl.u32 920167782, %v778
          %v791 = vor.u32 %v789, %v790
          %v792 = vshll.u32 920167782, %v777
          %v793 = vshrl.u32 1326507024, %v778
          %v794 = vor.u32 %v792, %v793
          %vm795 = vcmp.lt.s32.totalorder %v776, 1
          %vm796 = vcmp.lt.s32.totalorder %v776, 2
          %vm797 = vcmp.lt.s32.totalorder %v776, 3
          %vm798 = vcmp.lt.s32.totalorder %v776, 4
          %v799 = vsel %vm795, %v779, %v782
          %v800 = vsel %vm798, %v788, 2102212464
          %v801 = vsel %vm797, %v785, %v800
          %v802 = vsel %vm796, %v799, %v801
          %v803 = vsel %vm795, %v782, %v785
          %v804 = vsel %vm798, %v791, 920167782
          %v805 = vsel %vm797, %v788, %v804
          %v806 = vsel %vm796, %v803, %v805
          %v807 = vsel %vm795, %v785, %v788
          %v808 = vsel %vm798, %v794, 1326507024
          %v809 = vsel %vm797, %v791, %v808
          %v810 = vsel %vm796, %v807, %v809
          %v811 = vshll.u32 %v771, 8
          %v812 = vmul.u32.u64.compose %v811, %v810
          %v813 = vextract.low.u32 %v812
          %v814 = vextract.high.u32 %v812
          %v815 = vmul.u32.u64.compose %v811, %v806
          %v816 = vextract.low.u32 %v815
          %v817 = vextract.high.u32 %v815
          %v818 = vmul.u32 %v811, %v802
          %v819 = vadd.s32 %v814, %v816
          %vm820 = vc.u32 %v814, %v816
          %v821 = vadd.s32 %v817, 1
          %v822 = vsel %vm820, %v821, %v817
          %v823 = vadd.s32 %v818, %v822
          %v824 = vadd.s32 %v823, 536870912
          %v825 = vshrl.u32 %v824, 30
          %v826 = vshll.u32 %v825, 30
          %v827 = vsub.s32 %v823, %v826
          %vm828 = vcmp.lt.s32.totalorder %v827, 0
          %v829 = vsub.s32 0, %v827
          %v830 = vsel %vm828, %v829, %v827
          %v831 = vclz %v830
          %v832 = vsub.s32 %v831, 2
          %vm833 = vcmp.gt.s32.totalorder 0, %v832
          %v834 = vsel %vm833, 0, %v832
          %v835 = vsub.s32 32, %v834
          %v836 = vshll.u32 %v827, %v834
          %v837 = vshrl.u32 %v819, %v835
          %v838 = vor.u32 %v836, %v837
          %v839 = vsub.s32 4294967266, %v834
          %v840 = vadd.s32 %v839, 127
          %v841 = vshll.u32 %v840, 23
          %v842 = vor.u32 4788187, %v841
          %v843 = vand.u32 2147483647, %v842
          %v845 = vcvt.s32.f32 %v838
          %v846 = vmul.f32 %v845, %v843
          %v847 = vxor.u32 %v846, 2147483648
          %v848 = vsel %vm765, %v847, %v846
          %v849 = vsub.s32 4, %v825
          %v850 = vsel %vm765, %v849, %v825
          %v851 = vsel %vm764, %v543, %v848
          %v852 = vsel %vm764, 0, %v850
          %v853 = vcosq.f32.pop %v851
          %v854 = vsinq.f32.pop %v851
          %vm855 = vweird.f32 %v543
          %v856 = vand.u32 %v852, 3
          %vm857 = vcmp.lt.s32.totalorder %v856, 2
          %vm858 = vcmp.eq.s32.totalorder %v856, 0
          %v859 = vxor.u32 %v854, 2147483648
          %v860 = vsel %vm858, %v853, %v859
          %vm861 = vcmp.eq.s32.totalorder %v856, 2
          %v862 = vxor.u32 %v853, 2147483648
          %v863 = vsel %vm861, %v862, %v854
          %v864 = vsel %vm857, %v860, %v863
          %v865 = vsel %vm855, nan, %v864
          %v866 = vand.u32 2147483647, %v544
          %vm867 = vcmp.le.f32.partialorder %v866, 0.7853982
          %vm868 = vcmp.lt.s32.totalorder %v544, 0
          %v869 = vand.u32 %v544, 2139095040
          %v870 = vshrl.u32 %v869, 23
          %v871 = vsub.s32 %v870, 127
          %v872 = vand.u32 2147483647, %v544
          %v873 = vand.u32 %v872, 8388607
          %v874 = vor.u32 %v873, 8388608
          %v875 = vsub.s32 0, %v874
          %v876 = vadd.s32 %v871, 1
          %vm877 = vcmp.gt.s32.totalorder %v876, 0
          %v878 = vsel %vm877, %v876, 0
          %v879 = vshrl.u32 %v878, 5
          %v880 = vand.u32 %v878, 31
          %v881 = vsub.s32 32, %v880
          %v882 = vshrl.u32 683565275, %v881
          %v883 = vshll.u32 683565275, %v880
          %v884 = vshrl.u32 2475754826, %v881
          %v885 = vor.u32 %v883, %v884
          %v886 = vshll.u32 2475754826, %v880
          %v887 = vshrl.u32 2131351028, %v881
          %v888 = vor.u32 %v886, %v887
          %v889 = vshll.u32 2131351028, %v880
          %v890 = vshrl.u32 2102212464, %v881
          %v891 = vor.u32 %v889, %v890
          %v892 = vshll.u32 2102212464, %v880
          %v893 = vshrl.u32 920167782, %v881
          %v894 = vor.u32 %v892, %v893
          %v895 = vshll.u32 920167782, %v880
          %v896 = vshrl.u32 1326507024, %v881
          %v897 = vor.u32 %v895, %v896
          %vm898 = vcmp.lt.s32.totalorder %v879, 1
          %vm899 = vcmp.lt.s32.totalorder %v879, 2
          %vm900 = vcmp.lt.s32.totalorder %v879, 3
          %vm901 = vcmp.lt.s32.totalorder %v879, 4
          %v902 = vsel %vm898, %v882, %v885
          %v903 = vsel %vm901, %v891, 2102212464
          %v904 = vsel %vm900, %v888, %v903
          %v905 = vsel %vm899, %v902, %v904
          %v906 = vsel %vm898, %v885, %v888
          %v907 = vsel %vm901, %v894, 920167782
          %v908 = vsel %vm900, %v891, %v907
          %v909 = vsel %vm899, %v906, %v908
          %v910 = vsel %vm898, %v888, %v891
          %v911 = vsel %vm901, %v897, 1326507024
          %v912 = vsel %vm900, %v894, %v911
          %v913 = vsel %vm899, %v910, %v912
          %v914 = vshll.u32 %v874, 8
          %v915 = vmul.u32.u64.compose %v914, %v913
          %v916 = vextract.low.u32 %v915
          %v917 = vextract.high.u32 %v915
          %v918 = vmul.u32.u64.compose %v914, %v909
          %v919 = vextract.low.u32 %v918
          %v920 = vextract.high.u32 %v918
          %v921 = vmul.u32 %v914, %v905
          %v922 = vadd.s32 %v917, %v919
          %vm923 = vc.u32 %v917, %v919
          %v924 = vadd.s32 %v920, 1
          %v925 = vsel %vm923, %v924, %v920
          %v926 = vadd.s32 %v921, %v925
          %v927 = vadd.s32 %v926, 536870912
          %v928 = vshrl.u32 %v927, 30
          %v929 = vshll.u32 %v928, 30
          %v930 = vsub.s32 %v926, %v929
          %vm931 = vcmp.lt.s32.totalorder %v930, 0
          %v932 = vsub.s32 0, %v930
          %v933 = vsel %vm931, %v932, %v930
          %v934 = vclz %v933
          %v935 = vsub.s32 %v934, 2
          %vm936 = vcmp.gt.s32.totalorder 0, %v935
          %v937 = vsel %vm936, 0, %v935
          %v938 = vsub.s32 32, %v937
          %v939 = vshll.u32 %v930, %v937
          %v940 = vshrl.u32 %v922, %v938
          %v941 = vor.u32 %v939, %v940
          %v942 = vsub.s32 4294967266, %v937
          %v943 = vadd.s32 %v942, 127
          %v944 = vshll.u32 %v943, 23
          %v945 = vor.u32 4788187, %v944
          %v946 = vand.u32 2147483647, %v945
          %v948 = vcvt.s32.f32 %v941
          %v949 = vmul.f32 %v948, %v946
          %v950 = vxor.u32 %v949, 2147483648
          %v951 = vsel %vm868, %v950, %v949
          %v952 = vsub.s32 4, %v928
          %v953 = vsel %vm868, %v952, %v928
          %v954 = vsel %vm867, %v544, %v951
          %v955 = vsel %vm867, 0, %v953
          %v956 = vcosq.f32.pop %v954
          %v957 = vsinq.f32.pop %v954
          %vm958 = vweird.f32 %v544
          %v959 = vand.u32 %v955, 3
          %vm960 = vcmp.lt.s32.totalorder %v959, 2
          %vm961 = vcmp.eq.s32.totalorder %v959, 0
          %v962 = vxor.u32 %v957, 2147483648
          %v963 = vsel %vm961, %v956, %v962
          %vm964 = vcmp.eq.s32.totalorder %v959, 2
          %v965 = vxor.u32 %v956, 2147483648
          %v966 = vsel %vm964, %v965, %v957
          %v967 = vsel %vm960, %v963, %v966
          %v968 = vsel %vm958, nan, %v967
          %v969 = vand.u32 2147483647, %v545
          %vm970 = vcmp.le.f32.partialorder %v969, 0.7853982
          %vm971 = vcmp.lt.s32.totalorder %v545, 0
          %v972 = vand.u32 %v545, 2139095040
          %v973 = vshrl.u32 %v972, 23
          %v974 = vsub.s32 %v973, 127
          %v975 = vand.u32 2147483647, %v545
          %v976 = vand.u32 %v975, 8388607
          %v977 = vor.u32 %v976, 8388608
          %v978 = vsub.s32 0, %v977
          %v979 = vadd.s32 %v974, 1
          %vm980 = vcmp.gt.s32.totalorder %v979, 0
          %v981 = vsel %vm980, %v979, 0
          %v982 = vshrl.u32 %v981, 5
          %v983 = vand.u32 %v981, 31
          %v984 = vsub.s32 32, %v983
          %v985 = vshrl.u32 683565275, %v984
          %v986 = vshll.u32 683565275, %v983
          %v987 = vshrl.u32 2475754826, %v984
          %v988 = vor.u32 %v986, %v987
          %v989 = vshll.u32 2475754826, %v983
          %v990 = vshrl.u32 2131351028, %v984
          %v991 = vor.u32 %v989, %v990
          %v992 = vshll.u32 2131351028, %v983
          %v993 = vshrl.u32 2102212464, %v984
          %v994 = vor.u32 %v992, %v993
          %v995 = vshll.u32 2102212464, %v983
          %v996 = vshrl.u32 920167782, %v984
          %v997 = vor.u32 %v995, %v996
          %v998 = vshll.u32 920167782, %v983
          %v999 = vshrl.u32 1326507024, %v984
          %v1000 = vor.u32 %v998, %v999
          %vm1001 = vcmp.lt.s32.totalorder %v982, 1
          %vm1002 = vcmp.lt.s32.totalorder %v982, 2
          %vm1003 = vcmp.lt.s32.totalorder %v982, 3
          %vm1004 = vcmp.lt.s32.totalorder %v982, 4
          %v1005 = vsel %vm1001, %v985, %v988
          %v1006 = vsel %vm1004, %v994, 2102212464
          %v1007 = vsel %vm1003, %v991, %v1006
          %v1008 = vsel %vm1002, %v1005, %v1007
          %v1009 = vsel %vm1001, %v988, %v991
          %v1010 = vsel %vm1004, %v997, 920167782
          %v1011 = vsel %vm1003, %v994, %v1010
          %v1012 = vsel %vm1002, %v1009, %v1011
          %v1013 = vsel %vm1001, %v991, %v994
          %v1014 = vsel %vm1004, %v1000, 1326507024
          %v1015 = vsel %vm1003, %v997, %v1014
          %v1016 = vsel %vm1002, %v1013, %v1015
          %v1017 = vshll.u32 %v977, 8
          %v1018 = vmul.u32.u64.compose %v1017, %v1016
          %v1019 = vextract.low.u32 %v1018
          %v1020 = vextract.high.u32 %v1018
          %v1021 = vmul.u32.u64.compose %v1017, %v1012
          %v1022 = vextract.low.u32 %v1021
          %v1023 = vextract.high.u32 %v1021
          %v1024 = vmul.u32 %v1017, %v1008
          %v1025 = vadd.s32 %v1020, %v1022
          %vm1026 = vc.u32 %v1020, %v1022
          %v1027 = vadd.s32 %v1023, 1
          %v1028 = vsel %vm1026, %v1027, %v1023
          %v1029 = vadd.s32 %v1024, %v1028
          %v1030 = vadd.s32 %v1029, 536870912
          %v1031 = vshrl.u32 %v1030, 30
          %v1032 = vshll.u32 %v1031, 30
          %v1033 = vsub.s32 %v1029, %v1032
          %vm1034 = vcmp.lt.s32.totalorder %v1033, 0
          %v1035 = vsub.s32 0, %v1033
          %v1036 = vsel %vm1034, %v1035, %v1033
          %v1037 = vclz %v1036
          %v1038 = vsub.s32 %v1037, 2
          %vm1039 = vcmp.gt.s32.totalorder 0, %v1038
          %v1040 = vsel %vm1039, 0, %v1038
          %v1041 = vsub.s32 32, %v1040
          %v1042 = vshll.u32 %v1033, %v1040
          %v1043 = vshrl.u32 %v1025, %v1041
          %v1044 = vor.u32 %v1042, %v1043
          %v1045 = vsub.s32 4294967266, %v1040
          %v1046 = vadd.s32 %v1045, 127
          %v1047 = vshll.u32 %v1046, 23
          %v1048 = vor.u32 4788187, %v1047
          %v1049 = vand.u32 2147483647, %v1048
          %v1051 = vcvt.s32.f32 %v1044
          %v1052 = vmul.f32 %v1051, %v1049
          %v1053 = vxor.u32 %v1052, 2147483648
          %v1054 = vsel %vm971, %v1053, %v1052
          %v1055 = vsub.s32 4, %v1031
          %v1056 = vsel %vm971, %v1055, %v1031
          %v1057 = vsel %vm970, %v545, %v1054
          %v1058 = vsel %vm970, 0, %v1056
          %v1059 = vcosq.f32.pop %v1057
          %v1060 = vsinq.f32.pop %v1057
          %vm1061 = vweird.f32 %v545
          %v1062 = vand.u32 %v1058, 3
          %vm1063 = vcmp.lt.s32.totalorder %v1062, 2
          %vm1064 = vcmp.eq.s32.totalorder %v1062, 0
          %v1065 = vxor.u32 %v1060, 2147483648
          %v1066 = vsel %vm1064, %v1059, %v1065
          %vm1067 = vcmp.eq.s32.totalorder %v1062, 2
          %v1068 = vxor.u32 %v1059, 2147483648
          %v1069 = vsel %vm1067, %v1068, %v1060
          %v1070 = vsel %vm1063, %v1066, %v1069
          %v1071 = vsel %vm1061, nan, %v1070
          %v1072 = vand.u32 2147483647, %v546
          %vm1073 = vcmp.le.f32.partialorder %v1072, 0.7853982
          %vm1074 = vcmp.lt.s32.totalorder %v546, 0
          %v1075 = vand.u32 %v546, 2139095040
          %v1076 = vshrl.u32 %v1075, 23
          %v1077 = vsub.s32 %v1076, 127
          %v1078 = vand.u32 2147483647, %v546
          %v1079 = vand.u32 %v1078, 8388607
          %v1080 = vor.u32 %v1079, 8388608
          %v1081 = vsub.s32 0, %v1080
          %v1082 = vadd.s32 %v1077, 1
          %vm1083 = vcmp.gt.s32.totalorder %v1082, 0
          %v1084 = vsel %vm1083, %v1082, 0
          %v1085 = vshrl.u32 %v1084, 5
          %v1086 = vand.u32 %v1084, 31
          %v1087 = vsub.s32 32, %v1086
          %v1088 = vshrl.u32 683565275, %v1087
          %v1089 = vshll.u32 683565275, %v1086
          %v1090 = vshrl.u32 2475754826, %v1087
          %v1091 = vor.u32 %v1089, %v1090
          %v1092 = vshll.u32 2475754826, %v1086
          %v1093 = vshrl.u32 2131351028, %v1087
          %v1094 = vor.u32 %v1092, %v1093
          %v1095 = vshll.u32 2131351028, %v1086
          %v1096 = vshrl.u32 2102212464, %v1087
          %v1097 = vor.u32 %v1095, %v1096
          %v1098 = vshll.u32 2102212464, %v1086
          %v1099 = vshrl.u32 920167782, %v1087
          %v1100 = vor.u32 %v1098, %v1099
          %v1101 = vshll.u32 920167782, %v1086
          %v1102 = vshrl.u32 1326507024, %v1087
          %v1103 = vor.u32 %v1101, %v1102
          %vm1104 = vcmp.lt.s32.totalorder %v1085, 1
          %vm1105 = vcmp.lt.s32.totalorder %v1085, 2
          %vm1106 = vcmp.lt.s32.totalorder %v1085, 3
          %vm1107 = vcmp.lt.s32.totalorder %v1085, 4
          %v1108 = vsel %vm1104, %v1088, %v1091
          %v1109 = vsel %vm1107, %v1097, 2102212464
          %v1110 = vsel %vm1106, %v1094, %v1109
          %v1111 = vsel %vm1105, %v1108, %v1110
          %v1112 = vsel %vm1104, %v1091, %v1094
          %v1113 = vsel %vm1107, %v1100, 920167782
          %v1114 = vsel %vm1106, %v1097, %v1113
          %v1115 = vsel %vm1105, %v1112, %v1114
          %v1116 = vsel %vm1104, %v1094, %v1097
          %v1117 = vsel %vm1107, %v1103, 1326507024
          %v1118 = vsel %vm1106, %v1100, %v1117
          %v1119 = vsel %vm1105, %v1116, %v1118
          %v1120 = vshll.u32 %v1080, 8
          %v1121 = vmul.u32.u64.compose %v1120, %v1119
          %v1122 = vextract.low.u32 %v1121
          %v1123 = vextract.high.u32 %v1121
          %v1124 = vmul.u32.u64.compose %v1120, %v1115
          %v1125 = vextract.low.u32 %v1124
          %v1126 = vextract.high.u32 %v1124
          %v1127 = vmul.u32 %v1120, %v1111
          %v1128 = vadd.s32 %v1123, %v1125
          %vm1129 = vc.u32 %v1123, %v1125
          %v1130 = vadd.s32 %v1126, 1
          %v1131 = vsel %vm1129, %v1130, %v1126
          %v1132 = vadd.s32 %v1127, %v1131
          %v1133 = vadd.s32 %v1132, 536870912
          %v1134 = vshrl.u32 %v1133, 30
          %v1135 = vshll.u32 %v1134, 30
          %v1136 = vsub.s32 %v1132, %v1135
          %vm1137 = vcmp.lt.s32.totalorder %v1136, 0
          %v1138 = vsub.s32 0, %v1136
          %v1139 = vsel %vm1137, %v1138, %v1136
          %v1140 = vclz %v1139
          %v1141 = vsub.s32 %v1140, 2
          %vm1142 = vcmp.gt.s32.totalorder 0, %v1141
          %v1143 = vsel %vm1142, 0, %v1141
          %v1144 = vsub.s32 32, %v1143
          %v1145 = vshll.u32 %v1136, %v1143
          %v1146 = vshrl.u32 %v1128, %v1144
          %v1147 = vor.u32 %v1145, %v1146
          %v1148 = vsub.s32 4294967266, %v1143
          %v1149 = vadd.s32 %v1148, 127
          %v1150 = vshll.u32 %v1149, 23
          %v1151 = vor.u32 4788187, %v1150
          %v1152 = vand.u32 2147483647, %v1151
          %v1154 = vcvt.s32.f32 %v1147
          %v1155 = vmul.f32 %v1154, %v1152
          %v1156 = vxor.u32 %v1155, 2147483648
          %v1157 = vsel %vm1074, %v1156, %v1155
          %v1158 = vsub.s32 4, %v1134
          %v1159 = vsel %vm1074, %v1158, %v1134
          %v1160 = vsel %vm1073, %v546, %v1157
          %v1161 = vsel %vm1073, 0, %v1159
          %v1162 = vcosq.f32.pop %v1160
          %v1163 = vsinq.f32.pop %v1160
          %vm1164 = vweird.f32 %v546
          %v1165 = vand.u32 %v1161, 3
          %vm1166 = vcmp.lt.s32.totalorder %v1165, 2
          %vm1167 = vcmp.eq.s32.totalorder %v1165, 0
          %v1168 = vxor.u32 %v1163, 2147483648
          %v1169 = vsel %vm1167, %v1162, %v1168
          %vm1170 = vcmp.eq.s32.totalorder %v1165, 2
          %v1171 = vxor.u32 %v1162, 2147483648
          %v1172 = vsel %vm1170, %v1171, %v1163
          %v1173 = vsel %vm1166, %v1169, %v1172
          %v1174 = vsel %vm1164, nan, %v1173
          %v1175 = vand.u32 2147483647, %v547
          %vm1176 = vcmp.le.f32.partialorder %v1175, 0.7853982
          %vm1177 = vcmp.lt.s32.totalorder %v547, 0
          %v1178 = vand.u32 %v547, 2139095040
          %v1179 = vshrl.u32 %v1178, 23
          %v1180 = vsub.s32 %v1179, 127
          %v1181 = vand.u32 2147483647, %v547
          %v1182 = vand.u32 %v1181, 8388607
          %v1183 = vor.u32 %v1182, 8388608
          %v1184 = vsub.s32 0, %v1183
          %v1185 = vadd.s32 %v1180, 1
          %vm1186 = vcmp.gt.s32.totalorder %v1185, 0
          %v1187 = vsel %vm1186, %v1185, 0
          %v1188 = vshrl.u32 %v1187, 5
          %v1189 = vand.u32 %v1187, 31
          %v1190 = vsub.s32 32, %v1189
          %v1191 = vshrl.u32 683565275, %v1190
          %v1192 = vshll.u32 683565275, %v1189
          %v1193 = vshrl.u32 2475754826, %v1190
          %v1194 = vor.u32 %v1192, %v1193
          %v1195 = vshll.u32 2475754826, %v1189
          %v1196 = vshrl.u32 2131351028, %v1190
          %v1197 = vor.u32 %v1195, %v1196
          %v1198 = vshll.u32 2131351028, %v1189
          %v1199 = vshrl.u32 2102212464, %v1190
          %v1200 = vor.u32 %v1198, %v1199
          %v1201 = vshll.u32 2102212464, %v1189
          %v1202 = vshrl.u32 920167782, %v1190
          %v1203 = vor.u32 %v1201, %v1202
          %v1204 = vshll.u32 920167782, %v1189
          %v1205 = vshrl.u32 1326507024, %v1190
          %v1206 = vor.u32 %v1204, %v1205
          %vm1207 = vcmp.lt.s32.totalorder %v1188, 1
          %vm1208 = vcmp.lt.s32.totalorder %v1188, 2
          %vm1209 = vcmp.lt.s32.totalorder %v1188, 3
          %vm1210 = vcmp.lt.s32.totalorder %v1188, 4
          %v1211 = vsel %vm1207, %v1191, %v1194
          %v1212 = vsel %vm1210, %v1200, 2102212464
          %v1213 = vsel %vm1209, %v1197, %v1212
          %v1214 = vsel %vm1208, %v1211, %v1213
          %v1215 = vsel %vm1207, %v1194, %v1197
          %v1216 = vsel %vm1210, %v1203, 920167782
          %v1217 = vsel %vm1209, %v1200, %v1216
          %v1218 = vsel %vm1208, %v1215, %v1217
          %v1219 = vsel %vm1207, %v1197, %v1200
          %v1220 = vsel %vm1210, %v1206, 1326507024
          %v1221 = vsel %vm1209, %v1203, %v1220
          %v1222 = vsel %vm1208, %v1219, %v1221
          %v1223 = vshll.u32 %v1183, 8
          %v1224 = vmul.u32.u64.compose %v1223, %v1222
          %v1225 = vextract.low.u32 %v1224
          %v1226 = vextract.high.u32 %v1224
          %v1227 = vmul.u32.u64.compose %v1223, %v1218
          %v1228 = vextract.low.u32 %v1227
          %v1229 = vextract.high.u32 %v1227
          %v1230 = vmul.u32 %v1223, %v1214
          %v1231 = vadd.s32 %v1226, %v1228
          %vm1232 = vc.u32 %v1226, %v1228
          %v1233 = vadd.s32 %v1229, 1
          %v1234 = vsel %vm1232, %v1233, %v1229
          %v1235 = vadd.s32 %v1230, %v1234
          %v1236 = vadd.s32 %v1235, 536870912
          %v1237 = vshrl.u32 %v1236, 30
          %v1238 = vshll.u32 %v1237, 30
          %v1239 = vsub.s32 %v1235, %v1238
          %vm1240 = vcmp.lt.s32.totalorder %v1239, 0
          %v1241 = vsub.s32 0, %v1239
          %v1242 = vsel %vm1240, %v1241, %v1239
          %v1243 = vclz %v1242
          %v1244 = vsub.s32 %v1243, 2
          %vm1245 = vcmp.gt.s32.totalorder 0, %v1244
          %v1246 = vsel %vm1245, 0, %v1244
          %v1247 = vsub.s32 32, %v1246
          %v1248 = vshll.u32 %v1239, %v1246
          %v1249 = vshrl.u32 %v1231, %v1247
          %v1250 = vor.u32 %v1248, %v1249
          %v1251 = vsub.s32 4294967266, %v1246
          %v1252 = vadd.s32 %v1251, 127
          %v1253 = vshll.u32 %v1252, 23
          %v1254 = vor.u32 4788187, %v1253
          %v1255 = vand.u32 2147483647, %v1254
          %v1257 = vcvt.s32.f32 %v1250
          %v1258 = vmul.f32 %v1257, %v1255
          %v1259 = vxor.u32 %v1258, 2147483648
          %v1260 = vsel %vm1177, %v1259, %v1258
          %v1261 = vsub.s32 4, %v1237
          %v1262 = vsel %vm1177, %v1261, %v1237
          %v1263 = vsel %vm1176, %v547, %v1260
          %v1264 = vsel %vm1176, 0, %v1262
          %v1265 = vcosq.f32.pop %v1263
          %v1266 = vsinq.f32.pop %v1263
          %vm1267 = vweird.f32 %v547
          %v1268 = vand.u32 %v1264, 3
          %vm1269 = vcmp.lt.s32.totalorder %v1268, 2
          %vm1270 = vcmp.eq.s32.totalorder %v1268, 0
          %v1271 = vxor.u32 %v1266, 2147483648
          %v1272 = vsel %vm1270, %v1265, %v1271
          %vm1273 = vcmp.eq.s32.totalorder %v1268, 2
          %v1274 = vxor.u32 %v1265, 2147483648
          %v1275 = vsel %vm1273, %v1274, %v1266
          %v1276 = vsel %vm1269, %v1272, %v1275
          %v1277 = vsel %vm1267, nan, %v1276
          %v1278 = vand.u32 2147483647, %v548
          %vm1279 = vcmp.le.f32.partialorder %v1278, 0.7853982
          %vm1280 = vcmp.lt.s32.totalorder %v548, 0
          %v1281 = vand.u32 %v548, 2139095040
          %v1282 = vshrl.u32 %v1281, 23
          %v1283 = vsub.s32 %v1282, 127
          %v1284 = vand.u32 2147483647, %v548
          %v1285 = vand.u32 %v1284, 8388607
          %v1286 = vor.u32 %v1285, 8388608
          %v1287 = vsub.s32 0, %v1286
          %v1288 = vadd.s32 %v1283, 1
          %vm1289 = vcmp.gt.s32.totalorder %v1288, 0
          %v1290 = vsel %vm1289, %v1288, 0
          %v1291 = vshrl.u32 %v1290, 5
          %v1292 = vand.u32 %v1290, 31
          %v1293 = vsub.s32 32, %v1292
          %v1294 = vshrl.u32 683565275, %v1293
          %v1295 = vshll.u32 683565275, %v1292
          %v1296 = vshrl.u32 2475754826, %v1293
          %v1297 = vor.u32 %v1295, %v1296
          %v1298 = vshll.u32 2475754826, %v1292
          %v1299 = vshrl.u32 2131351028, %v1293
          %v1300 = vor.u32 %v1298, %v1299
          %v1301 = vshll.u32 2131351028, %v1292
          %v1302 = vshrl.u32 2102212464, %v1293
          %v1303 = vor.u32 %v1301, %v1302
          %v1304 = vshll.u32 2102212464, %v1292
          %v1305 = vshrl.u32 920167782, %v1293
          %v1306 = vor.u32 %v1304, %v1305
          %v1307 = vshll.u32 920167782, %v1292
          %v1308 = vshrl.u32 1326507024, %v1293
          %v1309 = vor.u32 %v1307, %v1308
          %vm1310 = vcmp.lt.s32.totalorder %v1291, 1
          %vm1311 = vcmp.lt.s32.totalorder %v1291, 2
          %vm1312 = vcmp.lt.s32.totalorder %v1291, 3
          %vm1313 = vcmp.lt.s32.totalorder %v1291, 4
          %v1314 = vsel %vm1310, %v1294, %v1297
          %v1315 = vsel %vm1313, %v1303, 2102212464
          %v1316 = vsel %vm1312, %v1300, %v1315
          %v1317 = vsel %vm1311, %v1314, %v1316
          %v1318 = vsel %vm1310, %v1297, %v1300
          %v1319 = vsel %vm1313, %v1306, 920167782
          %v1320 = vsel %vm1312, %v1303, %v1319
          %v1321 = vsel %vm1311, %v1318, %v1320
          %v1322 = vsel %vm1310, %v1300, %v1303
          %v1323 = vsel %vm1313, %v1309, 1326507024
          %v1324 = vsel %vm1312, %v1306, %v1323
          %v1325 = vsel %vm1311, %v1322, %v1324
          %v1326 = vshll.u32 %v1286, 8
          %v1327 = vmul.u32.u64.compose %v1326, %v1325
          %v1328 = vextract.low.u32 %v1327
          %v1329 = vextract.high.u32 %v1327
          %v1330 = vmul.u32.u64.compose %v1326, %v1321
          %v1331 = vextract.low.u32 %v1330
          %v1332 = vextract.high.u32 %v1330
          %v1333 = vmul.u32 %v1326, %v1317
          %v1334 = vadd.s32 %v1329, %v1331
          %vm1335 = vc.u32 %v1329, %v1331
          %v1336 = vadd.s32 %v1332, 1
          %v1337 = vsel %vm1335, %v1336, %v1332
          %v1338 = vadd.s32 %v1333, %v1337
          %v1339 = vadd.s32 %v1338, 536870912
          %v1340 = vshrl.u32 %v1339, 30
          %v1341 = vshll.u32 %v1340, 30
          %v1342 = vsub.s32 %v1338, %v1341
          %vm1343 = vcmp.lt.s32.totalorder %v1342, 0
          %v1344 = vsub.s32 0, %v1342
          %v1345 = vsel %vm1343, %v1344, %v1342
          %v1346 = vclz %v1345
          %v1347 = vsub.s32 %v1346, 2
          %vm1348 = vcmp.gt.s32.totalorder 0, %v1347
          %v1349 = vsel %vm1348, 0, %v1347
          %v1350 = vsub.s32 32, %v1349
          %v1351 = vshll.u32 %v1342, %v1349
          %v1352 = vshrl.u32 %v1334, %v1350
          %v1353 = vor.u32 %v1351, %v1352
          %v1354 = vsub.s32 4294967266, %v1349
          %v1355 = vadd.s32 %v1354, 127
          %v1356 = vshll.u32 %v1355, 23
          %v1357 = vor.u32 4788187, %v1356
          %v1358 = vand.u32 2147483647, %v1357
          %v1360 = vcvt.s32.f32 %v1353
          %v1361 = vmul.f32 %v1360, %v1358
          %v1362 = vxor.u32 %v1361, 2147483648
          %v1363 = vsel %vm1280, %v1362, %v1361
          %v1364 = vsub.s32 4, %v1340
          %v1365 = vsel %vm1280, %v1364, %v1340
          %v1366 = vsel %vm1279, %v548, %v1363
          %v1367 = vsel %vm1279, 0, %v1365
          %v1368 = vcosq.f32.pop %v1366
          %v1369 = vsinq.f32.pop %v1366
          %vm1370 = vweird.f32 %v548
          %v1371 = vand.u32 %v1367, 3
          %vm1372 = vcmp.lt.s32.totalorder %v1371, 2
          %vm1373 = vcmp.eq.s32.totalorder %v1371, 0
          %v1374 = vxor.u32 %v1369, 2147483648
          %v1375 = vsel %vm1373, %v1368, %v1374
          %vm1376 = vcmp.eq.s32.totalorder %v1371, 2
          %v1377 = vxor.u32 %v1368, 2147483648
          %v1378 = vsel %vm1376, %v1377, %v1369
          %v1379 = vsel %vm1372, %v1375, %v1378
          %v1380 = vsel %vm1370, nan, %v1379
          %v1381 = vand.u32 2147483647, %v549
          %vm1382 = vcmp.le.f32.partialorder %v1381, 0.7853982
          %vm1383 = vcmp.lt.s32.totalorder %v549, 0
          %v1384 = vand.u32 %v549, 2139095040
          %v1385 = vshrl.u32 %v1384, 23
          %v1386 = vsub.s32 %v1385, 127
          %v1387 = vand.u32 2147483647, %v549
          %v1388 = vand.u32 %v1387, 8388607
          %v1389 = vor.u32 %v1388, 8388608
          %v1390 = vsub.s32 0, %v1389
          %v1391 = vadd.s32 %v1386, 1
          %vm1392 = vcmp.gt.s32.totalorder %v1391, 0
          %v1393 = vsel %vm1392, %v1391, 0
          %v1394 = vshrl.u32 %v1393, 5
          %v1395 = vand.u32 %v1393, 31
          %v1396 = vsub.s32 32, %v1395
          %v1397 = vshrl.u32 683565275, %v1396
          %v1398 = vshll.u32 683565275, %v1395
          %v1399 = vshrl.u32 2475754826, %v1396
          %v1400 = vor.u32 %v1398, %v1399
          %v1401 = vshll.u32 2475754826, %v1395
          %v1402 = vshrl.u32 2131351028, %v1396
          %v1403 = vor.u32 %v1401, %v1402
          %v1404 = vshll.u32 2131351028, %v1395
          %v1405 = vshrl.u32 2102212464, %v1396
          %v1406 = vor.u32 %v1404, %v1405
          %v1407 = vshll.u32 2102212464, %v1395
          %v1408 = vshrl.u32 920167782, %v1396
          %v1409 = vor.u32 %v1407, %v1408
          %v1410 = vshll.u32 920167782, %v1395
          %v1411 = vshrl.u32 1326507024, %v1396
          %v1412 = vor.u32 %v1410, %v1411
          %vm1413 = vcmp.lt.s32.totalorder %v1394, 1
          %vm1414 = vcmp.lt.s32.totalorder %v1394, 2
          %vm1415 = vcmp.lt.s32.totalorder %v1394, 3
          %vm1416 = vcmp.lt.s32.totalorder %v1394, 4
          %v1417 = vsel %vm1413, %v1397, %v1400
          %v1418 = vsel %vm1416, %v1406, 2102212464
          %v1419 = vsel %vm1415, %v1403, %v1418
          %v1420 = vsel %vm1414, %v1417, %v1419
          %v1421 = vsel %vm1413, %v1400, %v1403
          %v1422 = vsel %vm1416, %v1409, 920167782
          %v1423 = vsel %vm1415, %v1406, %v1422
          %v1424 = vsel %vm1414, %v1421, %v1423
          %v1425 = vsel %vm1413, %v1403, %v1406
          %v1426 = vsel %vm1416, %v1412, 1326507024
          %v1427 = vsel %vm1415, %v1409, %v1426
          %v1428 = vsel %vm1414, %v1425, %v1427
          %v1429 = vshll.u32 %v1389, 8
          %v1430 = vmul.u32.u64.compose %v1429, %v1428
          %v1431 = vextract.low.u32 %v1430
          %v1432 = vextract.high.u32 %v1430
          %v1433 = vmul.u32.u64.compose %v1429, %v1424
          %v1434 = vextract.low.u32 %v1433
          %v1435 = vextract.high.u32 %v1433
          %v1436 = vmul.u32 %v1429, %v1420
          %v1437 = vadd.s32 %v1432, %v1434
          %vm1438 = vc.u32 %v1432, %v1434
          %v1439 = vadd.s32 %v1435, 1
          %v1440 = vsel %vm1438, %v1439, %v1435
          %v1441 = vadd.s32 %v1436, %v1440
          %v1442 = vadd.s32 %v1441, 536870912
          %v1443 = vshrl.u32 %v1442, 30
          %v1444 = vshll.u32 %v1443, 30
          %v1445 = vsub.s32 %v1441, %v1444
          %vm1446 = vcmp.lt.s32.totalorder %v1445, 0
          %v1447 = vsub.s32 0, %v1445
          %v1448 = vsel %vm1446, %v1447, %v1445
          %v1449 = vclz %v1448
          %v1450 = vsub.s32 %v1449, 2
          %vm1451 = vcmp.gt.s32.totalorder 0, %v1450
          %v1452 = vsel %vm1451, 0, %v1450
          %v1453 = vsub.s32 32, %v1452
          %v1454 = vshll.u32 %v1445, %v1452
          %v1455 = vshrl.u32 %v1437, %v1453
          %v1456 = vor.u32 %v1454, %v1455
          %v1457 = vsub.s32 4294967266, %v1452
          %v1458 = vadd.s32 %v1457, 127
          %v1459 = vshll.u32 %v1458, 23
          %v1460 = vor.u32 4788187, %v1459
          %v1461 = vand.u32 2147483647, %v1460
          %v1463 = vcvt.s32.f32 %v1456
          %v1464 = vmul.f32 %v1463, %v1461
          %v1465 = vxor.u32 %v1464, 2147483648
          %v1466 = vsel %vm1383, %v1465, %v1464
          %v1467 = vsub.s32 4, %v1443
          %v1468 = vsel %vm1383, %v1467, %v1443
          %v1469 = vsel %vm1382, %v549, %v1466
          %v1470 = vsel %vm1382, 0, %v1468
          %v1471 = vcosq.f32.pop %v1469
          %v1472 = vsinq.f32.pop %v1469
          %vm1473 = vweird.f32 %v549
          %v1474 = vand.u32 %v1470, 3
          %vm1475 = vcmp.lt.s32.totalorder %v1474, 2
          %vm1476 = vcmp.eq.s32.totalorder %v1474, 0
          %v1477 = vxor.u32 %v1472, 2147483648
          %v1478 = vsel %vm1476, %v1471, %v1477
          %vm1479 = vcmp.eq.s32.totalorder %v1474, 2
          %v1480 = vxor.u32 %v1471, 2147483648
          %v1481 = vsel %vm1479, %v1480, %v1472
          %v1482 = vsel %vm1475, %v1478, %v1481
          %v1483 = vsel %vm1473, nan, %v1482
          %v1484 = vand.u32 2147483647, %v550
          %vm1485 = vcmp.le.f32.partialorder %v1484, 0.7853982
          %vm1486 = vcmp.lt.s32.totalorder %v550, 0
          %v1487 = vand.u32 %v550, 2139095040
          %v1488 = vshrl.u32 %v1487, 23
          %v1489 = vsub.s32 %v1488, 127
          %v1490 = vand.u32 2147483647, %v550
          %v1491 = vand.u32 %v1490, 8388607
          %v1492 = vor.u32 %v1491, 8388608
          %v1493 = vsub.s32 0, %v1492
          %v1494 = vadd.s32 %v1489, 1
          %vm1495 = vcmp.gt.s32.totalorder %v1494, 0
          %v1496 = vsel %vm1495, %v1494, 0
          %v1497 = vshrl.u32 %v1496, 5
          %v1498 = vand.u32 %v1496, 31
          %v1499 = vsub.s32 32, %v1498
          %v1500 = vshrl.u32 683565275, %v1499
          %v1501 = vshll.u32 683565275, %v1498
          %v1502 = vshrl.u32 2475754826, %v1499
          %v1503 = vor.u32 %v1501, %v1502
          %v1504 = vshll.u32 2475754826, %v1498
          %v1505 = vshrl.u32 2131351028, %v1499
          %v1506 = vor.u32 %v1504, %v1505
          %v1507 = vshll.u32 2131351028, %v1498
          %v1508 = vshrl.u32 2102212464, %v1499
          %v1509 = vor.u32 %v1507, %v1508
          %v1510 = vshll.u32 2102212464, %v1498
          %v1511 = vshrl.u32 920167782, %v1499
          %v1512 = vor.u32 %v1510, %v1511
          %v1513 = vshll.u32 920167782, %v1498
          %v1514 = vshrl.u32 1326507024, %v1499
          %v1515 = vor.u32 %v1513, %v1514
          %vm1516 = vcmp.lt.s32.totalorder %v1497, 1
          %vm1517 = vcmp.lt.s32.totalorder %v1497, 2
          %vm1518 = vcmp.lt.s32.totalorder %v1497, 3
          %vm1519 = vcmp.lt.s32.totalorder %v1497, 4
          %v1520 = vsel %vm1516, %v1500, %v1503
          %v1521 = vsel %vm1519, %v1509, 2102212464
          %v1522 = vsel %vm1518, %v1506, %v1521
          %v1523 = vsel %vm1517, %v1520, %v1522
          %v1524 = vsel %vm1516, %v1503, %v1506
          %v1525 = vsel %vm1519, %v1512, 920167782
          %v1526 = vsel %vm1518, %v1509, %v1525
          %v1527 = vsel %vm1517, %v1524, %v1526
          %v1528 = vsel %vm1516, %v1506, %v1509
          %v1529 = vsel %vm1519, %v1515, 1326507024
          %v1530 = vsel %vm1518, %v1512, %v1529
          %v1531 = vsel %vm1517, %v1528, %v1530
          %v1532 = vshll.u32 %v1492, 8
          %v1533 = vmul.u32.u64.compose %v1532, %v1531
          %v1534 = vextract.low.u32 %v1533
          %v1535 = vextract.high.u32 %v1533
          %v1536 = vmul.u32.u64.compose %v1532, %v1527
          %v1537 = vextract.low.u32 %v1536
          %v1538 = vextract.high.u32 %v1536
          %v1539 = vmul.u32 %v1532, %v1523
          %v1540 = vadd.s32 %v1535, %v1537
          %vm1541 = vc.u32 %v1535, %v1537
          %v1542 = vadd.s32 %v1538, 1
          %v1543 = vsel %vm1541, %v1542, %v1538
          %v1544 = vadd.s32 %v1539, %v1543
          %v1545 = vadd.s32 %v1544, 536870912
          %v1546 = vshrl.u32 %v1545, 30
          %v1547 = vshll.u32 %v1546, 30
          %v1548 = vsub.s32 %v1544, %v1547
          %vm1549 = vcmp.lt.s32.totalorder %v1548, 0
          %v1550 = vsub.s32 0, %v1548
          %v1551 = vsel %vm1549, %v1550, %v1548
          %v1552 = vclz %v1551
          %v1553 = vsub.s32 %v1552, 2
          %vm1554 = vcmp.gt.s32.totalorder 0, %v1553
          %v1555 = vsel %vm1554, 0, %v1553
          %v1556 = vsub.s32 32, %v1555
          %v1557 = vshll.u32 %v1548, %v1555
          %v1558 = vshrl.u32 %v1540, %v1556
          %v1559 = vor.u32 %v1557, %v1558
          %v1560 = vsub.s32 4294967266, %v1555
          %v1561 = vadd.s32 %v1560, 127
          %v1562 = vshll.u32 %v1561, 23
          %v1563 = vor.u32 4788187, %v1562
          %v1564 = vand.u32 2147483647, %v1563
          %v1566 = vcvt.s32.f32 %v1559
          %v1567 = vmul.f32 %v1566, %v1564
          %v1568 = vxor.u32 %v1567, 2147483648
          %v1569 = vsel %vm1486, %v1568, %v1567
          %v1570 = vsub.s32 4, %v1546
          %v1571 = vsel %vm1486, %v1570, %v1546
          %v1572 = vsel %vm1485, %v550, %v1569
          %v1573 = vsel %vm1485, 0, %v1571
          %v1574 = vcosq.f32.pop %v1572
          %v1575 = vsinq.f32.pop %v1572
          %vm1576 = vweird.f32 %v550
          %v1577 = vand.u32 %v1573, 3
          %vm1578 = vcmp.lt.s32.totalorder %v1577, 2
          %vm1579 = vcmp.eq.s32.totalorder %v1577, 0
          %v1580 = vxor.u32 %v1575, 2147483648
          %v1581 = vsel %vm1579, %v1574, %v1580
          %vm1582 = vcmp.eq.s32.totalorder %v1577, 2
          %v1583 = vxor.u32 %v1574, 2147483648
          %v1584 = vsel %vm1582, %v1583, %v1575
          %v1585 = vsel %vm1578, %v1581, %v1584
          %v1586 = vsel %vm1576, nan, %v1585
          %v1587 = vand.u32 2147483647, %v551
          %vm1588 = vcmp.le.f32.partialorder %v1587, 0.7853982
          %vm1589 = vcmp.lt.s32.totalorder %v551, 0
          %v1590 = vand.u32 %v551, 2139095040
          %v1591 = vshrl.u32 %v1590, 23
          %v1592 = vsub.s32 %v1591, 127
          %v1593 = vand.u32 2147483647, %v551
          %v1594 = vand.u32 %v1593, 8388607
          %v1595 = vor.u32 %v1594, 8388608
          %v1596 = vsub.s32 0, %v1595
          %v1597 = vadd.s32 %v1592, 1
          %vm1598 = vcmp.gt.s32.totalorder %v1597, 0
          %v1599 = vsel %vm1598, %v1597, 0
          %v1600 = vshrl.u32 %v1599, 5
          %v1601 = vand.u32 %v1599, 31
          %v1602 = vsub.s32 32, %v1601
          %v1603 = vshrl.u32 683565275, %v1602
          %v1604 = vshll.u32 683565275, %v1601
          %v1605 = vshrl.u32 2475754826, %v1602
          %v1606 = vor.u32 %v1604, %v1605
          %v1607 = vshll.u32 2475754826, %v1601
          %v1608 = vshrl.u32 2131351028, %v1602
          %v1609 = vor.u32 %v1607, %v1608
          %v1610 = vshll.u32 2131351028, %v1601
          %v1611 = vshrl.u32 2102212464, %v1602
          %v1612 = vor.u32 %v1610, %v1611
          %v1613 = vshll.u32 2102212464, %v1601
          %v1614 = vshrl.u32 920167782, %v1602
          %v1615 = vor.u32 %v1613, %v1614
          %v1616 = vshll.u32 920167782, %v1601
          %v1617 = vshrl.u32 1326507024, %v1602
          %v1618 = vor.u32 %v1616, %v1617
          %vm1619 = vcmp.lt.s32.totalorder %v1600, 1
          %vm1620 = vcmp.lt.s32.totalorder %v1600, 2
          %vm1621 = vcmp.lt.s32.totalorder %v1600, 3
          %vm1622 = vcmp.lt.s32.totalorder %v1600, 4
          %v1623 = vsel %vm1619, %v1603, %v1606
          %v1624 = vsel %vm1622, %v1612, 2102212464
          %v1625 = vsel %vm1621, %v1609, %v1624
          %v1626 = vsel %vm1620, %v1623, %v1625
          %v1627 = vsel %vm1619, %v1606, %v1609
          %v1628 = vsel %vm1622, %v1615, 920167782
          %v1629 = vsel %vm1621, %v1612, %v1628
          %v1630 = vsel %vm1620, %v1627, %v1629
          %v1631 = vsel %vm1619, %v1609, %v1612
          %v1632 = vsel %vm1622, %v1618, 1326507024
          %v1633 = vsel %vm1621, %v1615, %v1632
          %v1634 = vsel %vm1620, %v1631, %v1633
          %v1635 = vshll.u32 %v1595, 8
          %v1636 = vmul.u32.u64.compose %v1635, %v1634
          %v1637 = vextract.low.u32 %v1636
          %v1638 = vextract.high.u32 %v1636
          %v1639 = vmul.u32.u64.compose %v1635, %v1630
          %v1640 = vextract.low.u32 %v1639
          %v1641 = vextract.high.u32 %v1639
          %v1642 = vmul.u32 %v1635, %v1626
          %v1643 = vadd.s32 %v1638, %v1640
          %vm1644 = vc.u32 %v1638, %v1640
          %v1645 = vadd.s32 %v1641, 1
          %v1646 = vsel %vm1644, %v1645, %v1641
          %v1647 = vadd.s32 %v1642, %v1646
          %v1648 = vadd.s32 %v1647, 536870912
          %v1649 = vshrl.u32 %v1648, 30
          %v1650 = vshll.u32 %v1649, 30
          %v1651 = vsub.s32 %v1647, %v1650
          %vm1652 = vcmp.lt.s32.totalorder %v1651, 0
          %v1653 = vsub.s32 0, %v1651
          %v1654 = vsel %vm1652, %v1653, %v1651
          %v1655 = vclz %v1654
          %v1656 = vsub.s32 %v1655, 2
          %vm1657 = vcmp.gt.s32.totalorder 0, %v1656
          %v1658 = vsel %vm1657, 0, %v1656
          %v1659 = vsub.s32 32, %v1658
          %v1660 = vshll.u32 %v1651, %v1658
          %v1661 = vshrl.u32 %v1643, %v1659
          %v1662 = vor.u32 %v1660, %v1661
          %v1663 = vsub.s32 4294967266, %v1658
          %v1664 = vadd.s32 %v1663, 127
          %v1665 = vshll.u32 %v1664, 23
          %v1666 = vor.u32 4788187, %v1665
          %v1667 = vand.u32 2147483647, %v1666
          %v1669 = vcvt.s32.f32 %v1662
          %v1670 = vmul.f32 %v1669, %v1667
          %v1671 = vxor.u32 %v1670, 2147483648
          %v1672 = vsel %vm1589, %v1671, %v1670
          %v1673 = vsub.s32 4, %v1649
          %v1674 = vsel %vm1589, %v1673, %v1649
          %v1675 = vsel %vm1588, %v551, %v1672
          %v1676 = vsel %vm1588, 0, %v1674
          %v1677 = vcosq.f32.pop %v1675
          %v1678 = vsinq.f32.pop %v1675
          %vm1679 = vweird.f32 %v551
          %v1680 = vand.u32 %v1676, 3
          %vm1681 = vcmp.lt.s32.totalorder %v1680, 2
          %vm1682 = vcmp.eq.s32.totalorder %v1680, 0
          %v1683 = vxor.u32 %v1678, 2147483648
          %v1684 = vsel %vm1682, %v1677, %v1683
          %vm1685 = vcmp.eq.s32.totalorder %v1680, 2
          %v1686 = vxor.u32 %v1677, 2147483648
          %v1687 = vsel %vm1685, %v1686, %v1678
          %v1688 = vsel %vm1681, %v1684, %v1687
          %v1689 = vsel %vm1679, nan, %v1688
          %v1690 = vand.u32 2147483647, %v552
          %vm1691 = vcmp.le.f32.partialorder %v1690, 0.7853982
          %vm1692 = vcmp.lt.s32.totalorder %v552, 0
          %v1693 = vand.u32 %v552, 2139095040
          %v1694 = vshrl.u32 %v1693, 23
          %v1695 = vsub.s32 %v1694, 127
          %v1696 = vand.u32 2147483647, %v552
          %v1697 = vand.u32 %v1696, 8388607
          %v1698 = vor.u32 %v1697, 8388608
          %v1699 = vsub.s32 0, %v1698
          %v1700 = vadd.s32 %v1695, 1
          %vm1701 = vcmp.gt.s32.totalorder %v1700, 0
          %v1702 = vsel %vm1701, %v1700, 0
          %v1703 = vshrl.u32 %v1702, 5
          %v1704 = vand.u32 %v1702, 31
          %v1705 = vsub.s32 32, %v1704
          %v1706 = vshrl.u32 683565275, %v1705
          %v1707 = vshll.u32 683565275, %v1704
          %v1708 = vshrl.u32 2475754826, %v1705
          %v1709 = vor.u32 %v1707, %v1708
          %v1710 = vshll.u32 2475754826, %v1704
          %v1711 = vshrl.u32 2131351028, %v1705
          %v1712 = vor.u32 %v1710, %v1711
          %v1713 = vshll.u32 2131351028, %v1704
          %v1714 = vshrl.u32 2102212464, %v1705
          %v1715 = vor.u32 %v1713, %v1714
          %v1716 = vshll.u32 2102212464, %v1704
          %v1717 = vshrl.u32 920167782, %v1705
          %v1718 = vor.u32 %v1716, %v1717
          %v1719 = vshll.u32 920167782, %v1704
          %v1720 = vshrl.u32 1326507024, %v1705
          %v1721 = vor.u32 %v1719, %v1720
          %vm1722 = vcmp.lt.s32.totalorder %v1703, 1
          %vm1723 = vcmp.lt.s32.totalorder %v1703, 2
          %vm1724 = vcmp.lt.s32.totalorder %v1703, 3
          %vm1725 = vcmp.lt.s32.totalorder %v1703, 4
          %v1726 = vsel %vm1722, %v1706, %v1709
          %v1727 = vsel %vm1725, %v1715, 2102212464
          %v1728 = vsel %vm1724, %v1712, %v1727
          %v1729 = vsel %vm1723, %v1726, %v1728
          %v1730 = vsel %vm1722, %v1709, %v1712
          %v1731 = vsel %vm1725, %v1718, 920167782
          %v1732 = vsel %vm1724, %v1715, %v1731
          %v1733 = vsel %vm1723, %v1730, %v1732
          %v1734 = vsel %vm1722, %v1712, %v1715
          %v1735 = vsel %vm1725, %v1721, 1326507024
          %v1736 = vsel %vm1724, %v1718, %v1735
          %v1737 = vsel %vm1723, %v1734, %v1736
          %v1738 = vshll.u32 %v1698, 8
          %v1739 = vmul.u32.u64.compose %v1738, %v1737
          %v1740 = vextract.low.u32 %v1739
          %v1741 = vextract.high.u32 %v1739
          %v1742 = vmul.u32.u64.compose %v1738, %v1733
          %v1743 = vextract.low.u32 %v1742
          %v1744 = vextract.high.u32 %v1742
          %v1745 = vmul.u32 %v1738, %v1729
          %v1746 = vadd.s32 %v1741, %v1743
          %vm1747 = vc.u32 %v1741, %v1743
          %v1748 = vadd.s32 %v1744, 1
          %v1749 = vsel %vm1747, %v1748, %v1744
          %v1750 = vadd.s32 %v1745, %v1749
          %v1751 = vadd.s32 %v1750, 536870912
          %v1752 = vshrl.u32 %v1751, 30
          %v1753 = vshll.u32 %v1752, 30
          %v1754 = vsub.s32 %v1750, %v1753
          %vm1755 = vcmp.lt.s32.totalorder %v1754, 0
          %v1756 = vsub.s32 0, %v1754
          %v1757 = vsel %vm1755, %v1756, %v1754
          %v1758 = vclz %v1757
          %v1759 = vsub.s32 %v1758, 2
          %vm1760 = vcmp.gt.s32.totalorder 0, %v1759
          %v1761 = vsel %vm1760, 0, %v1759
          %v1762 = vsub.s32 32, %v1761
          %v1763 = vshll.u32 %v1754, %v1761
          %v1764 = vshrl.u32 %v1746, %v1762
          %v1765 = vor.u32 %v1763, %v1764
          %v1766 = vsub.s32 4294967266, %v1761
          %v1767 = vadd.s32 %v1766, 127
          %v1768 = vshll.u32 %v1767, 23
          %v1769 = vor.u32 4788187, %v1768
          %v1770 = vand.u32 2147483647, %v1769
          %v1772 = vcvt.s32.f32 %v1765
          %v1773 = vmul.f32 %v1772, %v1770
          %v1774 = vxor.u32 %v1773, 2147483648
          %v1775 = vsel %vm1692, %v1774, %v1773
          %v1776 = vsub.s32 4, %v1752
          %v1777 = vsel %vm1692, %v1776, %v1752
          %v1778 = vsel %vm1691, %v552, %v1775
          %v1779 = vsel %vm1691, 0, %v1777
          %v1780 = vcosq.f32.pop %v1778
          %v1781 = vsinq.f32.pop %v1778
          %vm1782 = vweird.f32 %v552
          %v1783 = vand.u32 %v1779, 3
          %vm1784 = vcmp.lt.s32.totalorder %v1783, 2
          %vm1785 = vcmp.eq.s32.totalorder %v1783, 0
          %v1786 = vxor.u32 %v1781, 2147483648
          %v1787 = vsel %vm1785, %v1780, %v1786
          %vm1788 = vcmp.eq.s32.totalorder %v1783, 2
          %v1789 = vxor.u32 %v1780, 2147483648
          %v1790 = vsel %vm1788, %v1789, %v1781
          %v1791 = vsel %vm1784, %v1787, %v1790
          %v1792 = vsel %vm1782, nan, %v1791
          %v1793 = vand.u32 2147483647, %v553
          %vm1794 = vcmp.le.f32.partialorder %v1793, 0.7853982
          %vm1795 = vcmp.lt.s32.totalorder %v553, 0
          %v1796 = vand.u32 %v553, 2139095040
          %v1797 = vshrl.u32 %v1796, 23
          %v1798 = vsub.s32 %v1797, 127
          %v1799 = vand.u32 2147483647, %v553
          %v1800 = vand.u32 %v1799, 8388607
          %v1801 = vor.u32 %v1800, 8388608
          %v1802 = vsub.s32 0, %v1801
          %v1803 = vadd.s32 %v1798, 1
          %vm1804 = vcmp.gt.s32.totalorder %v1803, 0
          %v1805 = vsel %vm1804, %v1803, 0
          %v1806 = vshrl.u32 %v1805, 5
          %v1807 = vand.u32 %v1805, 31
          %v1808 = vsub.s32 32, %v1807
          %v1809 = vshrl.u32 683565275, %v1808
          %v1810 = vshll.u32 683565275, %v1807
          %v1811 = vshrl.u32 2475754826, %v1808
          %v1812 = vor.u32 %v1810, %v1811
          %v1813 = vshll.u32 2475754826, %v1807
          %v1814 = vshrl.u32 2131351028, %v1808
          %v1815 = vor.u32 %v1813, %v1814
          %v1816 = vshll.u32 2131351028, %v1807
          %v1817 = vshrl.u32 2102212464, %v1808
          %v1818 = vor.u32 %v1816, %v1817
          %v1819 = vshll.u32 2102212464, %v1807
          %v1820 = vshrl.u32 920167782, %v1808
          %v1821 = vor.u32 %v1819, %v1820
          %v1822 = vshll.u32 920167782, %v1807
          %v1823 = vshrl.u32 1326507024, %v1808
          %v1824 = vor.u32 %v1822, %v1823
          %vm1825 = vcmp.lt.s32.totalorder %v1806, 1
          %vm1826 = vcmp.lt.s32.totalorder %v1806, 2
          %vm1827 = vcmp.lt.s32.totalorder %v1806, 3
          %vm1828 = vcmp.lt.s32.totalorder %v1806, 4
          %v1829 = vsel %vm1825, %v1809, %v1812
          %v1830 = vsel %vm1828, %v1818, 2102212464
          %v1831 = vsel %vm1827, %v1815, %v1830
          %v1832 = vsel %vm1826, %v1829, %v1831
          %v1833 = vsel %vm1825, %v1812, %v1815
          %v1834 = vsel %vm1828, %v1821, 920167782
          %v1835 = vsel %vm1827, %v1818, %v1834
          %v1836 = vsel %vm1826, %v1833, %v1835
          %v1837 = vsel %vm1825, %v1815, %v1818
          %v1838 = vsel %vm1828, %v1824, 1326507024
          %v1839 = vsel %vm1827, %v1821, %v1838
          %v1840 = vsel %vm1826, %v1837, %v1839
          %v1841 = vshll.u32 %v1801, 8
          %v1842 = vmul.u32.u64.compose %v1841, %v1840
          %v1843 = vextract.low.u32 %v1842
          %v1844 = vextract.high.u32 %v1842
          %v1845 = vmul.u32.u64.compose %v1841, %v1836
          %v1846 = vextract.low.u32 %v1845
          %v1847 = vextract.high.u32 %v1845
          %v1848 = vmul.u32 %v1841, %v1832
          %v1849 = vadd.s32 %v1844, %v1846
          %vm1850 = vc.u32 %v1844, %v1846
          %v1851 = vadd.s32 %v1847, 1
          %v1852 = vsel %vm1850, %v1851, %v1847
          %v1853 = vadd.s32 %v1848, %v1852
          %v1854 = vadd.s32 %v1853, 536870912
          %v1855 = vshrl.u32 %v1854, 30
          %v1856 = vshll.u32 %v1855, 30
          %v1857 = vsub.s32 %v1853, %v1856
          %vm1858 = vcmp.lt.s32.totalorder %v1857, 0
          %v1859 = vsub.s32 0, %v1857
          %v1860 = vsel %vm1858, %v1859, %v1857
          %v1861 = vclz %v1860
          %v1862 = vsub.s32 %v1861, 2
          %vm1863 = vcmp.gt.s32.totalorder 0, %v1862
          %v1864 = vsel %vm1863, 0, %v1862
          %v1865 = vsub.s32 32, %v1864
          %v1866 = vshll.u32 %v1857, %v1864
          %v1867 = vshrl.u32 %v1849, %v1865
          %v1868 = vor.u32 %v1866, %v1867
          %v1869 = vsub.s32 4294967266, %v1864
          %v1870 = vadd.s32 %v1869, 127
          %v1871 = vshll.u32 %v1870, 23
          %v1872 = vor.u32 4788187, %v1871
          %v1873 = vand.u32 2147483647, %v1872
          %v1875 = vcvt.s32.f32 %v1868
          %v1876 = vmul.f32 %v1875, %v1873
          %v1877 = vxor.u32 %v1876, 2147483648
          %v1878 = vsel %vm1795, %v1877, %v1876
          %v1879 = vsub.s32 4, %v1855
          %v1880 = vsel %vm1795, %v1879, %v1855
          %v1881 = vsel %vm1794, %v553, %v1878
          %v1882 = vsel %vm1794, 0, %v1880
          %v1883 = vcosq.f32.pop %v1881
          %v1884 = vsinq.f32.pop %v1881
          %vm1885 = vweird.f32 %v553
          %v1886 = vand.u32 %v1882, 3
          %vm1887 = vcmp.lt.s32.totalorder %v1886, 2
          %vm1888 = vcmp.eq.s32.totalorder %v1886, 0
          %v1889 = vxor.u32 %v1884, 2147483648
          %v1890 = vsel %vm1888, %v1883, %v1889
          %vm1891 = vcmp.eq.s32.totalorder %v1886, 2
          %v1892 = vxor.u32 %v1883, 2147483648
          %v1893 = vsel %vm1891, %v1892, %v1884
          %v1894 = vsel %vm1887, %v1890, %v1893
          %v1895 = vsel %vm1885, nan, %v1894
          %v1896 = vand.u32 2147483647, %v554
          %vm1897 = vcmp.le.f32.partialorder %v1896, 0.7853982
          %vm1898 = vcmp.lt.s32.totalorder %v554, 0
          %v1899 = vand.u32 %v554, 2139095040
          %v1900 = vshrl.u32 %v1899, 23
          %v1901 = vsub.s32 %v1900, 127
          %v1902 = vand.u32 2147483647, %v554
          %v1903 = vand.u32 %v1902, 8388607
          %v1904 = vor.u32 %v1903, 8388608
          %v1905 = vsub.s32 0, %v1904
          %v1906 = vadd.s32 %v1901, 1
          %vm1907 = vcmp.gt.s32.totalorder %v1906, 0
          %v1908 = vsel %vm1907, %v1906, 0
          %v1909 = vshrl.u32 %v1908, 5
          %v1910 = vand.u32 %v1908, 31
          %v1911 = vsub.s32 32, %v1910
          %v1912 = vshrl.u32 683565275, %v1911
          %v1913 = vshll.u32 683565275, %v1910
          %v1914 = vshrl.u32 2475754826, %v1911
          %v1915 = vor.u32 %v1913, %v1914
          %v1916 = vshll.u32 2475754826, %v1910
          %v1917 = vshrl.u32 2131351028, %v1911
          %v1918 = vor.u32 %v1916, %v1917
          %v1919 = vshll.u32 2131351028, %v1910
          %v1920 = vshrl.u32 2102212464, %v1911
          %v1921 = vor.u32 %v1919, %v1920
          %v1922 = vshll.u32 2102212464, %v1910
          %v1923 = vshrl.u32 920167782, %v1911
          %v1924 = vor.u32 %v1922, %v1923
          %v1925 = vshll.u32 920167782, %v1910
          %v1926 = vshrl.u32 1326507024, %v1911
          %v1927 = vor.u32 %v1925, %v1926
          %vm1928 = vcmp.lt.s32.totalorder %v1909, 1
          %vm1929 = vcmp.lt.s32.totalorder %v1909, 2
          %vm1930 = vcmp.lt.s32.totalorder %v1909, 3
          %vm1931 = vcmp.lt.s32.totalorder %v1909, 4
          %v1932 = vsel %vm1928, %v1912, %v1915
          %v1933 = vsel %vm1931, %v1921, 2102212464
          %v1934 = vsel %vm1930, %v1918, %v1933
          %v1935 = vsel %vm1929, %v1932, %v1934
          %v1936 = vsel %vm1928, %v1915, %v1918
          %v1937 = vsel %vm1931, %v1924, 920167782
          %v1938 = vsel %vm1930, %v1921, %v1937
          %v1939 = vsel %vm1929, %v1936, %v1938
          %v1940 = vsel %vm1928, %v1918, %v1921
          %v1941 = vsel %vm1931, %v1927, 1326507024
          %v1942 = vsel %vm1930, %v1924, %v1941
          %v1943 = vsel %vm1929, %v1940, %v1942
          %v1944 = vshll.u32 %v1904, 8
          %v1945 = vmul.u32.u64.compose %v1944, %v1943
          %v1946 = vextract.low.u32 %v1945
          %v1947 = vextract.high.u32 %v1945
          %v1948 = vmul.u32.u64.compose %v1944, %v1939
          %v1949 = vextract.low.u32 %v1948
          %v1950 = vextract.high.u32 %v1948
          %v1951 = vmul.u32 %v1944, %v1935
          %v1952 = vadd.s32 %v1947, %v1949
          %vm1953 = vc.u32 %v1947, %v1949
          %v1954 = vadd.s32 %v1950, 1
          %v1955 = vsel %vm1953, %v1954, %v1950
          %v1956 = vadd.s32 %v1951, %v1955
          %v1957 = vadd.s32 %v1956, 536870912
          %v1958 = vshrl.u32 %v1957, 30
          %v1959 = vshll.u32 %v1958, 30
          %v1960 = vsub.s32 %v1956, %v1959
          %vm1961 = vcmp.lt.s32.totalorder %v1960, 0
          %v1962 = vsub.s32 0, %v1960
          %v1963 = vsel %vm1961, %v1962, %v1960
          %v1964 = vclz %v1963
          %v1965 = vsub.s32 %v1964, 2
          %vm1966 = vcmp.gt.s32.totalorder 0, %v1965
          %v1967 = vsel %vm1966, 0, %v1965
          %v1968 = vsub.s32 32, %v1967
          %v1969 = vshll.u32 %v1960, %v1967
          %v1970 = vshrl.u32 %v1952, %v1968
          %v1971 = vor.u32 %v1969, %v1970
          %v1972 = vsub.s32 4294967266, %v1967
          %v1973 = vadd.s32 %v1972, 127
          %v1974 = vshll.u32 %v1973, 23
          %v1975 = vor.u32 4788187, %v1974
          %v1976 = vand.u32 2147483647, %v1975
          %v1978 = vcvt.s32.f32 %v1971
          %v1979 = vmul.f32 %v1978, %v1976
          %v1980 = vxor.u32 %v1979, 2147483648
          %v1981 = vsel %vm1898, %v1980, %v1979
          %v1982 = vsub.s32 4, %v1958
          %v1983 = vsel %vm1898, %v1982, %v1958
          %v1984 = vsel %vm1897, %v554, %v1981
          %v1985 = vsel %vm1897, 0, %v1983
          %v1986 = vcosq.f32.pop %v1984
          %v1987 = vsinq.f32.pop %v1984
          %vm1988 = vweird.f32 %v554
          %v1989 = vand.u32 %v1985, 3
          %vm1990 = vcmp.lt.s32.totalorder %v1989, 2
          %vm1991 = vcmp.eq.s32.totalorder %v1989, 0
          %v1992 = vxor.u32 %v1987, 2147483648
          %v1993 = vsel %vm1991, %v1986, %v1992
          %vm1994 = vcmp.eq.s32.totalorder %v1989, 2
          %v1995 = vxor.u32 %v1986, 2147483648
          %v1996 = vsel %vm1994, %v1995, %v1987
          %v1997 = vsel %vm1990, %v1993, %v1996
          %v1998 = vsel %vm1988, nan, %v1997
          %v1999 = vand.u32 2147483647, %v555
          %vm2000 = vcmp.le.f32.partialorder %v1999, 0.7853982
          %vm2001 = vcmp.lt.s32.totalorder %v555, 0
          %v2002 = vand.u32 %v555, 2139095040
          %v2003 = vshrl.u32 %v2002, 23
          %v2004 = vsub.s32 %v2003, 127
          %v2005 = vand.u32 2147483647, %v555
          %v2006 = vand.u32 %v2005, 8388607
          %v2007 = vor.u32 %v2006, 8388608
          %v2008 = vsub.s32 0, %v2007
          %v2009 = vadd.s32 %v2004, 1
          %vm2010 = vcmp.gt.s32.totalorder %v2009, 0
          %v2011 = vsel %vm2010, %v2009, 0
          %v2012 = vshrl.u32 %v2011, 5
          %v2013 = vand.u32 %v2011, 31
          %v2014 = vsub.s32 32, %v2013
          %v2015 = vshrl.u32 683565275, %v2014
          %v2016 = vshll.u32 683565275, %v2013
          %v2017 = vshrl.u32 2475754826, %v2014
          %v2018 = vor.u32 %v2016, %v2017
          %v2019 = vshll.u32 2475754826, %v2013
          %v2020 = vshrl.u32 2131351028, %v2014
          %v2021 = vor.u32 %v2019, %v2020
          %v2022 = vshll.u32 2131351028, %v2013
          %v2023 = vshrl.u32 2102212464, %v2014
          %v2024 = vor.u32 %v2022, %v2023
          %v2025 = vshll.u32 2102212464, %v2013
          %v2026 = vshrl.u32 920167782, %v2014
          %v2027 = vor.u32 %v2025, %v2026
          %v2028 = vshll.u32 920167782, %v2013
          %v2029 = vshrl.u32 1326507024, %v2014
          %v2030 = vor.u32 %v2028, %v2029
          %vm2031 = vcmp.lt.s32.totalorder %v2012, 1
          %vm2032 = vcmp.lt.s32.totalorder %v2012, 2
          %vm2033 = vcmp.lt.s32.totalorder %v2012, 3
          %vm2034 = vcmp.lt.s32.totalorder %v2012, 4
          %v2035 = vsel %vm2031, %v2015, %v2018
          %v2036 = vsel %vm2034, %v2024, 2102212464
          %v2037 = vsel %vm2033, %v2021, %v2036
          %v2038 = vsel %vm2032, %v2035, %v2037
          %v2039 = vsel %vm2031, %v2018, %v2021
          %v2040 = vsel %vm2034, %v2027, 920167782
          %v2041 = vsel %vm2033, %v2024, %v2040
          %v2042 = vsel %vm2032, %v2039, %v2041
          %v2043 = vsel %vm2031, %v2021, %v2024
          %v2044 = vsel %vm2034, %v2030, 1326507024
          %v2045 = vsel %vm2033, %v2027, %v2044
          %v2046 = vsel %vm2032, %v2043, %v2045
          %v2047 = vshll.u32 %v2007, 8
          %v2048 = vmul.u32.u64.compose %v2047, %v2046
          %v2049 = vextract.low.u32 %v2048
          %v2050 = vextract.high.u32 %v2048
          %v2051 = vmul.u32.u64.compose %v2047, %v2042
          %v2052 = vextract.low.u32 %v2051
          %v2053 = vextract.high.u32 %v2051
          %v2054 = vmul.u32 %v2047, %v2038
          %v2055 = vadd.s32 %v2050, %v2052
          %vm2056 = vc.u32 %v2050, %v2052
          %v2057 = vadd.s32 %v2053, 1
          %v2058 = vsel %vm2056, %v2057, %v2053
          %v2059 = vadd.s32 %v2054, %v2058
          %v2060 = vadd.s32 %v2059, 536870912
          %v2061 = vshrl.u32 %v2060, 30
          %v2062 = vshll.u32 %v2061, 30
          %v2063 = vsub.s32 %v2059, %v2062
          %vm2064 = vcmp.lt.s32.totalorder %v2063, 0
          %v2065 = vsub.s32 0, %v2063
          %v2066 = vsel %vm2064, %v2065, %v2063
          %v2067 = vclz %v2066
          %v2068 = vsub.s32 %v2067, 2
          %vm2069 = vcmp.gt.s32.totalorder 0, %v2068
          %v2070 = vsel %vm2069, 0, %v2068
          %v2071 = vsub.s32 32, %v2070
          %v2072 = vshll.u32 %v2063, %v2070
          %v2073 = vshrl.u32 %v2055, %v2071
          %v2074 = vor.u32 %v2072, %v2073
          %v2075 = vsub.s32 4294967266, %v2070
          %v2076 = vadd.s32 %v2075, 127
          %v2077 = vshll.u32 %v2076, 23
          %v2078 = vor.u32 4788187, %v2077
          %v2079 = vand.u32 2147483647, %v2078
          %v2081 = vcvt.s32.f32 %v2074
          %v2082 = vmul.f32 %v2081, %v2079
          %v2083 = vxor.u32 %v2082, 2147483648
          %v2084 = vsel %vm2001, %v2083, %v2082
          %v2085 = vsub.s32 4, %v2061
          %v2086 = vsel %vm2001, %v2085, %v2061
          %v2087 = vsel %vm2000, %v555, %v2084
          %v2088 = vsel %vm2000, 0, %v2086
          %v2089 = vcosq.f32.pop %v2087
          %v2090 = vsinq.f32.pop %v2087
          %vm2091 = vweird.f32 %v555
          %v2092 = vand.u32 %v2088, 3
          %vm2093 = vcmp.lt.s32.totalorder %v2092, 2
          %vm2094 = vcmp.eq.s32.totalorder %v2092, 0
          %v2095 = vxor.u32 %v2090, 2147483648
          %v2096 = vsel %vm2094, %v2089, %v2095
          %vm2097 = vcmp.eq.s32.totalorder %v2092, 2
          %v2098 = vxor.u32 %v2089, 2147483648
          %v2099 = vsel %vm2097, %v2098, %v2090
          %v2100 = vsel %vm2093, %v2096, %v2099
          %v2101 = vsel %vm2091, nan, %v2100
          %v2102 = vand.u32 2147483647, %v556
          %vm2103 = vcmp.le.f32.partialorder %v2102, 0.7853982
          %vm2104 = vcmp.lt.s32.totalorder %v556, 0
          %v2105 = vand.u32 %v556, 2139095040
          %v2106 = vshrl.u32 %v2105, 23
          %v2107 = vsub.s32 %v2106, 127
          %v2108 = vand.u32 2147483647, %v556
          %v2109 = vand.u32 %v2108, 8388607
          %v2110 = vor.u32 %v2109, 8388608
          %v2111 = vsub.s32 0, %v2110
          %v2112 = vadd.s32 %v2107, 1
          %vm2113 = vcmp.gt.s32.totalorder %v2112, 0
          %v2114 = vsel %vm2113, %v2112, 0
          %v2115 = vshrl.u32 %v2114, 5
          %v2116 = vand.u32 %v2114, 31
          %v2117 = vsub.s32 32, %v2116
          %v2118 = vshrl.u32 683565275, %v2117
          %v2119 = vshll.u32 683565275, %v2116
          %v2120 = vshrl.u32 2475754826, %v2117
          %v2121 = vor.u32 %v2119, %v2120
          %v2122 = vshll.u32 2475754826, %v2116
          %v2123 = vshrl.u32 2131351028, %v2117
          %v2124 = vor.u32 %v2122, %v2123
          %v2125 = vshll.u32 2131351028, %v2116
          %v2126 = vshrl.u32 2102212464, %v2117
          %v2127 = vor.u32 %v2125, %v2126
          %v2128 = vshll.u32 2102212464, %v2116
          %v2129 = vshrl.u32 920167782, %v2117
          %v2130 = vor.u32 %v2128, %v2129
          %v2131 = vshll.u32 920167782, %v2116
          %v2132 = vshrl.u32 1326507024, %v2117
          %v2133 = vor.u32 %v2131, %v2132
          %vm2134 = vcmp.lt.s32.totalorder %v2115, 1
          %vm2135 = vcmp.lt.s32.totalorder %v2115, 2
          %vm2136 = vcmp.lt.s32.totalorder %v2115, 3
          %vm2137 = vcmp.lt.s32.totalorder %v2115, 4
          %v2138 = vsel %vm2134, %v2118, %v2121
          %v2139 = vsel %vm2137, %v2127, 2102212464
          %v2140 = vsel %vm2136, %v2124, %v2139
          %v2141 = vsel %vm2135, %v2138, %v2140
          %v2142 = vsel %vm2134, %v2121, %v2124
          %v2143 = vsel %vm2137, %v2130, 920167782
          %v2144 = vsel %vm2136, %v2127, %v2143
          %v2145 = vsel %vm2135, %v2142, %v2144
          %v2146 = vsel %vm2134, %v2124, %v2127
          %v2147 = vsel %vm2137, %v2133, 1326507024
          %v2148 = vsel %vm2136, %v2130, %v2147
          %v2149 = vsel %vm2135, %v2146, %v2148
          %v2150 = vshll.u32 %v2110, 8
          %v2151 = vmul.u32.u64.compose %v2150, %v2149
          %v2152 = vextract.low.u32 %v2151
          %v2153 = vextract.high.u32 %v2151
          %v2154 = vmul.u32.u64.compose %v2150, %v2145
          %v2155 = vextract.low.u32 %v2154
          %v2156 = vextract.high.u32 %v2154
          %v2157 = vmul.u32 %v2150, %v2141
          %v2158 = vadd.s32 %v2153, %v2155
          %vm2159 = vc.u32 %v2153, %v2155
          %v2160 = vadd.s32 %v2156, 1
          %v2161 = vsel %vm2159, %v2160, %v2156
          %v2162 = vadd.s32 %v2157, %v2161
          %v2163 = vadd.s32 %v2162, 536870912
          %v2164 = vshrl.u32 %v2163, 30
          %v2165 = vshll.u32 %v2164, 30
          %v2166 = vsub.s32 %v2162, %v2165
          %vm2167 = vcmp.lt.s32.totalorder %v2166, 0
          %v2168 = vsub.s32 0, %v2166
          %v2169 = vsel %vm2167, %v2168, %v2166
          %v2170 = vclz %v2169
          %v2171 = vsub.s32 %v2170, 2
          %vm2172 = vcmp.gt.s32.totalorder 0, %v2171
          %v2173 = vsel %vm2172, 0, %v2171
          %v2174 = vsub.s32 32, %v2173
          %v2175 = vshll.u32 %v2166, %v2173
          %v2176 = vshrl.u32 %v2158, %v2174
          %v2177 = vor.u32 %v2175, %v2176
          %v2178 = vsub.s32 4294967266, %v2173
          %v2179 = vadd.s32 %v2178, 127
          %v2180 = vshll.u32 %v2179, 23
          %v2181 = vor.u32 4788187, %v2180
          %v2182 = vand.u32 2147483647, %v2181
          %v2184 = vcvt.s32.f32 %v2177
          %v2185 = vmul.f32 %v2184, %v2182
          %v2186 = vxor.u32 %v2185, 2147483648
          %v2187 = vsel %vm2104, %v2186, %v2185
          %v2188 = vsub.s32 4, %v2164
          %v2189 = vsel %vm2104, %v2188, %v2164
          %v2190 = vsel %vm2103, %v556, %v2187
          %v2191 = vsel %vm2103, 0, %v2189
          %v2192 = vcosq.f32.pop %v2190
          %v2193 = vsinq.f32.pop %v2190
          %vm2194 = vweird.f32 %v556
          %v2195 = vand.u32 %v2191, 3
          %vm2196 = vcmp.lt.s32.totalorder %v2195, 2
          %vm2197 = vcmp.eq.s32.totalorder %v2195, 0
          %v2198 = vxor.u32 %v2193, 2147483648
          %v2199 = vsel %vm2197, %v2192, %v2198
          %vm2200 = vcmp.eq.s32.totalorder %v2195, 2
          %v2201 = vxor.u32 %v2192, 2147483648
          %v2202 = vsel %vm2200, %v2201, %v2193
          %v2203 = vsel %vm2196, %v2199, %v2202
          %v2204 = vsel %vm2194, nan, %v2203
          %vm2205 = vcmask 7168
          %2206 = vst.msk [vmem:[#allocation6] sm:$0xff] %vm2205, %v659
          %2207 = vst.msk [vmem:[#allocation6 + $0x8] sm:$0xff] %vm2205, %v762
          %2208 = vst.msk [vmem:[#allocation6 + $0x10] sm:$0xff] %vm2205, %v865
          %2209 = vst.msk [vmem:[#allocation6 + $0x18] sm:$0xff] %vm2205, %v968
          %2210 = vst.msk [vmem:[#allocation6 + $0x20] sm:$0xff] %vm2205, %v1071
          %2211 = vst.msk [vmem:[#allocation6 + $0x28] sm:$0xff] %vm2205, %v1174
          %2212 = vst.msk [vmem:[#allocation6 + $0x30] sm:$0xff] %vm2205, %v1277
          %2213 = vst.msk [vmem:[#allocation6 + $0x38] sm:$0xff] %vm2205, %v1380
          %2214 = vst.msk [vmem:[#allocation6 + $0x40] sm:$0xff] %vm2205, %v1483
          %2215 = vst.msk [vmem:[#allocation6 + $0x48] sm:$0xff] %vm2205, %v1586
          %2216 = vst.msk [vmem:[#allocation6 + $0x50] sm:$0xff] %vm2205, %v1689
          %2217 = vst.msk [vmem:[#allocation6 + $0x58] sm:$0xff] %vm2205, %v1792
          %2218 = vst.msk [vmem:[#allocation6 + $0x60] sm:$0xff] %vm2205, %v1895
          %2219 = vst.msk [vmem:[#allocation6 + $0x68] sm:$0xff] %vm2205, %v1998
          %2220 = vst.msk [vmem:[#allocation6 + $0x70] sm:$0xff] %vm2205, %v2101
          %2221 = vst.msk [vmem:[#allocation6 + $0x78] sm:$0xff] %vm2205, %v2204
          %v2222 = vand.u32 2147483647, %v541
          %vm2223 = vcmp.le.f32.partialorder %v2222, 0.7853982
          %vm2224 = vcmp.lt.s32.totalorder %v541, 0
          %v2225 = vand.u32 %v541, 2139095040
          %v2226 = vshrl.u32 %v2225, 23
          %v2227 = vsub.s32 %v2226, 127
          %v2228 = vand.u32 2147483647, %v541
          %v2229 = vand.u32 %v2228, 8388607
          %v2230 = vor.u32 %v2229, 8388608
          %v2231 = vsub.s32 0, %v2230
          %v2232 = vadd.s32 %v2227, 1
          %vm2233 = vcmp.gt.s32.totalorder %v2232, 0
          %v2234 = vsel %vm2233, %v2232, 0
          %v2235 = vshrl.u32 %v2234, 5
          %v2236 = vand.u32 %v2234, 31
          %v2237 = vsub.s32 32, %v2236
          %v2238 = vshrl.u32 683565275, %v2237
          %v2239 = vshll.u32 683565275, %v2236
          %v2240 = vshrl.u32 2475754826, %v2237
          %v2241 = vor.u32 %v2239, %v2240
          %v2242 = vshll.u32 2475754826, %v2236
          %v2243 = vshrl.u32 2131351028, %v2237
          %v2244 = vor.u32 %v2242, %v2243
          %v2245 = vshll.u32 2131351028, %v2236
          %v2246 = vshrl.u32 2102212464, %v2237
          %v2247 = vor.u32 %v2245, %v2246
          %v2248 = vshll.u32 2102212464, %v2236
          %v2249 = vshrl.u32 920167782, %v2237
          %v2250 = vor.u32 %v2248, %v2249
          %v2251 = vshll.u32 920167782, %v2236
          %v2252 = vshrl.u32 1326507024, %v2237
          %v2253 = vor.u32 %v2251, %v2252
          %vm2254 = vcmp.lt.s32.totalorder %v2235, 1
          %vm2255 = vcmp.lt.s32.totalorder %v2235, 2
          %vm2256 = vcmp.lt.s32.totalorder %v2235, 3
          %vm2257 = vcmp.lt.s32.totalorder %v2235, 4
          %v2258 = vsel %vm2254, %v2238, %v2241
          %v2259 = vsel %vm2257, %v2247, 2102212464
          %v2260 = vsel %vm2256, %v2244, %v2259
          %v2261 = vsel %vm2255, %v2258, %v2260
          %v2262 = vsel %vm2254, %v2241, %v2244
          %v2263 = vsel %vm2257, %v2250, 920167782
          %v2264 = vsel %vm2256, %v2247, %v2263
          %v2265 = vsel %vm2255, %v2262, %v2264
          %v2266 = vsel %vm2254, %v2244, %v2247
          %v2267 = vsel %vm2257, %v2253, 1326507024
          %v2268 = vsel %vm2256, %v2250, %v2267
          %v2269 = vsel %vm2255, %v2266, %v2268
          %v2270 = vshll.u32 %v2230, 8
          %v2271 = vmul.u32.u64.compose %v2270, %v2269
          %v2272 = vextract.low.u32 %v2271
          %v2273 = vextract.high.u32 %v2271
          %v2274 = vmul.u32.u64.compose %v2270, %v2265
          %v2275 = vextract.low.u32 %v2274
          %v2276 = vextract.high.u32 %v2274
          %v2277 = vmul.u32 %v2270, %v2261
          %v2278 = vadd.s32 %v2273, %v2275
          %vm2279 = vc.u32 %v2273, %v2275
          %v2280 = vadd.s32 %v2276, 1
          %v2281 = vsel %vm2279, %v2280, %v2276
          %v2282 = vadd.s32 %v2277, %v2281
          %v2283 = vadd.s32 %v2282, 536870912
          %v2284 = vshrl.u32 %v2283, 30
          %v2285 = vshll.u32 %v2284, 30
          %v2286 = vsub.s32 %v2282, %v2285
          %vm2287 = vcmp.lt.s32.totalorder %v2286, 0
          %v2288 = vsub.s32 0, %v2286
          %v2289 = vsel %vm2287, %v2288, %v2286
          %v2290 = vclz %v2289
          %v2291 = vsub.s32 %v2290, 2
          %vm2292 = vcmp.gt.s32.totalorder 0, %v2291
          %v2293 = vsel %vm2292, 0, %v2291
          %v2294 = vsub.s32 32, %v2293
          %v2295 = vshll.u32 %v2286, %v2293
          %v2296 = vshrl.u32 %v2278, %v2294
          %v2297 = vor.u32 %v2295, %v2296
          %v2298 = vsub.s32 4294967266, %v2293
          %v2299 = vadd.s32 %v2298, 127
          %v2300 = vshll.u32 %v2299, 23
          %v2301 = vor.u32 4788187, %v2300
          %v2302 = vand.u32 2147483647, %v2301
          %v2304 = vcvt.s32.f32 %v2297
          %v2305 = vmul.f32 %v2304, %v2302
          %v2306 = vxor.u32 %v2305, 2147483648
          %v2307 = vsel %vm2224, %v2306, %v2305
          %v2308 = vsub.s32 4, %v2284
          %v2309 = vsel %vm2224, %v2308, %v2284
          %v2310 = vsel %vm2223, %v541, %v2307
          %v2311 = vsel %vm2223, 0, %v2309
          %v2312 = vcosq.f32.pop %v2310
          %v2313 = vsinq.f32.pop %v2310
          %vm2314 = vweird.f32 %v541
          %v2315 = vadd.s32 %v2311, 3
          %v2316 = vand.u32 %v2315, 3
          %vm2317 = vcmp.lt.s32.totalorder %v2316, 2
          %vm2318 = vcmp.eq.s32.totalorder %v2316, 0
          %v2319 = vxor.u32 %v2313, 2147483648
          %v2320 = vsel %vm2318, %v2312, %v2319
          %vm2321 = vcmp.eq.s32.totalorder %v2316, 2
          %v2322 = vxor.u32 %v2312, 2147483648
          %v2323 = vsel %vm2321, %v2322, %v2313
          %v2324 = vsel %vm2317, %v2320, %v2323
          %v2325 = vsel %vm2314, nan, %v2324
          %v2326 = vand.u32 2147483647, %v542
          %vm2327 = vcmp.le.f32.partialorder %v2326, 0.7853982
          %vm2328 = vcmp.lt.s32.totalorder %v542, 0
          %v2329 = vand.u32 %v542, 2139095040
          %v2330 = vshrl.u32 %v2329, 23
          %v2331 = vsub.s32 %v2330, 127
          %v2332 = vand.u32 2147483647, %v542
          %v2333 = vand.u32 %v2332, 8388607
          %v2334 = vor.u32 %v2333, 8388608
          %v2335 = vsub.s32 0, %v2334
          %v2336 = vadd.s32 %v2331, 1
          %vm2337 = vcmp.gt.s32.totalorder %v2336, 0
          %v2338 = vsel %vm2337, %v2336, 0
          %v2339 = vshrl.u32 %v2338, 5
          %v2340 = vand.u32 %v2338, 31
          %v2341 = vsub.s32 32, %v2340
          %v2342 = vshrl.u32 683565275, %v2341
          %v2343 = vshll.u32 683565275, %v2340
          %v2344 = vshrl.u32 2475754826, %v2341
          %v2345 = vor.u32 %v2343, %v2344
          %v2346 = vshll.u32 2475754826, %v2340
          %v2347 = vshrl.u32 2131351028, %v2341
          %v2348 = vor.u32 %v2346, %v2347
          %v2349 = vshll.u32 2131351028, %v2340
          %v2350 = vshrl.u32 2102212464, %v2341
          %v2351 = vor.u32 %v2349, %v2350
          %v2352 = vshll.u32 2102212464, %v2340
          %v2353 = vshrl.u32 920167782, %v2341
          %v2354 = vor.u32 %v2352, %v2353
          %v2355 = vshll.u32 920167782, %v2340
          %v2356 = vshrl.u32 1326507024, %v2341
          %v2357 = vor.u32 %v2355, %v2356
          %vm2358 = vcmp.lt.s32.totalorder %v2339, 1
          %vm2359 = vcmp.lt.s32.totalorder %v2339, 2
          %vm2360 = vcmp.lt.s32.totalorder %v2339, 3
          %vm2361 = vcmp.lt.s32.totalorder %v2339, 4
          %v2362 = vsel %vm2358, %v2342, %v2345
          %v2363 = vsel %vm2361, %v2351, 2102212464
          %v2364 = vsel %vm2360, %v2348, %v2363
          %v2365 = vsel %vm2359, %v2362, %v2364
          %v2366 = vsel %vm2358, %v2345, %v2348
          %v2367 = vsel %vm2361, %v2354, 920167782
          %v2368 = vsel %vm2360, %v2351, %v2367
          %v2369 = vsel %vm2359, %v2366, %v2368
          %v2370 = vsel %vm2358, %v2348, %v2351
          %v2371 = vsel %vm2361, %v2357, 1326507024
          %v2372 = vsel %vm2360, %v2354, %v2371
          %v2373 = vsel %vm2359, %v2370, %v2372
          %v2374 = vshll.u32 %v2334, 8
          %v2375 = vmul.u32.u64.compose %v2374, %v2373
          %v2376 = vextract.low.u32 %v2375
          %v2377 = vextract.high.u32 %v2375
          %v2378 = vmul.u32.u64.compose %v2374, %v2369
          %v2379 = vextract.low.u32 %v2378
          %v2380 = vextract.high.u32 %v2378
          %v2381 = vmul.u32 %v2374, %v2365
          %v2382 = vadd.s32 %v2377, %v2379
          %vm2383 = vc.u32 %v2377, %v2379
          %v2384 = vadd.s32 %v2380, 1
          %v2385 = vsel %vm2383, %v2384, %v2380
          %v2386 = vadd.s32 %v2381, %v2385
          %v2387 = vadd.s32 %v2386, 536870912
          %v2388 = vshrl.u32 %v2387, 30
          %v2389 = vshll.u32 %v2388, 30
          %v2390 = vsub.s32 %v2386, %v2389
          %vm2391 = vcmp.lt.s32.totalorder %v2390, 0
          %v2392 = vsub.s32 0, %v2390
          %v2393 = vsel %vm2391, %v2392, %v2390
          %v2394 = vclz %v2393
          %v2395 = vsub.s32 %v2394, 2
          %vm2396 = vcmp.gt.s32.totalorder 0, %v2395
          %v2397 = vsel %vm2396, 0, %v2395
          %v2398 = vsub.s32 32, %v2397
          %v2399 = vshll.u32 %v2390, %v2397
          %v2400 = vshrl.u32 %v2382, %v2398
          %v2401 = vor.u32 %v2399, %v2400
          %v2402 = vsub.s32 4294967266, %v2397
          %v2403 = vadd.s32 %v2402, 127
          %v2404 = vshll.u32 %v2403, 23
          %v2405 = vor.u32 4788187, %v2404
          %v2406 = vand.u32 2147483647, %v2405
          %v2408 = vcvt.s32.f32 %v2401
          %v2409 = vmul.f32 %v2408, %v2406
          %v2410 = vxor.u32 %v2409, 2147483648
          %v2411 = vsel %vm2328, %v2410, %v2409
          %v2412 = vsub.s32 4, %v2388
          %v2413 = vsel %vm2328, %v2412, %v2388
          %v2414 = vsel %vm2327, %v542, %v2411
          %v2415 = vsel %vm2327, 0, %v2413
          %v2416 = vcosq.f32.pop %v2414
          %v2417 = vsinq.f32.pop %v2414
          %vm2418 = vweird.f32 %v542
          %v2419 = vadd.s32 %v2415, 3
          %v2420 = vand.u32 %v2419, 3
          %vm2421 = vcmp.lt.s32.totalorder %v2420, 2
          %vm2422 = vcmp.eq.s32.totalorder %v2420, 0
          %v2423 = vxor.u32 %v2417, 2147483648
          %v2424 = vsel %vm2422, %v2416, %v2423
          %vm2425 = vcmp.eq.s32.totalorder %v2420, 2
          %v2426 = vxor.u32 %v2416, 2147483648
          %v2427 = vsel %vm2425, %v2426, %v2417
          %v2428 = vsel %vm2421, %v2424, %v2427
          %v2429 = vsel %vm2418, nan, %v2428
          %v2430 = vand.u32 2147483647, %v543
          %vm2431 = vcmp.le.f32.partialorder %v2430, 0.7853982
          %vm2432 = vcmp.lt.s32.totalorder %v543, 0
          %v2433 = vand.u32 %v543, 2139095040
          %v2434 = vshrl.u32 %v2433, 23
          %v2435 = vsub.s32 %v2434, 127
          %v2436 = vand.u32 2147483647, %v543
          %v2437 = vand.u32 %v2436, 8388607
          %v2438 = vor.u32 %v2437, 8388608
          %v2439 = vsub.s32 0, %v2438
          %v2440 = vadd.s32 %v2435, 1
          %vm2441 = vcmp.gt.s32.totalorder %v2440, 0
          %v2442 = vsel %vm2441, %v2440, 0
          %v2443 = vshrl.u32 %v2442, 5
          %v2444 = vand.u32 %v2442, 31
          %v2445 = vsub.s32 32, %v2444
          %v2446 = vshrl.u32 683565275, %v2445
          %v2447 = vshll.u32 683565275, %v2444
          %v2448 = vshrl.u32 2475754826, %v2445
          %v2449 = vor.u32 %v2447, %v2448
          %v2450 = vshll.u32 2475754826, %v2444
          %v2451 = vshrl.u32 2131351028, %v2445
          %v2452 = vor.u32 %v2450, %v2451
          %v2453 = vshll.u32 2131351028, %v2444
          %v2454 = vshrl.u32 2102212464, %v2445
          %v2455 = vor.u32 %v2453, %v2454
          %v2456 = vshll.u32 2102212464, %v2444
          %v2457 = vshrl.u32 920167782, %v2445
          %v2458 = vor.u32 %v2456, %v2457
          %v2459 = vshll.u32 920167782, %v2444
          %v2460 = vshrl.u32 1326507024, %v2445
          %v2461 = vor.u32 %v2459, %v2460
          %vm2462 = vcmp.lt.s32.totalorder %v2443, 1
          %vm2463 = vcmp.lt.s32.totalorder %v2443, 2
          %vm2464 = vcmp.lt.s32.totalorder %v2443, 3
          %vm2465 = vcmp.lt.s32.totalorder %v2443, 4
          %v2466 = vsel %vm2462, %v2446, %v2449
          %v2467 = vsel %vm2465, %v2455, 2102212464
          %v2468 = vsel %vm2464, %v2452, %v2467
          %v2469 = vsel %vm2463, %v2466, %v2468
          %v2470 = vsel %vm2462, %v2449, %v2452
          %v2471 = vsel %vm2465, %v2458, 920167782
          %v2472 = vsel %vm2464, %v2455, %v2471
          %v2473 = vsel %vm2463, %v2470, %v2472
          %v2474 = vsel %vm2462, %v2452, %v2455
          %v2475 = vsel %vm2465, %v2461, 1326507024
          %v2476 = vsel %vm2464, %v2458, %v2475
          %v2477 = vsel %vm2463, %v2474, %v2476
          %v2478 = vshll.u32 %v2438, 8
          %v2479 = vmul.u32.u64.compose %v2478, %v2477
          %v2480 = vextract.low.u32 %v2479
          %v2481 = vextract.high.u32 %v2479
          %v2482 = vmul.u32.u64.compose %v2478, %v2473
          %v2483 = vextract.low.u32 %v2482
          %v2484 = vextract.high.u32 %v2482
          %v2485 = vmul.u32 %v2478, %v2469
          %v2486 = vadd.s32 %v2481, %v2483
          %vm2487 = vc.u32 %v2481, %v2483
          %v2488 = vadd.s32 %v2484, 1
          %v2489 = vsel %vm2487, %v2488, %v2484
          %v2490 = vadd.s32 %v2485, %v2489
          %v2491 = vadd.s32 %v2490, 536870912
          %v2492 = vshrl.u32 %v2491, 30
          %v2493 = vshll.u32 %v2492, 30
          %v2494 = vsub.s32 %v2490, %v2493
          %vm2495 = vcmp.lt.s32.totalorder %v2494, 0
          %v2496 = vsub.s32 0, %v2494
          %v2497 = vsel %vm2495, %v2496, %v2494
          %v2498 = vclz %v2497
          %v2499 = vsub.s32 %v2498, 2
          %vm2500 = vcmp.gt.s32.totalorder 0, %v2499
          %v2501 = vsel %vm2500, 0, %v2499
          %v2502 = vsub.s32 32, %v2501
          %v2503 = vshll.u32 %v2494, %v2501
          %v2504 = vshrl.u32 %v2486, %v2502
          %v2505 = vor.u32 %v2503, %v2504
          %v2506 = vsub.s32 4294967266, %v2501
          %v2507 = vadd.s32 %v2506, 127
          %v2508 = vshll.u32 %v2507, 23
          %v2509 = vor.u32 4788187, %v2508
          %v2510 = vand.u32 2147483647, %v2509
          %v2512 = vcvt.s32.f32 %v2505
          %v2513 = vmul.f32 %v2512, %v2510
          %v2514 = vxor.u32 %v2513, 2147483648
          %v2515 = vsel %vm2432, %v2514, %v2513
          %v2516 = vsub.s32 4, %v2492
          %v2517 = vsel %vm2432, %v2516, %v2492
          %v2518 = vsel %vm2431, %v543, %v2515
          %v2519 = vsel %vm2431, 0, %v2517
          %v2520 = vcosq.f32.pop %v2518
          %v2521 = vsinq.f32.pop %v2518
          %vm2522 = vweird.f32 %v543
          %v2523 = vadd.s32 %v2519, 3
          %v2524 = vand.u32 %v2523, 3
          %vm2525 = vcmp.lt.s32.totalorder %v2524, 2
          %vm2526 = vcmp.eq.s32.totalorder %v2524, 0
          %v2527 = vxor.u32 %v2521, 2147483648
          %v2528 = vsel %vm2526, %v2520, %v2527
          %vm2529 = vcmp.eq.s32.totalorder %v2524, 2
          %v2530 = vxor.u32 %v2520, 2147483648
          %v2531 = vsel %vm2529, %v2530, %v2521
          %v2532 = vsel %vm2525, %v2528, %v2531
          %v2533 = vsel %vm2522, nan, %v2532
          %v2534 = vand.u32 2147483647, %v544
          %vm2535 = vcmp.le.f32.partialorder %v2534, 0.7853982
          %vm2536 = vcmp.lt.s32.totalorder %v544, 0
          %v2537 = vand.u32 %v544, 2139095040
          %v2538 = vshrl.u32 %v2537, 23
          %v2539 = vsub.s32 %v2538, 127
          %v2540 = vand.u32 2147483647, %v544
          %v2541 = vand.u32 %v2540, 8388607
          %v2542 = vor.u32 %v2541, 8388608
          %v2543 = vsub.s32 0, %v2542
          %v2544 = vadd.s32 %v2539, 1
          %vm2545 = vcmp.gt.s32.totalorder %v2544, 0
          %v2546 = vsel %vm2545, %v2544, 0
          %v2547 = vshrl.u32 %v2546, 5
          %v2548 = vand.u32 %v2546, 31
          %v2549 = vsub.s32 32, %v2548
          %v2550 = vshrl.u32 683565275, %v2549
          %v2551 = vshll.u32 683565275, %v2548
          %v2552 = vshrl.u32 2475754826, %v2549
          %v2553 = vor.u32 %v2551, %v2552
          %v2554 = vshll.u32 2475754826, %v2548
          %v2555 = vshrl.u32 2131351028, %v2549
          %v2556 = vor.u32 %v2554, %v2555
          %v2557 = vshll.u32 2131351028, %v2548
          %v2558 = vshrl.u32 2102212464, %v2549
          %v2559 = vor.u32 %v2557, %v2558
          %v2560 = vshll.u32 2102212464, %v2548
          %v2561 = vshrl.u32 920167782, %v2549
          %v2562 = vor.u32 %v2560, %v2561
          %v2563 = vshll.u32 920167782, %v2548
          %v2564 = vshrl.u32 1326507024, %v2549
          %v2565 = vor.u32 %v2563, %v2564
          %vm2566 = vcmp.lt.s32.totalorder %v2547, 1
          %vm2567 = vcmp.lt.s32.totalorder %v2547, 2
          %vm2568 = vcmp.lt.s32.totalorder %v2547, 3
          %vm2569 = vcmp.lt.s32.totalorder %v2547, 4
          %v2570 = vsel %vm2566, %v2550, %v2553
          %v2571 = vsel %vm2569, %v2559, 2102212464
          %v2572 = vsel %vm2568, %v2556, %v2571
          %v2573 = vsel %vm2567, %v2570, %v2572
          %v2574 = vsel %vm2566, %v2553, %v2556
          %v2575 = vsel %vm2569, %v2562, 920167782
          %v2576 = vsel %vm2568, %v2559, %v2575
          %v2577 = vsel %vm2567, %v2574, %v2576
          %v2578 = vsel %vm2566, %v2556, %v2559
          %v2579 = vsel %vm2569, %v2565, 1326507024
          %v2580 = vsel %vm2568, %v2562, %v2579
          %v2581 = vsel %vm2567, %v2578, %v2580
          %v2582 = vshll.u32 %v2542, 8
          %v2583 = vmul.u32.u64.compose %v2582, %v2581
          %v2584 = vextract.low.u32 %v2583
          %v2585 = vextract.high.u32 %v2583
          %v2586 = vmul.u32.u64.compose %v2582, %v2577
          %v2587 = vextract.low.u32 %v2586
          %v2588 = vextract.high.u32 %v2586
          %v2589 = vmul.u32 %v2582, %v2573
          %v2590 = vadd.s32 %v2585, %v2587
          %vm2591 = vc.u32 %v2585, %v2587
          %v2592 = vadd.s32 %v2588, 1
          %v2593 = vsel %vm2591, %v2592, %v2588
          %v2594 = vadd.s32 %v2589, %v2593
          %v2595 = vadd.s32 %v2594, 536870912
          %v2596 = vshrl.u32 %v2595, 30
          %v2597 = vshll.u32 %v2596, 30
          %v2598 = vsub.s32 %v2594, %v2597
          %vm2599 = vcmp.lt.s32.totalorder %v2598, 0
          %v2600 = vsub.s32 0, %v2598
          %v2601 = vsel %vm2599, %v2600, %v2598
          %v2602 = vclz %v2601
          %v2603 = vsub.s32 %v2602, 2
          %vm2604 = vcmp.gt.s32.totalorder 0, %v2603
          %v2605 = vsel %vm2604, 0, %v2603
          %v2606 = vsub.s32 32, %v2605
          %v2607 = vshll.u32 %v2598, %v2605
          %v2608 = vshrl.u32 %v2590, %v2606
          %v2609 = vor.u32 %v2607, %v2608
          %v2610 = vsub.s32 4294967266, %v2605
          %v2611 = vadd.s32 %v2610, 127
          %v2612 = vshll.u32 %v2611, 23
          %v2613 = vor.u32 4788187, %v2612
          %v2614 = vand.u32 2147483647, %v2613
          %v2616 = vcvt.s32.f32 %v2609
          %v2617 = vmul.f32 %v2616, %v2614
          %v2618 = vxor.u32 %v2617, 2147483648
          %v2619 = vsel %vm2536, %v2618, %v2617
          %v2620 = vsub.s32 4, %v2596
          %v2621 = vsel %vm2536, %v2620, %v2596
          %v2622 = vsel %vm2535, %v544, %v2619
          %v2623 = vsel %vm2535, 0, %v2621
          %v2624 = vcosq.f32.pop %v2622
          %v2625 = vsinq.f32.pop %v2622
          %vm2626 = vweird.f32 %v544
          %v2627 = vadd.s32 %v2623, 3
          %v2628 = vand.u32 %v2627, 3
          %vm2629 = vcmp.lt.s32.totalorder %v2628, 2
          %vm2630 = vcmp.eq.s32.totalorder %v2628, 0
          %v2631 = vxor.u32 %v2625, 2147483648
          %v2632 = vsel %vm2630, %v2624, %v2631
          %vm2633 = vcmp.eq.s32.totalorder %v2628, 2
          %v2634 = vxor.u32 %v2624, 2147483648
          %v2635 = vsel %vm2633, %v2634, %v2625
          %v2636 = vsel %vm2629, %v2632, %v2635
          %v2637 = vsel %vm2626, nan, %v2636
          %v2638 = vand.u32 2147483647, %v545
          %vm2639 = vcmp.le.f32.partialorder %v2638, 0.7853982
          %vm2640 = vcmp.lt.s32.totalorder %v545, 0
          %v2641 = vand.u32 %v545, 2139095040
          %v2642 = vshrl.u32 %v2641, 23
          %v2643 = vsub.s32 %v2642, 127
          %v2644 = vand.u32 2147483647, %v545
          %v2645 = vand.u32 %v2644, 8388607
          %v2646 = vor.u32 %v2645, 8388608
          %v2647 = vsub.s32 0, %v2646
          %v2648 = vadd.s32 %v2643, 1
          %vm2649 = vcmp.gt.s32.totalorder %v2648, 0
          %v2650 = vsel %vm2649, %v2648, 0
          %v2651 = vshrl.u32 %v2650, 5
          %v2652 = vand.u32 %v2650, 31
          %v2653 = vsub.s32 32, %v2652
          %v2654 = vshrl.u32 683565275, %v2653
          %v2655 = vshll.u32 683565275, %v2652
          %v2656 = vshrl.u32 2475754826, %v2653
          %v2657 = vor.u32 %v2655, %v2656
          %v2658 = vshll.u32 2475754826, %v2652
          %v2659 = vshrl.u32 2131351028, %v2653
          %v2660 = vor.u32 %v2658, %v2659
          %v2661 = vshll.u32 2131351028, %v2652
          %v2662 = vshrl.u32 2102212464, %v2653
          %v2663 = vor.u32 %v2661, %v2662
          %v2664 = vshll.u32 2102212464, %v2652
          %v2665 = vshrl.u32 920167782, %v2653
          %v2666 = vor.u32 %v2664, %v2665
          %v2667 = vshll.u32 920167782, %v2652
          %v2668 = vshrl.u32 1326507024, %v2653
          %v2669 = vor.u32 %v2667, %v2668
          %vm2670 = vcmp.lt.s32.totalorder %v2651, 1
          %vm2671 = vcmp.lt.s32.totalorder %v2651, 2
          %vm2672 = vcmp.lt.s32.totalorder %v2651, 3
          %vm2673 = vcmp.lt.s32.totalorder %v2651, 4
          %v2674 = vsel %vm2670, %v2654, %v2657
          %v2675 = vsel %vm2673, %v2663, 2102212464
          %v2676 = vsel %vm2672, %v2660, %v2675
          %v2677 = vsel %vm2671, %v2674, %v2676
          %v2678 = vsel %vm2670, %v2657, %v2660
          %v2679 = vsel %vm2673, %v2666, 920167782
          %v2680 = vsel %vm2672, %v2663, %v2679
          %v2681 = vsel %vm2671, %v2678, %v2680
          %v2682 = vsel %vm2670, %v2660, %v2663
          %v2683 = vsel %vm2673, %v2669, 1326507024
          %v2684 = vsel %vm2672, %v2666, %v2683
          %v2685 = vsel %vm2671, %v2682, %v2684
          %v2686 = vshll.u32 %v2646, 8
          %v2687 = vmul.u32.u64.compose %v2686, %v2685
          %v2688 = vextract.low.u32 %v2687
          %v2689 = vextract.high.u32 %v2687
          %v2690 = vmul.u32.u64.compose %v2686, %v2681
          %v2691 = vextract.low.u32 %v2690
          %v2692 = vextract.high.u32 %v2690
          %v2693 = vmul.u32 %v2686, %v2677
          %v2694 = vadd.s32 %v2689, %v2691
          %vm2695 = vc.u32 %v2689, %v2691
          %v2696 = vadd.s32 %v2692, 1
          %v2697 = vsel %vm2695, %v2696, %v2692
          %v2698 = vadd.s32 %v2693, %v2697
          %v2699 = vadd.s32 %v2698, 536870912
          %v2700 = vshrl.u32 %v2699, 30
          %v2701 = vshll.u32 %v2700, 30
          %v2702 = vsub.s32 %v2698, %v2701
          %vm2703 = vcmp.lt.s32.totalorder %v2702, 0
          %v2704 = vsub.s32 0, %v2702
          %v2705 = vsel %vm2703, %v2704, %v2702
          %v2706 = vclz %v2705
          %v2707 = vsub.s32 %v2706, 2
          %vm2708 = vcmp.gt.s32.totalorder 0, %v2707
          %v2709 = vsel %vm2708, 0, %v2707
          %v2710 = vsub.s32 32, %v2709
          %v2711 = vshll.u32 %v2702, %v2709
          %v2712 = vshrl.u32 %v2694, %v2710
          %v2713 = vor.u32 %v2711, %v2712
          %v2714 = vsub.s32 4294967266, %v2709
          %v2715 = vadd.s32 %v2714, 127
          %v2716 = vshll.u32 %v2715, 23
          %v2717 = vor.u32 4788187, %v2716
          %v2718 = vand.u32 2147483647, %v2717
          %v2720 = vcvt.s32.f32 %v2713
          %v2721 = vmul.f32 %v2720, %v2718
          %v2722 = vxor.u32 %v2721, 2147483648
          %v2723 = vsel %vm2640, %v2722, %v2721
          %v2724 = vsub.s32 4, %v2700
          %v2725 = vsel %vm2640, %v2724, %v2700
          %v2726 = vsel %vm2639, %v545, %v2723
          %v2727 = vsel %vm2639, 0, %v2725
          %v2728 = vcosq.f32.pop %v2726
          %v2729 = vsinq.f32.pop %v2726
          %vm2730 = vweird.f32 %v545
          %v2731 = vadd.s32 %v2727, 3
          %v2732 = vand.u32 %v2731, 3
          %vm2733 = vcmp.lt.s32.totalorder %v2732, 2
          %vm2734 = vcmp.eq.s32.totalorder %v2732, 0
          %v2735 = vxor.u32 %v2729, 2147483648
          %v2736 = vsel %vm2734, %v2728, %v2735
          %vm2737 = vcmp.eq.s32.totalorder %v2732, 2
          %v2738 = vxor.u32 %v2728, 2147483648
          %v2739 = vsel %vm2737, %v2738, %v2729
          %v2740 = vsel %vm2733, %v2736, %v2739
          %v2741 = vsel %vm2730, nan, %v2740
          %v2742 = vand.u32 2147483647, %v546
          %vm2743 = vcmp.le.f32.partialorder %v2742, 0.7853982
          %vm2744 = vcmp.lt.s32.totalorder %v546, 0
          %v2745 = vand.u32 %v546, 2139095040
          %v2746 = vshrl.u32 %v2745, 23
          %v2747 = vsub.s32 %v2746, 127
          %v2748 = vand.u32 2147483647, %v546
          %v2749 = vand.u32 %v2748, 8388607
          %v2750 = vor.u32 %v2749, 8388608
          %v2751 = vsub.s32 0, %v2750
          %v2752 = vadd.s32 %v2747, 1
          %vm2753 = vcmp.gt.s32.totalorder %v2752, 0
          %v2754 = vsel %vm2753, %v2752, 0
          %v2755 = vshrl.u32 %v2754, 5
          %v2756 = vand.u32 %v2754, 31
          %v2757 = vsub.s32 32, %v2756
          %v2758 = vshrl.u32 683565275, %v2757
          %v2759 = vshll.u32 683565275, %v2756
          %v2760 = vshrl.u32 2475754826, %v2757
          %v2761 = vor.u32 %v2759, %v2760
          %v2762 = vshll.u32 2475754826, %v2756
          %v2763 = vshrl.u32 2131351028, %v2757
          %v2764 = vor.u32 %v2762, %v2763
          %v2765 = vshll.u32 2131351028, %v2756
          %v2766 = vshrl.u32 2102212464, %v2757
          %v2767 = vor.u32 %v2765, %v2766
          %v2768 = vshll.u32 2102212464, %v2756
          %v2769 = vshrl.u32 920167782, %v2757
          %v2770 = vor.u32 %v2768, %v2769
          %v2771 = vshll.u32 920167782, %v2756
          %v2772 = vshrl.u32 1326507024, %v2757
          %v2773 = vor.u32 %v2771, %v2772
          %vm2774 = vcmp.lt.s32.totalorder %v2755, 1
          %vm2775 = vcmp.lt.s32.totalorder %v2755, 2
          %vm2776 = vcmp.lt.s32.totalorder %v2755, 3
          %vm2777 = vcmp.lt.s32.totalorder %v2755, 4
          %v2778 = vsel %vm2774, %v2758, %v2761
          %v2779 = vsel %vm2777, %v2767, 2102212464
          %v2780 = vsel %vm2776, %v2764, %v2779
          %v2781 = vsel %vm2775, %v2778, %v2780
          %v2782 = vsel %vm2774, %v2761, %v2764
          %v2783 = vsel %vm2777, %v2770, 920167782
          %v2784 = vsel %vm2776, %v2767, %v2783
          %v2785 = vsel %vm2775, %v2782, %v2784
          %v2786 = vsel %vm2774, %v2764, %v2767
          %v2787 = vsel %vm2777, %v2773, 1326507024
          %v2788 = vsel %vm2776, %v2770, %v2787
          %v2789 = vsel %vm2775, %v2786, %v2788
          %v2790 = vshll.u32 %v2750, 8
          %v2791 = vmul.u32.u64.compose %v2790, %v2789
          %v2792 = vextract.low.u32 %v2791
          %v2793 = vextract.high.u32 %v2791
          %v2794 = vmul.u32.u64.compose %v2790, %v2785
          %v2795 = vextract.low.u32 %v2794
          %v2796 = vextract.high.u32 %v2794
          %v2797 = vmul.u32 %v2790, %v2781
          %v2798 = vadd.s32 %v2793, %v2795
          %vm2799 = vc.u32 %v2793, %v2795
          %v2800 = vadd.s32 %v2796, 1
          %v2801 = vsel %vm2799, %v2800, %v2796
          %v2802 = vadd.s32 %v2797, %v2801
          %v2803 = vadd.s32 %v2802, 536870912
          %v2804 = vshrl.u32 %v2803, 30
          %v2805 = vshll.u32 %v2804, 30
          %v2806 = vsub.s32 %v2802, %v2805
          %vm2807 = vcmp.lt.s32.totalorder %v2806, 0
          %v2808 = vsub.s32 0, %v2806
          %v2809 = vsel %vm2807, %v2808, %v2806
          %v2810 = vclz %v2809
          %v2811 = vsub.s32 %v2810, 2
          %vm2812 = vcmp.gt.s32.totalorder 0, %v2811
          %v2813 = vsel %vm2812, 0, %v2811
          %v2814 = vsub.s32 32, %v2813
          %v2815 = vshll.u32 %v2806, %v2813
          %v2816 = vshrl.u32 %v2798, %v2814
          %v2817 = vor.u32 %v2815, %v2816
          %v2818 = vsub.s32 4294967266, %v2813
          %v2819 = vadd.s32 %v2818, 127
          %v2820 = vshll.u32 %v2819, 23
          %v2821 = vor.u32 4788187, %v2820
          %v2822 = vand.u32 2147483647, %v2821
          %v2824 = vcvt.s32.f32 %v2817
          %v2825 = vmul.f32 %v2824, %v2822
          %v2826 = vxor.u32 %v2825, 2147483648
          %v2827 = vsel %vm2744, %v2826, %v2825
          %v2828 = vsub.s32 4, %v2804
          %v2829 = vsel %vm2744, %v2828, %v2804
          %v2830 = vsel %vm2743, %v546, %v2827
          %v2831 = vsel %vm2743, 0, %v2829
          %v2832 = vcosq.f32.pop %v2830
          %v2833 = vsinq.f32.pop %v2830
          %vm2834 = vweird.f32 %v546
          %v2835 = vadd.s32 %v2831, 3
          %v2836 = vand.u32 %v2835, 3
          %vm2837 = vcmp.lt.s32.totalorder %v2836, 2
          %vm2838 = vcmp.eq.s32.totalorder %v2836, 0
          %v2839 = vxor.u32 %v2833, 2147483648
          %v2840 = vsel %vm2838, %v2832, %v2839
          %vm2841 = vcmp.eq.s32.totalorder %v2836, 2
          %v2842 = vxor.u32 %v2832, 2147483648
          %v2843 = vsel %vm2841, %v2842, %v2833
          %v2844 = vsel %vm2837, %v2840, %v2843
          %v2845 = vsel %vm2834, nan, %v2844
          %v2846 = vand.u32 2147483647, %v547
          %vm2847 = vcmp.le.f32.partialorder %v2846, 0.7853982
          %vm2848 = vcmp.lt.s32.totalorder %v547, 0
          %v2849 = vand.u32 %v547, 2139095040
          %v2850 = vshrl.u32 %v2849, 23
          %v2851 = vsub.s32 %v2850, 127
          %v2852 = vand.u32 2147483647, %v547
          %v2853 = vand.u32 %v2852, 8388607
          %v2854 = vor.u32 %v2853, 8388608
          %v2855 = vsub.s32 0, %v2854
          %v2856 = vadd.s32 %v2851, 1
          %vm2857 = vcmp.gt.s32.totalorder %v2856, 0
          %v2858 = vsel %vm2857, %v2856, 0
          %v2859 = vshrl.u32 %v2858, 5
          %v2860 = vand.u32 %v2858, 31
          %v2861 = vsub.s32 32, %v2860
          %v2862 = vshrl.u32 683565275, %v2861
          %v2863 = vshll.u32 683565275, %v2860
          %v2864 = vshrl.u32 2475754826, %v2861
          %v2865 = vor.u32 %v2863, %v2864
          %v2866 = vshll.u32 2475754826, %v2860
          %v2867 = vshrl.u32 2131351028, %v2861
          %v2868 = vor.u32 %v2866, %v2867
          %v2869 = vshll.u32 2131351028, %v2860
          %v2870 = vshrl.u32 2102212464, %v2861
          %v2871 = vor.u32 %v2869, %v2870
          %v2872 = vshll.u32 2102212464, %v2860
          %v2873 = vshrl.u32 920167782, %v2861
          %v2874 = vor.u32 %v2872, %v2873
          %v2875 = vshll.u32 920167782, %v2860
          %v2876 = vshrl.u32 1326507024, %v2861
          %v2877 = vor.u32 %v2875, %v2876
          %vm2878 = vcmp.lt.s32.totalorder %v2859, 1
          %vm2879 = vcmp.lt.s32.totalorder %v2859, 2
          %vm2880 = vcmp.lt.s32.totalorder %v2859, 3
          %vm2881 = vcmp.lt.s32.totalorder %v2859, 4
          %v2882 = vsel %vm2878, %v2862, %v2865
          %v2883 = vsel %vm2881, %v2871, 2102212464
          %v2884 = vsel %vm2880, %v2868, %v2883
          %v2885 = vsel %vm2879, %v2882, %v2884
          %v2886 = vsel %vm2878, %v2865, %v2868
          %v2887 = vsel %vm2881, %v2874, 920167782
          %v2888 = vsel %vm2880, %v2871, %v2887
          %v2889 = vsel %vm2879, %v2886, %v2888
          %v2890 = vsel %vm2878, %v2868, %v2871
          %v2891 = vsel %vm2881, %v2877, 1326507024
          %v2892 = vsel %vm2880, %v2874, %v2891
          %v2893 = vsel %vm2879, %v2890, %v2892
          %v2894 = vshll.u32 %v2854, 8
          %v2895 = vmul.u32.u64.compose %v2894, %v2893
          %v2896 = vextract.low.u32 %v2895
          %v2897 = vextract.high.u32 %v2895
          %v2898 = vmul.u32.u64.compose %v2894, %v2889
          %v2899 = vextract.low.u32 %v2898
          %v2900 = vextract.high.u32 %v2898
          %v2901 = vmul.u32 %v2894, %v2885
          %v2902 = vadd.s32 %v2897, %v2899
          %vm2903 = vc.u32 %v2897, %v2899
          %v2904 = vadd.s32 %v2900, 1
          %v2905 = vsel %vm2903, %v2904, %v2900
          %v2906 = vadd.s32 %v2901, %v2905
          %v2907 = vadd.s32 %v2906, 536870912
          %v2908 = vshrl.u32 %v2907, 30
          %v2909 = vshll.u32 %v2908, 30
          %v2910 = vsub.s32 %v2906, %v2909
          %vm2911 = vcmp.lt.s32.totalorder %v2910, 0
          %v2912 = vsub.s32 0, %v2910
          %v2913 = vsel %vm2911, %v2912, %v2910
          %v2914 = vclz %v2913
          %v2915 = vsub.s32 %v2914, 2
          %vm2916 = vcmp.gt.s32.totalorder 0, %v2915
          %v2917 = vsel %vm2916, 0, %v2915
          %v2918 = vsub.s32 32, %v2917
          %v2919 = vshll.u32 %v2910, %v2917
          %v2920 = vshrl.u32 %v2902, %v2918
          %v2921 = vor.u32 %v2919, %v2920
          %v2922 = vsub.s32 4294967266, %v2917
          %v2923 = vadd.s32 %v2922, 127
          %v2924 = vshll.u32 %v2923, 23
          %v2925 = vor.u32 4788187, %v2924
          %v2926 = vand.u32 2147483647, %v2925
          %v2928 = vcvt.s32.f32 %v2921
          %v2929 = vmul.f32 %v2928, %v2926
          %v2930 = vxor.u32 %v2929, 2147483648
          %v2931 = vsel %vm2848, %v2930, %v2929
          %v2932 = vsub.s32 4, %v2908
          %v2933 = vsel %vm2848, %v2932, %v2908
          %v2934 = vsel %vm2847, %v547, %v2931
          %v2935 = vsel %vm2847, 0, %v2933
          %v2936 = vcosq.f32.pop %v2934
          %v2937 = vsinq.f32.pop %v2934
          %vm2938 = vweird.f32 %v547
          %v2939 = vadd.s32 %v2935, 3
          %v2940 = vand.u32 %v2939, 3
          %vm2941 = vcmp.lt.s32.totalorder %v2940, 2
          %vm2942 = vcmp.eq.s32.totalorder %v2940, 0
          %v2943 = vxor.u32 %v2937, 2147483648
          %v2944 = vsel %vm2942, %v2936, %v2943
          %vm2945 = vcmp.eq.s32.totalorder %v2940, 2
          %v2946 = vxor.u32 %v2936, 2147483648
          %v2947 = vsel %vm2945, %v2946, %v2937
          %v2948 = vsel %vm2941, %v2944, %v2947
          %v2949 = vsel %vm2938, nan, %v2948
          %v2950 = vand.u32 2147483647, %v548
          %vm2951 = vcmp.le.f32.partialorder %v2950, 0.7853982
          %vm2952 = vcmp.lt.s32.totalorder %v548, 0
          %v2953 = vand.u32 %v548, 2139095040
          %v2954 = vshrl.u32 %v2953, 23
          %v2955 = vsub.s32 %v2954, 127
          %v2956 = vand.u32 2147483647, %v548
          %v2957 = vand.u32 %v2956, 8388607
          %v2958 = vor.u32 %v2957, 8388608
          %v2959 = vsub.s32 0, %v2958
          %v2960 = vadd.s32 %v2955, 1
          %vm2961 = vcmp.gt.s32.totalorder %v2960, 0
          %v2962 = vsel %vm2961, %v2960, 0
          %v2963 = vshrl.u32 %v2962, 5
          %v2964 = vand.u32 %v2962, 31
          %v2965 = vsub.s32 32, %v2964
          %v2966 = vshrl.u32 683565275, %v2965
          %v2967 = vshll.u32 683565275, %v2964
          %v2968 = vshrl.u32 2475754826, %v2965
          %v2969 = vor.u32 %v2967, %v2968
          %v2970 = vshll.u32 2475754826, %v2964
          %v2971 = vshrl.u32 2131351028, %v2965
          %v2972 = vor.u32 %v2970, %v2971
          %v2973 = vshll.u32 2131351028, %v2964
          %v2974 = vshrl.u32 2102212464, %v2965
          %v2975 = vor.u32 %v2973, %v2974
          %v2976 = vshll.u32 2102212464, %v2964
          %v2977 = vshrl.u32 920167782, %v2965
          %v2978 = vor.u32 %v2976, %v2977
          %v2979 = vshll.u32 920167782, %v2964
          %v2980 = vshrl.u32 1326507024, %v2965
          %v2981 = vor.u32 %v2979, %v2980
          %vm2982 = vcmp.lt.s32.totalorder %v2963, 1
          %vm2983 = vcmp.lt.s32.totalorder %v2963, 2
          %vm2984 = vcmp.lt.s32.totalorder %v2963, 3
          %vm2985 = vcmp.lt.s32.totalorder %v2963, 4
          %v2986 = vsel %vm2982, %v2966, %v2969
          %v2987 = vsel %vm2985, %v2975, 2102212464
          %v2988 = vsel %vm2984, %v2972, %v2987
          %v2989 = vsel %vm2983, %v2986, %v2988
          %v2990 = vsel %vm2982, %v2969, %v2972
          %v2991 = vsel %vm2985, %v2978, 920167782
          %v2992 = vsel %vm2984, %v2975, %v2991
          %v2993 = vsel %vm2983, %v2990, %v2992
          %v2994 = vsel %vm2982, %v2972, %v2975
          %v2995 = vsel %vm2985, %v2981, 1326507024
          %v2996 = vsel %vm2984, %v2978, %v2995
          %v2997 = vsel %vm2983, %v2994, %v2996
          %v2998 = vshll.u32 %v2958, 8
          %v2999 = vmul.u32.u64.compose %v2998, %v2997
          %v3000 = vextract.low.u32 %v2999
          %v3001 = vextract.high.u32 %v2999
          %v3002 = vmul.u32.u64.compose %v2998, %v2993
          %v3003 = vextract.low.u32 %v3002
          %v3004 = vextract.high.u32 %v3002
          %v3005 = vmul.u32 %v2998, %v2989
          %v3006 = vadd.s32 %v3001, %v3003
          %vm3007 = vc.u32 %v3001, %v3003
          %v3008 = vadd.s32 %v3004, 1
          %v3009 = vsel %vm3007, %v3008, %v3004
          %v3010 = vadd.s32 %v3005, %v3009
          %v3011 = vadd.s32 %v3010, 536870912
          %v3012 = vshrl.u32 %v3011, 30
          %v3013 = vshll.u32 %v3012, 30
          %v3014 = vsub.s32 %v3010, %v3013
          %vm3015 = vcmp.lt.s32.totalorder %v3014, 0
          %v3016 = vsub.s32 0, %v3014
          %v3017 = vsel %vm3015, %v3016, %v3014
          %v3018 = vclz %v3017
          %v3019 = vsub.s32 %v3018, 2
          %vm3020 = vcmp.gt.s32.totalorder 0, %v3019
          %v3021 = vsel %vm3020, 0, %v3019
          %v3022 = vsub.s32 32, %v3021
          %v3023 = vshll.u32 %v3014, %v3021
          %v3024 = vshrl.u32 %v3006, %v3022
          %v3025 = vor.u32 %v3023, %v3024
          %v3026 = vsub.s32 4294967266, %v3021
          %v3027 = vadd.s32 %v3026, 127
          %v3028 = vshll.u32 %v3027, 23
          %v3029 = vor.u32 4788187, %v3028
          %v3030 = vand.u32 2147483647, %v3029
          %v3032 = vcvt.s32.f32 %v3025
          %v3033 = vmul.f32 %v3032, %v3030
          %v3034 = vxor.u32 %v3033, 2147483648
          %v3035 = vsel %vm2952, %v3034, %v3033
          %v3036 = vsub.s32 4, %v3012
          %v3037 = vsel %vm2952, %v3036, %v3012
          %v3038 = vsel %vm2951, %v548, %v3035
          %v3039 = vsel %vm2951, 0, %v3037
          %v3040 = vcosq.f32.pop %v3038
          %v3041 = vsinq.f32.pop %v3038
          %vm3042 = vweird.f32 %v548
          %v3043 = vadd.s32 %v3039, 3
          %v3044 = vand.u32 %v3043, 3
          %vm3045 = vcmp.lt.s32.totalorder %v3044, 2
          %vm3046 = vcmp.eq.s32.totalorder %v3044, 0
          %v3047 = vxor.u32 %v3041, 2147483648
          %v3048 = vsel %vm3046, %v3040, %v3047
          %vm3049 = vcmp.eq.s32.totalorder %v3044, 2
          %v3050 = vxor.u32 %v3040, 2147483648
          %v3051 = vsel %vm3049, %v3050, %v3041
          %v3052 = vsel %vm3045, %v3048, %v3051
          %v3053 = vsel %vm3042, nan, %v3052
          %v3054 = vand.u32 2147483647, %v549
          %vm3055 = vcmp.le.f32.partialorder %v3054, 0.7853982
          %vm3056 = vcmp.lt.s32.totalorder %v549, 0
          %v3057 = vand.u32 %v549, 2139095040
          %v3058 = vshrl.u32 %v3057, 23
          %v3059 = vsub.s32 %v3058, 127
          %v3060 = vand.u32 2147483647, %v549
          %v3061 = vand.u32 %v3060, 8388607
          %v3062 = vor.u32 %v3061, 8388608
          %v3063 = vsub.s32 0, %v3062
          %v3064 = vadd.s32 %v3059, 1
          %vm3065 = vcmp.gt.s32.totalorder %v3064, 0
          %v3066 = vsel %vm3065, %v3064, 0
          %v3067 = vshrl.u32 %v3066, 5
          %v3068 = vand.u32 %v3066, 31
          %v3069 = vsub.s32 32, %v3068
          %v3070 = vshrl.u32 683565275, %v3069
          %v3071 = vshll.u32 683565275, %v3068
          %v3072 = vshrl.u32 2475754826, %v3069
          %v3073 = vor.u32 %v3071, %v3072
          %v3074 = vshll.u32 2475754826, %v3068
          %v3075 = vshrl.u32 2131351028, %v3069
          %v3076 = vor.u32 %v3074, %v3075
          %v3077 = vshll.u32 2131351028, %v3068
          %v3078 = vshrl.u32 2102212464, %v3069
          %v3079 = vor.u32 %v3077, %v3078
          %v3080 = vshll.u32 2102212464, %v3068
          %v3081 = vshrl.u32 920167782, %v3069
          %v3082 = vor.u32 %v3080, %v3081
          %v3083 = vshll.u32 920167782, %v3068
          %v3084 = vshrl.u32 1326507024, %v3069
          %v3085 = vor.u32 %v3083, %v3084
          %vm3086 = vcmp.lt.s32.totalorder %v3067, 1
          %vm3087 = vcmp.lt.s32.totalorder %v3067, 2
          %vm3088 = vcmp.lt.s32.totalorder %v3067, 3
          %vm3089 = vcmp.lt.s32.totalorder %v3067, 4
          %v3090 = vsel %vm3086, %v3070, %v3073
          %v3091 = vsel %vm3089, %v3079, 2102212464
          %v3092 = vsel %vm3088, %v3076, %v3091
          %v3093 = vsel %vm3087, %v3090, %v3092
          %v3094 = vsel %vm3086, %v3073, %v3076
          %v3095 = vsel %vm3089, %v3082, 920167782
          %v3096 = vsel %vm3088, %v3079, %v3095
          %v3097 = vsel %vm3087, %v3094, %v3096
          %v3098 = vsel %vm3086, %v3076, %v3079
          %v3099 = vsel %vm3089, %v3085, 1326507024
          %v3100 = vsel %vm3088, %v3082, %v3099
          %v3101 = vsel %vm3087, %v3098, %v3100
          %v3102 = vshll.u32 %v3062, 8
          %v3103 = vmul.u32.u64.compose %v3102, %v3101
          %v3104 = vextract.low.u32 %v3103
          %v3105 = vextract.high.u32 %v3103
          %v3106 = vmul.u32.u64.compose %v3102, %v3097
          %v3107 = vextract.low.u32 %v3106
          %v3108 = vextract.high.u32 %v3106
          %v3109 = vmul.u32 %v3102, %v3093
          %v3110 = vadd.s32 %v3105, %v3107
          %vm3111 = vc.u32 %v3105, %v3107
          %v3112 = vadd.s32 %v3108, 1
          %v3113 = vsel %vm3111, %v3112, %v3108
          %v3114 = vadd.s32 %v3109, %v3113
          %v3115 = vadd.s32 %v3114, 536870912
          %v3116 = vshrl.u32 %v3115, 30
          %v3117 = vshll.u32 %v3116, 30
          %v3118 = vsub.s32 %v3114, %v3117
          %vm3119 = vcmp.lt.s32.totalorder %v3118, 0
          %v3120 = vsub.s32 0, %v3118
          %v3121 = vsel %vm3119, %v3120, %v3118
          %v3122 = vclz %v3121
          %v3123 = vsub.s32 %v3122, 2
          %vm3124 = vcmp.gt.s32.totalorder 0, %v3123
          %v3125 = vsel %vm3124, 0, %v3123
          %v3126 = vsub.s32 32, %v3125
          %v3127 = vshll.u32 %v3118, %v3125
          %v3128 = vshrl.u32 %v3110, %v3126
          %v3129 = vor.u32 %v3127, %v3128
          %v3130 = vsub.s32 4294967266, %v3125
          %v3131 = vadd.s32 %v3130, 127
          %v3132 = vshll.u32 %v3131, 23
          %v3133 = vor.u32 4788187, %v3132
          %v3134 = vand.u32 2147483647, %v3133
          %v3136 = vcvt.s32.f32 %v3129
          %v3137 = vmul.f32 %v3136, %v3134
          %v3138 = vxor.u32 %v3137, 2147483648
          %v3139 = vsel %vm3056, %v3138, %v3137
          %v3140 = vsub.s32 4, %v3116
          %v3141 = vsel %vm3056, %v3140, %v3116
          %v3142 = vsel %vm3055, %v549, %v3139
          %v3143 = vsel %vm3055, 0, %v3141
          %v3144 = vcosq.f32.pop %v3142
          %v3145 = vsinq.f32.pop %v3142
          %vm3146 = vweird.f32 %v549
          %v3147 = vadd.s32 %v3143, 3
          %v3148 = vand.u32 %v3147, 3
          %vm3149 = vcmp.lt.s32.totalorder %v3148, 2
          %vm3150 = vcmp.eq.s32.totalorder %v3148, 0
          %v3151 = vxor.u32 %v3145, 2147483648
          %v3152 = vsel %vm3150, %v3144, %v3151
          %vm3153 = vcmp.eq.s32.totalorder %v3148, 2
          %v3154 = vxor.u32 %v3144, 2147483648
          %v3155 = vsel %vm3153, %v3154, %v3145
          %v3156 = vsel %vm3149, %v3152, %v3155
          %v3157 = vsel %vm3146, nan, %v3156
          %v3158 = vand.u32 2147483647, %v550
          %vm3159 = vcmp.le.f32.partialorder %v3158, 0.7853982
          %vm3160 = vcmp.lt.s32.totalorder %v550, 0
          %v3161 = vand.u32 %v550, 2139095040
          %v3162 = vshrl.u32 %v3161, 23
          %v3163 = vsub.s32 %v3162, 127
          %v3164 = vand.u32 2147483647, %v550
          %v3165 = vand.u32 %v3164, 8388607
          %v3166 = vor.u32 %v3165, 8388608
          %v3167 = vsub.s32 0, %v3166
          %v3168 = vadd.s32 %v3163, 1
          %vm3169 = vcmp.gt.s32.totalorder %v3168, 0
          %v3170 = vsel %vm3169, %v3168, 0
          %v3171 = vshrl.u32 %v3170, 5
          %v3172 = vand.u32 %v3170, 31
          %v3173 = vsub.s32 32, %v3172
          %v3174 = vshrl.u32 683565275, %v3173
          %v3175 = vshll.u32 683565275, %v3172
          %v3176 = vshrl.u32 2475754826, %v3173
          %v3177 = vor.u32 %v3175, %v3176
          %v3178 = vshll.u32 2475754826, %v3172
          %v3179 = vshrl.u32 2131351028, %v3173
          %v3180 = vor.u32 %v3178, %v3179
          %v3181 = vshll.u32 2131351028, %v3172
          %v3182 = vshrl.u32 2102212464, %v3173
          %v3183 = vor.u32 %v3181, %v3182
          %v3184 = vshll.u32 2102212464, %v3172
          %v3185 = vshrl.u32 920167782, %v3173
          %v3186 = vor.u32 %v3184, %v3185
          %v3187 = vshll.u32 920167782, %v3172
          %v3188 = vshrl.u32 1326507024, %v3173
          %v3189 = vor.u32 %v3187, %v3188
          %vm3190 = vcmp.lt.s32.totalorder %v3171, 1
          %vm3191 = vcmp.lt.s32.totalorder %v3171, 2
          %vm3192 = vcmp.lt.s32.totalorder %v3171, 3
          %vm3193 = vcmp.lt.s32.totalorder %v3171, 4
          %v3194 = vsel %vm3190, %v3174, %v3177
          %v3195 = vsel %vm3193, %v3183, 2102212464
          %v3196 = vsel %vm3192, %v3180, %v3195
          %v3197 = vsel %vm3191, %v3194, %v3196
          %v3198 = vsel %vm3190, %v3177, %v3180
          %v3199 = vsel %vm3193, %v3186, 920167782
          %v3200 = vsel %vm3192, %v3183, %v3199
          %v3201 = vsel %vm3191, %v3198, %v3200
          %v3202 = vsel %vm3190, %v3180, %v3183
          %v3203 = vsel %vm3193, %v3189, 1326507024
          %v3204 = vsel %vm3192, %v3186, %v3203
          %v3205 = vsel %vm3191, %v3202, %v3204
          %v3206 = vshll.u32 %v3166, 8
          %v3207 = vmul.u32.u64.compose %v3206, %v3205
          %v3208 = vextract.low.u32 %v3207
          %v3209 = vextract.high.u32 %v3207
          %v3210 = vmul.u32.u64.compose %v3206, %v3201
          %v3211 = vextract.low.u32 %v3210
          %v3212 = vextract.high.u32 %v3210
          %v3213 = vmul.u32 %v3206, %v3197
          %v3214 = vadd.s32 %v3209, %v3211
          %vm3215 = vc.u32 %v3209, %v3211
          %v3216 = vadd.s32 %v3212, 1
          %v3217 = vsel %vm3215, %v3216, %v3212
          %v3218 = vadd.s32 %v3213, %v3217
          %v3219 = vadd.s32 %v3218, 536870912
          %v3220 = vshrl.u32 %v3219, 30
          %v3221 = vshll.u32 %v3220, 30
          %v3222 = vsub.s32 %v3218, %v3221
          %vm3223 = vcmp.lt.s32.totalorder %v3222, 0
          %v3224 = vsub.s32 0, %v3222
          %v3225 = vsel %vm3223, %v3224, %v3222
          %v3226 = vclz %v3225
          %v3227 = vsub.s32 %v3226, 2
          %vm3228 = vcmp.gt.s32.totalorder 0, %v3227
          %v3229 = vsel %vm3228, 0, %v3227
          %v3230 = vsub.s32 32, %v3229
          %v3231 = vshll.u32 %v3222, %v3229
          %v3232 = vshrl.u32 %v3214, %v3230
          %v3233 = vor.u32 %v3231, %v3232
          %v3234 = vsub.s32 4294967266, %v3229
          %v3235 = vadd.s32 %v3234, 127
          %v3236 = vshll.u32 %v3235, 23
          %v3237 = vor.u32 4788187, %v3236
          %v3238 = vand.u32 2147483647, %v3237
          %v3240 = vcvt.s32.f32 %v3233
          %v3241 = vmul.f32 %v3240, %v3238
          %v3242 = vxor.u32 %v3241, 2147483648
          %v3243 = vsel %vm3160, %v3242, %v3241
          %v3244 = vsub.s32 4, %v3220
          %v3245 = vsel %vm3160, %v3244, %v3220
          %v3246 = vsel %vm3159, %v550, %v3243
          %v3247 = vsel %vm3159, 0, %v3245
          %v3248 = vcosq.f32.pop %v3246
          %v3249 = vsinq.f32.pop %v3246
          %vm3250 = vweird.f32 %v550
          %v3251 = vadd.s32 %v3247, 3
          %v3252 = vand.u32 %v3251, 3
          %vm3253 = vcmp.lt.s32.totalorder %v3252, 2
          %vm3254 = vcmp.eq.s32.totalorder %v3252, 0
          %v3255 = vxor.u32 %v3249, 2147483648
          %v3256 = vsel %vm3254, %v3248, %v3255
          %vm3257 = vcmp.eq.s32.totalorder %v3252, 2
          %v3258 = vxor.u32 %v3248, 2147483648
          %v3259 = vsel %vm3257, %v3258, %v3249
          %v3260 = vsel %vm3253, %v3256, %v3259
          %v3261 = vsel %vm3250, nan, %v3260
          %v3262 = vand.u32 2147483647, %v551
          %vm3263 = vcmp.le.f32.partialorder %v3262, 0.7853982
          %vm3264 = vcmp.lt.s32.totalorder %v551, 0
          %v3265 = vand.u32 %v551, 2139095040
          %v3266 = vshrl.u32 %v3265, 23
          %v3267 = vsub.s32 %v3266, 127
          %v3268 = vand.u32 2147483647, %v551
          %v3269 = vand.u32 %v3268, 8388607
          %v3270 = vor.u32 %v3269, 8388608
          %v3271 = vsub.s32 0, %v3270
          %v3272 = vadd.s32 %v3267, 1
          %vm3273 = vcmp.gt.s32.totalorder %v3272, 0
          %v3274 = vsel %vm3273, %v3272, 0
          %v3275 = vshrl.u32 %v3274, 5
          %v3276 = vand.u32 %v3274, 31
          %v3277 = vsub.s32 32, %v3276
          %v3278 = vshrl.u32 683565275, %v3277
          %v3279 = vshll.u32 683565275, %v3276
          %v3280 = vshrl.u32 2475754826, %v3277
          %v3281 = vor.u32 %v3279, %v3280
          %v3282 = vshll.u32 2475754826, %v3276
          %v3283 = vshrl.u32 2131351028, %v3277
          %v3284 = vor.u32 %v3282, %v3283
          %v3285 = vshll.u32 2131351028, %v3276
          %v3286 = vshrl.u32 2102212464, %v3277
          %v3287 = vor.u32 %v3285, %v3286
          %v3288 = vshll.u32 2102212464, %v3276
          %v3289 = vshrl.u32 920167782, %v3277
          %v3290 = vor.u32 %v3288, %v3289
          %v3291 = vshll.u32 920167782, %v3276
          %v3292 = vshrl.u32 1326507024, %v3277
          %v3293 = vor.u32 %v3291, %v3292
          %vm3294 = vcmp.lt.s32.totalorder %v3275, 1
          %vm3295 = vcmp.lt.s32.totalorder %v3275, 2
          %vm3296 = vcmp.lt.s32.totalorder %v3275, 3
          %vm3297 = vcmp.lt.s32.totalorder %v3275, 4
          %v3298 = vsel %vm3294, %v3278, %v3281
          %v3299 = vsel %vm3297, %v3287, 2102212464
          %v3300 = vsel %vm3296, %v3284, %v3299
          %v3301 = vsel %vm3295, %v3298, %v3300
          %v3302 = vsel %vm3294, %v3281, %v3284
          %v3303 = vsel %vm3297, %v3290, 920167782
          %v3304 = vsel %vm3296, %v3287, %v3303
          %v3305 = vsel %vm3295, %v3302, %v3304
          %v3306 = vsel %vm3294, %v3284, %v3287
          %v3307 = vsel %vm3297, %v3293, 1326507024
          %v3308 = vsel %vm3296, %v3290, %v3307
          %v3309 = vsel %vm3295, %v3306, %v3308
          %v3310 = vshll.u32 %v3270, 8
          %v3311 = vmul.u32.u64.compose %v3310, %v3309
          %v3312 = vextract.low.u32 %v3311
          %v3313 = vextract.high.u32 %v3311
          %v3314 = vmul.u32.u64.compose %v3310, %v3305
          %v3315 = vextract.low.u32 %v3314
          %v3316 = vextract.high.u32 %v3314
          %v3317 = vmul.u32 %v3310, %v3301
          %v3318 = vadd.s32 %v3313, %v3315
          %vm3319 = vc.u32 %v3313, %v3315
          %v3320 = vadd.s32 %v3316, 1
          %v3321 = vsel %vm3319, %v3320, %v3316
          %v3322 = vadd.s32 %v3317, %v3321
          %v3323 = vadd.s32 %v3322, 536870912
          %v3324 = vshrl.u32 %v3323, 30
          %v3325 = vshll.u32 %v3324, 30
          %v3326 = vsub.s32 %v3322, %v3325
          %vm3327 = vcmp.lt.s32.totalorder %v3326, 0
          %v3328 = vsub.s32 0, %v3326
          %v3329 = vsel %vm3327, %v3328, %v3326
          %v3330 = vclz %v3329
          %v3331 = vsub.s32 %v3330, 2
          %vm3332 = vcmp.gt.s32.totalorder 0, %v3331
          %v3333 = vsel %vm3332, 0, %v3331
          %v3334 = vsub.s32 32, %v3333
          %v3335 = vshll.u32 %v3326, %v3333
          %v3336 = vshrl.u32 %v3318, %v3334
          %v3337 = vor.u32 %v3335, %v3336
          %v3338 = vsub.s32 4294967266, %v3333
          %v3339 = vadd.s32 %v3338, 127
          %v3340 = vshll.u32 %v3339, 23
          %v3341 = vor.u32 4788187, %v3340
          %v3342 = vand.u32 2147483647, %v3341
          %v3344 = vcvt.s32.f32 %v3337
          %v3345 = vmul.f32 %v3344, %v3342
          %v3346 = vxor.u32 %v3345, 2147483648
          %v3347 = vsel %vm3264, %v3346, %v3345
          %v3348 = vsub.s32 4, %v3324
          %v3349 = vsel %vm3264, %v3348, %v3324
          %v3350 = vsel %vm3263, %v551, %v3347
          %v3351 = vsel %vm3263, 0, %v3349
          %v3352 = vcosq.f32.pop %v3350
          %v3353 = vsinq.f32.pop %v3350
          %vm3354 = vweird.f32 %v551
          %v3355 = vadd.s32 %v3351, 3
          %v3356 = vand.u32 %v3355, 3
          %vm3357 = vcmp.lt.s32.totalorder %v3356, 2
          %vm3358 = vcmp.eq.s32.totalorder %v3356, 0
          %v3359 = vxor.u32 %v3353, 2147483648
          %v3360 = vsel %vm3358, %v3352, %v3359
          %vm3361 = vcmp.eq.s32.totalorder %v3356, 2
          %v3362 = vxor.u32 %v3352, 2147483648
          %v3363 = vsel %vm3361, %v3362, %v3353
          %v3364 = vsel %vm3357, %v3360, %v3363
          %v3365 = vsel %vm3354, nan, %v3364
          %v3366 = vand.u32 2147483647, %v552
          %vm3367 = vcmp.le.f32.partialorder %v3366, 0.7853982
          %vm3368 = vcmp.lt.s32.totalorder %v552, 0
          %v3369 = vand.u32 %v552, 2139095040
          %v3370 = vshrl.u32 %v3369, 23
          %v3371 = vsub.s32 %v3370, 127
          %v3372 = vand.u32 2147483647, %v552
          %v3373 = vand.u32 %v3372, 8388607
          %v3374 = vor.u32 %v3373, 8388608
          %v3375 = vsub.s32 0, %v3374
          %v3376 = vadd.s32 %v3371, 1
          %vm3377 = vcmp.gt.s32.totalorder %v3376, 0
          %v3378 = vsel %vm3377, %v3376, 0
          %v3379 = vshrl.u32 %v3378, 5
          %v3380 = vand.u32 %v3378, 31
          %v3381 = vsub.s32 32, %v3380
          %v3382 = vshrl.u32 683565275, %v3381
          %v3383 = vshll.u32 683565275, %v3380
          %v3384 = vshrl.u32 2475754826, %v3381
          %v3385 = vor.u32 %v3383, %v3384
          %v3386 = vshll.u32 2475754826, %v3380
          %v3387 = vshrl.u32 2131351028, %v3381
          %v3388 = vor.u32 %v3386, %v3387
          %v3389 = vshll.u32 2131351028, %v3380
          %v3390 = vshrl.u32 2102212464, %v3381
          %v3391 = vor.u32 %v3389, %v3390
          %v3392 = vshll.u32 2102212464, %v3380
          %v3393 = vshrl.u32 920167782, %v3381
          %v3394 = vor.u32 %v3392, %v3393
          %v3395 = vshll.u32 920167782, %v3380
          %v3396 = vshrl.u32 1326507024, %v3381
          %v3397 = vor.u32 %v3395, %v3396
          %vm3398 = vcmp.lt.s32.totalorder %v3379, 1
          %vm3399 = vcmp.lt.s32.totalorder %v3379, 2
          %vm3400 = vcmp.lt.s32.totalorder %v3379, 3
          %vm3401 = vcmp.lt.s32.totalorder %v3379, 4
          %v3402 = vsel %vm3398, %v3382, %v3385
          %v3403 = vsel %vm3401, %v3391, 2102212464
          %v3404 = vsel %vm3400, %v3388, %v3403
          %v3405 = vsel %vm3399, %v3402, %v3404
          %v3406 = vsel %vm3398, %v3385, %v3388
          %v3407 = vsel %vm3401, %v3394, 920167782
          %v3408 = vsel %vm3400, %v3391, %v3407
          %v3409 = vsel %vm3399, %v3406, %v3408
          %v3410 = vsel %vm3398, %v3388, %v3391
          %v3411 = vsel %vm3401, %v3397, 1326507024
          %v3412 = vsel %vm3400, %v3394, %v3411
          %v3413 = vsel %vm3399, %v3410, %v3412
          %v3414 = vshll.u32 %v3374, 8
          %v3415 = vmul.u32.u64.compose %v3414, %v3413
          %v3416 = vextract.low.u32 %v3415
          %v3417 = vextract.high.u32 %v3415
          %v3418 = vmul.u32.u64.compose %v3414, %v3409
          %v3419 = vextract.low.u32 %v3418
          %v3420 = vextract.high.u32 %v3418
          %v3421 = vmul.u32 %v3414, %v3405
          %v3422 = vadd.s32 %v3417, %v3419
          %vm3423 = vc.u32 %v3417, %v3419
          %v3424 = vadd.s32 %v3420, 1
          %v3425 = vsel %vm3423, %v3424, %v3420
          %v3426 = vadd.s32 %v3421, %v3425
          %v3427 = vadd.s32 %v3426, 536870912
          %v3428 = vshrl.u32 %v3427, 30
          %v3429 = vshll.u32 %v3428, 30
          %v3430 = vsub.s32 %v3426, %v3429
          %vm3431 = vcmp.lt.s32.totalorder %v3430, 0
          %v3432 = vsub.s32 0, %v3430
          %v3433 = vsel %vm3431, %v3432, %v3430
          %v3434 = vclz %v3433
          %v3435 = vsub.s32 %v3434, 2
          %vm3436 = vcmp.gt.s32.totalorder 0, %v3435
          %v3437 = vsel %vm3436, 0, %v3435
          %v3438 = vsub.s32 32, %v3437
          %v3439 = vshll.u32 %v3430, %v3437
          %v3440 = vshrl.u32 %v3422, %v3438
          %v3441 = vor.u32 %v3439, %v3440
          %v3442 = vsub.s32 4294967266, %v3437
          %v3443 = vadd.s32 %v3442, 127
          %v3444 = vshll.u32 %v3443, 23
          %v3445 = vor.u32 4788187, %v3444
          %v3446 = vand.u32 2147483647, %v3445
          %v3448 = vcvt.s32.f32 %v3441
          %v3449 = vmul.f32 %v3448, %v3446
          %v3450 = vxor.u32 %v3449, 2147483648
          %v3451 = vsel %vm3368, %v3450, %v3449
          %v3452 = vsub.s32 4, %v3428
          %v3453 = vsel %vm3368, %v3452, %v3428
          %v3454 = vsel %vm3367, %v552, %v3451
          %v3455 = vsel %vm3367, 0, %v3453
          %v3456 = vcosq.f32.pop %v3454
          %v3457 = vsinq.f32.pop %v3454
          %vm3458 = vweird.f32 %v552
          %v3459 = vadd.s32 %v3455, 3
          %v3460 = vand.u32 %v3459, 3
          %vm3461 = vcmp.lt.s32.totalorder %v3460, 2
          %vm3462 = vcmp.eq.s32.totalorder %v3460, 0
          %v3463 = vxor.u32 %v3457, 2147483648
          %v3464 = vsel %vm3462, %v3456, %v3463
          %vm3465 = vcmp.eq.s32.totalorder %v3460, 2
          %v3466 = vxor.u32 %v3456, 2147483648
          %v3467 = vsel %vm3465, %v3466, %v3457
          %v3468 = vsel %vm3461, %v3464, %v3467
          %v3469 = vsel %vm3458, nan, %v3468
          %v3470 = vand.u32 2147483647, %v553
          %vm3471 = vcmp.le.f32.partialorder %v3470, 0.7853982
          %vm3472 = vcmp.lt.s32.totalorder %v553, 0
          %v3473 = vand.u32 %v553, 2139095040
          %v3474 = vshrl.u32 %v3473, 23
          %v3475 = vsub.s32 %v3474, 127
          %v3476 = vand.u32 2147483647, %v553
          %v3477 = vand.u32 %v3476, 8388607
          %v3478 = vor.u32 %v3477, 8388608
          %v3479 = vsub.s32 0, %v3478
          %v3480 = vadd.s32 %v3475, 1
          %vm3481 = vcmp.gt.s32.totalorder %v3480, 0
          %v3482 = vsel %vm3481, %v3480, 0
          %v3483 = vshrl.u32 %v3482, 5
          %v3484 = vand.u32 %v3482, 31
          %v3485 = vsub.s32 32, %v3484
          %v3486 = vshrl.u32 683565275, %v3485
          %v3487 = vshll.u32 683565275, %v3484
          %v3488 = vshrl.u32 2475754826, %v3485
          %v3489 = vor.u32 %v3487, %v3488
          %v3490 = vshll.u32 2475754826, %v3484
          %v3491 = vshrl.u32 2131351028, %v3485
          %v3492 = vor.u32 %v3490, %v3491
          %v3493 = vshll.u32 2131351028, %v3484
          %v3494 = vshrl.u32 2102212464, %v3485
          %v3495 = vor.u32 %v3493, %v3494
          %v3496 = vshll.u32 2102212464, %v3484
          %v3497 = vshrl.u32 920167782, %v3485
          %v3498 = vor.u32 %v3496, %v3497
          %v3499 = vshll.u32 920167782, %v3484
          %v3500 = vshrl.u32 1326507024, %v3485
          %v3501 = vor.u32 %v3499, %v3500
          %vm3502 = vcmp.lt.s32.totalorder %v3483, 1
          %vm3503 = vcmp.lt.s32.totalorder %v3483, 2
          %vm3504 = vcmp.lt.s32.totalorder %v3483, 3
          %vm3505 = vcmp.lt.s32.totalorder %v3483, 4
          %v3506 = vsel %vm3502, %v3486, %v3489
          %v3507 = vsel %vm3505, %v3495, 2102212464
          %v3508 = vsel %vm3504, %v3492, %v3507
          %v3509 = vsel %vm3503, %v3506, %v3508
          %v3510 = vsel %vm3502, %v3489, %v3492
          %v3511 = vsel %vm3505, %v3498, 920167782
          %v3512 = vsel %vm3504, %v3495, %v3511
          %v3513 = vsel %vm3503, %v3510, %v3512
          %v3514 = vsel %vm3502, %v3492, %v3495
          %v3515 = vsel %vm3505, %v3501, 1326507024
          %v3516 = vsel %vm3504, %v3498, %v3515
          %v3517 = vsel %vm3503, %v3514, %v3516
          %v3518 = vshll.u32 %v3478, 8
          %v3519 = vmul.u32.u64.compose %v3518, %v3517
          %v3520 = vextract.low.u32 %v3519
          %v3521 = vextract.high.u32 %v3519
          %v3522 = vmul.u32.u64.compose %v3518, %v3513
          %v3523 = vextract.low.u32 %v3522
          %v3524 = vextract.high.u32 %v3522
          %v3525 = vmul.u32 %v3518, %v3509
          %v3526 = vadd.s32 %v3521, %v3523
          %vm3527 = vc.u32 %v3521, %v3523
          %v3528 = vadd.s32 %v3524, 1
          %v3529 = vsel %vm3527, %v3528, %v3524
          %v3530 = vadd.s32 %v3525, %v3529
          %v3531 = vadd.s32 %v3530, 536870912
          %v3532 = vshrl.u32 %v3531, 30
          %v3533 = vshll.u32 %v3532, 30
          %v3534 = vsub.s32 %v3530, %v3533
          %vm3535 = vcmp.lt.s32.totalorder %v3534, 0
          %v3536 = vsub.s32 0, %v3534
          %v3537 = vsel %vm3535, %v3536, %v3534
          %v3538 = vclz %v3537
          %v3539 = vsub.s32 %v3538, 2
          %vm3540 = vcmp.gt.s32.totalorder 0, %v3539
          %v3541 = vsel %vm3540, 0, %v3539
          %v3542 = vsub.s32 32, %v3541
          %v3543 = vshll.u32 %v3534, %v3541
          %v3544 = vshrl.u32 %v3526, %v3542
          %v3545 = vor.u32 %v3543, %v3544
          %v3546 = vsub.s32 4294967266, %v3541
          %v3547 = vadd.s32 %v3546, 127
          %v3548 = vshll.u32 %v3547, 23
          %v3549 = vor.u32 4788187, %v3548
          %v3550 = vand.u32 2147483647, %v3549
          %v3552 = vcvt.s32.f32 %v3545
          %v3553 = vmul.f32 %v3552, %v3550
          %v3554 = vxor.u32 %v3553, 2147483648
          %v3555 = vsel %vm3472, %v3554, %v3553
          %v3556 = vsub.s32 4, %v3532
          %v3557 = vsel %vm3472, %v3556, %v3532
          %v3558 = vsel %vm3471, %v553, %v3555
          %v3559 = vsel %vm3471, 0, %v3557
          %v3560 = vcosq.f32.pop %v3558
          %v3561 = vsinq.f32.pop %v3558
          %vm3562 = vweird.f32 %v553
          %v3563 = vadd.s32 %v3559, 3
          %v3564 = vand.u32 %v3563, 3
          %vm3565 = vcmp.lt.s32.totalorder %v3564, 2
          %vm3566 = vcmp.eq.s32.totalorder %v3564, 0
          %v3567 = vxor.u32 %v3561, 2147483648
          %v3568 = vsel %vm3566, %v3560, %v3567
          %vm3569 = vcmp.eq.s32.totalorder %v3564, 2
          %v3570 = vxor.u32 %v3560, 2147483648
          %v3571 = vsel %vm3569, %v3570, %v3561
          %v3572 = vsel %vm3565, %v3568, %v3571
          %v3573 = vsel %vm3562, nan, %v3572
          %v3574 = vand.u32 2147483647, %v554
          %vm3575 = vcmp.le.f32.partialorder %v3574, 0.7853982
          %vm3576 = vcmp.lt.s32.totalorder %v554, 0
          %v3577 = vand.u32 %v554, 2139095040
          %v3578 = vshrl.u32 %v3577, 23
          %v3579 = vsub.s32 %v3578, 127
          %v3580 = vand.u32 2147483647, %v554
          %v3581 = vand.u32 %v3580, 8388607
          %v3582 = vor.u32 %v3581, 8388608
          %v3583 = vsub.s32 0, %v3582
          %v3584 = vadd.s32 %v3579, 1
          %vm3585 = vcmp.gt.s32.totalorder %v3584, 0
          %v3586 = vsel %vm3585, %v3584, 0
          %v3587 = vshrl.u32 %v3586, 5
          %v3588 = vand.u32 %v3586, 31
          %v3589 = vsub.s32 32, %v3588
          %v3590 = vshrl.u32 683565275, %v3589
          %v3591 = vshll.u32 683565275, %v3588
          %v3592 = vshrl.u32 2475754826, %v3589
          %v3593 = vor.u32 %v3591, %v3592
          %v3594 = vshll.u32 2475754826, %v3588
          %v3595 = vshrl.u32 2131351028, %v3589
          %v3596 = vor.u32 %v3594, %v3595
          %v3597 = vshll.u32 2131351028, %v3588
          %v3598 = vshrl.u32 2102212464, %v3589
          %v3599 = vor.u32 %v3597, %v3598
          %v3600 = vshll.u32 2102212464, %v3588
          %v3601 = vshrl.u32 920167782, %v3589
          %v3602 = vor.u32 %v3600, %v3601
          %v3603 = vshll.u32 920167782, %v3588
          %v3604 = vshrl.u32 1326507024, %v3589
          %v3605 = vor.u32 %v3603, %v3604
          %vm3606 = vcmp.lt.s32.totalorder %v3587, 1
          %vm3607 = vcmp.lt.s32.totalorder %v3587, 2
          %vm3608 = vcmp.lt.s32.totalorder %v3587, 3
          %vm3609 = vcmp.lt.s32.totalorder %v3587, 4
          %v3610 = vsel %vm3606, %v3590, %v3593
          %v3611 = vsel %vm3609, %v3599, 2102212464
          %v3612 = vsel %vm3608, %v3596, %v3611
          %v3613 = vsel %vm3607, %v3610, %v3612
          %v3614 = vsel %vm3606, %v3593, %v3596
          %v3615 = vsel %vm3609, %v3602, 920167782
          %v3616 = vsel %vm3608, %v3599, %v3615
          %v3617 = vsel %vm3607, %v3614, %v3616
          %v3618 = vsel %vm3606, %v3596, %v3599
          %v3619 = vsel %vm3609, %v3605, 1326507024
          %v3620 = vsel %vm3608, %v3602, %v3619
          %v3621 = vsel %vm3607, %v3618, %v3620
          %v3622 = vshll.u32 %v3582, 8
          %v3623 = vmul.u32.u64.compose %v3622, %v3621
          %v3624 = vextract.low.u32 %v3623
          %v3625 = vextract.high.u32 %v3623
          %v3626 = vmul.u32.u64.compose %v3622, %v3617
          %v3627 = vextract.low.u32 %v3626
          %v3628 = vextract.high.u32 %v3626
          %v3629 = vmul.u32 %v3622, %v3613
          %v3630 = vadd.s32 %v3625, %v3627
          %vm3631 = vc.u32 %v3625, %v3627
          %v3632 = vadd.s32 %v3628, 1
          %v3633 = vsel %vm3631, %v3632, %v3628
          %v3634 = vadd.s32 %v3629, %v3633
          %v3635 = vadd.s32 %v3634, 536870912
          %v3636 = vshrl.u32 %v3635, 30
          %v3637 = vshll.u32 %v3636, 30
          %v3638 = vsub.s32 %v3634, %v3637
          %vm3639 = vcmp.lt.s32.totalorder %v3638, 0
          %v3640 = vsub.s32 0, %v3638
          %v3641 = vsel %vm3639, %v3640, %v3638
          %v3642 = vclz %v3641
          %v3643 = vsub.s32 %v3642, 2
          %vm3644 = vcmp.gt.s32.totalorder 0, %v3643
          %v3645 = vsel %vm3644, 0, %v3643
          %v3646 = vsub.s32 32, %v3645
          %v3647 = vshll.u32 %v3638, %v3645
          %v3648 = vshrl.u32 %v3630, %v3646
          %v3649 = vor.u32 %v3647, %v3648
          %v3650 = vsub.s32 4294967266, %v3645
          %v3651 = vadd.s32 %v3650, 127
          %v3652 = vshll.u32 %v3651, 23
          %v3653 = vor.u32 4788187, %v3652
          %v3654 = vand.u32 2147483647, %v3653
          %v3656 = vcvt.s32.f32 %v3649
          %v3657 = vmul.f32 %v3656, %v3654
          %v3658 = vxor.u32 %v3657, 2147483648
          %v3659 = vsel %vm3576, %v3658, %v3657
          %v3660 = vsub.s32 4, %v3636
          %v3661 = vsel %vm3576, %v3660, %v3636
          %v3662 = vsel %vm3575, %v554, %v3659
          %v3663 = vsel %vm3575, 0, %v3661
          %v3664 = vcosq.f32.pop %v3662
          %v3665 = vsinq.f32.pop %v3662
          %vm3666 = vweird.f32 %v554
          %v3667 = vadd.s32 %v3663, 3
          %v3668 = vand.u32 %v3667, 3
          %vm3669 = vcmp.lt.s32.totalorder %v3668, 2
          %vm3670 = vcmp.eq.s32.totalorder %v3668, 0
          %v3671 = vxor.u32 %v3665, 2147483648
          %v3672 = vsel %vm3670, %v3664, %v3671
          %vm3673 = vcmp.eq.s32.totalorder %v3668, 2
          %v3674 = vxor.u32 %v3664, 2147483648
          %v3675 = vsel %vm3673, %v3674, %v3665
          %v3676 = vsel %vm3669, %v3672, %v3675
          %v3677 = vsel %vm3666, nan, %v3676
          %v3678 = vand.u32 2147483647, %v555
          %vm3679 = vcmp.le.f32.partialorder %v3678, 0.7853982
          %vm3680 = vcmp.lt.s32.totalorder %v555, 0
          %v3681 = vand.u32 %v555, 2139095040
          %v3682 = vshrl.u32 %v3681, 23
          %v3683 = vsub.s32 %v3682, 127
          %v3684 = vand.u32 2147483647, %v555
          %v3685 = vand.u32 %v3684, 8388607
          %v3686 = vor.u32 %v3685, 8388608
          %v3687 = vsub.s32 0, %v3686
          %v3688 = vadd.s32 %v3683, 1
          %vm3689 = vcmp.gt.s32.totalorder %v3688, 0
          %v3690 = vsel %vm3689, %v3688, 0
          %v3691 = vshrl.u32 %v3690, 5
          %v3692 = vand.u32 %v3690, 31
          %v3693 = vsub.s32 32, %v3692
          %v3694 = vshrl.u32 683565275, %v3693
          %v3695 = vshll.u32 683565275, %v3692
          %v3696 = vshrl.u32 2475754826, %v3693
          %v3697 = vor.u32 %v3695, %v3696
          %v3698 = vshll.u32 2475754826, %v3692
          %v3699 = vshrl.u32 2131351028, %v3693
          %v3700 = vor.u32 %v3698, %v3699
          %v3701 = vshll.u32 2131351028, %v3692
          %v3702 = vshrl.u32 2102212464, %v3693
          %v3703 = vor.u32 %v3701, %v3702
          %v3704 = vshll.u32 2102212464, %v3692
          %v3705 = vshrl.u32 920167782, %v3693
          %v3706 = vor.u32 %v3704, %v3705
          %v3707 = vshll.u32 920167782, %v3692
          %v3708 = vshrl.u32 1326507024, %v3693
          %v3709 = vor.u32 %v3707, %v3708
          %vm3710 = vcmp.lt.s32.totalorder %v3691, 1
          %vm3711 = vcmp.lt.s32.totalorder %v3691, 2
          %vm3712 = vcmp.lt.s32.totalorder %v3691, 3
          %vm3713 = vcmp.lt.s32.totalorder %v3691, 4
          %v3714 = vsel %vm3710, %v3694, %v3697
          %v3715 = vsel %vm3713, %v3703, 2102212464
          %v3716 = vsel %vm3712, %v3700, %v3715
          %v3717 = vsel %vm3711, %v3714, %v3716
          %v3718 = vsel %vm3710, %v3697, %v3700
          %v3719 = vsel %vm3713, %v3706, 920167782
          %v3720 = vsel %vm3712, %v3703, %v3719
          %v3721 = vsel %vm3711, %v3718, %v3720
          %v3722 = vsel %vm3710, %v3700, %v3703
          %v3723 = vsel %vm3713, %v3709, 1326507024
          %v3724 = vsel %vm3712, %v3706, %v3723
          %v3725 = vsel %vm3711, %v3722, %v3724
          %v3726 = vshll.u32 %v3686, 8
          %v3727 = vmul.u32.u64.compose %v3726, %v3725
          %v3728 = vextract.low.u32 %v3727
          %v3729 = vextract.high.u32 %v3727
          %v3730 = vmul.u32.u64.compose %v3726, %v3721
          %v3731 = vextract.low.u32 %v3730
          %v3732 = vextract.high.u32 %v3730
          %v3733 = vmul.u32 %v3726, %v3717
          %v3734 = vadd.s32 %v3729, %v3731
          %vm3735 = vc.u32 %v3729, %v3731
          %v3736 = vadd.s32 %v3732, 1
          %v3737 = vsel %vm3735, %v3736, %v3732
          %v3738 = vadd.s32 %v3733, %v3737
          %v3739 = vadd.s32 %v3738, 536870912
          %v3740 = vshrl.u32 %v3739, 30
          %v3741 = vshll.u32 %v3740, 30
          %v3742 = vsub.s32 %v3738, %v3741
          %vm3743 = vcmp.lt.s32.totalorder %v3742, 0
          %v3744 = vsub.s32 0, %v3742
          %v3745 = vsel %vm3743, %v3744, %v3742
          %v3746 = vclz %v3745
          %v3747 = vsub.s32 %v3746, 2
          %vm3748 = vcmp.gt.s32.totalorder 0, %v3747
          %v3749 = vsel %vm3748, 0, %v3747
          %v3750 = vsub.s32 32, %v3749
          %v3751 = vshll.u32 %v3742, %v3749
          %v3752 = vshrl.u32 %v3734, %v3750
          %v3753 = vor.u32 %v3751, %v3752
          %v3754 = vsub.s32 4294967266, %v3749
          %v3755 = vadd.s32 %v3754, 127
          %v3756 = vshll.u32 %v3755, 23
          %v3757 = vor.u32 4788187, %v3756
          %v3758 = vand.u32 2147483647, %v3757
          %v3760 = vcvt.s32.f32 %v3753
          %v3761 = vmul.f32 %v3760, %v3758
          %v3762 = vxor.u32 %v3761, 2147483648
          %v3763 = vsel %vm3680, %v3762, %v3761
          %v3764 = vsub.s32 4, %v3740
          %v3765 = vsel %vm3680, %v3764, %v3740
          %v3766 = vsel %vm3679, %v555, %v3763
          %v3767 = vsel %vm3679, 0, %v3765
          %v3768 = vcosq.f32.pop %v3766
          %v3769 = vsinq.f32.pop %v3766
          %vm3770 = vweird.f32 %v555
          %v3771 = vadd.s32 %v3767, 3
          %v3772 = vand.u32 %v3771, 3
          %vm3773 = vcmp.lt.s32.totalorder %v3772, 2
          %vm3774 = vcmp.eq.s32.totalorder %v3772, 0
          %v3775 = vxor.u32 %v3769, 2147483648
          %v3776 = vsel %vm3774, %v3768, %v3775
          %vm3777 = vcmp.eq.s32.totalorder %v3772, 2
          %v3778 = vxor.u32 %v3768, 2147483648
          %v3779 = vsel %vm3777, %v3778, %v3769
          %v3780 = vsel %vm3773, %v3776, %v3779
          %v3781 = vsel %vm3770, nan, %v3780
          %v3782 = vand.u32 2147483647, %v556
          %vm3783 = vcmp.le.f32.partialorder %v3782, 0.7853982
          %vm3784 = vcmp.lt.s32.totalorder %v556, 0
          %v3785 = vand.u32 %v556, 2139095040
          %v3786 = vshrl.u32 %v3785, 23
          %v3787 = vsub.s32 %v3786, 127
          %v3788 = vand.u32 2147483647, %v556
          %v3789 = vand.u32 %v3788, 8388607
          %v3790 = vor.u32 %v3789, 8388608
          %v3791 = vsub.s32 0, %v3790
          %v3792 = vadd.s32 %v3787, 1
          %vm3793 = vcmp.gt.s32.totalorder %v3792, 0
          %v3794 = vsel %vm3793, %v3792, 0
          %v3795 = vshrl.u32 %v3794, 5
          %v3796 = vand.u32 %v3794, 31
          %v3797 = vsub.s32 32, %v3796
          %v3798 = vshrl.u32 683565275, %v3797
          %v3799 = vshll.u32 683565275, %v3796
          %v3800 = vshrl.u32 2475754826, %v3797
          %v3801 = vor.u32 %v3799, %v3800
          %v3802 = vshll.u32 2475754826, %v3796
          %v3803 = vshrl.u32 2131351028, %v3797
          %v3804 = vor.u32 %v3802, %v3803
          %v3805 = vshll.u32 2131351028, %v3796
          %v3806 = vshrl.u32 2102212464, %v3797
          %v3807 = vor.u32 %v3805, %v3806
          %v3808 = vshll.u32 2102212464, %v3796
          %v3809 = vshrl.u32 920167782, %v3797
          %v3810 = vor.u32 %v3808, %v3809
          %v3811 = vshll.u32 920167782, %v3796
          %v3812 = vshrl.u32 1326507024, %v3797
          %v3813 = vor.u32 %v3811, %v3812
          %vm3814 = vcmp.lt.s32.totalorder %v3795, 1
          %vm3815 = vcmp.lt.s32.totalorder %v3795, 2
          %vm3816 = vcmp.lt.s32.totalorder %v3795, 3
          %vm3817 = vcmp.lt.s32.totalorder %v3795, 4
          %v3818 = vsel %vm3814, %v3798, %v3801
          %v3819 = vsel %vm3817, %v3807, 2102212464
          %v3820 = vsel %vm3816, %v3804, %v3819
          %v3821 = vsel %vm3815, %v3818, %v3820
          %v3822 = vsel %vm3814, %v3801, %v3804
          %v3823 = vsel %vm3817, %v3810, 920167782
          %v3824 = vsel %vm3816, %v3807, %v3823
          %v3825 = vsel %vm3815, %v3822, %v3824
          %v3826 = vsel %vm3814, %v3804, %v3807
          %v3827 = vsel %vm3817, %v3813, 1326507024
          %v3828 = vsel %vm3816, %v3810, %v3827
          %v3829 = vsel %vm3815, %v3826, %v3828
          %v3830 = vshll.u32 %v3790, 8
          %v3831 = vmul.u32.u64.compose %v3830, %v3829
          %v3832 = vextract.low.u32 %v3831
          %v3833 = vextract.high.u32 %v3831
          %v3834 = vmul.u32.u64.compose %v3830, %v3825
          %v3835 = vextract.low.u32 %v3834
          %v3836 = vextract.high.u32 %v3834
          %v3837 = vmul.u32 %v3830, %v3821
          %v3838 = vadd.s32 %v3833, %v3835
          %vm3839 = vc.u32 %v3833, %v3835
          %v3840 = vadd.s32 %v3836, 1
          %v3841 = vsel %vm3839, %v3840, %v3836
          %v3842 = vadd.s32 %v3837, %v3841
          %v3843 = vadd.s32 %v3842, 536870912
          %v3844 = vshrl.u32 %v3843, 30
          %v3845 = vshll.u32 %v3844, 30
          %v3846 = vsub.s32 %v3842, %v3845
          %vm3847 = vcmp.lt.s32.totalorder %v3846, 0
          %v3848 = vsub.s32 0, %v3846
          %v3849 = vsel %vm3847, %v3848, %v3846
          %v3850 = vclz %v3849
          %v3851 = vsub.s32 %v3850, 2
          %vm3852 = vcmp.gt.s32.totalorder 0, %v3851
          %v3853 = vsel %vm3852, 0, %v3851
          %v3854 = vsub.s32 32, %v3853
          %v3855 = vshll.u32 %v3846, %v3853
          %v3856 = vshrl.u32 %v3838, %v3854
          %v3857 = vor.u32 %v3855, %v3856
          %v3858 = vsub.s32 4294967266, %v3853
          %v3859 = vadd.s32 %v3858, 127
          %v3860 = vshll.u32 %v3859, 23
          %v3861 = vor.u32 4788187, %v3860
          %v3862 = vand.u32 2147483647, %v3861
          %v3864 = vcvt.s32.f32 %v3857
          %v3865 = vmul.f32 %v3864, %v3862
          %v3866 = vxor.u32 %v3865, 2147483648
          %v3867 = vsel %vm3784, %v3866, %v3865
          %v3868 = vsub.s32 4, %v3844
          %v3869 = vsel %vm3784, %v3868, %v3844
          %v3870 = vsel %vm3783, %v556, %v3867
          %v3871 = vsel %vm3783, 0, %v3869
          %v3872 = vcosq.f32.pop %v3870
          %v3873 = vsinq.f32.pop %v3870
          %vm3874 = vweird.f32 %v556
          %v3875 = vadd.s32 %v3871, 3
          %v3876 = vand.u32 %v3875, 3
          %vm3877 = vcmp.lt.s32.totalorder %v3876, 2
          %vm3878 = vcmp.eq.s32.totalorder %v3876, 0
          %v3879 = vxor.u32 %v3873, 2147483648
          %v3880 = vsel %vm3878, %v3872, %v3879
          %vm3881 = vcmp.eq.s32.totalorder %v3876, 2
          %v3882 = vxor.u32 %v3872, 2147483648
          %v3883 = vsel %vm3881, %v3882, %v3873
          %v3884 = vsel %vm3877, %v3880, %v3883
          %v3885 = vsel %vm3874, nan, %v3884
          %3886 = vst.msk [vmem:[#allocation7] sm:$0xff] %vm2205, %v2325
          %3887 = vst.msk [vmem:[#allocation7 + $0x8] sm:$0xff] %vm2205, %v2429
          %3888 = vst.msk [vmem:[#allocation7 + $0x10] sm:$0xff] %vm2205, %v2533
          %3889 = vst.msk [vmem:[#allocation7 + $0x18] sm:$0xff] %vm2205, %v2637
          %3890 = vst.msk [vmem:[#allocation7 + $0x20] sm:$0xff] %vm2205, %v2741
          %3891 = vst.msk [vmem:[#allocation7 + $0x28] sm:$0xff] %vm2205, %v2845
          %3892 = vst.msk [vmem:[#allocation7 + $0x30] sm:$0xff] %vm2205, %v2949
          %3893 = vst.msk [vmem:[#allocation7 + $0x38] sm:$0xff] %vm2205, %v3053
          %3894 = vst.msk [vmem:[#allocation7 + $0x40] sm:$0xff] %vm2205, %v3157
          %3895 = vst.msk [vmem:[#allocation7 + $0x48] sm:$0xff] %vm2205, %v3261
          %3896 = vst.msk [vmem:[#allocation7 + $0x50] sm:$0xff] %vm2205, %v3365
          %3897 = vst.msk [vmem:[#allocation7 + $0x58] sm:$0xff] %vm2205, %v3469
          %3898 = vst.msk [vmem:[#allocation7 + $0x60] sm:$0xff] %vm2205, %v3573
          %3899 = vst.msk [vmem:[#allocation7 + $0x68] sm:$0xff] %vm2205, %v3677
          %3900 = vst.msk [vmem:[#allocation7 + $0x70] sm:$0xff] %vm2205, %v3781
          %3901 = vst.msk [vmem:[#allocation7 + $0x78] sm:$0xff] %vm2205, %v3885
          %v3902 = vmul.f32 %v493, 8.264463e-05
          %v3903 = vmul.f32 %v494, 8.264463e-05
          %v3904 = vmul.f32 %v495, 8.264463e-05
          %v3905 = vmul.f32 %v496, 8.264463e-05
          %v3906 = vmul.f32 %v497, 8.264463e-05
          %v3907 = vmul.f32 %v498, 8.264463e-05
          %v3908 = vmul.f32 %v499, 8.264463e-05
          %v3909 = vmul.f32 %v500, 8.264463e-05
          %v3910 = vmul.f32 %v501, 8.264463e-05
          %v3911 = vmul.f32 %v502, 8.264463e-05
          %v3912 = vmul.f32 %v503, 8.264463e-05
          %v3913 = vmul.f32 %v504, 8.264463e-05
          %v3914 = vmul.f32 %v505, 8.264463e-05
          %v3915 = vmul.f32 %v506, 8.264463e-05
          %v3916 = vmul.f32 %v507, 8.264463e-05
          %v3917 = vmul.f32 %v508, 8.264463e-05
          %v3918 = vrcp.pop %v493
          %v3919 = vrcp.pop %v494
          %v3920 = vrcp.pop %v495
          %v3921 = vrcp.pop %v496
          %v3922 = vrcp.pop %v497
          %v3923 = vrcp.pop %v498
          %v3924 = vrcp.pop %v499
          %v3925 = vrcp.pop %v500
          %v3926 = vrcp.pop %v501
          %v3927 = vrcp.pop %v502
          %v3928 = vrcp.pop %v503
          %v3929 = vrcp.pop %v504
          %v3930 = vrcp.pop %v505
          %v3931 = vrcp.pop %v506
          %v3932 = vrcp.pop %v507
          %v3933 = vrcp.pop %v508
          %v3934 = vadd.f32 %v3902, %v3918
          %v3935 = vadd.f32 %v3903, %v3919
          %v3936 = vadd.f32 %v3904, %v3920
          %v3937 = vadd.f32 %v3905, %v3921
          %v3938 = vadd.f32 %v3906, %v3922
          %v3939 = vadd.f32 %v3907, %v3923
          %v3940 = vadd.f32 %v3908, %v3924
          %v3941 = vadd.f32 %v3909, %v3925
          %v3942 = vadd.f32 %v3910, %v3926
          %v3943 = vadd.f32 %v3911, %v3927
          %v3944 = vadd.f32 %v3912, %v3928
          %v3945 = vadd.f32 %v3913, %v3929
          %v3946 = vadd.f32 %v3914, %v3930
          %v3947 = vadd.f32 %v3915, %v3931
          %v3948 = vadd.f32 %v3916, %v3932
          %v3949 = vadd.f32 %v3917, %v3933
          %3950 = vst.msk [vmem:[#allocation8] sm:$0xff] %vm2205, %v3934
          %3951 = vst.msk [vmem:[#allocation8 + $0x8] sm:$0xff] %vm2205, %v3935
          %3952 = vst.msk [vmem:[#allocation8 + $0x10] sm:$0xff] %vm2205, %v3936
          %3953 = vst.msk [vmem:[#allocation8 + $0x18] sm:$0xff] %vm2205, %v3937
          %3954 = vst.msk [vmem:[#allocation8 + $0x20] sm:$0xff] %vm2205, %v3938
          %3955 = vst.msk [vmem:[#allocation8 + $0x28] sm:$0xff] %vm2205, %v3939
          %3956 = vst.msk [vmem:[#allocation8 + $0x30] sm:$0xff] %vm2205, %v3940
          %3957 = vst.msk [vmem:[#allocation8 + $0x38] sm:$0xff] %vm2205, %v3941
          %3958 = vst.msk [vmem:[#allocation8 + $0x40] sm:$0xff] %vm2205, %v3942
          %3959 = vst.msk [vmem:[#allocation8 + $0x48] sm:$0xff] %vm2205, %v3943
          %3960 = vst.msk [vmem:[#allocation8 + $0x50] sm:$0xff] %vm2205, %v3944
          %3961 = vst.msk [vmem:[#allocation8 + $0x58] sm:$0xff] %vm2205, %v3945
          %3962 = vst.msk [vmem:[#allocation8 + $0x60] sm:$0xff] %vm2205, %v3946
          %3963 = vst.msk [vmem:[#allocation8 + $0x68] sm:$0xff] %vm2205, %v3947
          %3964 = vst.msk [vmem:[#allocation8 + $0x70] sm:$0xff] %vm2205, %v3948
          %3965 = vst.msk [vmem:[#allocation8 + $0x78] sm:$0xff] %vm2205, %v3949
          %v3966 = vmax.f32 %v319, 1e-24
          %v3967 = vmax.f32 %v322, 1e-24
          %v3968 = vmax.f32 %v325, 1e-24
          %v3969 = vmax.f32 %v328, 1e-24
          %v3970 = vmax.f32 %v331, 1e-24
          %v3971 = vmax.f32 %v334, 1e-24
          %v3972 = vmax.f32 %v337, 1e-24
          %v3973 = vmax.f32 %v340, 1e-24
          %v3974 = vmax.f32 %v343, 1e-24
          %v3975 = vmax.f32 %v346, 1e-24
          %v3976 = vmax.f32 %v349, 1e-24
          %v3977 = vmax.f32 %v352, 1e-24
          %v3978 = vmax.f32 %v355, 1e-24
          %v3979 = vmax.f32 %v358, 1e-24
          %v3980 = vmax.f32 %v361, 1e-24
          %v3981 = vmax.f32 %v364, 1e-24
          %v3982 = vrsqrt.pop %v3966
          %v3983 = vrsqrt.pop %v3967
          %v3984 = vrsqrt.pop %v3968
          %v3985 = vrsqrt.pop %v3969
          %v3986 = vrsqrt.pop %v3970
          %v3987 = vrsqrt.pop %v3971
          %v3988 = vrsqrt.pop %v3972
          %v3989 = vrsqrt.pop %v3973
          %v3990 = vrsqrt.pop %v3974
          %v3991 = vrsqrt.pop %v3975
          %v3992 = vrsqrt.pop %v3976
          %v3993 = vrsqrt.pop %v3977
          %v3994 = vrsqrt.pop %v3978
          %v3995 = vrsqrt.pop %v3979
          %v3996 = vrsqrt.pop %v3980
          %v3997 = vrsqrt.pop %v3981
          %v3998 = vmul.f32 %v284, %v3982
          %v3999 = vmul.f32 %v285, %v3983
          %v4000 = vmul.f32 %v286, %v3984
          %v4001 = vmul.f32 %v287, %v3985
          %v4002 = vmul.f32 %v288, %v3986
          %v4003 = vmul.f32 %v289, %v3987
          %v4004 = vmul.f32 %v290, %v3988
          %v4005 = vmul.f32 %v291, %v3989
          %v4006 = vmul.f32 %v292, %v3990
          %v4007 = vmul.f32 %v293, %v3991
          %v4008 = vmul.f32 %v294, %v3992
          %v4009 = vmul.f32 %v295, %v3993
          %v4010 = vmul.f32 %v296, %v3994
          %v4011 = vmul.f32 %v297, %v3995
          %v4012 = vmul.f32 %v298, %v3996
          %v4013 = vmul.f32 %v299, %v3997
          %v4014 = vpack.c.bf16 %v3999, %v3998
          %v4015 = vpack.c.bf16 %v4001, %v4000
          %v4016 = vpack.c.bf16 %v4003, %v4002
          %v4017 = vpack.c.bf16 %v4005, %v4004
          %v4018 = vpack.c.bf16 %v4007, %v4006
          %v4019 = vpack.c.bf16 %v4009, %v4008
          %v4020 = vpack.c.bf16 %v4011, %v4010
          %v4021 = vpack.c.bf16 %v4013, %v4012
          %4022 = vst.msk [vmem:[#allocation5] sm:$0xff] %vm316, %v4014
          %4023 = vst.msk [vmem:[#allocation5 + $0x8] sm:$0xff] %vm316, %v4015
          %4024 = vst.msk [vmem:[#allocation5 + $0x10] sm:$0xff] %vm316, %v4016
          %4025 = vst.msk [vmem:[#allocation5 + $0x18] sm:$0xff] %vm316, %v4017
          %4026 = vst.msk [vmem:[#allocation5 + $0x20] sm:$0xff] %vm316, %v4018
          %4027 = vst.msk [vmem:[#allocation5 + $0x28] sm:$0xff] %vm316, %v4019
          %4028 = vst.msk [vmem:[#allocation5 + $0x30] sm:$0xff] %vm316, %v4020
          %4029 = vst.msk [vmem:[#allocation5 + $0x38] sm:$0xff] %vm316, %v4021
          %4030 = vst.msk [vmem:[#allocation2] sm:$0xff] %vm2205, -1e+30
          %4031 = vst.msk [vmem:[#allocation2 + $0x8] sm:$0xff] %vm2205, -1e+30
          %4032 = vst.msk [vmem:[#allocation2 + $0x10] sm:$0xff] %vm2205, -1e+30
          %4033 = vst.msk [vmem:[#allocation2 + $0x18] sm:$0xff] %vm2205, -1e+30
          %4034 = vst.msk [vmem:[#allocation2 + $0x20] sm:$0xff] %vm2205, -1e+30
          %4035 = vst.msk [vmem:[#allocation2 + $0x28] sm:$0xff] %vm2205, -1e+30
          %4036 = vst.msk [vmem:[#allocation2 + $0x30] sm:$0xff] %vm2205, -1e+30
          %4037 = vst.msk [vmem:[#allocation2 + $0x38] sm:$0xff] %vm2205, -1e+30
          %4038 = vst.msk [vmem:[#allocation2 + $0x40] sm:$0xff] %vm2205, -1e+30
          %4039 = vst.msk [vmem:[#allocation2 + $0x48] sm:$0xff] %vm2205, -1e+30
          %4040 = vst.msk [vmem:[#allocation2 + $0x50] sm:$0xff] %vm2205, -1e+30
          %4041 = vst.msk [vmem:[#allocation2 + $0x58] sm:$0xff] %vm2205, -1e+30
          %4042 = vst.msk [vmem:[#allocation2 + $0x60] sm:$0xff] %vm2205, -1e+30
          %4043 = vst.msk [vmem:[#allocation2 + $0x68] sm:$0xff] %vm2205, -1e+30
          %4044 = vst.msk [vmem:[#allocation2 + $0x70] sm:$0xff] %vm2205, -1e+30
          %4045 = vst.msk [vmem:[#allocation2 + $0x78] sm:$0xff] %vm2205, -1e+30
          %4046 = vst.msk [vmem:[#allocation3] sm:$0xff] %vm2205, 0.0
          %4047 = vst.msk [vmem:[#allocation3 + $0x8] sm:$0xff] %vm2205, 0.0
          %4048 = vst.msk [vmem:[#allocation3 + $0x10] sm:$0xff] %vm2205, 0.0
          %4049 = vst.msk [vmem:[#allocation3 + $0x18] sm:$0xff] %vm2205, 0.0
          %4050 = vst.msk [vmem:[#allocation3 + $0x20] sm:$0xff] %vm2205, 0.0
          %4051 = vst.msk [vmem:[#allocation3 + $0x28] sm:$0xff] %vm2205, 0.0
          %4052 = vst.msk [vmem:[#allocation3 + $0x30] sm:$0xff] %vm2205, 0.0
          %4053 = vst.msk [vmem:[#allocation3 + $0x38] sm:$0xff] %vm2205, 0.0
          %4054 = vst.msk [vmem:[#allocation3 + $0x40] sm:$0xff] %vm2205, 0.0
          %4055 = vst.msk [vmem:[#allocation3 + $0x48] sm:$0xff] %vm2205, 0.0
          %4056 = vst.msk [vmem:[#allocation3 + $0x50] sm:$0xff] %vm2205, 0.0
          %4057 = vst.msk [vmem:[#allocation3 + $0x58] sm:$0xff] %vm2205, 0.0
          %4058 = vst.msk [vmem:[#allocation3 + $0x60] sm:$0xff] %vm2205, 0.0
          %4059 = vst.msk [vmem:[#allocation3 + $0x68] sm:$0xff] %vm2205, 0.0
          %4060 = vst.msk [vmem:[#allocation3 + $0x70] sm:$0xff] %vm2205, 0.0
          %4061 = vst.msk [vmem:[#allocation3 + $0x78] sm:$0xff] %vm2205, 0.0
          %4062 = vst.msk [vmem:[#allocation4] sm:$0xff] %vm2205, 0.0
          %4063 = vst.msk [vmem:[#allocation4 + $0x8] sm:$0xff] %vm2205, 0.0
          %4064 = vst.msk [vmem:[#allocation4 + $0x10] sm:$0xff] %vm2205, 0.0
          %4065 = vst.msk [vmem:[#allocation4 + $0x18] sm:$0xff] %vm2205, 0.0
          %4066 = vst.msk [vmem:[#allocation4 + $0x20] sm:$0xff] %vm2205, 0.0
          %4067 = vst.msk [vmem:[#allocation4 + $0x28] sm:$0xff] %vm2205, 0.0
          %4068 = vst.msk [vmem:[#allocation4 + $0x30] sm:$0xff] %vm2205, 0.0
          %4069 = vst.msk [vmem:[#allocation4 + $0x38] sm:$0xff] %vm2205, 0.0
          %4070 = vst.msk [vmem:[#allocation4 + $0x40] sm:$0xff] %vm2205, 0.0
          %4071 = vst.msk [vmem:[#allocation4 + $0x48] sm:$0xff] %vm2205, 0.0
          %4072 = vst.msk [vmem:[#allocation4 + $0x50] sm:$0xff] %vm2205, 0.0
          %4073 = vst.msk [vmem:[#allocation4 + $0x58] sm:$0xff] %vm2205, 0.0
          %4074 = vst.msk [vmem:[#allocation4 + $0x60] sm:$0xff] %vm2205, 0.0
          %4075 = vst.msk [vmem:[#allocation4 + $0x68] sm:$0xff] %vm2205, 0.0
          %4076 = vst.msk [vmem:[#allocation4 + $0x70] sm:$0xff] %vm2205, 0.0
          %4077 = vst.msk [vmem:[#allocation4 + $0x78] sm:$0xff] %vm2205, 0.0
        $region59: #{magface_loss.1} parent=50 // pred_fallthru
          _
        %v4078 = vld [vmem:[%s229] sm:$0xff]
        %v4079 = vld [vmem:[%s229 + $0x8] sm:$0xff]
        %v4080 = vld [vmem:[%s229 + $0x10] sm:$0xff]
        %v4081 = vld [vmem:[%s229 + $0x18] sm:$0xff]
        %v4082 = vld [vmem:[%s229 + $0x20] sm:$0xff]
        %v4083 = vld [vmem:[%s229 + $0x28] sm:$0xff]
        %v4084 = vld [vmem:[%s229 + $0x30] sm:$0xff]
        %v4085 = vld [vmem:[%s229 + $0x38] sm:$0xff]
        %v4086 = vld [vmem:[%s229 + $0x40] sm:$0xff]
        %v4087 = vld [vmem:[%s229 + $0x48] sm:$0xff]
        %v4088 = vld [vmem:[%s229 + $0x50] sm:$0xff]
        %v4089 = vld [vmem:[%s229 + $0x58] sm:$0xff]
        %v4090 = vld [vmem:[%s229 + $0x60] sm:$0xff]
        %v4091 = vld [vmem:[%s229 + $0x68] sm:$0xff]
        %v4092 = vld [vmem:[%s229 + $0x70] sm:$0xff]
        %v4093 = vld [vmem:[%s229 + $0x78] sm:$0xff]
        %v4094 = vunpack.c.l.bf16 %v4078
        %v4095 = vunpack.c.h.bf16 %v4078
        %v4096 = vunpack.c.l.bf16 %v4079
        %v4097 = vunpack.c.h.bf16 %v4079
        %v4098 = vunpack.c.l.bf16 %v4080
        %v4099 = vunpack.c.h.bf16 %v4080
        %v4100 = vunpack.c.l.bf16 %v4081
        %v4101 = vunpack.c.h.bf16 %v4081
        %v4102 = vunpack.c.l.bf16 %v4082
        %v4103 = vunpack.c.h.bf16 %v4082
        %v4104 = vunpack.c.l.bf16 %v4083
        %v4105 = vunpack.c.h.bf16 %v4083
        %v4106 = vunpack.c.l.bf16 %v4084
        %v4107 = vunpack.c.h.bf16 %v4084
        %v4108 = vunpack.c.l.bf16 %v4085
        %v4109 = vunpack.c.h.bf16 %v4085
        %v4110 = vunpack.c.l.bf16 %v4086
        %v4111 = vunpack.c.h.bf16 %v4086
        %v4112 = vunpack.c.l.bf16 %v4087
        %v4113 = vunpack.c.h.bf16 %v4087
        %v4114 = vunpack.c.l.bf16 %v4088
        %v4115 = vunpack.c.h.bf16 %v4088
        %v4116 = vunpack.c.l.bf16 %v4089
        %v4117 = vunpack.c.h.bf16 %v4089
        %v4118 = vunpack.c.l.bf16 %v4090
        %v4119 = vunpack.c.h.bf16 %v4090
        %v4120 = vunpack.c.l.bf16 %v4091
        %v4121 = vunpack.c.h.bf16 %v4091
        %v4122 = vunpack.c.l.bf16 %v4092
        %v4123 = vunpack.c.h.bf16 %v4092
        %v4124 = vunpack.c.l.bf16 %v4093
        %v4125 = vunpack.c.h.bf16 %v4093
        %v4126 = vmul.f32 %v4094, %v4094
        %v4127 = vmul.f32 %v4095, %v4095
        %v4128 = vmul.f32 %v4096, %v4096
        %v4129 = vmul.f32 %v4097, %v4097
        %v4130 = vmul.f32 %v4098, %v4098
        %v4131 = vmul.f32 %v4099, %v4099
        %v4132 = vmul.f32 %v4100, %v4100
        %v4133 = vmul.f32 %v4101, %v4101
        %v4134 = vmul.f32 %v4102, %v4102
        %v4135 = vmul.f32 %v4103, %v4103
        %v4136 = vmul.f32 %v4104, %v4104
        %v4137 = vmul.f32 %v4105, %v4105
        %v4138 = vmul.f32 %v4106, %v4106
        %v4139 = vmul.f32 %v4107, %v4107
        %v4140 = vmul.f32 %v4108, %v4108
        %v4141 = vmul.f32 %v4109, %v4109
        %v4142 = vmul.f32 %v4110, %v4110
        %v4143 = vmul.f32 %v4111, %v4111
        %v4144 = vmul.f32 %v4112, %v4112
        %v4145 = vmul.f32 %v4113, %v4113
        %v4146 = vmul.f32 %v4114, %v4114
        %v4147 = vmul.f32 %v4115, %v4115
        %v4148 = vmul.f32 %v4116, %v4116
        %v4149 = vmul.f32 %v4117, %v4117
        %v4150 = vmul.f32 %v4118, %v4118
        %v4151 = vmul.f32 %v4119, %v4119
        %v4152 = vmul.f32 %v4120, %v4120
        %v4153 = vmul.f32 %v4121, %v4121
        %v4154 = vmul.f32 %v4122, %v4122
        %v4155 = vmul.f32 %v4123, %v4123
        %v4156 = vmul.f32 %v4124, %v4124
        %v4157 = vmul.f32 %v4125, %v4125
        %v4158 = vadd.f32 %v4126, %v4130
        %v4159 = vadd.f32 %v4158, %v4134
        %v4160 = vadd.f32 %v4159, %v4138
        %v4161 = vadd.f32 %v4160, %v4142
        %v4162 = vadd.f32 %v4161, %v4146
        %v4163 = vadd.f32 %v4162, %v4150
        %v4164 = vadd.f32 %v4163, %v4154
        %v4165 = vrot.slane %v4164, 4
        %v4166 = vadd.f32 %v4164, %v4165
        %v4167 = vrot.slane %v4166, 2
        %v4168 = vadd.f32 %v4166, %v4167
        %v4169 = vrot.slane %v4168, 1
        %v4170 = vadd.f32 %v4168, %v4169
        %v4171 = vadd.f32 %v4127, %v4131
        %v4172 = vadd.f32 %v4171, %v4135
        %v4173 = vadd.f32 %v4172, %v4139
        %v4174 = vadd.f32 %v4173, %v4143
        %v4175 = vadd.f32 %v4174, %v4147
        %v4176 = vadd.f32 %v4175, %v4151
        %v4177 = vadd.f32 %v4176, %v4155
        %v4178 = vrot.slane %v4177, 4
        %v4179 = vadd.f32 %v4177, %v4178
        %v4180 = vrot.slane %v4179, 2
        %v4181 = vadd.f32 %v4179, %v4180
        %v4182 = vrot.slane %v4181, 1
        %v4183 = vadd.f32 %v4181, %v4182
        %v4184 = vadd.f32 %v4128, %v4132
        %v4185 = vadd.f32 %v4184, %v4136
        %v4186 = vadd.f32 %v4185, %v4140
        %v4187 = vadd.f32 %v4186, %v4144
        %v4188 = vadd.f32 %v4187, %v4148
        %v4189 = vadd.f32 %v4188, %v4152
        %v4190 = vadd.f32 %v4189, %v4156
        %v4191 = vrot.slane %v4190, 4
        %v4192 = vadd.f32 %v4190, %v4191
        %v4193 = vrot.slane %v4192, 2
        %v4194 = vadd.f32 %v4192, %v4193
        %v4195 = vrot.slane %v4194, 1
        %v4196 = vadd.f32 %v4194, %v4195
        %v4197 = vadd.f32 %v4129, %v4133
        %v4198 = vadd.f32 %v4197, %v4137
        %v4199 = vadd.f32 %v4198, %v4141
        %v4200 = vadd.f32 %v4199, %v4145
        %v4201 = vadd.f32 %v4200, %v4149
        %v4202 = vadd.f32 %v4201, %v4153
        %v4203 = vadd.f32 %v4202, %v4157
        %v4204 = vrot.slane %v4203, 4
        %v4205 = vadd.f32 %v4203, %v4204
        %v4206 = vrot.slane %v4205, 2
        %v4207 = vadd.f32 %v4205, %v4206
        %v4208 = vrot.slane %v4207, 1
        %v4209 = vadd.f32 %v4207, %v4208
        %v4210 = vmax.f32 %v4170, 1e-24
        %v4211 = vmax.f32 %v4183, 1e-24
        %v4212 = vmax.f32 %v4196, 1e-24
        %v4213 = vmax.f32 %v4209, 1e-24
        %v4214 = vrsqrt.pop %v4210
        %v4215 = vrsqrt.pop %v4211
        %v4216 = vrsqrt.pop %v4212
        %v4217 = vrsqrt.pop %v4213
        %v4218 = vmul.f32 %v4094, %v4214
        %v4219 = vmul.f32 %v4095, %v4215
        %v4220 = vmul.f32 %v4096, %v4216
        %v4221 = vmul.f32 %v4097, %v4217
        %v4222 = vmul.f32 %v4098, %v4214
        %v4223 = vmul.f32 %v4099, %v4215
        %v4224 = vmul.f32 %v4100, %v4216
        %v4225 = vmul.f32 %v4101, %v4217
        %v4226 = vmul.f32 %v4102, %v4214
        %v4227 = vmul.f32 %v4103, %v4215
        %v4228 = vmul.f32 %v4104, %v4216
        %v4229 = vmul.f32 %v4105, %v4217
        %v4230 = vmul.f32 %v4106, %v4214
        %v4231 = vmul.f32 %v4107, %v4215
        %v4232 = vmul.f32 %v4108, %v4216
        %v4233 = vmul.f32 %v4109, %v4217
        %v4234 = vmul.f32 %v4110, %v4214
        %v4235 = vmul.f32 %v4111, %v4215
        %v4236 = vmul.f32 %v4112, %v4216
        %v4237 = vmul.f32 %v4113, %v4217
        %v4238 = vmul.f32 %v4114, %v4214
        %v4239 = vmul.f32 %v4115, %v4215
        %v4240 = vmul.f32 %v4116, %v4216
        %v4241 = vmul.f32 %v4117, %v4217
        %v4242 = vmul.f32 %v4118, %v4214
        %v4243 = vmul.f32 %v4119, %v4215
        %v4244 = vmul.f32 %v4120, %v4216
        %v4245 = vmul.f32 %v4121, %v4217
        %v4246 = vmul.f32 %v4122, %v4214
        %v4247 = vmul.f32 %v4123, %v4215
        %v4248 = vmul.f32 %v4124, %v4216
        %v4249 = vmul.f32 %v4125, %v4217
        %v4250 = vpack.c.bf16 %v4222, %v4218
        %v4251 = vpack.c.bf16 %v4223, %v4219
        %v4252 = vpack.c.bf16 %v4224, %v4220
        %v4253 = vpack.c.bf16 %v4225, %v4221
        %v4254 = vpack.c.bf16 %v4230, %v4226
        %v4255 = vpack.c.bf16 %v4231, %v4227
        %v4256 = vpack.c.bf16 %v4232, %v4228
        %v4257 = vpack.c.bf16 %v4233, %v4229
        %v4258 = vpack.c.bf16 %v4238, %v4234
        %v4259 = vpack.c.bf16 %v4239, %v4235
        %v4260 = vpack.c.bf16 %v4240, %v4236
        %v4261 = vpack.c.bf16 %v4241, %v4237
        %v4262 = vpack.c.bf16 %v4246, %v4242
        %v4263 = vpack.c.bf16 %v4247, %v4243
        %v4264 = vpack.c.bf16 %v4248, %v4244
        %v4265 = vpack.c.bf16 %v4249, %v4245
        %v4266 = vld [vmem:[#allocation5] sm:$0xff]
        %v4267 = vld [vmem:[#allocation5 + $0x8] sm:$0xff]
        %v4268 = vld [vmem:[#allocation5 + $0x10] sm:$0xff]
        %v4269 = vld [vmem:[#allocation5 + $0x18] sm:$0xff]
        %v4270 = vld [vmem:[#allocation5 + $0x20] sm:$0xff]
        %v4271 = vld [vmem:[#allocation5 + $0x28] sm:$0xff]
        %v4272 = vld [vmem:[#allocation5 + $0x30] sm:$0xff]
        %v4273 = vld [vmem:[#allocation5 + $0x38] sm:$0xff]
        %vm4274 = vcmask 523264
        %v4276 = vsel %vm4274, %v4266, 0
        %v4279 = vsel %vm4274, %v4267, 0
        %v4282 = vsel %vm4274, %v4268, 0
        %v4285 = vsel %vm4274, %v4269, 0
        %v4288 = vsel %vm4274, %v4270, 0
        %v4291 = vsel %vm4274, %v4271, 0
        %v4294 = vsel %vm4274, %v4272, 0
        %v4297 = vsel %vm4274, %v4273, 0
        %4299 = vmatprep.subr.bf16.mxu0 %v4251
        %4300 = vmatpush1.bf16.msra.mxu0 %v4250
        %4301 = vmatprep.subr.bf16.mxu0 %v4255
        %4302 = vmatpush1.bf16.msra.mxu0 %v4254
        %4303 = vmatprep.subr.bf16.mxu0 %v4259
        %4304 = vmatpush1.bf16.msra.mxu0 %v4258
        %4305 = vmatprep.subr.bf16.mxu0 %v4263
        %4306 = vmatpush1.bf16.msra.mxu0 %v4262
        %4307 = vmatprep.subr.bf16.mxu0 0
        %4308 = vmatpush1.bf16.msra.mxu0 0
        %4309 = vmatprep.subr.bf16.mxu0 0
        %4310 = vmatpush1.bf16.msra.mxu0 0
        %4311 = vmatprep.subr.bf16.mxu0 0
        %4312 = vmatpush1.bf16.msra.mxu0 0
        %4313 = vmatprep.subr.bf16.mxu0 0
        %4314 = vmatpush1.bf16.msra.mxu0 0
        %4315 = vmatprep.subr.bf16.mxu0 0
        %4316 = vmatpush1.bf16.msra.mxu0 0
        %4317 = vmatprep.subr.bf16.mxu0 0
        %4318 = vmatpush1.bf16.msra.mxu0 0
        %4319 = vmatprep.subr.bf16.mxu0 0
        %4320 = vmatpush1.bf16.msra.mxu0 0
        %4321 = vmatprep.subr.bf16.mxu0 0
        %4322 = vmatpush1.bf16.msra.mxu0 0
        %4323 = vmatprep.subr.bf16.mxu0 0
        %4324 = vmatpush1.bf16.msra.mxu0 0
        %4325 = vmatprep.subr.bf16.mxu0 0
        %4326 = vmatpush1.bf16.msra.mxu0 0
        %4327 = vmatprep.subr.bf16.mxu0 0
        %4328 = vmatpush1.bf16.msra.mxu0 0
        %4329 = vmatprep.subr.bf16.mxu0 0
        %4330 = vmatpush1.bf16.msra.mxu0 0
        %4331 = vmatprep.mubr.bf16.mxu0 0
        %4332 = vmatmul.mubr.bf16.gmra.mrb[0].mxu0 %v4276
        %v4333 = vpop.f32.mrb[0].mxu0
        %v4334 = vadd.f32 0.0, %v4333
        %v4335 = vpop.f32.mrb[0].mxu0
        %v4336 = vadd.f32 0.0, %v4335
        %v4337 = vpop.f32.mrb[0].mxu0
        %v4338 = vadd.f32 0.0, %v4337
        %v4339 = vpop.f32.mrb[0].mxu0
        %v4340 = vadd.f32 0.0, %v4339
        %4341 = vmatprep.mubr.bf16.mxu0 0
        %4342 = vmatmul.mubr.bf16.gmra.mrb[0].mxu0 %v4279
        %v4343 = vpop.f32.mrb[0].mxu0
        %v4344 = vadd.f32 0.0, %v4343
        %v4345 = vpop.f32.mrb[0].mxu0
        %v4346 = vadd.f32 0.0, %v4345
        %v4347 = vpop.f32.mrb[0].mxu0
        %v4348 = vadd.f32 0.0, %v4347
        %v4349 = vpop.f32.mrb[0].mxu0
        %v4350 = vadd.f32 0.0, %v4349
        %4351 = vmatprep.mubr.bf16.mxu0 0
        %4352 = vmatmul.mubr.bf16.gmra.mrb[0].mxu0 %v4282
        %v4353 = vpop.f32.mrb[0].mxu0
        %v4354 = vadd.f32 0.0, %v4353
        %v4355 = vpop.f32.mrb[0].mxu0
        %v4356 = vadd.f32 0.0, %v4355
        %v4357 = vpop.f32.mrb[0].mxu0
        %v4358 = vadd.f32 0.0, %v4357
        %v4359 = vpop.f32.mrb[0].mxu0
        %v4360 = vadd.f32 0.0, %v4359
        %4361 = vmatprep.mubr.bf16.mxu0 0
        %4362 = vmatmul.mubr.bf16.gmra.mrb[0].mxu0 %v4285
        %v4363 = vpop.f32.mrb[0].mxu0
        %v4364 = vadd.f32 0.0, %v4363
        %v4365 = vpop.f32.mrb[0].mxu0
        %v4366 = vadd.f32 0.0, %v4365
        %v4367 = vpop.f32.mrb[0].mxu0
        %v4368 = vadd.f32 0.0, %v4367
        %v4369 = vpop.f32.mrb[0].mxu0
        %v4370 = vadd.f32 0.0, %v4369
        %4371 = vmatprep.mubr.bf16.mxu0 0
        %4372 = vmatmul.mubr.bf16.gmra.mrb[0].mxu0 %v4288
        %v4373 = vpop.f32.mrb[0].mxu0
        %v4374 = vadd.f32 0.0, %v4373
        %v4375 = vpop.f32.mrb[0].mxu0
        %v4376 = vadd.f32 0.0, %v4375
        %v4377 = vpop.f32.mrb[0].mxu0
        %v4378 = vadd.f32 0.0, %v4377
        %v4379 = vpop.f32.mrb[0].mxu0
        %v4380 = vadd.f32 0.0, %v4379
        %4381 = vmatprep.mubr.bf16.mxu0 0
        %4382 = vmatmul.mubr.bf16.gmra.mrb[0].mxu0 %v4291
        %v4383 = vpop.f32.mrb[0].mxu0
        %v4384 = vadd.f32 0.0, %v4383
        %v4385 = vpop.f32.mrb[0].mxu0
        %v4386 = vadd.f32 0.0, %v4385
        %v4387 = vpop.f32.mrb[0].mxu0
        %v4388 = vadd.f32 0.0, %v4387
        %v4389 = vpop.f32.mrb[0].mxu0
        %v4390 = vadd.f32 0.0, %v4389
        %4391 = vmatprep.mubr.bf16.mxu0 0
        %4392 = vmatmul.mubr.bf16.gmra.mrb[0].mxu0 %v4294
        %v4393 = vpop.f32.mrb[0].mxu0
        %v4394 = vadd.f32 0.0, %v4393
        %v4395 = vpop.f32.mrb[0].mxu0
        %v4396 = vadd.f32 0.0, %v4395
        %v4397 = vpop.f32.mrb[0].mxu0
        %v4398 = vadd.f32 0.0, %v4397
        %v4399 = vpop.f32.mrb[0].mxu0
        %v4400 = vadd.f32 0.0, %v4399
        %4401 = vmatprep.mubr.bf16.mxu0 0
        %4402 = vmatmul.mubr.bf16.gmra.mrb[0].mxu0 %v4297
        %v4403 = vpop.f32.mrb[0].mxu0
        %v4404 = vadd.f32 0.0, %v4403
        %v4405 = vpop.f32.mrb[0].mxu0
        %v4406 = vadd.f32 0.0, %v4405
        %v4407 = vpop.f32.mrb[0].mxu0
        %v4408 = vadd.f32 0.0, %v4407
        %v4409 = vpop.f32.mrb[0].mxu0
        %v4410 = vadd.f32 0.0, %v4409
        %4411 = vdwg.mxu0
        %4412 = vmatprep.subr.bf16.mxu0 %v4253
        %4413 = vmatpush1.bf16.msra.mxu0 %v4252
        %4414 = vmatprep.subr.bf16.mxu0 %v4257
        %4415 = vmatpush1.bf16.msra.mxu0 %v4256
        %4416 = vmatprep.subr.bf16.mxu0 %v4261
        %4417 = vmatpush1.bf16.msra.mxu0 %v4260
        %4418 = vmatprep.subr.bf16.mxu0 %v4265
        %4419 = vmatpush1.bf16.msra.mxu0 %v4264
        %4420 = vmatprep.subr.bf16.mxu0 0
        %4421 = vmatpush1.bf16.msra.mxu0 0
        %4422 = vmatprep.subr.bf16.mxu0 0
        %4423 = vmatpush1.bf16.msra.mxu0 0
        %4424 = vmatprep.subr.bf16.mxu0 0
        %4425 = vmatpush1.bf16.msra.mxu0 0
        %4426 = vmatprep.subr.bf16.mxu0 0
        %4427 = vmatpush1.bf16.msra.mxu0 0
        %4428 = vmatprep.subr.bf16.mxu0 0
        %4429 = vmatpush1.bf16.msra.mxu0 0
        %4430 = vmatprep.subr.bf16.mxu0 0
        %4431 = vmatpush1.bf16.msra.mxu0 0
        %4432 = vmatprep.subr.bf16.mxu0 0
        %4433 = vmatpush1.bf16.msra.mxu0 0
        %4434 = vmatprep.subr.bf16.mxu0 0
        %4435 = vmatpush1.bf16.msra.mxu0 0
        %4436 = vmatprep.subr.bf16.mxu0 0
        %4437 = vmatpush1.bf16.msra.mxu0 0
        %4438 = vmatprep.subr.bf16.mxu0 0
        %4439 = vmatpush1.bf16.msra.mxu0 0
        %4440 = vmatprep.subr.bf16.mxu0 0
        %4441 = vmatpush1.bf16.msra.mxu0 0
        %4442 = vmatprep.subr.bf16.mxu0 0
        %4443 = vmatpush1.bf16.msra.mxu0 0
        %4444 = vmatprep.mubr.bf16.mxu0 0
        %4445 = vmatmul.mubr.bf16.gmra.mrb[0].mxu0 %v4276
        %v4446 = vpop.f32.mrb[0].mxu0
        %v4447 = vadd.f32 0.0, %v4446
        %v4448 = vpop.f32.mrb[0].mxu0
        %v4449 = vadd.f32 0.0, %v4448
        %v4450 = vpop.f32.mrb[0].mxu0
        %v4451 = vadd.f32 0.0, %v4450
        %v4452 = vpop.f32.mrb[0].mxu0
        %v4453 = vadd.f32 0.0, %v4452
        %4454 = vmatprep.mubr.bf16.mxu0 0
        %4455 = vmatmul.mubr.bf16.gmra.mrb[0].mxu0 %v4279
        %v4456 = vpop.f32.mrb[0].mxu0
        %v4457 = vadd.f32 0.0, %v4456
        %v4458 = vpop.f32.mrb[0].mxu0
        %v4459 = vadd.f32 0.0, %v4458
        %v4460 = vpop.f32.mrb[0].mxu0
        %v4461 = vadd.f32 0.0, %v4460
        %v4462 = vpop.f32.mrb[0].mxu0
        %v4463 = vadd.f32 0.0, %v4462
        %4464 = vmatprep.mubr.bf16.mxu0 0
        %4465 = vmatmul.mubr.bf16.gmra.mrb[0].mxu0 %v4282
        %v4466 = vpop.f32.mrb[0].mxu0
        %v4467 = vadd.f32 0.0, %v4466
        %v4468 = vpop.f32.mrb[0].mxu0
        %v4469 = vadd.f32 0.0, %v4468
        %v4470 = vpop.f32.mrb[0].mxu0
        %v4471 = vadd.f32 0.0, %v4470
        %v4472 = vpop.f32.mrb[0].mxu0
        %v4473 = vadd.f32 0.0, %v4472
        %4474 = vmatprep.mubr.bf16.mxu0 0
        %4475 = vmatmul.mubr.bf16.gmra.mrb[0].mxu0 %v4285
        %v4476 = vpop.f32.mrb[0].mxu0
        %v4477 = vadd.f32 0.0, %v4476
        %v4478 = vpop.f32.mrb[0].mxu0
        %v4479 = vadd.f32 0.0, %v4478
        %v4480 = vpop.f32.mrb[0].mxu0
        %v4481 = vadd.f32 0.0, %v4480
        %v4482 = vpop.f32.mrb[0].mxu0
        %v4483 = vadd.f32 0.0, %v4482
        %4484 = vmatprep.mubr.bf16.mxu0 0
        %4485 = vmatmul.mubr.bf16.gmra.mrb[0].mxu0 %v4288
        %v4486 = vpop.f32.mrb[0].mxu0
        %v4487 = vadd.f32 0.0, %v4486
        %v4488 = vpop.f32.mrb[0].mxu0
        %v4489 = vadd.f32 0.0, %v4488
        %v4490 = vpop.f32.mrb[0].mxu0
        %v4491 = vadd.f32 0.0, %v4490
        %v4492 = vpop.f32.mrb[0].mxu0
        %v4493 = vadd.f32 0.0, %v4492
        %4494 = vmatprep.mubr.bf16.mxu0 0
        %4495 = vmatmul.mubr.bf16.gmra.mrb[0].mxu0 %v4291
        %v4496 = vpop.f32.mrb[0].mxu0
        %v4497 = vadd.f32 0.0, %v4496
        %v4498 = vpop.f32.mrb[0].mxu0
        %v4499 = vadd.f32 0.0, %v4498
        %v4500 = vpop.f32.mrb[0].mxu0
        %v4501 = vadd.f32 0.0, %v4500
        %v4502 = vpop.f32.mrb[0].mxu0
        %v4503 = vadd.f32 0.0, %v4502
        %4504 = vmatprep.mubr.bf16.mxu0 0
        %4505 = vmatmul.mubr.bf16.gmra.mrb[0].mxu0 %v4294
        %v4506 = vpop.f32.mrb[0].mxu0
        %v4507 = vadd.f32 0.0, %v4506
        %v4508 = vpop.f32.mrb[0].mxu0
        %v4509 = vadd.f32 0.0, %v4508
        %v4510 = vpop.f32.mrb[0].mxu0
        %v4511 = vadd.f32 0.0, %v4510
        %v4512 = vpop.f32.mrb[0].mxu0
        %v4513 = vadd.f32 0.0, %v4512
        %4514 = vmatprep.mubr.bf16.mxu0 0
        %4515 = vmatmul.mubr.bf16.gmra.mrb[0].mxu0 %v4297
        %v4516 = vpop.f32.mrb[0].mxu0
        %v4517 = vadd.f32 0.0, %v4516
        %v4518 = vpop.f32.mrb[0].mxu0
        %v4519 = vadd.f32 0.0, %v4518
        %v4520 = vpop.f32.mrb[0].mxu0
        %v4521 = vadd.f32 0.0, %v4520
        %v4522 = vpop.f32.mrb[0].mxu0
        %v4523 = vadd.f32 0.0, %v4522
        %4524 = vdwg.mxu0
        %v4525 = vmax.f32 %v4334, -1.0
        %v4526 = vmax.f32 %v4336, -1.0
        %v4527 = vmax.f32 %v4447, -1.0
        %v4528 = vmax.f32 %v4449, -1.0
        %v4529 = vmax.f32 %v4338, -1.0
        %v4530 = vmax.f32 %v4340, -1.0
        %v4531 = vmax.f32 %v4451, -1.0
        %v4532 = vmax.f32 %v4453, -1.0
        %v4533 = vmax.f32 %v4344, -1.0
        %v4534 = vmax.f32 %v4346, -1.0
        %v4535 = vmax.f32 %v4457, -1.0
        %v4536 = vmax.f32 %v4459, -1.0
        %v4537 = vmax.f32 %v4348, -1.0
        %v4538 = vmax.f32 %v4350, -1.0
        %v4539 = vmax.f32 %v4461, -1.0
        %v4540 = vmax.f32 %v4463, -1.0
        %v4541 = vmax.f32 %v4354, -1.0
        %v4542 = vmax.f32 %v4356, -1.0
        %v4543 = vmax.f32 %v4467, -1.0
        %v4544 = vmax.f32 %v4469, -1.0
        %v4545 = vmax.f32 %v4358, -1.0
        %v4546 = vmax.f32 %v4360, -1.0
        %v4547 = vmax.f32 %v4471, -1.0
        %v4548 = vmax.f32 %v4473, -1.0
        %v4549 = vmax.f32 %v4364, -1.0
        %v4550 = vmax.f32 %v4366, -1.0
        %v4551 = vmax.f32 %v4477, -1.0
        %v4552 = vmax.f32 %v4479, -1.0
        %v4553 = vmax.f32 %v4368, -1.0
        %v4554 = vmax.f32 %v4370, -1.0
        %v4555 = vmax.f32 %v4481, -1.0
        %v4556 = vmax.f32 %v4483, -1.0
        %v4557 = vmax.f32 %v4374, -1.0
        %v4558 = vmax.f32 %v4376, -1.0
        %v4559 = vmax.f32 %v4487, -1.0
        %v4560 = vmax.f32 %v4489, -1.0
        %v4561 = vmax.f32 %v4378, -1.0
        %v4562 = vmax.f32 %v4380, -1.0
        %v4563 = vmax.f32 %v4491, -1.0
        %v4564 = vmax.f32 %v4493, -1.0
        %v4565 = vmax.f32 %v4384, -1.0
        %v4566 = vmax.f32 %v4386, -1.0
        %v4567 = vmax.f32 %v4497, -1.0
        %v4568 = vmax.f32 %v4499, -1.0
        %v4569 = vmax.f32 %v4388, -1.0
        %v4570 = vmax.f32 %v4390, -1.0
        %v4571 = vmax.f32 %v4501, -1.0
        %v4572 = vmax.f32 %v4503, -1.0
        %v4573 = vmax.f32 %v4394, -1.0
        %v4574 = vmax.f32 %v4396, -1.0
        %v4575 = vmax.f32 %v4507, -1.0
        %v4576 = vmax.f32 %v4509, -1.0
        %v4577 = vmax.f32 %v4398, -1.0
        %v4578 = vmax.f32 %v4400, -1.0
        %v4579 = vmax.f32 %v4511, -1.0
        %v4580 = vmax.f32 %v4513, -1.0
        %v4581 = vmax.f32 %v4404, -1.0
        %v4582 = vmax.f32 %v4406, -1.0
        %v4583 = vmax.f32 %v4517, -1.0
        %v4584 = vmax.f32 %v4519, -1.0
        %v4585 = vmax.f32 %v4408, -1.0
        %v4586 = vmax.f32 %v4410, -1.0
        %v4587 = vmax.f32 %v4521, -1.0
        %v4588 = vmax.f32 %v4523, -1.0
        %v4589 = vmin.f32 %v4525, 1.0
        %v4590 = vmin.f32 %v4526, 1.0
        %v4591 = vmin.f32 %v4527, 1.0
        %v4592 = vmin.f32 %v4528, 1.0
        %v4593 = vmin.f32 %v4529, 1.0
        %v4594 = vmin.f32 %v4530, 1.0
        %v4595 = vmin.f32 %v4531, 1.0
        %v4596 = vmin.f32 %v4532, 1.0
        %v4597 = vmin.f32 %v4533, 1.0
        %v4598 = vmin.f32 %v4534, 1.0
        %v4599 = vmin.f32 %v4535, 1.0
        %v4600 = vmin.f32 %v4536, 1.0
        %v4601 = vmin.f32 %v4537, 1.0
        %v4602 = vmin.f32 %v4538, 1.0
        %v4603 = vmin.f32 %v4539, 1.0
        %v4604 = vmin.f32 %v4540, 1.0
        %v4605 = vmin.f32 %v4541, 1.0
        %v4606 = vmin.f32 %v4542, 1.0
        %v4607 = vmin.f32 %v4543, 1.0
        %v4608 = vmin.f32 %v4544, 1.0
        %v4609 = vmin.f32 %v4545, 1.0
        %v4610 = vmin.f32 %v4546, 1.0
        %v4611 = vmin.f32 %v4547, 1.0
        %v4612 = vmin.f32 %v4548, 1.0
        %v4613 = vmin.f32 %v4549, 1.0
        %v4614 = vmin.f32 %v4550, 1.0
        %v4615 = vmin.f32 %v4551, 1.0
        %v4616 = vmin.f32 %v4552, 1.0
        %v4617 = vmin.f32 %v4553, 1.0
        %v4618 = vmin.f32 %v4554, 1.0
        %v4619 = vmin.f32 %v4555, 1.0
        %v4620 = vmin.f32 %v4556, 1.0
        %v4621 = vmin.f32 %v4557, 1.0
        %v4622 = vmin.f32 %v4558, 1.0
        %v4623 = vmin.f32 %v4559, 1.0
        %v4624 = vmin.f32 %v4560, 1.0
        %v4625 = vmin.f32 %v4561, 1.0
        %v4626 = vmin.f32 %v4562, 1.0
        %v4627 = vmin.f32 %v4563, 1.0
        %v4628 = vmin.f32 %v4564, 1.0
        %v4629 = vmin.f32 %v4565, 1.0
        %v4630 = vmin.f32 %v4566, 1.0
        %v4631 = vmin.f32 %v4567, 1.0
        %v4632 = vmin.f32 %v4568, 1.0
        %v4633 = vmin.f32 %v4569, 1.0
        %v4634 = vmin.f32 %v4570, 1.0
        %v4635 = vmin.f32 %v4571, 1.0
        %v4636 = vmin.f32 %v4572, 1.0
        %v4637 = vmin.f32 %v4573, 1.0
        %v4638 = vmin.f32 %v4574, 1.0
        %v4639 = vmin.f32 %v4575, 1.0
        %v4640 = vmin.f32 %v4576, 1.0
        %v4641 = vmin.f32 %v4577, 1.0
        %v4642 = vmin.f32 %v4578, 1.0
        %v4643 = vmin.f32 %v4579, 1.0
        %v4644 = vmin.f32 %v4580, 1.0
        %v4645 = vmin.f32 %v4581, 1.0
        %v4646 = vmin.f32 %v4582, 1.0
        %v4647 = vmin.f32 %v4583, 1.0
        %v4648 = vmin.f32 %v4584, 1.0
        %v4649 = vmin.f32 %v4585, 1.0
        %v4650 = vmin.f32 %v4586, 1.0
        %v4651 = vmin.f32 %v4587, 1.0
        %v4652 = vmin.f32 %v4588, 1.0
        %v4653 = vld [vmem:[#allocation6] sm:$0xff]
        %v4654 = vld [vmem:[#allocation6 + $0x8] sm:$0xff]
        %v4655 = vld [vmem:[#allocation6 + $0x10] sm:$0xff]
        %v4656 = vld [vmem:[#allocation6 + $0x18] sm:$0xff]
        %v4657 = vld [vmem:[#allocation6 + $0x20] sm:$0xff]
        %v4658 = vld [vmem:[#allocation6 + $0x28] sm:$0xff]
        %v4659 = vld [vmem:[#allocation6 + $0x30] sm:$0xff]
        %v4660 = vld [vmem:[#allocation6 + $0x38] sm:$0xff]
        %v4661 = vld [vmem:[#allocation6 + $0x40] sm:$0xff]
        %v4662 = vld [vmem:[#allocation6 + $0x48] sm:$0xff]
        %v4663 = vld [vmem:[#allocation6 + $0x50] sm:$0xff]
        %v4664 = vld [vmem:[#allocation6 + $0x58] sm:$0xff]
        %v4665 = vld [vmem:[#allocation6 + $0x60] sm:$0xff]
        %v4666 = vld [vmem:[#allocation6 + $0x68] sm:$0xff]
        %v4667 = vld [vmem:[#allocation6 + $0x70] sm:$0xff]
        %v4668 = vld [vmem:[#allocation6 + $0x78] sm:$0xff]
        %v4669 = vld [vmem:[#allocation7] sm:$0xff]
        %v4670 = vld [vmem:[#allocation7 + $0x8] sm:$0xff]
        %v4671 = vld [vmem:[#allocation7 + $0x10] sm:$0xff]
        %v4672 = vld [vmem:[#allocation7 + $0x18] sm:$0xff]
        %v4673 = vld [vmem:[#allocation7 + $0x20] sm:$0xff]
        %v4674 = vld [vmem:[#allocation7 + $0x28] sm:$0xff]
        %v4675 = vld [vmem:[#allocation7 + $0x30] sm:$0xff]
        %v4676 = vld [vmem:[#allocation7 + $0x38] sm:$0xff]
        %v4677 = vld [vmem:[#allocation7 + $0x40] sm:$0xff]
        %v4678 = vld [vmem:[#allocation7 + $0x48] sm:$0xff]
        %v4679 = vld [vmem:[#allocation7 + $0x50] sm:$0xff]
        %v4680 = vld [vmem:[#allocation7 + $0x58] sm:$0xff]
        %v4681 = vld [vmem:[#allocation7 + $0x60] sm:$0xff]
        %v4682 = vld [vmem:[#allocation7 + $0x68] sm:$0xff]
        %v4683 = vld [vmem:[#allocation7 + $0x70] sm:$0xff]
        %v4684 = vld [vmem:[#allocation7 + $0x78] sm:$0xff]
        %v4685 = vmul.f32 %v4589, %v4589
        %v4686 = vmul.f32 %v4590, %v4590
        %v4687 = vmul.f32 %v4591, %v4591
        %v4688 = vmul.f32 %v4592, %v4592
        %v4689 = vmul.f32 %v4593, %v4593
        %v4690 = vmul.f32 %v4594, %v4594
        %v4691 = vmul.f32 %v4595, %v4595
        %v4692 = vmul.f32 %v4596, %v4596
        %v4693 = vmul.f32 %v4597, %v4597
        %v4694 = vmul.f32 %v4598, %v4598
        %v4695 = vmul.f32 %v4599, %v4599
        %v4696 = vmul.f32 %v4600, %v4600
        %v4697 = vmul.f32 %v4601, %v4601
        %v4698 = vmul.f32 %v4602, %v4602
        %v4699 = vmul.f32 %v4603, %v4603
        %v4700 = vmul.f32 %v4604, %v4604
        %v4701 = vmul.f32 %v4605, %v4605
        %v4702 = vmul.f32 %v4606, %v4606
        %v4703 = vmul.f32 %v4607, %v4607
        %v4704 = vmul.f32 %v4608, %v4608
        %v4705 = vmul.f32 %v4609, %v4609
        %v4706 = vmul.f32 %v4610, %v4610
        %v4707 = vmul.f32 %v4611, %v4611
        %v4708 = vmul.f32 %v4612, %v4612
        %v4709 = vmul.f32 %v4613, %v4613
        %v4710 = vmul.f32 %v4614, %v4614
        %v4711 = vmul.f32 %v4615, %v4615
        %v4712 = vmul.f32 %v4616, %v4616
        %v4713 = vmul.f32 %v4617, %v4617
        %v4714 = vmul.f32 %v4618, %v4618
        %v4715 = vmul.f32 %v4619, %v4619
        %v4716 = vmul.f32 %v4620, %v4620
        %v4717 = vmul.f32 %v4621, %v4621
        %v4718 = vmul.f32 %v4622, %v4622
        %v4719 = vmul.f32 %v4623, %v4623
        %v4720 = vmul.f32 %v4624, %v4624
        %v4721 = vmul.f32 %v4625, %v4625
        %v4722 = vmul.f32 %v4626, %v4626
        %v4723 = vmul.f32 %v4627, %v4627
        %v4724 = vmul.f32 %v4628, %v4628
        %v4725 = vmul.f32 %v4629, %v4629
        %v4726 = vmul.f32 %v4630, %v4630
        %v4727 = vmul.f32 %v4631, %v4631
        %v4728 = vmul.f32 %v4632, %v4632
        %v4729 = vmul.f32 %v4633, %v4633
        %v4730 = vmul.f32 %v4634, %v4634
        %v4731 = vmul.f32 %v4635, %v4635
        %v4732 = vmul.f32 %v4636, %v4636
        %v4733 = vmul.f32 %v4637, %v4637
        %v4734 = vmul.f32 %v4638, %v4638
        %v4735 = vmul.f32 %v4639, %v4639
        %v4736 = vmul.f32 %v4640, %v4640
        %v4737 = vmul.f32 %v4641, %v4641
        %v4738 = vmul.f32 %v4642, %v4642
        %v4739 = vmul.f32 %v4643, %v4643
        %v4740 = vmul.f32 %v4644, %v4644
        %v4741 = vmul.f32 %v4645, %v4645
        %v4742 = vmul.f32 %v4646, %v4646
        %v4743 = vmul.f32 %v4647, %v4647
        %v4744 = vmul.f32 %v4648, %v4648
        %v4745 = vmul.f32 %v4649, %v4649
        %v4746 = vmul.f32 %v4650, %v4650
        %v4747 = vmul.f32 %v4651, %v4651
        %v4748 = vmul.f32 %v4652, %v4652
        %v4749 = vsub.f32 1.0, %v4685
        %v4750 = vsub.f32 1.0, %v4686
        %v4751 = vsub.f32 1.0, %v4687
        %v4752 = vsub.f32 1.0, %v4688
        %v4753 = vsub.f32 1.0, %v4689
        %v4754 = vsub.f32 1.0, %v4690
        %v4755 = vsub.f32 1.0, %v4691
        %v4756 = vsub.f32 1.0, %v4692
        %v4757 = vsub.f32 1.0, %v4693
        %v4758 = vsub.f32 1.0, %v4694
        %v4759 = vsub.f32 1.0, %v4695
        %v4760 = vsub.f32 1.0, %v4696
        %v4761 = vsub.f32 1.0, %v4697
        %v4762 = vsub.f32 1.0, %v4698
        %v4763 = vsub.f32 1.0, %v4699
        %v4764 = vsub.f32 1.0, %v4700
        %v4765 = vsub.f32 1.0, %v4701
        %v4766 = vsub.f32 1.0, %v4702
        %v4767 = vsub.f32 1.0, %v4703
        %v4768 = vsub.f32 1.0, %v4704
        %v4769 = vsub.f32 1.0, %v4705
        %v4770 = vsub.f32 1.0, %v4706
        %v4771 = vsub.f32 1.0, %v4707
        %v4772 = vsub.f32 1.0, %v4708
        %v4773 = vsub.f32 1.0, %v4709
        %v4774 = vsub.f32 1.0, %v4710
        %v4775 = vsub.f32 1.0, %v4711
        %v4776 = vsub.f32 1.0, %v4712
        %v4777 = vsub.f32 1.0, %v4713
        %v4778 = vsub.f32 1.0, %v4714
        %v4779 = vsub.f32 1.0, %v4715
        %v4780 = vsub.f32 1.0, %v4716
        %v4781 = vsub.f32 1.0, %v4717
        %v4782 = vsub.f32 1.0, %v4718
        %v4783 = vsub.f32 1.0, %v4719
        %v4784 = vsub.f32 1.0, %v4720
        %v4785 = vsub.f32 1.0, %v4721
        %v4786 = vsub.f32 1.0, %v4722
        %v4787 = vsub.f32 1.0, %v4723
        %v4788 = vsub.f32 1.0, %v4724
        %v4789 = vsub.f32 1.0, %v4725
        %v4790 = vsub.f32 1.0, %v4726
        %v4791 = vsub.f32 1.0, %v4727
        %v4792 = vsub.f32 1.0, %v4728
        %v4793 = vsub.f32 1.0, %v4729
        %v4794 = vsub.f32 1.0, %v4730
        %v4795 = vsub.f32 1.0, %v4731
        %v4796 = vsub.f32 1.0, %v4732
        %v4797 = vsub.f32 1.0, %v4733
        %v4798 = vsub.f32 1.0, %v4734
        %v4799 = vsub.f32 1.0, %v4735
        %v4800 = vsub.f32 1.0, %v4736
        %v4801 = vsub.f32 1.0, %v4737
        %v4802 = vsub.f32 1.0, %v4738
        %v4803 = vsub.f32 1.0, %v4739
        %v4804 = vsub.f32 1.0, %v4740
        %v4805 = vsub.f32 1.0, %v4741
        %v4806 = vsub.f32 1.0, %v4742
        %v4807 = vsub.f32 1.0, %v4743
        %v4808 = vsub.f32 1.0, %v4744
        %v4809 = vsub.f32 1.0, %v4745
        %v4810 = vsub.f32 1.0, %v4746
        %v4811 = vsub.f32 1.0, %v4747
        %v4812 = vsub.f32 1.0, %v4748
        %v4813 = vrsqrt.pop %v4749
        %v4814 = vmul.f32 %v4749, %v4813
        %vm4815 = vcmp.eq.f32.partialorder %v4749, inf
        %v4816 = vsel %vm4815, %v4749, %v4814
        %vm4817 = vcmp.eq.f32.partialorder %v4749, 0.0
        %v4818 = vand.u32 %v4749, 2147483648
        %v4819 = vsel %vm4817, %v4818, %v4816
        %v4820 = vrsqrt.pop %v4750
        %v4821 = vmul.f32 %v4750, %v4820
        %vm4822 = vcmp.eq.f32.partialorder %v4750, inf
        %v4823 = vsel %vm4822, %v4750, %v4821
        %vm4824 = vcmp.eq.f32.partialorder %v4750, 0.0
        %v4825 = vand.u32 %v4750, 2147483648
        %v4826 = vsel %vm4824, %v4825, %v4823
        %v4827 = vrsqrt.pop %v4751
        %v4828 = vmul.f32 %v4751, %v4827
        %vm4829 = vcmp.eq.f32.partialorder %v4751, inf
        %v4830 = vsel %vm4829, %v4751, %v4828
        %vm4831 = vcmp.eq.f32.partialorder %v4751, 0.0
        %v4832 = vand.u32 %v4751, 2147483648
        %v4833 = vsel %vm4831, %v4832, %v4830
        %v4834 = vrsqrt.pop %v4752
        %v4835 = vmul.f32 %v4752, %v4834
        %vm4836 = vcmp.eq.f32.partialorder %v4752, inf
        %v4837 = vsel %vm4836, %v4752, %v4835
        %vm4838 = vcmp.eq.f32.partialorder %v4752, 0.0
        %v4839 = vand.u32 %v4752, 2147483648
        %v4840 = vsel %vm4838, %v4839, %v4837
        %v4841 = vrsqrt.pop %v4753
        %v4842 = vmul.f32 %v4753, %v4841
        %vm4843 = vcmp.eq.f32.partialorder %v4753, inf
        %v4844 = vsel %vm4843, %v4753, %v4842
        %vm4845 = vcmp.eq.f32.partialorder %v4753, 0.0
        %v4846 = vand.u32 %v4753, 2147483648
        %v4847 = vsel %vm4845, %v4846, %v4844
        %v4848 = vrsqrt.pop %v4754
        %v4849 = vmul.f32 %v4754, %v4848
        %vm4850 = vcmp.eq.f32.partialorder %v4754, inf
        %v4851 = vsel %vm4850, %v4754, %v4849
        %vm4852 = vcmp.eq.f32.partialorder %v4754, 0.0
        %v4853 = vand.u32 %v4754, 2147483648
        %v4854 = vsel %vm4852, %v4853, %v4851
        %v4855 = vrsqrt.pop %v4755
        %v4856 = vmul.f32 %v4755, %v4855
        %vm4857 = vcmp.eq.f32.partialorder %v4755, inf
        %v4858 = vsel %vm4857, %v4755, %v4856
        %vm4859 = vcmp.eq.f32.partialorder %v4755, 0.0
        %v4860 = vand.u32 %v4755, 2147483648
        %v4861 = vsel %vm4859, %v4860, %v4858
        %v4862 = vrsqrt.pop %v4756
        %v4863 = vmul.f32 %v4756, %v4862
        %vm4864 = vcmp.eq.f32.partialorder %v4756, inf
        %v4865 = vsel %vm4864, %v4756, %v4863
        %vm4866 = vcmp.eq.f32.partialorder %v4756, 0.0
        %v4867 = vand.u32 %v4756, 2147483648
        %v4868 = vsel %vm4866, %v4867, %v4865
        %v4869 = vrsqrt.pop %v4757
        %v4870 = vmul.f32 %v4757, %v4869
        %vm4871 = vcmp.eq.f32.partialorder %v4757, inf
        %v4872 = vsel %vm4871, %v4757, %v4870
        %vm4873 = vcmp.eq.f32.partialorder %v4757, 0.0
        %v4874 = vand.u32 %v4757, 2147483648
        %v4875 = vsel %vm4873, %v4874, %v4872
        %v4876 = vrsqrt.pop %v4758
        %v4877 = vmul.f32 %v4758, %v4876
        %vm4878 = vcmp.eq.f32.partialorder %v4758, inf
        %v4879 = vsel %vm4878, %v4758, %v4877
        %vm4880 = vcmp.eq.f32.partialorder %v4758, 0.0
        %v4881 = vand.u32 %v4758, 2147483648
        %v4882 = vsel %vm4880, %v4881, %v4879
        %v4883 = vrsqrt.pop %v4759
        %v4884 = vmul.f32 %v4759, %v4883
        %vm4885 = vcmp.eq.f32.partialorder %v4759, inf
        %v4886 = vsel %vm4885, %v4759, %v4884
        %vm4887 = vcmp.eq.f32.partialorder %v4759, 0.0
        %v4888 = vand.u32 %v4759, 2147483648
        %v4889 = vsel %vm4887, %v4888, %v4886
        %v4890 = vrsqrt.pop %v4760
        %v4891 = vmul.f32 %v4760, %v4890
        %vm4892 = vcmp.eq.f32.partialorder %v4760, inf
        %v4893 = vsel %vm4892, %v4760, %v4891
        %vm4894 = vcmp.eq.f32.partialorder %v4760, 0.0
        %v4895 = vand.u32 %v4760, 2147483648
        %v4896 = vsel %vm4894, %v4895, %v4893
        %v4897 = vrsqrt.pop %v4761
        %v4898 = vmul.f32 %v4761, %v4897
        %vm4899 = vcmp.eq.f32.partialorder %v4761, inf
        %v4900 = vsel %vm4899, %v4761, %v4898
        %vm4901 = vcmp.eq.f32.partialorder %v4761, 0.0
        %v4902 = vand.u32 %v4761, 2147483648
        %v4903 = vsel %vm4901, %v4902, %v4900
        %v4904 = vrsqrt.pop %v4762
        %v4905 = vmul.f32 %v4762, %v4904
        %vm4906 = vcmp.eq.f32.partialorder %v4762, inf
        %v4907 = vsel %vm4906, %v4762, %v4905
        %vm4908 = vcmp.eq.f32.partialorder %v4762, 0.0
        %v4909 = vand.u32 %v4762, 2147483648
        %v4910 = vsel %vm4908, %v4909, %v4907
        %v4911 = vrsqrt.pop %v4763
        %v4912 = vmul.f32 %v4763, %v4911
        %vm4913 = vcmp.eq.f32.partialorder %v4763, inf
        %v4914 = vsel %vm4913, %v4763, %v4912
        %vm4915 = vcmp.eq.f32.partialorder %v4763, 0.0
        %v4916 = vand.u32 %v4763, 2147483648
        %v4917 = vsel %vm4915, %v4916, %v4914
        %v4918 = vrsqrt.pop %v4764
        %v4919 = vmul.f32 %v4764, %v4918
        %vm4920 = vcmp.eq.f32.partialorder %v4764, inf
        %v4921 = vsel %vm4920, %v4764, %v4919
        %vm4922 = vcmp.eq.f32.partialorder %v4764, 0.0
        %v4923 = vand.u32 %v4764, 2147483648
        %v4924 = vsel %vm4922, %v4923, %v4921
        %v4925 = vrsqrt.pop %v4765
        %v4926 = vmul.f32 %v4765, %v4925
        %vm4927 = vcmp.eq.f32.partialorder %v4765, inf
        %v4928 = vsel %vm4927, %v4765, %v4926
        %vm4929 = vcmp.eq.f32.partialorder %v4765, 0.0
        %v4930 = vand.u32 %v4765, 2147483648
        %v4931 = vsel %vm4929, %v4930, %v4928
        %v4932 = vrsqrt.pop %v4766
        %v4933 = vmul.f32 %v4766, %v4932
        %vm4934 = vcmp.eq.f32.partialorder %v4766, inf
        %v4935 = vsel %vm4934, %v4766, %v4933
        %vm4936 = vcmp.eq.f32.partialorder %v4766, 0.0
        %v4937 = vand.u32 %v4766, 2147483648
        %v4938 = vsel %vm4936, %v4937, %v4935
        %v4939 = vrsqrt.pop %v4767
        %v4940 = vmul.f32 %v4767, %v4939
        %vm4941 = vcmp.eq.f32.partialorder %v4767, inf
        %v4942 = vsel %vm4941, %v4767, %v4940
        %vm4943 = vcmp.eq.f32.partialorder %v4767, 0.0
        %v4944 = vand.u32 %v4767, 2147483648
        %v4945 = vsel %vm4943, %v4944, %v4942
        %v4946 = vrsqrt.pop %v4768
        %v4947 = vmul.f32 %v4768, %v4946
        %vm4948 = vcmp.eq.f32.partialorder %v4768, inf
        %v4949 = vsel %vm4948, %v4768, %v4947
        %vm4950 = vcmp.eq.f32.partialorder %v4768, 0.0
        %v4951 = vand.u32 %v4768, 2147483648
        %v4952 = vsel %vm4950, %v4951, %v4949
        %v4953 = vrsqrt.pop %v4769
        %v4954 = vmul.f32 %v4769, %v4953
        %vm4955 = vcmp.eq.f32.partialorder %v4769, inf
        %v4956 = vsel %vm4955, %v4769, %v4954
        %vm4957 = vcmp.eq.f32.partialorder %v4769, 0.0
        %v4958 = vand.u32 %v4769, 2147483648
        %v4959 = vsel %vm4957, %v4958, %v4956
        %v4960 = vrsqrt.pop %v4770
        %v4961 = vmul.f32 %v4770, %v4960
        %vm4962 = vcmp.eq.f32.partialorder %v4770, inf
        %v4963 = vsel %vm4962, %v4770, %v4961
        %vm4964 = vcmp.eq.f32.partialorder %v4770, 0.0
        %v4965 = vand.u32 %v4770, 2147483648
        %v4966 = vsel %vm4964, %v4965, %v4963
        %v4967 = vrsqrt.pop %v4771
        %v4968 = vmul.f32 %v4771, %v4967
        %vm4969 = vcmp.eq.f32.partialorder %v4771, inf
        %v4970 = vsel %vm4969, %v4771, %v4968
        %vm4971 = vcmp.eq.f32.partialorder %v4771, 0.0
        %v4972 = vand.u32 %v4771, 2147483648
        %v4973 = vsel %vm4971, %v4972, %v4970
        %v4974 = vrsqrt.pop %v4772
        %v4975 = vmul.f32 %v4772, %v4974
        %vm4976 = vcmp.eq.f32.partialorder %v4772, inf
        %v4977 = vsel %vm4976, %v4772, %v4975
        %vm4978 = vcmp.eq.f32.partialorder %v4772, 0.0
        %v4979 = vand.u32 %v4772, 2147483648
        %v4980 = vsel %vm4978, %v4979, %v4977
        %v4981 = vrsqrt.pop %v4773
        %v4982 = vmul.f32 %v4773, %v4981
        %vm4983 = vcmp.eq.f32.partialorder %v4773, inf
        %v4984 = vsel %vm4983, %v4773, %v4982
        %vm4985 = vcmp.eq.f32.partialorder %v4773, 0.0
        %v4986 = vand.u32 %v4773, 2147483648
        %v4987 = vsel %vm4985, %v4986, %v4984
        %v4988 = vrsqrt.pop %v4774
        %v4989 = vmul.f32 %v4774, %v4988
        %vm4990 = vcmp.eq.f32.partialorder %v4774, inf
        %v4991 = vsel %vm4990, %v4774, %v4989
        %vm4992 = vcmp.eq.f32.partialorder %v4774, 0.0
        %v4993 = vand.u32 %v4774, 2147483648
        %v4994 = vsel %vm4992, %v4993, %v4991
        %v4995 = vrsqrt.pop %v4775
        %v4996 = vmul.f32 %v4775, %v4995
        %vm4997 = vcmp.eq.f32.partialorder %v4775, inf
        %v4998 = vsel %vm4997, %v4775, %v4996
        %vm4999 = vcmp.eq.f32.partialorder %v4775, 0.0
        %v5000 = vand.u32 %v4775, 2147483648
        %v5001 = vsel %vm4999, %v5000, %v4998
        %v5002 = vrsqrt.pop %v4776
        %v5003 = vmul.f32 %v4776, %v5002
        %vm5004 = vcmp.eq.f32.partialorder %v4776, inf
        %v5005 = vsel %vm5004, %v4776, %v5003
        %vm5006 = vcmp.eq.f32.partialorder %v4776, 0.0
        %v5007 = vand.u32 %v4776, 2147483648
        %v5008 = vsel %vm5006, %v5007, %v5005
        %v5009 = vrsqrt.pop %v4777
        %v5010 = vmul.f32 %v4777, %v5009
        %vm5011 = vcmp.eq.f32.partialorder %v4777, inf
        %v5012 = vsel %vm5011, %v4777, %v5010
        %vm5013 = vcmp.eq.f32.partialorder %v4777, 0.0
        %v5014 = vand.u32 %v4777, 2147483648
        %v5015 = vsel %vm5013, %v5014, %v5012
        %v5016 = vrsqrt.pop %v4778
        %v5017 = vmul.f32 %v4778, %v5016
        %vm5018 = vcmp.eq.f32.partialorder %v4778, inf
        %v5019 = vsel %vm5018, %v4778, %v5017
        %vm5020 = vcmp.eq.f32.partialorder %v4778, 0.0
        %v5021 = vand.u32 %v4778, 2147483648
        %v5022 = vsel %vm5020, %v5021, %v5019
        %v5023 = vrsqrt.pop %v4779
        %v5024 = vmul.f32 %v4779, %v5023
        %vm5025 = vcmp.eq.f32.partialorder %v4779, inf
        %v5026 = vsel %vm5025, %v4779, %v5024
        %vm5027 = vcmp.eq.f32.partialorder %v4779, 0.0
        %v5028 = vand.u32 %v4779, 2147483648
        %v5029 = vsel %vm5027, %v5028, %v5026
        %v5030 = vrsqrt.pop %v4780
        %v5031 = vmul.f32 %v4780, %v5030
        %vm5032 = vcmp.eq.f32.partialorder %v4780, inf
        %v5033 = vsel %vm5032, %v4780, %v5031
        %vm5034 = vcmp.eq.f32.partialorder %v4780, 0.0
        %v5035 = vand.u32 %v4780, 2147483648
        %v5036 = vsel %vm5034, %v5035, %v5033
        %v5037 = vrsqrt.pop %v4781
        %v5038 = vmul.f32 %v4781, %v5037
        %vm5039 = vcmp.eq.f32.partialorder %v4781, inf
        %v5040 = vsel %vm5039, %v4781, %v5038
        %vm5041 = vcmp.eq.f32.partialorder %v4781, 0.0
        %v5042 = vand.u32 %v4781, 2147483648
        %v5043 = vsel %vm5041, %v5042, %v5040
        %v5044 = vrsqrt.pop %v4782
        %v5045 = vmul.f32 %v4782, %v5044
        %vm5046 = vcmp.eq.f32.partialorder %v4782, inf
        %v5047 = vsel %vm5046, %v4782, %v5045
        %vm5048 = vcmp.eq.f32.partialorder %v4782, 0.0
        %v5049 = vand.u32 %v4782, 2147483648
        %v5050 = vsel %vm5048, %v5049, %v5047
        %v5051 = vrsqrt.pop %v4783
        %v5052 = vmul.f32 %v4783, %v5051
        %vm5053 = vcmp.eq.f32.partialorder %v4783, inf
        %v5054 = vsel %vm5053, %v4783, %v5052
        %vm5055 = vcmp.eq.f32.partialorder %v4783, 0.0
        %v5056 = vand.u32 %v4783, 2147483648
        %v5057 = vsel %vm5055, %v5056, %v5054
        %v5058 = vrsqrt.pop %v4784
        %v5059 = vmul.f32 %v4784, %v5058
        %vm5060 = vcmp.eq.f32.partialorder %v4784, inf
        %v5061 = vsel %vm5060, %v4784, %v5059
        %vm5062 = vcmp.eq.f32.partialorder %v4784, 0.0
        %v5063 = vand.u32 %v4784, 2147483648
        %v5064 = vsel %vm5062, %v5063, %v5061
        %v5065 = vrsqrt.pop %v4785
        %v5066 = vmul.f32 %v4785, %v5065
        %vm5067 = vcmp.eq.f32.partialorder %v4785, inf
        %v5068 = vsel %vm5067, %v4785, %v5066
        %vm5069 = vcmp.eq.f32.partialorder %v4785, 0.0
        %v5070 = vand.u32 %v4785, 2147483648
        %v5071 = vsel %vm5069, %v5070, %v5068
        %v5072 = vrsqrt.pop %v4786
        %v5073 = vmul.f32 %v4786, %v5072
        %vm5074 = vcmp.eq.f32.partialorder %v4786, inf
        %v5075 = vsel %vm5074, %v4786, %v5073
        %vm5076 = vcmp.eq.f32.partialorder %v4786, 0.0
        %v5077 = vand.u32 %v4786, 2147483648
        %v5078 = vsel %vm5076, %v5077, %v5075
        %v5079 = vrsqrt.pop %v4787
        %v5080 = vmul.f32 %v4787, %v5079
        %vm5081 = vcmp.eq.f32.partialorder %v4787, inf
        %v5082 = vsel %vm5081, %v4787, %v5080
        %vm5083 = vcmp.eq.f32.partialorder %v4787, 0.0
        %v5084 = vand.u32 %v4787, 2147483648
        %v5085 = vsel %vm5083, %v5084, %v5082
        %v5086 = vrsqrt.pop %v4788
        %v5087 = vmul.f32 %v4788, %v5086
        %vm5088 = vcmp.eq.f32.partialorder %v4788, inf
        %v5089 = vsel %vm5088, %v4788, %v5087
        %vm5090 = vcmp.eq.f32.partialorder %v4788, 0.0
        %v5091 = vand.u32 %v4788, 2147483648
        %v5092 = vsel %vm5090, %v5091, %v5089
        %v5093 = vrsqrt.pop %v4789
        %v5094 = vmul.f32 %v4789, %v5093
        %vm5095 = vcmp.eq.f32.partialorder %v4789, inf
        %v5096 = vsel %vm5095, %v4789, %v5094
        %vm5097 = vcmp.eq.f32.partialorder %v4789, 0.0
        %v5098 = vand.u32 %v4789, 2147483648
        %v5099 = vsel %vm5097, %v5098, %v5096
        %v5100 = vrsqrt.pop %v4790
        %v5101 = vmul.f32 %v4790, %v5100
        %vm5102 = vcmp.eq.f32.partialorder %v4790, inf
        %v5103 = vsel %vm5102, %v4790, %v5101
        %vm5104 = vcmp.eq.f32.partialorder %v4790, 0.0
        %v5105 = vand.u32 %v4790, 2147483648
        %v5106 = vsel %vm5104, %v5105, %v5103
        %v5107 = vrsqrt.pop %v4791
        %v5108 = vmul.f32 %v4791, %v5107
        %vm5109 = vcmp.eq.f32.partialorder %v4791, inf
        %v5110 = vsel %vm5109, %v4791, %v5108
        %vm5111 = vcmp.eq.f32.partialorder %v4791, 0.0
        %v5112 = vand.u32 %v4791, 2147483648
        %v5113 = vsel %vm5111, %v5112, %v5110
        %v5114 = vrsqrt.pop %v4792
        %v5115 = vmul.f32 %v4792, %v5114
        %vm5116 = vcmp.eq.f32.partialorder %v4792, inf
        %v5117 = vsel %vm5116, %v4792, %v5115
        %vm5118 = vcmp.eq.f32.partialorder %v4792, 0.0
        %v5119 = vand.u32 %v4792, 2147483648
        %v5120 = vsel %vm5118, %v5119, %v5117
        %v5121 = vrsqrt.pop %v4793
        %v5122 = vmul.f32 %v4793, %v5121
        %vm5123 = vcmp.eq.f32.partialorder %v4793, inf
        %v5124 = vsel %vm5123, %v4793, %v5122
        %vm5125 = vcmp.eq.f32.partialorder %v4793, 0.0
        %v5126 = vand.u32 %v4793, 2147483648
        %v5127 = vsel %vm5125, %v5126, %v5124
        %v5128 = vrsqrt.pop %v4794
        %v5129 = vmul.f32 %v4794, %v5128
        %vm5130 = vcmp.eq.f32.partialorder %v4794, inf
        %v5131 = vsel %vm5130, %v4794, %v5129
        %vm5132 = vcmp.eq.f32.partialorder %v4794, 0.0
        %v5133 = vand.u32 %v4794, 2147483648
        %v5134 = vsel %vm5132, %v5133, %v5131
        %v5135 = vrsqrt.pop %v4795
        %v5136 = vmul.f32 %v4795, %v5135
        %vm5137 = vcmp.eq.f32.partialorder %v4795, inf
        %v5138 = vsel %vm5137, %v4795, %v5136
        %vm5139 = vcmp.eq.f32.partialorder %v4795, 0.0
        %v5140 = vand.u32 %v4795, 2147483648
        %v5141 = vsel %vm5139, %v5140, %v5138
        %v5142 = vrsqrt.pop %v4796
        %v5143 = vmul.f32 %v4796, %v5142
        %vm5144 = vcmp.eq.f32.partialorder %v4796, inf
        %v5145 = vsel %vm5144, %v4796, %v5143
        %vm5146 = vcmp.eq.f32.partialorder %v4796, 0.0
        %v5147 = vand.u32 %v4796, 2147483648
        %v5148 = vsel %vm5146, %v5147, %v5145
        %v5149 = vrsqrt.pop %v4797
        %v5150 = vmul.f32 %v4797, %v5149
        %vm5151 = vcmp.eq.f32.partialorder %v4797, inf
        %v5152 = vsel %vm5151, %v4797, %v5150
        %vm5153 = vcmp.eq.f32.partialorder %v4797, 0.0
        %v5154 = vand.u32 %v4797, 2147483648
        %v5155 = vsel %vm5153, %v5154, %v5152
        %v5156 = vrsqrt.pop %v4798
        %v5157 = vmul.f32 %v4798, %v5156
        %vm5158 = vcmp.eq.f32.partialorder %v4798, inf
        %v5159 = vsel %vm5158, %v4798, %v5157
        %vm5160 = vcmp.eq.f32.partialorder %v4798, 0.0
        %v5161 = vand.u32 %v4798, 2147483648
        %v5162 = vsel %vm5160, %v5161, %v5159
        %v5163 = vrsqrt.pop %v4799
        %v5164 = vmul.f32 %v4799, %v5163
        %vm5165 = vcmp.eq.f32.partialorder %v4799, inf
        %v5166 = vsel %vm5165, %v4799, %v5164
        %vm5167 = vcmp.eq.f32.partialorder %v4799, 0.0
        %v5168 = vand.u32 %v4799, 2147483648
        %v5169 = vsel %vm5167, %v5168, %v5166
        %v5170 = vrsqrt.pop %v4800
        %v5171 = vmul.f32 %v4800, %v5170
        %vm5172 = vcmp.eq.f32.partialorder %v4800, inf
        %v5173 = vsel %vm5172, %v4800, %v5171
        %vm5174 = vcmp.eq.f32.partialorder %v4800, 0.0
        %v5175 = vand.u32 %v4800, 2147483648
        %v5176 = vsel %vm5174, %v5175, %v5173
        %v5177 = vrsqrt.pop %v4801
        %v5178 = vmul.f32 %v4801, %v5177
        %vm5179 = vcmp.eq.f32.partialorder %v4801, inf
        %v5180 = vsel %vm5179, %v4801, %v5178
        %vm5181 = vcmp.eq.f32.partialorder %v4801, 0.0
        %v5182 = vand.u32 %v4801, 2147483648
        %v5183 = vsel %vm5181, %v5182, %v5180
        %v5184 = vrsqrt.pop %v4802
        %v5185 = vmul.f32 %v4802, %v5184
        %vm5186 = vcmp.eq.f32.partialorder %v4802, inf
        %v5187 = vsel %vm5186, %v4802, %v5185
        %vm5188 = vcmp.eq.f32.partialorder %v4802, 0.0
        %v5189 = vand.u32 %v4802, 2147483648
        %v5190 = vsel %vm5188, %v5189, %v5187
        %v5191 = vrsqrt.pop %v4803
        %v5192 = vmul.f32 %v4803, %v5191
        %vm5193 = vcmp.eq.f32.partialorder %v4803, inf
        %v5194 = vsel %vm5193, %v4803, %v5192
        %vm5195 = vcmp.eq.f32.partialorder %v4803, 0.0
        %v5196 = vand.u32 %v4803, 2147483648
        %v5197 = vsel %vm5195, %v5196, %v5194
        %v5198 = vrsqrt.pop %v4804
        %v5199 = vmul.f32 %v4804, %v5198
        %vm5200 = vcmp.eq.f32.partialorder %v4804, inf
        %v5201 = vsel %vm5200, %v4804, %v5199
        %vm5202 = vcmp.eq.f32.partialorder %v4804, 0.0
        %v5203 = vand.u32 %v4804, 2147483648
        %v5204 = vsel %vm5202, %v5203, %v5201
        %v5205 = vrsqrt.pop %v4805
        %v5206 = vmul.f32 %v4805, %v5205
        %vm5207 = vcmp.eq.f32.partialorder %v4805, inf
        %v5208 = vsel %vm5207, %v4805, %v5206
        %vm5209 = vcmp.eq.f32.partialorder %v4805, 0.0
        %v5210 = vand.u32 %v4805, 2147483648
        %v5211 = vsel %vm5209, %v5210, %v5208
        %v5212 = vrsqrt.pop %v4806
        %v5213 = vmul.f32 %v4806, %v5212
        %vm5214 = vcmp.eq.f32.partialorder %v4806, inf
        %v5215 = vsel %vm5214, %v4806, %v5213
        %vm5216 = vcmp.eq.f32.partialorder %v4806, 0.0
        %v5217 = vand.u32 %v4806, 2147483648
        %v5218 = vsel %vm5216, %v5217, %v5215
        %v5219 = vrsqrt.pop %v4807
        %v5220 = vmul.f32 %v4807, %v5219
        %vm5221 = vcmp.eq.f32.partialorder %v4807, inf
        %v5222 = vsel %vm5221, %v4807, %v5220
        %vm5223 = vcmp.eq.f32.partialorder %v4807, 0.0
        %v5224 = vand.u32 %v4807, 2147483648
        %v5225 = vsel %vm5223, %v5224, %v5222
        %v5226 = vrsqrt.pop %v4808
        %v5227 = vmul.f32 %v4808, %v5226
        %vm5228 = vcmp.eq.f32.partialorder %v4808, inf
        %v5229 = vsel %vm5228, %v4808, %v5227
        %vm5230 = vcmp.eq.f32.partialorder %v4808, 0.0
        %v5231 = vand.u32 %v4808, 2147483648
        %v5232 = vsel %vm5230, %v5231, %v5229
        %v5233 = vrsqrt.pop %v4809
        %v5234 = vmul.f32 %v4809, %v5233
        %vm5235 = vcmp.eq.f32.partialorder %v4809, inf
        %v5236 = vsel %vm5235, %v4809, %v5234
        %vm5237 = vcmp.eq.f32.partialorder %v4809, 0.0
        %v5238 = vand.u32 %v4809, 2147483648
        %v5239 = vsel %vm5237, %v5238, %v5236
        %v5240 = vrsqrt.pop %v4810
        %v5241 = vmul.f32 %v4810, %v5240
        %vm5242 = vcmp.eq.f32.partialorder %v4810, inf
        %v5243 = vsel %vm5242, %v4810, %v5241
        %vm5244 = vcmp.eq.f32.partialorder %v4810, 0.0
        %v5245 = vand.u32 %v4810, 2147483648
        %v5246 = vsel %vm5244, %v5245, %v5243
        %v5247 = vrsqrt.pop %v4811
        %v5248 = vmul.f32 %v4811, %v5247
        %vm5249 = vcmp.eq.f32.partialorder %v4811, inf
        %v5250 = vsel %vm5249, %v4811, %v5248
        %vm5251 = vcmp.eq.f32.partialorder %v4811, 0.0
        %v5252 = vand.u32 %v4811, 2147483648
        %v5253 = vsel %vm5251, %v5252, %v5250
        %v5254 = vrsqrt.pop %v4812
        %v5255 = vmul.f32 %v4812, %v5254
        %vm5256 = vcmp.eq.f32.partialorder %v4812, inf
        %v5257 = vsel %vm5256, %v4812, %v5255
        %vm5258 = vcmp.eq.f32.partialorder %v4812, 0.0
        %v5259 = vand.u32 %v4812, 2147483648
        %v5260 = vsel %vm5258, %v5259, %v5257
        %5262 = vset.pattern.permute.xlu0 0
        %5263 = vperm.xlu0 %5262, %v4653
        %v5264 = vpop.permute.xlu0 %5263
        %5267 = vset.pattern.permute.xlu0 0
        %5268 = vperm.xlu0 %5267, %v4654
        %v5269 = vpop.permute.xlu0 %5268
        %5272 = vset.pattern.permute.xlu0 0
        %5273 = vperm.xlu0 %5272, %v4655
        %v5274 = vpop.permute.xlu0 %5273
        %5277 = vset.pattern.permute.xlu0 0
        %5278 = vperm.xlu0 %5277, %v4656
        %v5279 = vpop.permute.xlu0 %5278
        %5282 = vset.pattern.permute.xlu0 0
        %5283 = vperm.xlu0 %5282, %v4657
        %v5284 = vpop.permute.xlu0 %5283
        %5287 = vset.pattern.permute.xlu0 0
        %5288 = vperm.xlu0 %5287, %v4658
        %v5289 = vpop.permute.xlu0 %5288
        %5292 = vset.pattern.permute.xlu0 0
        %5293 = vperm.xlu0 %5292, %v4659
        %v5294 = vpop.permute.xlu0 %5293
        %5297 = vset.pattern.permute.xlu0 0
        %5298 = vperm.xlu0 %5297, %v4660
        %v5299 = vpop.permute.xlu0 %5298
        %5302 = vset.pattern.permute.xlu0 0
        %5303 = vperm.xlu0 %5302, %v4661
        %v5304 = vpop.permute.xlu0 %5303
        %5307 = vset.pattern.permute.xlu0 0
        %5308 = vperm.xlu0 %5307, %v4662
        %v5309 = vpop.permute.xlu0 %5308
        %5312 = vset.pattern.permute.xlu0 0
        %5313 = vperm.xlu0 %5312, %v4663
        %v5314 = vpop.permute.xlu0 %5313
        %5317 = vset.pattern.permute.xlu0 0
        %5318 = vperm.xlu0 %5317, %v4664
        %v5319 = vpop.permute.xlu0 %5318
        %5322 = vset.pattern.permute.xlu0 0
        %5323 = vperm.xlu0 %5322, %v4665
        %v5324 = vpop.permute.xlu0 %5323
        %5327 = vset.pattern.permute.xlu0 0
        %5328 = vperm.xlu0 %5327, %v4666
        %v5329 = vpop.permute.xlu0 %5328
        %5332 = vset.pattern.permute.xlu0 0
        %5333 = vperm.xlu0 %5332, %v4667
        %v5334 = vpop.permute.xlu0 %5333
        %5337 = vset.pattern.permute.xlu0 0
        %5338 = vperm.xlu0 %5337, %v4668
        %v5339 = vpop.permute.xlu0 %5338
        %v5341 = vmul.f32 %v4589, %v5264
        %v5342 = vmul.f32 %v4590, %v5264
        %v5343 = vmul.f32 %v4591, %v5264
        %v5344 = vmul.f32 %v4592, %v5264
        %v5345 = vmul.f32 %v4593, %v5269
        %v5346 = vmul.f32 %v4594, %v5269
        %v5347 = vmul.f32 %v4595, %v5269
        %v5348 = vmul.f32 %v4596, %v5269
        %v5349 = vmul.f32 %v4597, %v5274
        %v5350 = vmul.f32 %v4598, %v5274
        %v5351 = vmul.f32 %v4599, %v5274
        %v5352 = vmul.f32 %v4600, %v5274
        %v5353 = vmul.f32 %v4601, %v5279
        %v5354 = vmul.f32 %v4602, %v5279
        %v5355 = vmul.f32 %v4603, %v5279
        %v5356 = vmul.f32 %v4604, %v5279
        %v5357 = vmul.f32 %v4605, %v5284
        %v5358 = vmul.f32 %v4606, %v5284
        %v5359 = vmul.f32 %v4607, %v5284
        %v5360 = vmul.f32 %v4608, %v5284
        %v5361 = vmul.f32 %v4609, %v5289
        %v5362 = vmul.f32 %v4610, %v5289
        %v5363 = vmul.f32 %v4611, %v5289
        %v5364 = vmul.f32 %v4612, %v5289
        %v5365 = vmul.f32 %v4613, %v5294
        %v5366 = vmul.f32 %v4614, %v5294
        %v5367 = vmul.f32 %v4615, %v5294
        %v5368 = vmul.f32 %v4616, %v5294
        %v5369 = vmul.f32 %v4617, %v5299
        %v5370 = vmul.f32 %v4618, %v5299
        %v5371 = vmul.f32 %v4619, %v5299
        %v5372 = vmul.f32 %v4620, %v5299
        %v5373 = vmul.f32 %v4621, %v5304
        %v5374 = vmul.f32 %v4622, %v5304
        %v5375 = vmul.f32 %v4623, %v5304
        %v5376 = vmul.f32 %v4624, %v5304
        %v5377 = vmul.f32 %v4625, %v5309
        %v5378 = vmul.f32 %v4626, %v5309
        %v5379 = vmul.f32 %v4627, %v5309
        %v5380 = vmul.f32 %v4628, %v5309
        %v5381 = vmul.f32 %v4629, %v5314
        %v5382 = vmul.f32 %v4630, %v5314
        %v5383 = vmul.f32 %v4631, %v5314
        %v5384 = vmul.f32 %v4632, %v5314
        %v5385 = vmul.f32 %v4633, %v5319
        %v5386 = vmul.f32 %v4634, %v5319
        %v5387 = vmul.f32 %v4635, %v5319
        %v5388 = vmul.f32 %v4636, %v5319
        %v5389 = vmul.f32 %v4637, %v5324
        %v5390 = vmul.f32 %v4638, %v5324
        %v5391 = vmul.f32 %v4639, %v5324
        %v5392 = vmul.f32 %v4640, %v5324
        %v5393 = vmul.f32 %v4641, %v5329
        %v5394 = vmul.f32 %v4642, %v5329
        %v5395 = vmul.f32 %v4643, %v5329
        %v5396 = vmul.f32 %v4644, %v5329
        %v5397 = vmul.f32 %v4645, %v5334
        %v5398 = vmul.f32 %v4646, %v5334
        %v5399 = vmul.f32 %v4647, %v5334
        %v5400 = vmul.f32 %v4648, %v5334
        %v5401 = vmul.f32 %v4649, %v5339
        %v5402 = vmul.f32 %v4650, %v5339
        %v5403 = vmul.f32 %v4651, %v5339
        %v5404 = vmul.f32 %v4652, %v5339
        %5406 = vset.pattern.permute.xlu0 0
        %5407 = vperm.xlu0 %5406, %v4669
        %v5408 = vpop.permute.xlu0 %5407
        %5411 = vset.pattern.permute.xlu0 0
        %5412 = vperm.xlu0 %5411, %v4670
        %v5413 = vpop.permute.xlu0 %5412
        %5416 = vset.pattern.permute.xlu0 0
        %5417 = vperm.xlu0 %5416, %v4671
        %v5418 = vpop.permute.xlu0 %5417
        %5421 = vset.pattern.permute.xlu0 0
        %5422 = vperm.xlu0 %5421, %v4672
        %v5423 = vpop.permute.xlu0 %5422
        %5426 = vset.pattern.permute.xlu0 0
        %5427 = vperm.xlu0 %5426, %v4673
        %v5428 = vpop.permute.xlu0 %5427
        %5431 = vset.pattern.permute.xlu0 0
        %5432 = vperm.xlu0 %5431, %v4674
        %v5433 = vpop.permute.xlu0 %5432
        %5436 = vset.pattern.permute.xlu0 0
        %5437 = vperm.xlu0 %5436, %v4675
        %v5438 = vpop.permute.xlu0 %5437
        %5441 = vset.pattern.permute.xlu0 0
        %5442 = vperm.xlu0 %5441, %v4676
        %v5443 = vpop.permute.xlu0 %5442
        %5446 = vset.pattern.permute.xlu0 0
        %5447 = vperm.xlu0 %5446, %v4677
        %v5448 = vpop.permute.xlu0 %5447
        %5451 = vset.pattern.permute.xlu0 0
        %5452 = vperm.xlu0 %5451, %v4678
        %v5453 = vpop.permute.xlu0 %5452
        %5456 = vset.pattern.permute.xlu0 0
        %5457 = vperm.xlu0 %5456, %v4679
        %v5458 = vpop.permute.xlu0 %5457
        %5461 = vset.pattern.permute.xlu0 0
        %5462 = vperm.xlu0 %5461, %v4680
        %v5463 = vpop.permute.xlu0 %5462
        %5466 = vset.pattern.permute.xlu0 0
        %5467 = vperm.xlu0 %5466, %v4681
        %v5468 = vpop.permute.xlu0 %5467
        %5471 = vset.pattern.permute.xlu0 0
        %5472 = vperm.xlu0 %5471, %v4682
        %v5473 = vpop.permute.xlu0 %5472
        %5476 = vset.pattern.permute.xlu0 0
        %5477 = vperm.xlu0 %5476, %v4683
        %v5478 = vpop.permute.xlu0 %5477
        %5481 = vset.pattern.permute.xlu0 0
        %5482 = vperm.xlu0 %5481, %v4684
        %v5483 = vpop.permute.xlu0 %5482
        %v5485 = vmul.f32 %v4819, %v5408
        %v5486 = vmul.f32 %v4826, %v5408
        %v5487 = vmul.f32 %v4833, %v5408
        %v5488 = vmul.f32 %v4840, %v5408
        %v5489 = vmul.f32 %v4847, %v5413
        %v5490 = vmul.f32 %v4854, %v5413
        %v5491 = vmul.f32 %v4861, %v5413
        %v5492 = vmul.f32 %v4868, %v5413
        %v5493 = vmul.f32 %v4875, %v5418
        %v5494 = vmul.f32 %v4882, %v5418
        %v5495 = vmul.f32 %v4889, %v5418
        %v5496 = vmul.f32 %v4896, %v5418
        %v5497 = vmul.f32 %v4903, %v5423
        %v5498 = vmul.f32 %v4910, %v5423
        %v5499 = vmul.f32 %v4917, %v5423
        %v5500 = vmul.f32 %v4924, %v5423
        %v5501 = vmul.f32 %v4931, %v5428
        %v5502 = vmul.f32 %v4938, %v5428
        %v5503 = vmul.f32 %v4945, %v5428
        %v5504 = vmul.f32 %v4952, %v5428
        %v5505 = vmul.f32 %v4959, %v5433
        %v5506 = vmul.f32 %v4966, %v5433
        %v5507 = vmul.f32 %v4973, %v5433
        %v5508 = vmul.f32 %v4980, %v5433
        %v5509 = vmul.f32 %v4987, %v5438
        %v5510 = vmul.f32 %v4994, %v5438
        %v5511 = vmul.f32 %v5001, %v5438
        %v5512 = vmul.f32 %v5008, %v5438
        %v5513 = vmul.f32 %v5015, %v5443
        %v5514 = vmul.f32 %v5022, %v5443
        %v5515 = vmul.f32 %v5029, %v5443
        %v5516 = vmul.f32 %v5036, %v5443
        %v5517 = vmul.f32 %v5043, %v5448
        %v5518 = vmul.f32 %v5050, %v5448
        %v5519 = vmul.f32 %v5057, %v5448
        %v5520 = vmul.f32 %v5064, %v5448
        %v5521 = vmul.f32 %v5071, %v5453
        %v5522 = vmul.f32 %v5078, %v5453
        %v5523 = vmul.f32 %v5085, %v5453
        %v5524 = vmul.f32 %v5092, %v5453
        %v5525 = vmul.f32 %v5099, %v5458
        %v5526 = vmul.f32 %v5106, %v5458
        %v5527 = vmul.f32 %v5113, %v5458
        %v5528 = vmul.f32 %v5120, %v5458
        %v5529 = vmul.f32 %v5127, %v5463
        %v5530 = vmul.f32 %v5134, %v5463
        %v5531 = vmul.f32 %v5141, %v5463
        %v5532 = vmul.f32 %v5148, %v5463
        %v5533 = vmul.f32 %v5155, %v5468
        %v5534 = vmul.f32 %v5162, %v5468
        %v5535 = vmul.f32 %v5169, %v5468
        %v5536 = vmul.f32 %v5176, %v5468
        %v5537 = vmul.f32 %v5183, %v5473
        %v5538 = vmul.f32 %v5190, %v5473
        %v5539 = vmul.f32 %v5197, %v5473
        %v5540 = vmul.f32 %v5204, %v5473
        %v5541 = vmul.f32 %v5211, %v5478
        %v5542 = vmul.f32 %v5218, %v5478
        %v5543 = vmul.f32 %v5225, %v5478
        %v5544 = vmul.f32 %v5232, %v5478
        %v5545 = vmul.f32 %v5239, %v5483
        %v5546 = vmul.f32 %v5246, %v5483
        %v5547 = vmul.f32 %v5253, %v5483
        %v5548 = vmul.f32 %v5260, %v5483
        %v5549 = vsub.f32 %v5341, %v5485
        %v5550 = vsub.f32 %v5342, %v5486
        %v5551 = vsub.f32 %v5343, %v5487
        %v5552 = vsub.f32 %v5344, %v5488
        %v5553 = vsub.f32 %v5345, %v5489
        %v5554 = vsub.f32 %v5346, %v5490
        %v5555 = vsub.f32 %v5347, %v5491
        %v5556 = vsub.f32 %v5348, %v5492
        %v5557 = vsub.f32 %v5349, %v5493
        %v5558 = vsub.f32 %v5350, %v5494
        %v5559 = vsub.f32 %v5351, %v5495
        %v5560 = vsub.f32 %v5352, %v5496
        %v5561 = vsub.f32 %v5353, %v5497
        %v5562 = vsub.f32 %v5354, %v5498
        %v5563 = vsub.f32 %v5355, %v5499
        %v5564 = vsub.f32 %v5356, %v5500
        %v5565 = vsub.f32 %v5357, %v5501
        %v5566 = vsub.f32 %v5358, %v5502
        %v5567 = vsub.f32 %v5359, %v5503
        %v5568 = vsub.f32 %v5360, %v5504
        %v5569 = vsub.f32 %v5361, %v5505
        %v5570 = vsub.f32 %v5362, %v5506
        %v5571 = vsub.f32 %v5363, %v5507
        %v5572 = vsub.f32 %v5364, %v5508
        %v5573 = vsub.f32 %v5365, %v5509
        %v5574 = vsub.f32 %v5366, %v5510
        %v5575 = vsub.f32 %v5367, %v5511
        %v5576 = vsub.f32 %v5368, %v5512
        %v5577 = vsub.f32 %v5369, %v5513
        %v5578 = vsub.f32 %v5370, %v5514
        %v5579 = vsub.f32 %v5371, %v5515
        %v5580 = vsub.f32 %v5372, %v5516
        %v5581 = vsub.f32 %v5373, %v5517
        %v5582 = vsub.f32 %v5374, %v5518
        %v5583 = vsub.f32 %v5375, %v5519
        %v5584 = vsub.f32 %v5376, %v5520
        %v5585 = vsub.f32 %v5377, %v5521
        %v5586 = vsub.f32 %v5378, %v5522
        %v5587 = vsub.f32 %v5379, %v5523
        %v5588 = vsub.f32 %v5380, %v5524
        %v5589 = vsub.f32 %v5381, %v5525
        %v5590 = vsub.f32 %v5382, %v5526
        %v5591 = vsub.f32 %v5383, %v5527
        %v5592 = vsub.f32 %v5384, %v5528
        %v5593 = vsub.f32 %v5385, %v5529
        %v5594 = vsub.f32 %v5386, %v5530
        %v5595 = vsub.f32 %v5387, %v5531
        %v5596 = vsub.f32 %v5388, %v5532
        %v5597 = vsub.f32 %v5389, %v5533
        %v5598 = vsub.f32 %v5390, %v5534
        %v5599 = vsub.f32 %v5391, %v5535
        %v5600 = vsub.f32 %v5392, %v5536
        %v5601 = vsub.f32 %v5393, %v5537
        %v5602 = vsub.f32 %v5394, %v5538
        %v5603 = vsub.f32 %v5395, %v5539
        %v5604 = vsub.f32 %v5396, %v5540
        %v5605 = vsub.f32 %v5397, %v5541
        %v5606 = vsub.f32 %v5398, %v5542
        %v5607 = vsub.f32 %v5399, %v5543
        %v5608 = vsub.f32 %v5400, %v5544
        %v5609 = vsub.f32 %v5401, %v5545
        %v5610 = vsub.f32 %v5402, %v5546
        %v5611 = vsub.f32 %v5403, %v5547
        %v5612 = vsub.f32 %v5404, %v5548
        %v5613 = vsub.f32 0.0, %v4653
        %v5614 = vsub.f32 0.0, %v4654
        %v5615 = vsub.f32 0.0, %v4655
        %v5616 = vsub.f32 0.0, %v4656
        %v5617 = vsub.f32 0.0, %v4657
        %v5618 = vsub.f32 0.0, %v4658
        %v5619 = vsub.f32 0.0, %v4659
        %v5620 = vsub.f32 0.0, %v4660
        %v5621 = vsub.f32 0.0, %v4661
        %v5622 = vsub.f32 0.0, %v4662
        %v5623 = vsub.f32 0.0, %v4663
        %v5624 = vsub.f32 0.0, %v4664
        %v5625 = vsub.f32 0.0, %v4665
        %v5626 = vsub.f32 0.0, %v4666
        %v5627 = vsub.f32 0.0, %v4667
        %v5628 = vsub.f32 0.0, %v4668
        %5630 = vset.pattern.permute.xlu0 0
        %5631 = vperm.xlu0 %5630, %v5613
        %v5632 = vpop.permute.xlu0 %5631
        %5635 = vset.pattern.permute.xlu0 0
        %5636 = vperm.xlu0 %5635, %v5614
        %v5637 = vpop.permute.xlu0 %5636
        %5640 = vset.pattern.permute.xlu0 0
        %5641 = vperm.xlu0 %5640, %v5615
        %v5642 = vpop.permute.xlu0 %5641
        %5645 = vset.pattern.permute.xlu0 0
        %5646 = vperm.xlu0 %5645, %v5616
        %v5647 = vpop.permute.xlu0 %5646
        %5650 = vset.pattern.permute.xlu0 0
        %5651 = vperm.xlu0 %5650, %v5617
        %v5652 = vpop.permute.xlu0 %5651
        %5655 = vset.pattern.permute.xlu0 0
        %5656 = vperm.xlu0 %5655, %v5618
        %v5657 = vpop.permute.xlu0 %5656
        %5660 = vset.pattern.permute.xlu0 0
        %5661 = vperm.xlu0 %5660, %v5619
        %v5662 = vpop.permute.xlu0 %5661
        %5665 = vset.pattern.permute.xlu0 0
        %5666 = vperm.xlu0 %5665, %v5620
        %v5667 = vpop.permute.xlu0 %5666
        %5670 = vset.pattern.permute.xlu0 0
        %5671 = vperm.xlu0 %5670, %v5621
        %v5672 = vpop.permute.xlu0 %5671
        %5675 = vset.pattern.permute.xlu0 0
        %5676 = vperm.xlu0 %5675, %v5622
        %v5677 = vpop.permute.xlu0 %5676
        %5680 = vset.pattern.permute.xlu0 0
        %5681 = vperm.xlu0 %5680, %v5623
        %v5682 = vpop.permute.xlu0 %5681
        %5685 = vset.pattern.permute.xlu0 0
        %5686 = vperm.xlu0 %5685, %v5624
        %v5687 = vpop.permute.xlu0 %5686
        %5690 = vset.pattern.permute.xlu0 0
        %5691 = vperm.xlu0 %5690, %v5625
        %v5692 = vpop.permute.xlu0 %5691
        %5695 = vset.pattern.permute.xlu0 0
        %5696 = vperm.xlu0 %5695, %v5626
        %v5697 = vpop.permute.xlu0 %5696
        %5700 = vset.pattern.permute.xlu0 0
        %5701 = vperm.xlu0 %5700, %v5627
        %v5702 = vpop.permute.xlu0 %5701
        %5705 = vset.pattern.permute.xlu0 0
        %5706 = vperm.xlu0 %5705, %v5628
        %v5707 = vpop.permute.xlu0 %5706
        %vm5709 = vcmp.gt.f32.partialorder %v4589, %v5632
        %vm5710 = vcmp.gt.f32.partialorder %v4590, %v5632
        %vm5711 = vcmp.gt.f32.partialorder %v4591, %v5632
        %vm5712 = vcmp.gt.f32.partialorder %v4592, %v5632
        %vm5713 = vcmp.gt.f32.partialorder %v4593, %v5637
        %vm5714 = vcmp.gt.f32.partialorder %v4594, %v5637
        %vm5715 = vcmp.gt.f32.partialorder %v4595, %v5637
        %vm5716 = vcmp.gt.f32.partialorder %v4596, %v5637
        %vm5717 = vcmp.gt.f32.partialorder %v4597, %v5642
        %vm5718 = vcmp.gt.f32.partialorder %v4598, %v5642
        %vm5719 = vcmp.gt.f32.partialorder %v4599, %v5642
        %vm5720 = vcmp.gt.f32.partialorder %v4600, %v5642
        %vm5721 = vcmp.gt.f32.partialorder %v4601, %v5647
        %vm5722 = vcmp.gt.f32.partialorder %v4602, %v5647
        %vm5723 = vcmp.gt.f32.partialorder %v4603, %v5647
        %vm5724 = vcmp.gt.f32.partialorder %v4604, %v5647
        %vm5725 = vcmp.gt.f32.partialorder %v4605, %v5652
        %vm5726 = vcmp.gt.f32.partialorder %v4606, %v5652
        %vm5727 = vcmp.gt.f32.partialorder %v4607, %v5652
        %vm5728 = vcmp.gt.f32.partialorder %v4608, %v5652
        %vm5729 = vcmp.gt.f32.partialorder %v4609, %v5657
        %vm5730 = vcmp.gt.f32.partialorder %v4610, %v5657
        %vm5731 = vcmp.gt.f32.partialorder %v4611, %v5657
        %vm5732 = vcmp.gt.f32.partialorder %v4612, %v5657
        %vm5733 = vcmp.gt.f32.partialorder %v4613, %v5662
        %vm5734 = vcmp.gt.f32.partialorder %v4614, %v5662
        %vm5735 = vcmp.gt.f32.partialorder %v4615, %v5662
        %vm5736 = vcmp.gt.f32.partialorder %v4616, %v5662
        %vm5737 = vcmp.gt.f32.partialorder %v4617, %v5667
        %vm5738 = vcmp.gt.f32.partialorder %v4618, %v5667
        %vm5739 = vcmp.gt.f32.partialorder %v4619, %v5667
        %vm5740 = vcmp.gt.f32.partialorder %v4620, %v5667
        %vm5741 = vcmp.gt.f32.partialorder %v4621, %v5672
        %vm5742 = vcmp.gt.f32.partialorder %v4622, %v5672
        %vm5743 = vcmp.gt.f32.partialorder %v4623, %v5672
        %vm5744 = vcmp.gt.f32.partialorder %v4624, %v5672
        %vm5745 = vcmp.gt.f32.partialorder %v4625, %v5677
        %vm5746 = vcmp.gt.f32.partialorder %v4626, %v5677
        %vm5747 = vcmp.gt.f32.partialorder %v4627, %v5677
        %vm5748 = vcmp.gt.f32.partialorder %v4628, %v5677
        %vm5749 = vcmp.gt.f32.partialorder %v4629, %v5682
        %vm5750 = vcmp.gt.f32.partialorder %v4630, %v5682
        %vm5751 = vcmp.gt.f32.partialorder %v4631, %v5682
        %vm5752 = vcmp.gt.f32.partialorder %v4632, %v5682
        %vm5753 = vcmp.gt.f32.partialorder %v4633, %v5687
        %vm5754 = vcmp.gt.f32.partialorder %v4634, %v5687
        %vm5755 = vcmp.gt.f32.partialorder %v4635, %v5687
        %vm5756 = vcmp.gt.f32.partialorder %v4636, %v5687
        %vm5757 = vcmp.gt.f32.partialorder %v4637, %v5692
        %vm5758 = vcmp.gt.f32.partialorder %v4638, %v5692
        %vm5759 = vcmp.gt.f32.partialorder %v4639, %v5692
        %vm5760 = vcmp.gt.f32.partialorder %v4640, %v5692
        %vm5761 = vcmp.gt.f32.partialorder %v4641, %v5697
        %vm5762 = vcmp.gt.f32.partialorder %v4642, %v5697
        %vm5763 = vcmp.gt.f32.partialorder %v4643, %v5697
        %vm5764 = vcmp.gt.f32.partialorder %v4644, %v5697
        %vm5765 = vcmp.gt.f32.partialorder %v4645, %v5702
        %vm5766 = vcmp.gt.f32.partialorder %v4646, %v5702
        %vm5767 = vcmp.gt.f32.partialorder %v4647, %v5702
        %vm5768 = vcmp.gt.f32.partialorder %v4648, %v5702
        %vm5769 = vcmp.gt.f32.partialorder %v4649, %v5707
        %vm5770 = vcmp.gt.f32.partialorder %v4650, %v5707
        %vm5771 = vcmp.gt.f32.partialorder %v4651, %v5707
        %vm5772 = vcmp.gt.f32.partialorder %v4652, %v5707
        %v5773 = vsel %vm5709, %v5549, %v4589
        %v5774 = vsel %vm5710, %v5550, %v4590
        %v5775 = vsel %vm5711, %v5551, %v4591
        %v5776 = vsel %vm5712, %v5552, %v4592
        %v5777 = vsel %vm5713, %v5553, %v4593
        %v5778 = vsel %vm5714, %v5554, %v4594
        %v5779 = vsel %vm5715, %v5555, %v4595
        %v5780 = vsel %vm5716, %v5556, %v4596
        %v5781 = vsel %vm5717, %v5557, %v4597
        %v5782 = vsel %vm5718, %v5558, %v4598
        %v5783 = vsel %vm5719, %v5559, %v4599
        %v5784 = vsel %vm5720, %v5560, %v4600
        %v5785 = vsel %vm5721, %v5561, %v4601
        %v5786 = vsel %vm5722, %v5562, %v4602
        %v5787 = vsel %vm5723, %v5563, %v4603
        %v5788 = vsel %vm5724, %v5564, %v4604
        %v5789 = vsel %vm5725, %v5565, %v4605
        %v5790 = vsel %vm5726, %v5566, %v4606
        %v5791 = vsel %vm5727, %v5567, %v4607
        %v5792 = vsel %vm5728, %v5568, %v4608
        %v5793 = vsel %vm5729, %v5569, %v4609
        %v5794 = vsel %vm5730, %v5570, %v4610
        %v5795 = vsel %vm5731, %v5571, %v4611
        %v5796 = vsel %vm5732, %v5572, %v4612
        %v5797 = vsel %vm5733, %v5573, %v4613
        %v5798 = vsel %vm5734, %v5574, %v4614
        %v5799 = vsel %vm5735, %v5575, %v4615
        %v5800 = vsel %vm5736, %v5576, %v4616
        %v5801 = vsel %vm5737, %v5577, %v4617
        %v5802 = vsel %vm5738, %v5578, %v4618
        %v5803 = vsel %vm5739, %v5579, %v4619
        %v5804 = vsel %vm5740, %v5580, %v4620
        %v5805 = vsel %vm5741, %v5581, %v4621
        %v5806 = vsel %vm5742, %v5582, %v4622
        %v5807 = vsel %vm5743, %v5583, %v4623
        %v5808 = vsel %vm5744, %v5584, %v4624
        %v5809 = vsel %vm5745, %v5585, %v4625
        %v5810 = vsel %vm5746, %v5586, %v4626
        %v5811 = vsel %vm5747, %v5587, %v4627
        %v5812 = vsel %vm5748, %v5588, %v4628
        %v5813 = vsel %vm5749, %v5589, %v4629
        %v5814 = vsel %vm5750, %v5590, %v4630
        %v5815 = vsel %vm5751, %v5591, %v4631
        %v5816 = vsel %vm5752, %v5592, %v4632
        %v5817 = vsel %vm5753, %v5593, %v4633
        %v5818 = vsel %vm5754, %v5594, %v4634
        %v5819 = vsel %vm5755, %v5595, %v4635
        %v5820 = vsel %vm5756, %v5596, %v4636
        %v5821 = vsel %vm5757, %v5597, %v4637
        %v5822 = vsel %vm5758, %v5598, %v4638
        %v5823 = vsel %vm5759, %v5599, %v4639
        %v5824 = vsel %vm5760, %v5600, %v4640
        %v5825 = vsel %vm5761, %v5601, %v4641
        %v5826 = vsel %vm5762, %v5602, %v4642
        %v5827 = vsel %vm5763, %v5603, %v4643
        %v5828 = vsel %vm5764, %v5604, %v4644
        %v5829 = vsel %vm5765, %v5605, %v4645
        %v5830 = vsel %vm5766, %v5606, %v4646
        %v5831 = vsel %vm5767, %v5607, %v4647
        %v5832 = vsel %vm5768, %v5608, %v4648
        %v5833 = vsel %vm5769, %v5609, %v4649
        %v5834 = vsel %vm5770, %v5610, %v4650
        %v5835 = vsel %vm5771, %v5611, %v4651
        %v5836 = vsel %vm5772, %v5612, %v4652
        %v5837 = vlaneseq
        %v5838 = vand.u32 %v5837, 127
        %v5839 = vadd.s32 %v5838, 128
        %v5840 = vadd.s32 %v5838, 256
        %v5841 = vadd.s32 %v5838, 384
        %s5842 = smul.u32 %s19, 512
        %v5843 = vstv %s5842
        %v5844 = vadd.s32 %v5838, %v5843
        %v5845 = vadd.s32 %v5839, %v5843
        %v5846 = vadd.s32 %v5840, %v5843
        %v5847 = vadd.s32 %v5841, %v5843
        %v5848 = vld [vmem:[%s271] sm:$0xff]
        %v5849 = vld [vmem:[%s271 + $0x8] sm:$0xff]
        %v5850 = vld [vmem:[%s271 + $0x10] sm:$0xff]
        %v5851 = vld [vmem:[%s271 + $0x18] sm:$0xff]
        %v5852 = vld [vmem:[%s271 + $0x20] sm:$0xff]
        %v5853 = vld [vmem:[%s271 + $0x28] sm:$0xff]
        %v5854 = vld [vmem:[%s271 + $0x30] sm:$0xff]
        %v5855 = vld [vmem:[%s271 + $0x38] sm:$0xff]
        %v5856 = vld [vmem:[%s271 + $0x40] sm:$0xff]
        %v5857 = vld [vmem:[%s271 + $0x48] sm:$0xff]
        %v5858 = vld [vmem:[%s271 + $0x50] sm:$0xff]
        %v5859 = vld [vmem:[%s271 + $0x58] sm:$0xff]
        %v5860 = vld [vmem:[%s271 + $0x60] sm:$0xff]
        %v5861 = vld [vmem:[%s271 + $0x68] sm:$0xff]
        %v5862 = vld [vmem:[%s271 + $0x70] sm:$0xff]
        %v5863 = vld [vmem:[%s271 + $0x78] sm:$0xff]
        %5864 = vset.pattern.permute.xlu0 0
        %5865 = vperm.xlu0 %5864, %v5848
        %v5866 = vpop.permute.xlu0 %5865
        %5867 = vset.pattern.permute.xlu0 0
        %5868 = vperm.xlu0 %5867, %v5849
        %v5869 = vpop.permute.xlu0 %5868
        %5870 = vset.pattern.permute.xlu0 0
        %5871 = vperm.xlu0 %5870, %v5850
        %v5872 = vpop.permute.xlu0 %5871
        %5873 = vset.pattern.permute.xlu0 0
        %5874 = vperm.xlu0 %5873, %v5851
        %v5875 = vpop.permute.xlu0 %5874
        %5876 = vset.pattern.permute.xlu0 0
        %5877 = vperm.xlu0 %5876, %v5852
        %v5878 = vpop.permute.xlu0 %5877
        %5879 = vset.pattern.permute.xlu0 0
        %5880 = vperm.xlu0 %5879, %v5853
        %v5881 = vpop.permute.xlu0 %5880
        %5882 = vset.pattern.permute.xlu0 0
        %5883 = vperm.xlu0 %5882, %v5854
        %v5884 = vpop.permute.xlu0 %5883
        %5885 = vset.pattern.permute.xlu0 0
        %5886 = vperm.xlu0 %5885, %v5855
        %v5887 = vpop.permute.xlu0 %5886
        %5888 = vset.pattern.permute.xlu0 0
        %5889 = vperm.xlu0 %5888, %v5856
        %v5890 = vpop.permute.xlu0 %5889
        %5891 = vset.pattern.permute.xlu0 0
        %5892 = vperm.xlu0 %5891, %v5857
        %v5893 = vpop.permute.xlu0 %5892
        %5894 = vset.pattern.permute.xlu0 0
        %5895 = vperm.xlu0 %5894, %v5858
        %v5896 = vpop.permute.xlu0 %5895
        %5897 = vset.pattern.permute.xlu0 0
        %5898 = vperm.xlu0 %5897, %v5859
        %v5899 = vpop.permute.xlu0 %5898
        %5900 = vset.pattern.permute.xlu0 0
        %5901 = vperm.xlu0 %5900, %v5860
        %v5902 = vpop.permute.xlu0 %5901
        %5903 = vset.pattern.permute.xlu0 0
        %5904 = vperm.xlu0 %5903, %v5861
        %v5905 = vpop.permute.xlu0 %5904
        %5906 = vset.pattern.permute.xlu0 0
        %5907 = vperm.xlu0 %5906, %v5862
        %v5908 = vpop.permute.xlu0 %5907
        %5909 = vset.pattern.permute.xlu0 0
        %5910 = vperm.xlu0 %5909, %v5863
        %v5911 = vpop.permute.xlu0 %5910
        %vm5912 = vcmp.eq.s32.totalorder %v5844, %v5866
        %vm5913 = vcmp.eq.s32.totalorder %v5845, %v5866
        %vm5914 = vcmp.eq.s32.totalorder %v5846, %v5866
        %vm5915 = vcmp.eq.s32.totalorder %v5847, %v5866
        %vm5916 = vcmp.eq.s32.totalorder %v5844, %v5869
        %vm5917 = vcmp.eq.s32.totalorder %v5845, %v5869
        %vm5918 = vcmp.eq.s32.totalorder %v5846, %v5869
        %vm5919 = vcmp.eq.s32.totalorder %v5847, %v5869
        %vm5920 = vcmp.eq.s32.totalorder %v5844, %v5872
        %vm5921 = vcmp.eq.s32.totalorder %v5845, %v5872
        %vm5922 = vcmp.eq.s32.totalorder %v5846, %v5872
        %vm5923 = vcmp.eq.s32.totalorder %v5847, %v5872
        %vm5924 = vcmp.eq.s32.totalorder %v5844, %v5875
        %vm5925 = vcmp.eq.s32.totalorder %v5845, %v5875
        %vm5926 = vcmp.eq.s32.totalorder %v5846, %v5875
        %vm5927 = vcmp.eq.s32.totalorder %v5847, %v5875
        %vm5928 = vcmp.eq.s32.totalorder %v5844, %v5878
        %vm5929 = vcmp.eq.s32.totalorder %v5845, %v5878
        %vm5930 = vcmp.eq.s32.totalorder %v5846, %v5878
        %vm5931 = vcmp.eq.s32.totalorder %v5847, %v5878
        %vm5932 = vcmp.eq.s32.totalorder %v5844, %v5881
        %vm5933 = vcmp.eq.s32.totalorder %v5845, %v5881
        %vm5934 = vcmp.eq.s32.totalorder %v5846, %v5881
        %vm5935 = vcmp.eq.s32.totalorder %v5847, %v5881
        %vm5936 = vcmp.eq.s32.totalorder %v5844, %v5884
        %vm5937 = vcmp.eq.s32.totalorder %v5845, %v5884
        %vm5938 = vcmp.eq.s32.totalorder %v5846, %v5884
        %vm5939 = vcmp.eq.s32.totalorder %v5847, %v5884
        %vm5940 = vcmp.eq.s32.totalorder %v5844, %v5887
        %vm5941 = vcmp.eq.s32.totalorder %v5845, %v5887
        %vm5942 = vcmp.eq.s32.totalorder %v5846, %v5887
        %vm5943 = vcmp.eq.s32.totalorder %v5847, %v5887
        %vm5944 = vcmp.eq.s32.totalorder %v5844, %v5890
        %vm5945 = vcmp.eq.s32.totalorder %v5845, %v5890
        %vm5946 = vcmp.eq.s32.totalorder %v5846, %v5890
        %vm5947 = vcmp.eq.s32.totalorder %v5847, %v5890
        %vm5948 = vcmp.eq.s32.totalorder %v5844, %v5893
        %vm5949 = vcmp.eq.s32.totalorder %v5845, %v5893
        %vm5950 = vcmp.eq.s32.totalorder %v5846, %v5893
        %vm5951 = vcmp.eq.s32.totalorder %v5847, %v5893
        %vm5952 = vcmp.eq.s32.totalorder %v5844, %v5896
        %vm5953 = vcmp.eq.s32.totalorder %v5845, %v5896
        %vm5954 = vcmp.eq.s32.totalorder %v5846, %v5896
        %vm5955 = vcmp.eq.s32.totalorder %v5847, %v5896
        %vm5956 = vcmp.eq.s32.totalorder %v5844, %v5899
        %vm5957 = vcmp.eq.s32.totalorder %v5845, %v5899
        %vm5958 = vcmp.eq.s32.totalorder %v5846, %v5899
        %vm5959 = vcmp.eq.s32.totalorder %v5847, %v5899
        %vm5960 = vcmp.eq.s32.totalorder %v5844, %v5902
        %vm5961 = vcmp.eq.s32.totalorder %v5845, %v5902
        %vm5962 = vcmp.eq.s32.totalorder %v5846, %v5902
        %vm5963 = vcmp.eq.s32.totalorder %v5847, %v5902
        %vm5964 = vcmp.eq.s32.totalorder %v5844, %v5905
        %vm5965 = vcmp.eq.s32.totalorder %v5845, %v5905
        %vm5966 = vcmp.eq.s32.totalorder %v5846, %v5905
        %vm5967 = vcmp.eq.s32.totalorder %v5847, %v5905
        %vm5968 = vcmp.eq.s32.totalorder %v5844, %v5908
        %vm5969 = vcmp.eq.s32.totalorder %v5845, %v5908
        %vm5970 = vcmp.eq.s32.totalorder %v5846, %v5908
        %vm5971 = vcmp.eq.s32.totalorder %v5847, %v5908
        %vm5972 = vcmp.eq.s32.totalorder %v5844, %v5911
        %vm5973 = vcmp.eq.s32.totalorder %v5845, %v5911
        %vm5974 = vcmp.eq.s32.totalorder %v5846, %v5911
        %vm5975 = vcmp.eq.s32.totalorder %v5847, %v5911
        %v5976 = vsel %vm5912, %v5773, %v4589
        %v5977 = vsel %vm5913, %v5774, %v4590
        %v5978 = vsel %vm5914, %v5775, %v4591
        %v5979 = vsel %vm5915, %v5776, %v4592
        %v5980 = vsel %vm5916, %v5777, %v4593
        %v5981 = vsel %vm5917, %v5778, %v4594
        %v5982 = vsel %vm5918, %v5779, %v4595
        %v5983 = vsel %vm5919, %v5780, %v4596
        %v5984 = vsel %vm5920, %v5781, %v4597
        %v5985 = vsel %vm5921, %v5782, %v4598
        %v5986 = vsel %vm5922, %v5783, %v4599
        %v5987 = vsel %vm5923, %v5784, %v4600
        %v5988 = vsel %vm5924, %v5785, %v4601
        %v5989 = vsel %vm5925, %v5786, %v4602
        %v5990 = vsel %vm5926, %v5787, %v4603
        %v5991 = vsel %vm5927, %v5788, %v4604
        %v5992 = vsel %vm5928, %v5789, %v4605
        %v5993 = vsel %vm5929, %v5790, %v4606
        %v5994 = vsel %vm5930, %v5791, %v4607
        %v5995 = vsel %vm5931, %v5792, %v4608
        %v5996 = vsel %vm5932, %v5793, %v4609
        %v5997 = vsel %vm5933, %v5794, %v4610
        %v5998 = vsel %vm5934, %v5795, %v4611
        %v5999 = vsel %vm5935, %v5796, %v4612
        %v6000 = vsel %vm5936, %v5797, %v4613
        %v6001 = vsel %vm5937, %v5798, %v4614
        %v6002 = vsel %vm5938, %v5799, %v4615
        %v6003 = vsel %vm5939, %v5800, %v4616
        %v6004 = vsel %vm5940, %v5801, %v4617
        %v6005 = vsel %vm5941, %v5802, %v4618
        %v6006 = vsel %vm5942, %v5803, %v4619
        %v6007 = vsel %vm5943, %v5804, %v4620
        %v6008 = vsel %vm5944, %v5805, %v4621
        %v6009 = vsel %vm5945, %v5806, %v4622
        %v6010 = vsel %vm5946, %v5807, %v4623
        %v6011 = vsel %vm5947, %v5808, %v4624
        %v6012 = vsel %vm5948, %v5809, %v4625
        %v6013 = vsel %vm5949, %v5810, %v4626
        %v6014 = vsel %vm5950, %v5811, %v4627
        %v6015 = vsel %vm5951, %v5812, %v4628
        %v6016 = vsel %vm5952, %v5813, %v4629
        %v6017 = vsel %vm5953, %v5814, %v4630
        %v6018 = vsel %vm5954, %v5815, %v4631
        %v6019 = vsel %vm5955, %v5816, %v4632
        %v6020 = vsel %vm5956, %v5817, %v4633
        %v6021 = vsel %vm5957, %v5818, %v4634
        %v6022 = vsel %vm5958, %v5819, %v4635
        %v6023 = vsel %vm5959, %v5820, %v4636
        %v6024 = vsel %vm5960, %v5821, %v4637
        %v6025 = vsel %vm5961, %v5822, %v4638
        %v6026 = vsel %vm5962, %v5823, %v4639
        %v6027 = vsel %vm5963, %v5824, %v4640
        %v6028 = vsel %vm5964, %v5825, %v4641
        %v6029 = vsel %vm5965, %v5826, %v4642
        %v6030 = vsel %vm5966, %v5827, %v4643
        %v6031 = vsel %vm5967, %v5828, %v4644
        %v6032 = vsel %vm5968, %v5829, %v4645
        %v6033 = vsel %vm5969, %v5830, %v4646
        %v6034 = vsel %vm5970, %v5831, %v4647
        %v6035 = vsel %vm5971, %v5832, %v4648
        %v6036 = vsel %vm5972, %v5833, %v4649
        %v6037 = vsel %vm5973, %v5834, %v4650
        %v6038 = vsel %vm5974, %v5835, %v4651
        %v6039 = vsel %vm5975, %v5836, %v4652
        %v6040 = vmul.f32 %v5976, 32.0
        %v6041 = vmul.f32 %v5977, 32.0
        %v6042 = vmul.f32 %v5978, 32.0
        %v6043 = vmul.f32 %v5979, 32.0
        %v6044 = vmul.f32 %v5980, 32.0
        %v6045 = vmul.f32 %v5981, 32.0
        %v6046 = vmul.f32 %v5982, 32.0
        %v6047 = vmul.f32 %v5983, 32.0
        %v6048 = vmul.f32 %v5984, 32.0
        %v6049 = vmul.f32 %v5985, 32.0
        %v6050 = vmul.f32 %v5986, 32.0
        %v6051 = vmul.f32 %v5987, 32.0
        %v6052 = vmul.f32 %v5988, 32.0
        %v6053 = vmul.f32 %v5989, 32.0
        %v6054 = vmul.f32 %v5990, 32.0
        %v6055 = vmul.f32 %v5991, 32.0
        %v6056 = vmul.f32 %v5992, 32.0
        %v6057 = vmul.f32 %v5993, 32.0
        %v6058 = vmul.f32 %v5994, 32.0
        %v6059 = vmul.f32 %v5995, 32.0
        %v6060 = vmul.f32 %v5996, 32.0
        %v6061 = vmul.f32 %v5997, 32.0
        %v6062 = vmul.f32 %v5998, 32.0
        %v6063 = vmul.f32 %v5999, 32.0
        %v6064 = vmul.f32 %v6000, 32.0
        %v6065 = vmul.f32 %v6001, 32.0
        %v6066 = vmul.f32 %v6002, 32.0
        %v6067 = vmul.f32 %v6003, 32.0
        %v6068 = vmul.f32 %v6004, 32.0
        %v6069 = vmul.f32 %v6005, 32.0
        %v6070 = vmul.f32 %v6006, 32.0
        %v6071 = vmul.f32 %v6007, 32.0
        %v6072 = vmul.f32 %v6008, 32.0
        %v6073 = vmul.f32 %v6009, 32.0
        %v6074 = vmul.f32 %v6010, 32.0
        %v6075 = vmul.f32 %v6011, 32.0
        %v6076 = vmul.f32 %v6012, 32.0
        %v6077 = vmul.f32 %v6013, 32.0
        %v6078 = vmul.f32 %v6014, 32.0
        %v6079 = vmul.f32 %v6015, 32.0
        %v6080 = vmul.f32 %v6016, 32.0
        %v6081 = vmul.f32 %v6017, 32.0
        %v6082 = vmul.f32 %v6018, 32.0
        %v6083 = vmul.f32 %v6019, 32.0
        %v6084 = vmul.f32 %v6020, 32.0
        %v6085 = vmul.f32 %v6021, 32.0
        %v6086 = vmul.f32 %v6022, 32.0
        %v6087 = vmul.f32 %v6023, 32.0
        %v6088 = vmul.f32 %v6024, 32.0
        %v6089 = vmul.f32 %v6025, 32.0
        %v6090 = vmul.f32 %v6026, 32.0
        %v6091 = vmul.f32 %v6027, 32.0
        %v6092 = vmul.f32 %v6028, 32.0
        %v6093 = vmul.f32 %v6029, 32.0
        %v6094 = vmul.f32 %v6030, 32.0
        %v6095 = vmul.f32 %v6031, 32.0
        %v6096 = vmul.f32 %v6032, 32.0
        %v6097 = vmul.f32 %v6033, 32.0
        %v6098 = vmul.f32 %v6034, 32.0
        %v6099 = vmul.f32 %v6035, 32.0
        %v6100 = vmul.f32 %v6036, 32.0
        %v6101 = vmul.f32 %v6037, 32.0
        %v6102 = vmul.f32 %v6038, 32.0
        %v6103 = vmul.f32 %v6039, 32.0
        %v6104 = vld [vmem:[#allocation2] sm:$0xff]
        %v6105 = vld [vmem:[#allocation2 + $0x8] sm:$0xff]
        %v6106 = vld [vmem:[#allocation2 + $0x10] sm:$0xff]
        %v6107 = vld [vmem:[#allocation2 + $0x18] sm:$0xff]
        %v6108 = vld [vmem:[#allocation2 + $0x20] sm:$0xff]
        %v6109 = vld [vmem:[#allocation2 + $0x28] sm:$0xff]
        %v6110 = vld [vmem:[#allocation2 + $0x30] sm:$0xff]
        %v6111 = vld [vmem:[#allocation2 + $0x38] sm:$0xff]
        %v6112 = vld [vmem:[#allocation2 + $0x40] sm:$0xff]
        %v6113 = vld [vmem:[#allocation2 + $0x48] sm:$0xff]
        %v6114 = vld [vmem:[#allocation2 + $0x50] sm:$0xff]
        %v6115 = vld [vmem:[#allocation2 + $0x58] sm:$0xff]
        %v6116 = vld [vmem:[#allocation2 + $0x60] sm:$0xff]
        %v6117 = vld [vmem:[#allocation2 + $0x68] sm:$0xff]
        %v6118 = vld [vmem:[#allocation2 + $0x70] sm:$0xff]
        %v6119 = vld [vmem:[#allocation2 + $0x78] sm:$0xff]
        %v6120 = vmax.f32 %v6040, %v6041
        %v6121 = vmax.f32 %v6120, %v6042
        %v6122 = vmax.f32 %v6121, %v6043
        %6123 = vmax.xlane.f32.xlu0 %v6122
        %v6124 = vpop.xlane.xlu0 %6123
        %v6125 = vmax.f32 %v6044, %v6045
        %v6126 = vmax.f32 %v6125, %v6046
        %v6127 = vmax.f32 %v6126, %v6047
        %6128 = vmax.xlane.f32.xlu0 %v6127
        %v6129 = vpop.xlane.xlu0 %6128
        %v6130 = vmax.f32 %v6048, %v6049
        %v6131 = vmax.f32 %v6130, %v6050
        %v6132 = vmax.f32 %v6131, %v6051
        %6133 = vmax.xlane.f32.xlu0 %v6132
        %v6134 = vpop.xlane.xlu0 %6133
        %v6135 = vmax.f32 %v6052, %v6053
        %v6136 = vmax.f32 %v6135, %v6054
        %v6137 = vmax.f32 %v6136, %v6055
        %6138 = vmax.xlane.f32.xlu0 %v6137
        %v6139 = vpop.xlane.xlu0 %6138
        %v6140 = vmax.f32 %v6056, %v6057
        %v6141 = vmax.f32 %v6140, %v6058
        %v6142 = vmax.f32 %v6141, %v6059
        %6143 = vmax.xlane.f32.xlu0 %v6142
        %v6144 = vpop.xlane.xlu0 %6143
        %v6145 = vmax.f32 %v6060, %v6061
        %v6146 = vmax.f32 %v6145, %v6062
        %v6147 = vmax.f32 %v6146, %v6063
        %6148 = vmax.xlane.f32.xlu0 %v6147
        %v6149 = vpop.xlane.xlu0 %6148
        %v6150 = vmax.f32 %v6064, %v6065
        %v6151 = vmax.f32 %v6150, %v6066
        %v6152 = vmax.f32 %v6151, %v6067
        %6153 = vmax.xlane.f32.xlu0 %v6152
        %v6154 = vpop.xlane.xlu0 %6153
        %v6155 = vmax.f32 %v6068, %v6069
        %v6156 = vmax.f32 %v6155, %v6070
        %v6157 = vmax.f32 %v6156, %v6071
        %6158 = vmax.xlane.f32.xlu0 %v6157
        %v6159 = vpop.xlane.xlu0 %6158
        %v6160 = vmax.f32 %v6072, %v6073
        %v6161 = vmax.f32 %v6160, %v6074
        %v6162 = vmax.f32 %v6161, %v6075
        %6163 = vmax.xlane.f32.xlu0 %v6162
        %v6164 = vpop.xlane.xlu0 %6163
        %v6165 = vmax.f32 %v6076, %v6077
        %v6166 = vmax.f32 %v6165, %v6078
        %v6167 = vmax.f32 %v6166, %v6079
        %6168 = vmax.xlane.f32.xlu0 %v6167
        %v6169 = vpop.xlane.xlu0 %6168
        %v6170 = vmax.f32 %v6080, %v6081
        %v6171 = vmax.f32 %v6170, %v6082
        %v6172 = vmax.f32 %v6171, %v6083
        %6173 = vmax.xlane.f32.xlu0 %v6172
        %v6174 = vpop.xlane.xlu0 %6173
        %v6175 = vmax.f32 %v6084, %v6085
        %v6176 = vmax.f32 %v6175, %v6086
        %v6177 = vmax.f32 %v6176, %v6087
        %6178 = vmax.xlane.f32.xlu0 %v6177
        %v6179 = vpop.xlane.xlu0 %6178
        %v6180 = vmax.f32 %v6088, %v6089
        %v6181 = vmax.f32 %v6180, %v6090
        %v6182 = vmax.f32 %v6181, %v6091
        %6183 = vmax.xlane.f32.xlu0 %v6182
        %v6184 = vpop.xlane.xlu0 %6183
        %v6185 = vmax.f32 %v6092, %v6093
        %v6186 = vmax.f32 %v6185, %v6094
        %v6187 = vmax.f32 %v6186, %v6095
        %6188 = vmax.xlane.f32.xlu0 %v6187
        %v6189 = vpop.xlane.xlu0 %6188
        %v6190 = vmax.f32 %v6096, %v6097
        %v6191 = vmax.f32 %v6190, %v6098
        %v6192 = vmax.f32 %v6191, %v6099
        %6193 = vmax.xlane.f32.xlu0 %v6192
        %v6194 = vpop.xlane.xlu0 %6193
        %v6195 = vmax.f32 %v6100, %v6101
        %v6196 = vmax.f32 %v6195, %v6102
        %v6197 = vmax.f32 %v6196, %v6103
        %6198 = vmax.xlane.f32.xlu0 %v6197
        %v6199 = vpop.xlane.xlu0 %6198
        %v6200 = vmax.f32 %v6104, %v6124
        %v6201 = vmax.f32 %v6105, %v6129
        %v6202 = vmax.f32 %v6106, %v6134
        %v6203 = vmax.f32 %v6107, %v6139
        %v6204 = vmax.f32 %v6108, %v6144
        %v6205 = vmax.f32 %v6109, %v6149
        %v6206 = vmax.f32 %v6110, %v6154
        %v6207 = vmax.f32 %v6111, %v6159
        %v6208 = vmax.f32 %v6112, %v6164
        %v6209 = vmax.f32 %v6113, %v6169
        %v6210 = vmax.f32 %v6114, %v6174
        %v6211 = vmax.f32 %v6115, %v6179
        %v6212 = vmax.f32 %v6116, %v6184
        %v6213 = vmax.f32 %v6117, %v6189
        %v6214 = vmax.f32 %v6118, %v6194
        %v6215 = vmax.f32 %v6119, %v6199
        %v6216 = vsub.f32 %v6104, %v6200
        %v6217 = vsub.f32 %v6105, %v6201
        %v6218 = vsub.f32 %v6106, %v6202
        %v6219 = vsub.f32 %v6107, %v6203
        %v6220 = vsub.f32 %v6108, %v6204
        %v6221 = vsub.f32 %v6109, %v6205
        %v6222 = vsub.f32 %v6110, %v6206
        %v6223 = vsub.f32 %v6111, %v6207
        %v6224 = vsub.f32 %v6112, %v6208
        %v6225 = vsub.f32 %v6113, %v6209
        %v6226 = vsub.f32 %v6114, %v6210
        %v6227 = vsub.f32 %v6115, %v6211
        %v6228 = vsub.f32 %v6116, %v6212
        %v6229 = vsub.f32 %v6117, %v6213
        %v6230 = vsub.f32 %v6118, %v6214
        %v6231 = vsub.f32 %v6119, %v6215
        %v6232 = vmul.f32 %v6216, 1.442695
        %v6233 = vpow.pop %v6232
        %v6234 = vmul.f32 %v6217, 1.442695
        %v6235 = vpow.pop %v6234
        %v6236 = vmul.f32 %v6218, 1.442695
        %v6237 = vpow.pop %v6236
        %v6238 = vmul.f32 %v6219, 1.442695
        %v6239 = vpow.pop %v6238
        %v6240 = vmul.f32 %v6220, 1.442695
        %v6241 = vpow.pop %v6240
        %v6242 = vmul.f32 %v6221, 1.442695
        %v6243 = vpow.pop %v6242
        %v6244 = vmul.f32 %v6222, 1.442695
        %v6245 = vpow.pop %v6244
        %v6246 = vmul.f32 %v6223, 1.442695
        %v6247 = vpow.pop %v6246
        %v6248 = vmul.f32 %v6224, 1.442695
        %v6249 = vpow.pop %v6248
        %v6250 = vmul.f32 %v6225, 1.442695
        %v6251 = vpow.pop %v6250
        %v6252 = vmul.f32 %v6226, 1.442695
        %v6253 = vpow.pop %v6252
        %v6254 = vmul.f32 %v6227, 1.442695
        %v6255 = vpow.pop %v6254
        %v6256 = vmul.f32 %v6228, 1.442695
        %v6257 = vpow.pop %v6256
        %v6258 = vmul.f32 %v6229, 1.442695
        %v6259 = vpow.pop %v6258
        %v6260 = vmul.f32 %v6230, 1.442695
        %v6261 = vpow.pop %v6260
        %v6262 = vmul.f32 %v6231, 1.442695
        %v6263 = vpow.pop %v6262
        %6265 = vset.pattern.permute.xlu0 0
        %6266 = vperm.xlu0 %6265, %v6200
        %v6267 = vpop.permute.xlu0 %6266
        %6270 = vset.pattern.permute.xlu0 0
        %6271 = vperm.xlu0 %6270, %v6201
        %v6272 = vpop.permute.xlu0 %6271
        %6275 = vset.pattern.permute.xlu0 0
        %6276 = vperm.xlu0 %6275, %v6202
        %v6277 = vpop.permute.xlu0 %6276
        %6280 = vset.pattern.permute.xlu0 0
        %6281 = vperm.xlu0 %6280, %v6203
        %v6282 = vpop.permute.xlu0 %6281
        %6285 = vset.pattern.permute.xlu0 0
        %6286 = vperm.xlu0 %6285, %v6204
        %v6287 = vpop.permute.xlu0 %6286
        %6290 = vset.pattern.permute.xlu0 0
        %6291 = vperm.xlu0 %6290, %v6205
        %v6292 = vpop.permute.xlu0 %6291
        %6295 = vset.pattern.permute.xlu0 0
        %6296 = vperm.xlu0 %6295, %v6206
        %v6297 = vpop.permute.xlu0 %6296
        %6300 = vset.pattern.permute.xlu0 0
        %6301 = vperm.xlu0 %6300, %v6207
        %v6302 = vpop.permute.xlu0 %6301
        %6305 = vset.pattern.permute.xlu0 0
        %6306 = vperm.xlu0 %6305, %v6208
        %v6307 = vpop.permute.xlu0 %6306
        %6310 = vset.pattern.permute.xlu0 0
        %6311 = vperm.xlu0 %6310, %v6209
        %v6312 = vpop.permute.xlu0 %6311
        %6315 = vset.pattern.permute.xlu0 0
        %6316 = vperm.xlu0 %6315, %v6210
        %v6317 = vpop.permute.xlu0 %6316
        %6320 = vset.pattern.permute.xlu0 0
        %6321 = vperm.xlu0 %6320, %v6211
        %v6322 = vpop.permute.xlu0 %6321
        %6325 = vset.pattern.permute.xlu0 0
        %6326 = vperm.xlu0 %6325, %v6212
        %v6327 = vpop.permute.xlu0 %6326
        %6330 = vset.pattern.permute.xlu0 0
        %6331 = vperm.xlu0 %6330, %v6213
        %v6332 = vpop.permute.xlu0 %6331
        %6335 = vset.pattern.permute.xlu0 0
        %6336 = vperm.xlu0 %6335, %v6214
        %v6337 = vpop.permute.xlu0 %6336
        %6340 = vset.pattern.permute.xlu0 0
        %6341 = vperm.xlu0 %6340, %v6215
        %v6342 = vpop.permute.xlu0 %6341
        %v6344 = vsub.f32 %v6040, %v6267
        %v6345 = vsub.f32 %v6041, %v6267
        %v6346 = vsub.f32 %v6042, %v6267
        %v6347 = vsub.f32 %v6043, %v6267
        %v6348 = vsub.f32 %v6044, %v6272
        %v6349 = vsub.f32 %v6045, %v6272
        %v6350 = vsub.f32 %v6046, %v6272
        %v6351 = vsub.f32 %v6047, %v6272
        %v6352 = vsub.f32 %v6048, %v6277
        %v6353 = vsub.f32 %v6049, %v6277
        %v6354 = vsub.f32 %v6050, %v6277
        %v6355 = vsub.f32 %v6051, %v6277
        %v6356 = vsub.f32 %v6052, %v6282
        %v6357 = vsub.f32 %v6053, %v6282
        %v6358 = vsub.f32 %v6054, %v6282
        %v6359 = vsub.f32 %v6055, %v6282
        %v6360 = vsub.f32 %v6056, %v6287
        %v6361 = vsub.f32 %v6057, %v6287
        %v6362 = vsub.f32 %v6058, %v6287
        %v6363 = vsub.f32 %v6059, %v6287
        %v6364 = vsub.f32 %v6060, %v6292
        %v6365 = vsub.f32 %v6061, %v6292
        %v6366 = vsub.f32 %v6062, %v6292
        %v6367 = vsub.f32 %v6063, %v6292
        %v6368 = vsub.f32 %v6064, %v6297
        %v6369 = vsub.f32 %v6065, %v6297
        %v6370 = vsub.f32 %v6066, %v6297
        %v6371 = vsub.f32 %v6067, %v6297
        %v6372 = vsub.f32 %v6068, %v6302
        %v6373 = vsub.f32 %v6069, %v6302
        %v6374 = vsub.f32 %v6070, %v6302
        %v6375 = vsub.f32 %v6071, %v6302
        %v6376 = vsub.f32 %v6072, %v6307
        %v6377 = vsub.f32 %v6073, %v6307
        %v6378 = vsub.f32 %v6074, %v6307
        %v6379 = vsub.f32 %v6075, %v6307
        %v6380 = vsub.f32 %v6076, %v6312
        %v6381 = vsub.f32 %v6077, %v6312
        %v6382 = vsub.f32 %v6078, %v6312
        %v6383 = vsub.f32 %v6079, %v6312
        %v6384 = vsub.f32 %v6080, %v6317
        %v6385 = vsub.f32 %v6081, %v6317
        %v6386 = vsub.f32 %v6082, %v6317
        %v6387 = vsub.f32 %v6083, %v6317
        %v6388 = vsub.f32 %v6084, %v6322
        %v6389 = vsub.f32 %v6085, %v6322
        %v6390 = vsub.f32 %v6086, %v6322
        %v6391 = vsub.f32 %v6087, %v6322
        %v6392 = vsub.f32 %v6088, %v6327
        %v6393 = vsub.f32 %v6089, %v6327
        %v6394 = vsub.f32 %v6090, %v6327
        %v6395 = vsub.f32 %v6091, %v6327
        %v6396 = vsub.f32 %v6092, %v6332
        %v6397 = vsub.f32 %v6093, %v6332
        %v6398 = vsub.f32 %v6094, %v6332
        %v6399 = vsub.f32 %v6095, %v6332
        %v6400 = vsub.f32 %v6096, %v6337
        %v6401 = vsub.f32 %v6097, %v6337
        %v6402 = vsub.f32 %v6098, %v6337
        %v6403 = vsub.f32 %v6099, %v6337
        %v6404 = vsub.f32 %v6100, %v6342
        %v6405 = vsub.f32 %v6101, %v6342
        %v6406 = vsub.f32 %v6102, %v6342
        %v6407 = vsub.f32 %v6103, %v6342
        %v6408 = vmul.f32 %v6344, 1.442695
        %v6409 = vpow.pop %v6408
        %v6410 = vmul.f32 %v6345, 1.442695
        %v6411 = vpow.pop %v6410
        %v6412 = vmul.f32 %v6346, 1.442695
        %v6413 = vpow.pop %v6412
        %v6414 = vmul.f32 %v6347, 1.442695
        %v6415 = vpow.pop %v6414
        %v6416 = vmul.f32 %v6348, 1.442695
        %v6417 = vpow.pop %v6416
        %v6418 = vmul.f32 %v6349, 1.442695
        %v6419 = vpow.pop %v6418
        %v6420 = vmul.f32 %v6350, 1.442695
        %v6421 = vpow.pop %v6420
        %v6422 = vmul.f32 %v6351, 1.442695
        %v6423 = vpow.pop %v6422
        %v6424 = vmul.f32 %v6352, 1.442695
        %v6425 = vpow.pop %v6424
        %v6426 = vmul.f32 %v6353, 1.442695
        %v6427 = vpow.pop %v6426
        %v6428 = vmul.f32 %v6354, 1.442695
        %v6429 = vpow.pop %v6428
        %v6430 = vmul.f32 %v6355, 1.442695
        %v6431 = vpow.pop %v6430
        %v6432 = vmul.f32 %v6356, 1.442695
        %v6433 = vpow.pop %v6432
        %v6434 = vmul.f32 %v6357, 1.442695
        %v6435 = vpow.pop %v6434
        %v6436 = vmul.f32 %v6358, 1.442695
        %v6437 = vpow.pop %v6436
        %v6438 = vmul.f32 %v6359, 1.442695
        %v6439 = vpow.pop %v6438
        %v6440 = vmul.f32 %v6360, 1.442695
        %v6441 = vpow.pop %v6440
        %v6442 = vmul.f32 %v6361, 1.442695
        %v6443 = vpow.pop %v6442
        %v6444 = vmul.f32 %v6362, 1.442695
        %v6445 = vpow.pop %v6444
        %v6446 = vmul.f32 %v6363, 1.442695
        %v6447 = vpow.pop %v6446
        %v6448 = vmul.f32 %v6364, 1.442695
        %v6449 = vpow.pop %v6448
        %v6450 = vmul.f32 %v6365, 1.442695
        %v6451 = vpow.pop %v6450
        %v6452 = vmul.f32 %v6366, 1.442695
        %v6453 = vpow.pop %v6452
        %v6454 = vmul.f32 %v6367, 1.442695
        %v6455 = vpow.pop %v6454
        %v6456 = vmul.f32 %v6368, 1.442695
        %v6457 = vpow.pop %v6456
        %v6458 = vmul.f32 %v6369, 1.442695
        %v6459 = vpow.pop %v6458
        %v6460 = vmul.f32 %v6370, 1.442695
        %v6461 = vpow.pop %v6460
        %v6462 = vmul.f32 %v6371, 1.442695
        %v6463 = vpow.pop %v6462
        %v6464 = vmul.f32 %v6372, 1.442695
        %v6465 = vpow.pop %v6464
        %v6466 = vmul.f32 %v6373, 1.442695
        %v6467 = vpow.pop %v6466
        %v6468 = vmul.f32 %v6374, 1.442695
        %v6469 = vpow.pop %v6468
        %v6470 = vmul.f32 %v6375, 1.442695
        %v6471 = vpow.pop %v6470
        %v6472 = vmul.f32 %v6376, 1.442695
        %v6473 = vpow.pop %v6472
        %v6474 = vmul.f32 %v6377, 1.442695
        %v6475 = vpow.pop %v6474
        %v6476 = vmul.f32 %v6378, 1.442695
        %v6477 = vpow.pop %v6476
        %v6478 = vmul.f32 %v6379, 1.442695
        %v6479 = vpow.pop %v6478
        %v6480 = vmul.f32 %v6380, 1.442695
        %v6481 = vpow.pop %v6480
        %v6482 = vmul.f32 %v6381, 1.442695
        %v6483 = vpow.pop %v6482
        %v6484 = vmul.f32 %v6382, 1.442695
        %v6485 = vpow.pop %v6484
        %v6486 = vmul.f32 %v6383, 1.442695
        %v6487 = vpow.pop %v6486
        %v6488 = vmul.f32 %v6384, 1.442695
        %v6489 = vpow.pop %v6488
        %v6490 = vmul.f32 %v6385, 1.442695
        %v6491 = vpow.pop %v6490
        %v6492 = vmul.f32 %v6386, 1.442695
        %v6493 = vpow.pop %v6492
        %v6494 = vmul.f32 %v6387, 1.442695
        %v6495 = vpow.pop %v6494
        %v6496 = vmul.f32 %v6388, 1.442695
        %v6497 = vpow.pop %v6496
        %v6498 = vmul.f32 %v6389, 1.442695
        %v6499 = vpow.pop %v6498
        %v6500 = vmul.f32 %v6390, 1.442695
        %v6501 = vpow.pop %v6500
        %v6502 = vmul.f32 %v6391, 1.442695
        %v6503 = vpow.pop %v6502
        %v6504 = vmul.f32 %v6392, 1.442695
        %v6505 = vpow.pop %v6504
        %v6506 = vmul.f32 %v6393, 1.442695
        %v6507 = vpow.pop %v6506
        %v6508 = vmul.f32 %v6394, 1.442695
        %v6509 = vpow.pop %v6508
        %v6510 = vmul.f32 %v6395, 1.442695
        %v6511 = vpow.pop %v6510
        %v6512 = vmul.f32 %v6396, 1.442695
        %v6513 = vpow.pop %v6512
        %v6514 = vmul.f32 %v6397, 1.442695
        %v6515 = vpow.pop %v6514
        %v6516 = vmul.f32 %v6398, 1.442695
        %v6517 = vpow.pop %v6516
        %v6518 = vmul.f32 %v6399, 1.442695
        %v6519 = vpow.pop %v6518
        %v6520 = vmul.f32 %v6400, 1.442695
        %v6521 = vpow.pop %v6520
        %v6522 = vmul.f32 %v6401, 1.442695
        %v6523 = vpow.pop %v6522
        %v6524 = vmul.f32 %v6402, 1.442695
        %v6525 = vpow.pop %v6524
        %v6526 = vmul.f32 %v6403, 1.442695
        %v6527 = vpow.pop %v6526
        %v6528 = vmul.f32 %v6404, 1.442695
        %v6529 = vpow.pop %v6528
        %v6530 = vmul.f32 %v6405, 1.442695
        %v6531 = vpow.pop %v6530
        %v6532 = vmul.f32 %v6406, 1.442695
        %v6533 = vpow.pop %v6532
        %v6534 = vmul.f32 %v6407, 1.442695
        %v6535 = vpow.pop %v6534
        %v6536 = vld [vmem:[#allocation3] sm:$0xff]
        %v6537 = vld [vmem:[#allocation3 + $0x8] sm:$0xff]
        %v6538 = vld [vmem:[#allocation3 + $0x10] sm:$0xff]
        %v6539 = vld [vmem:[#allocation3 + $0x18] sm:$0xff]
        %v6540 = vld [vmem:[#allocation3 + $0x20] sm:$0xff]
        %v6541 = vld [vmem:[#allocation3 + $0x28] sm:$0xff]
        %v6542 = vld [vmem:[#allocation3 + $0x30] sm:$0xff]
        %v6543 = vld [vmem:[#allocation3 + $0x38] sm:$0xff]
        %v6544 = vld [vmem:[#allocation3 + $0x40] sm:$0xff]
        %v6545 = vld [vmem:[#allocation3 + $0x48] sm:$0xff]
        %v6546 = vld [vmem:[#allocation3 + $0x50] sm:$0xff]
        %v6547 = vld [vmem:[#allocation3 + $0x58] sm:$0xff]
        %v6548 = vld [vmem:[#allocation3 + $0x60] sm:$0xff]
        %v6549 = vld [vmem:[#allocation3 + $0x68] sm:$0xff]
        %v6550 = vld [vmem:[#allocation3 + $0x70] sm:$0xff]
        %v6551 = vld [vmem:[#allocation3 + $0x78] sm:$0xff]
        %v6552 = vmul.f32 %v6536, %v6233
        %v6553 = vmul.f32 %v6537, %v6235
        %v6554 = vmul.f32 %v6538, %v6237
        %v6555 = vmul.f32 %v6539, %v6239
        %v6556 = vmul.f32 %v6540, %v6241
        %v6557 = vmul.f32 %v6541, %v6243
        %v6558 = vmul.f32 %v6542, %v6245
        %v6559 = vmul.f32 %v6543, %v6247
        %v6560 = vmul.f32 %v6544, %v6249
        %v6561 = vmul.f32 %v6545, %v6251
        %v6562 = vmul.f32 %v6546, %v6253
        %v6563 = vmul.f32 %v6547, %v6255
        %v6564 = vmul.f32 %v6548, %v6257
        %v6565 = vmul.f32 %v6549, %v6259
        %v6566 = vmul.f32 %v6550, %v6261
        %v6567 = vmul.f32 %v6551, %v6263
        %v6568 = vadd.f32 %v6409, %v6411
        %v6569 = vadd.f32 %v6568, %v6413
        %v6570 = vadd.f32 %v6569, %v6415
        %6571 = vadd.xlane.f32.xlu0 %v6570
        %v6572 = vpop.xlane.xlu0 %6571
        %v6573 = vadd.f32 %v6417, %v6419
        %v6574 = vadd.f32 %v6573, %v6421
        %v6575 = vadd.f32 %v6574, %v6423
        %6576 = vadd.xlane.f32.xlu0 %v6575
        %v6577 = vpop.xlane.xlu0 %6576
        %v6578 = vadd.f32 %v6425, %v6427
        %v6579 = vadd.f32 %v6578, %v6429
        %v6580 = vadd.f32 %v6579, %v6431
        %6581 = vadd.xlane.f32.xlu0 %v6580
        %v6582 = vpop.xlane.xlu0 %6581
        %v6583 = vadd.f32 %v6433, %v6435
        %v6584 = vadd.f32 %v6583, %v6437
        %v6585 = vadd.f32 %v6584, %v6439
        %6586 = vadd.xlane.f32.xlu0 %v6585
        %v6587 = vpop.xlane.xlu0 %6586
        %v6588 = vadd.f32 %v6441, %v6443
        %v6589 = vadd.f32 %v6588, %v6445
        %v6590 = vadd.f32 %v6589, %v6447
        %6591 = vadd.xlane.f32.xlu0 %v6590
        %v6592 = vpop.xlane.xlu0 %6591
        %v6593 = vadd.f32 %v6449, %v6451
        %v6594 = vadd.f32 %v6593, %v6453
        %v6595 = vadd.f32 %v6594, %v6455
        %6596 = vadd.xlane.f32.xlu0 %v6595
        %v6597 = vpop.xlane.xlu0 %6596
        %v6598 = vadd.f32 %v6457, %v6459
        %v6599 = vadd.f32 %v6598, %v6461
        %v6600 = vadd.f32 %v6599, %v6463
        %6601 = vadd.xlane.f32.xlu0 %v6600
        %v6602 = vpop.xlane.xlu0 %6601
        %v6603 = vadd.f32 %v6465, %v6467
        %v6604 = vadd.f32 %v6603, %v6469
        %v6605 = vadd.f32 %v6604, %v6471
        %6606 = vadd.xlane.f32.xlu0 %v6605
        %v6607 = vpop.xlane.xlu0 %6606
        %v6608 = vadd.f32 %v6473, %v6475
        %v6609 = vadd.f32 %v6608, %v6477
        %v6610 = vadd.f32 %v6609, %v6479
        %6611 = vadd.xlane.f32.xlu0 %v6610
        %v6612 = vpop.xlane.xlu0 %6611
        %v6613 = vadd.f32 %v6481, %v6483
        %v6614 = vadd.f32 %v6613, %v6485
        %v6615 = vadd.f32 %v6614, %v6487
        %6616 = vadd.xlane.f32.xlu0 %v6615
        %v6617 = vpop.xlane.xlu0 %6616
        %v6618 = vadd.f32 %v6489, %v6491
        %v6619 = vadd.f32 %v6618, %v6493
        %v6620 = vadd.f32 %v6619, %v6495
        %6621 = vadd.xlane.f32.xlu0 %v6620
        %v6622 = vpop.xlane.xlu0 %6621
        %v6623 = vadd.f32 %v6497, %v6499
        %v6624 = vadd.f32 %v6623, %v6501
        %v6625 = vadd.f32 %v6624, %v6503
        %6626 = vadd.xlane.f32.xlu0 %v6625
        %v6627 = vpop.xlane.xlu0 %6626
        %v6628 = vadd.f32 %v6505, %v6507
        %v6629 = vadd.f32 %v6628, %v6509
        %v6630 = vadd.f32 %v6629, %v6511
        %6631 = vadd.xlane.f32.xlu0 %v6630
        %v6632 = vpop.xlane.xlu0 %6631
        %v6633 = vadd.f32 %v6513, %v6515
        %v6634 = vadd.f32 %v6633, %v6517
        %v6635 = vadd.f32 %v6634, %v6519
        %6636 = vadd.xlane.f32.xlu0 %v6635
        %v6637 = vpop.xlane.xlu0 %6636
        %v6638 = vadd.f32 %v6521, %v6523
        %v6639 = vadd.f32 %v6638, %v6525
        %v6640 = vadd.f32 %v6639, %v6527
        %6641 = vadd.xlane.f32.xlu0 %v6640
        %v6642 = vpop.xlane.xlu0 %6641
        %v6643 = vadd.f32 %v6529, %v6531
        %v6644 = vadd.f32 %v6643, %v6533
        %v6645 = vadd.f32 %v6644, %v6535
        %6646 = vadd.xlane.f32.xlu0 %v6645
        %v6647 = vpop.xlane.xlu0 %6646
        %v6648 = vadd.f32 %v6552, %v6572
        %v6649 = vadd.f32 %v6553, %v6577
        %v6650 = vadd.f32 %v6554, %v6582
        %v6651 = vadd.f32 %v6555, %v6587
        %v6652 = vadd.f32 %v6556, %v6592
        %v6653 = vadd.f32 %v6557, %v6597
        %v6654 = vadd.f32 %v6558, %v6602
        %v6655 = vadd.f32 %v6559, %v6607
        %v6656 = vadd.f32 %v6560, %v6612
        %v6657 = vadd.f32 %v6561, %v6617
        %v6658 = vadd.f32 %v6562, %v6622
        %v6659 = vadd.f32 %v6563, %v6627
        %v6660 = vadd.f32 %v6564, %v6632
        %v6661 = vadd.f32 %v6565, %v6637
        %v6662 = vadd.f32 %v6566, %v6642
        %v6663 = vadd.f32 %v6567, %v6647
        %vm6664 = vcmask 7168
        %6665 = vst.msk [vmem:[#allocation3] sm:$0xff] %vm6664, %v6648
        %6666 = vst.msk [vmem:[#allocation3 + $0x8] sm:$0xff] %vm6664, %v6649
        %6667 = vst.msk [vmem:[#allocation3 + $0x10] sm:$0xff] %vm6664, %v6650
        %6668 = vst.msk [vmem:[#allocation3 + $0x18] sm:$0xff] %vm6664, %v6651
        %6669 = vst.msk [vmem:[#allocation3 + $0x20] sm:$0xff] %vm6664, %v6652
        %6670 = vst.msk [vmem:[#allocation3 + $0x28] sm:$0xff] %vm6664, %v6653
        %6671 = vst.msk [vmem:[#allocation3 + $0x30] sm:$0xff] %vm6664, %v6654
        %6672 = vst.msk [vmem:[#allocation3 + $0x38] sm:$0xff] %vm6664, %v6655
        %6673 = vst.msk [vmem:[#allocation3 + $0x40] sm:$0xff] %vm6664, %v6656
        %6674 = vst.msk [vmem:[#allocation3 + $0x48] sm:$0xff] %vm6664, %v6657
        %6675 = vst.msk [vmem:[#allocation3 + $0x50] sm:$0xff] %vm6664, %v6658
        %6676 = vst.msk [vmem:[#allocation3 + $0x58] sm:$0xff] %vm6664, %v6659
        %6677 = vst.msk [vmem:[#allocation3 + $0x60] sm:$0xff] %vm6664, %v6660
        %6678 = vst.msk [vmem:[#allocation3 + $0x68] sm:$0xff] %vm6664, %v6661
        %6679 = vst.msk [vmem:[#allocation3 + $0x70] sm:$0xff] %vm6664, %v6662
        %6680 = vst.msk [vmem:[#allocation3 + $0x78] sm:$0xff] %vm6664, %v6663
        %v6681 = vld [vmem:[#allocation4] sm:$0xff]
        %v6682 = vld [vmem:[#allocation4 + $0x8] sm:$0xff]
        %v6683 = vld [vmem:[#allocation4 + $0x10] sm:$0xff]
        %v6684 = vld [vmem:[#allocation4 + $0x18] sm:$0xff]
        %v6685 = vld [vmem:[#allocation4 + $0x20] sm:$0xff]
        %v6686 = vld [vmem:[#allocation4 + $0x28] sm:$0xff]
        %v6687 = vld [vmem:[#allocation4 + $0x30] sm:$0xff]
        %v6688 = vld [vmem:[#allocation4 + $0x38] sm:$0xff]
        %v6689 = vld [vmem:[#allocation4 + $0x40] sm:$0xff]
        %v6690 = vld [vmem:[#allocation4 + $0x48] sm:$0xff]
        %v6691 = vld [vmem:[#allocation4 + $0x50] sm:$0xff]
        %v6692 = vld [vmem:[#allocation4 + $0x58] sm:$0xff]
        %v6693 = vld [vmem:[#allocation4 + $0x60] sm:$0xff]
        %v6694 = vld [vmem:[#allocation4 + $0x68] sm:$0xff]
        %v6695 = vld [vmem:[#allocation4 + $0x70] sm:$0xff]
        %v6696 = vld [vmem:[#allocation4 + $0x78] sm:$0xff]
        %v6697 = vsel %vm5912, %v6040, 0.0
        %v6698 = vsel %vm5913, %v6041, 0.0
        %v6699 = vsel %vm5914, %v6042, 0.0
        %v6700 = vsel %vm5915, %v6043, 0.0
        %v6701 = vsel %vm5916, %v6044, 0.0
        %v6702 = vsel %vm5917, %v6045, 0.0
        %v6703 = vsel %vm5918, %v6046, 0.0
        %v6704 = vsel %vm5919, %v6047, 0.0
        %v6705 = vsel %vm5920, %v6048, 0.0
        %v6706 = vsel %vm5921, %v6049, 0.0
        %v6707 = vsel %vm5922, %v6050, 0.0
        %v6708 = vsel %vm5923, %v6051, 0.0
        %v6709 = vsel %vm5924, %v6052, 0.0
        %v6710 = vsel %vm5925, %v6053, 0.0
        %v6711 = vsel %vm5926, %v6054, 0.0
        %v6712 = vsel %vm5927, %v6055, 0.0
        %v6713 = vsel %vm5928, %v6056, 0.0
        %v6714 = vsel %vm5929, %v6057, 0.0
        %v6715 = vsel %vm5930, %v6058, 0.0
        %v6716 = vsel %vm5931, %v6059, 0.0
        %v6717 = vsel %vm5932, %v6060, 0.0
        %v6718 = vsel %vm5933, %v6061, 0.0
        %v6719 = vsel %vm5934, %v6062, 0.0
        %v6720 = vsel %vm5935, %v6063, 0.0
        %v6721 = vsel %vm5936, %v6064, 0.0
        %v6722 = vsel %vm5937, %v6065, 0.0
        %v6723 = vsel %vm5938, %v6066, 0.0
        %v6724 = vsel %vm5939, %v6067, 0.0
        %v6725 = vsel %vm5940, %v6068, 0.0
        %v6726 = vsel %vm5941, %v6069, 0.0
        %v6727 = vsel %vm5942, %v6070, 0.0
        %v6728 = vsel %vm5943, %v6071, 0.0
        %v6729 = vsel %vm5944, %v6072, 0.0
        %v6730 = vsel %vm5945, %v6073, 0.0
        %v6731 = vsel %vm5946, %v6074, 0.0
        %v6732 = vsel %vm5947, %v6075, 0.0
        %v6733 = vsel %vm5948, %v6076, 0.0
        %v6734 = vsel %vm5949, %v6077, 0.0
        %v6735 = vsel %vm5950, %v6078, 0.0
        %v6736 = vsel %vm5951, %v6079, 0.0
        %v6737 = vsel %vm5952, %v6080, 0.0
        %v6738 = vsel %vm5953, %v6081, 0.0
        %v6739 = vsel %vm5954, %v6082, 0.0
        %v6740 = vsel %vm5955, %v6083, 0.0
        %v6741 = vsel %vm5956, %v6084, 0.0
        %v6742 = vsel %vm5957, %v6085, 0.0
        %v6743 = vsel %vm5958, %v6086, 0.0
        %v6744 = vsel %vm5959, %v6087, 0.0
        %v6745 = vsel %vm5960, %v6088, 0.0
        %v6746 = vsel %vm5961, %v6089, 0.0
        %v6747 = vsel %vm5962, %v6090, 0.0
        %v6748 = vsel %vm5963, %v6091, 0.0
        %v6749 = vsel %vm5964, %v6092, 0.0
        %v6750 = vsel %vm5965, %v6093, 0.0
        %v6751 = vsel %vm5966, %v6094, 0.0
        %v6752 = vsel %vm5967, %v6095, 0.0
        %v6753 = vsel %vm5968, %v6096, 0.0
        %v6754 = vsel %vm5969, %v6097, 0.0
        %v6755 = vsel %vm5970, %v6098, 0.0
        %v6756 = vsel %vm5971, %v6099, 0.0
        %v6757 = vsel %vm5972, %v6100, 0.0
        %v6758 = vsel %vm5973, %v6101, 0.0
        %v6759 = vsel %vm5974, %v6102, 0.0
        %v6760 = vsel %vm5975, %v6103, 0.0
        %v6761 = vadd.f32 %v6697, %v6698
        %v6762 = vadd.f32 %v6761, %v6699
        %v6763 = vadd.f32 %v6762, %v6700
        %6764 = vadd.xlane.f32.xlu0 %v6763
        %v6765 = vpop.xlane.xlu0 %6764
        %v6766 = vadd.f32 %v6701, %v6702
        %v6767 = vadd.f32 %v6766, %v6703
        %v6768 = vadd.f32 %v6767, %v6704
        %6769 = vadd.xlane.f32.xlu0 %v6768
        %v6770 = vpop.xlane.xlu0 %6769
        %v6771 = vadd.f32 %v6705, %v6706
        %v6772 = vadd.f32 %v6771, %v6707
        %v6773 = vadd.f32 %v6772, %v6708
        %6774 = vadd.xlane.f32.xlu0 %v6773
        %v6775 = vpop.xlane.xlu0 %6774
        %v6776 = vadd.f32 %v6709, %v6710
        %v6777 = vadd.f32 %v6776, %v6711
        %v6778 = vadd.f32 %v6777, %v6712
        %6779 = vadd.xlane.f32.xlu0 %v6778
        %v6780 = vpop.xlane.xlu0 %6779
        %v6781 = vadd.f32 %v6713, %v6714
        %v6782 = vadd.f32 %v6781, %v6715
        %v6783 = vadd.f32 %v6782, %v6716
        %6784 = vadd.xlane.f32.xlu0 %v6783
        %v6785 = vpop.xlane.xlu0 %6784
        %v6786 = vadd.f32 %v6717, %v6718
        %v6787 = vadd.f32 %v6786, %v6719
        %v6788 = vadd.f32 %v6787, %v6720
        %6789 = vadd.xlane.f32.xlu0 %v6788
        %v6790 = vpop.xlane.xlu0 %6789
        %v6791 = vadd.f32 %v6721, %v6722
        %v6792 = vadd.f32 %v6791, %v6723
        %v6793 = vadd.f32 %v6792, %v6724
        %6794 = vadd.xlane.f32.xlu0 %v6793
        %v6795 = vpop.xlane.xlu0 %6794
        %v6796 = vadd.f32 %v6725, %v6726
        %v6797 = vadd.f32 %v6796, %v6727
        %v6798 = vadd.f32 %v6797, %v6728
        %6799 = vadd.xlane.f32.xlu0 %v6798
        %v6800 = vpop.xlane.xlu0 %6799
        %v6801 = vadd.f32 %v6729, %v6730
        %v6802 = vadd.f32 %v6801, %v6731
        %v6803 = vadd.f32 %v6802, %v6732
        %6804 = vadd.xlane.f32.xlu0 %v6803
        %v6805 = vpop.xlane.xlu0 %6804
        %v6806 = vadd.f32 %v6733, %v6734
        %v6807 = vadd.f32 %v6806, %v6735
        %v6808 = vadd.f32 %v6807, %v6736
        %6809 = vadd.xlane.f32.xlu0 %v6808
        %v6810 = vpop.xlane.xlu0 %6809
        %v6811 = vadd.f32 %v6737, %v6738
        %v6812 = vadd.f32 %v6811, %v6739
        %v6813 = vadd.f32 %v6812, %v6740
        %6814 = vadd.xlane.f32.xlu0 %v6813
        %v6815 = vpop.xlane.xlu0 %6814
        %v6816 = vadd.f32 %v6741, %v6742
        %v6817 = vadd.f32 %v6816, %v6743
        %v6818 = vadd.f32 %v6817, %v6744
        %6819 = vadd.xlane.f32.xlu0 %v6818
        %v6820 = vpop.xlane.xlu0 %6819
        %v6821 = vadd.f32 %v6745, %v6746
        %v6822 = vadd.f32 %v6821, %v6747
        %v6823 = vadd.f32 %v6822, %v6748
        %6824 = vadd.xlane.f32.xlu0 %v6823
        %v6825 = vpop.xlane.xlu0 %6824
        %v6826 = vadd.f32 %v6749, %v6750
        %v6827 = vadd.f32 %v6826, %v6751
        %v6828 = vadd.f32 %v6827, %v6752
        %6829 = vadd.xlane.f32.xlu0 %v6828
        %v6830 = vpop.xlane.xlu0 %6829
        %v6831 = vadd.f32 %v6753, %v6754
        %v6832 = vadd.f32 %v6831, %v6755
        %v6833 = vadd.f32 %v6832, %v6756
        %6834 = vadd.xlane.f32.xlu0 %v6833
        %v6835 = vpop.xlane.xlu0 %6834
        %v6836 = vadd.f32 %v6757, %v6758
        %v6837 = vadd.f32 %v6836, %v6759
        %v6838 = vadd.f32 %v6837, %v6760
        %6839 = vadd.xlane.f32.xlu0 %v6838
        %v6840 = vpop.xlane.xlu0 %6839
        %v6841 = vadd.f32 %v6681, %v6765
        %v6842 = vadd.f32 %v6682, %v6770
        %v6843 = vadd.f32 %v6683, %v6775
        %v6844 = vadd.f32 %v6684, %v6780
        %v6845 = vadd.f32 %v6685, %v6785
        %v6846 = vadd.f32 %v6686, %v6790
        %v6847 = vadd.f32 %v6687, %v6795
        %v6848 = vadd.f32 %v6688, %v6800
        %v6849 = vadd.f32 %v6689, %v6805
        %v6850 = vadd.f32 %v6690, %v6810
        %v6851 = vadd.f32 %v6691, %v6815
        %v6852 = vadd.f32 %v6692, %v6820
        %v6853 = vadd.f32 %v6693, %v6825
        %v6854 = vadd.f32 %v6694, %v6830
        %v6855 = vadd.f32 %v6695, %v6835
        %v6856 = vadd.f32 %v6696, %v6840
        %6857 = vst.msk [vmem:[#allocation4] sm:$0xff] %vm6664, %v6841
        %6858 = vst.msk [vmem:[#allocation4 + $0x8] sm:$0xff] %vm6664, %v6842
        %6859 = vst.msk [vmem:[#allocation4 + $0x10] sm:$0xff] %vm6664, %v6843
        %6860 = vst.msk [vmem:[#allocation4 + $0x18] sm:$0xff] %vm6664, %v6844
        %6861 = vst.msk [vmem:[#allocation4 + $0x20] sm:$0xff] %vm6664, %v6845
        %6862 = vst.msk [vmem:[#allocation4 + $0x28] sm:$0xff] %vm6664, %v6846
        %6863 = vst.msk [vmem:[#allocation4 + $0x30] sm:$0xff] %vm6664, %v6847
        %6864 = vst.msk [vmem:[#allocation4 + $0x38] sm:$0xff] %vm6664, %v6848
        %6865 = vst.msk [vmem:[#allocation4 + $0x40] sm:$0xff] %vm6664, %v6849
        %6866 = vst.msk [vmem:[#allocation4 + $0x48] sm:$0xff] %vm6664, %v6850
        %6867 = vst.msk [vmem:[#allocation4 + $0x50] sm:$0xff] %vm6664, %v6851
        %6868 = vst.msk [vmem:[#allocation4 + $0x58] sm:$0xff] %vm6664, %v6852
        %6869 = vst.msk [vmem:[#allocation4 + $0x60] sm:$0xff] %vm6664, %v6853
        %6870 = vst.msk [vmem:[#allocation4 + $0x68] sm:$0xff] %vm6664, %v6854
        %6871 = vst.msk [vmem:[#allocation4 + $0x70] sm:$0xff] %vm6664, %v6855
        %6872 = vst.msk [vmem:[#allocation4 + $0x78] sm:$0xff] %vm6664, %v6856
        %6873 = vst.msk [vmem:[#allocation2] sm:$0xff] %vm6664, %v6200
        %6874 = vst.msk [vmem:[#allocation2 + $0x8] sm:$0xff] %vm6664, %v6201
        %6875 = vst.msk [vmem:[#allocation2 + $0x10] sm:$0xff] %vm6664, %v6202
        %6876 = vst.msk [vmem:[#allocation2 + $0x18] sm:$0xff] %vm6664, %v6203
        %6877 = vst.msk [vmem:[#allocation2 + $0x20] sm:$0xff] %vm6664, %v6204
        %6878 = vst.msk [vmem:[#allocation2 + $0x28] sm:$0xff] %vm6664, %v6205
        %6879 = vst.msk [vmem:[#allocation2 + $0x30] sm:$0xff] %vm6664, %v6206
        %6880 = vst.msk [vmem:[#allocation2 + $0x38] sm:$0xff] %vm6664, %v6207
        %6881 = vst.msk [vmem:[#allocation2 + $0x40] sm:$0xff] %vm6664, %v6208
        %6882 = vst.msk [vmem:[#allocation2 + $0x48] sm:$0xff] %vm6664, %v6209
        %6883 = vst.msk [vmem:[#allocation2 + $0x50] sm:$0xff] %vm6664, %v6210
        %6884 = vst.msk [vmem:[#allocation2 + $0x58] sm:$0xff] %vm6664, %v6211
        %6885 = vst.msk [vmem:[#allocation2 + $0x60] sm:$0xff] %vm6664, %v6212
        %6886 = vst.msk [vmem:[#allocation2 + $0x68] sm:$0xff] %vm6664, %v6213
        %6887 = vst.msk [vmem:[#allocation2 + $0x70] sm:$0xff] %vm6664, %v6214
        %6888 = vst.msk [vmem:[#allocation2 + $0x78] sm:$0xff] %vm6664, %v6215
        %p6889 = scmp.eq.s32.totalorder %s19, 3
        // Predicated region
        $region60: #{magface_loss.1} parent=50 // pred_check
          %p6890 = pneg %p6889
        $region61: #{magface_loss.1} parent=50 // pred_check_branch
          %6892 = sbr.rel (%p6890) target = $region63
        $region62: #{magface_loss.1} parent=50 // pred_region
          %v6893 = vld [vmem:[#allocation3] sm:$0xff]
          %v6894 = vld [vmem:[#allocation3 + $0x8] sm:$0xff]
          %v6895 = vld [vmem:[#allocation3 + $0x10] sm:$0xff]
          %v6896 = vld [vmem:[#allocation3 + $0x18] sm:$0xff]
          %v6897 = vld [vmem:[#allocation3 + $0x20] sm:$0xff]
          %v6898 = vld [vmem:[#allocation3 + $0x28] sm:$0xff]
          %v6899 = vld [vmem:[#allocation3 + $0x30] sm:$0xff]
          %v6900 = vld [vmem:[#allocation3 + $0x38] sm:$0xff]
          %v6901 = vld [vmem:[#allocation3 + $0x40] sm:$0xff]
          %v6902 = vld [vmem:[#allocation3 + $0x48] sm:$0xff]
          %v6903 = vld [vmem:[#allocation3 + $0x50] sm:$0xff]
          %v6904 = vld [vmem:[#allocation3 + $0x58] sm:$0xff]
          %v6905 = vld [vmem:[#allocation3 + $0x60] sm:$0xff]
          %v6906 = vld [vmem:[#allocation3 + $0x68] sm:$0xff]
          %v6907 = vld [vmem:[#allocation3 + $0x70] sm:$0xff]
          %v6908 = vld [vmem:[#allocation3 + $0x78] sm:$0xff]
          %v6909 = vlog2.pop %v6893
          %v6910 = vmul.f32 %v6909, 0.6931472
          %v6911 = vlog2.pop %v6894
          %v6912 = vmul.f32 %v6911, 0.6931472
          %v6913 = vlog2.pop %v6895
          %v6914 = vmul.f32 %v6913, 0.6931472
          %v6915 = vlog2.pop %v6896
          %v6916 = vmul.f32 %v6915, 0.6931472
          %v6917 = vlog2.pop %v6897
          %v6918 = vmul.f32 %v6917, 0.6931472
          %v6919 = vlog2.pop %v6898
          %v6920 = vmul.f32 %v6919, 0.6931472
          %v6921 = vlog2.pop %v6899
          %v6922 = vmul.f32 %v6921, 0.6931472
          %v6923 = vlog2.pop %v6900
          %v6924 = vmul.f32 %v6923, 0.6931472
          %v6925 = vlog2.pop %v6901
          %v6926 = vmul.f32 %v6925, 0.6931472
          %v6927 = vlog2.pop %v6902
          %v6928 = vmul.f32 %v6927, 0.6931472
          %v6929 = vlog2.pop %v6903
          %v6930 = vmul.f32 %v6929, 0.6931472
          %v6931 = vlog2.pop %v6904
          %v6932 = vmul.f32 %v6931, 0.6931472
          %v6933 = vlog2.pop %v6905
          %v6934 = vmul.f32 %v6933, 0.6931472
          %v6935 = vlog2.pop %v6906
          %v6936 = vmul.f32 %v6935, 0.6931472
          %v6937 = vlog2.pop %v6907
          %v6938 = vmul.f32 %v6937, 0.6931472
          %v6939 = vlog2.pop %v6908
          %v6940 = vmul.f32 %v6939, 0.6931472
          %v6941 = vld [vmem:[#allocation2] sm:$0xff]
          %v6942 = vld [vmem:[#allocation2 + $0x8] sm:$0xff]
          %v6943 = vld [vmem:[#allocation2 + $0x10] sm:$0xff]
          %v6944 = vld [vmem:[#allocation2 + $0x18] sm:$0xff]
          %v6945 = vld [vmem:[#allocation2 + $0x20] sm:$0xff]
          %v6946 = vld [vmem:[#allocation2 + $0x28] sm:$0xff]
          %v6947 = vld [vmem:[#allocation2 + $0x30] sm:$0xff]
          %v6948 = vld [vmem:[#allocation2 + $0x38] sm:$0xff]
          %v6949 = vld [vmem:[#allocation2 + $0x40] sm:$0xff]
          %v6950 = vld [vmem:[#allocation2 + $0x48] sm:$0xff]
          %v6951 = vld [vmem:[#allocation2 + $0x50] sm:$0xff]
          %v6952 = vld [vmem:[#allocation2 + $0x58] sm:$0xff]
          %v6953 = vld [vmem:[#allocation2 + $0x60] sm:$0xff]
          %v6954 = vld [vmem:[#allocation2 + $0x68] sm:$0xff]
          %v6955 = vld [vmem:[#allocation2 + $0x70] sm:$0xff]
          %v6956 = vld [vmem:[#allocation2 + $0x78] sm:$0xff]
          %v6957 = vadd.f32 %v6910, %v6941
          %v6958 = vadd.f32 %v6912, %v6942
          %v6959 = vadd.f32 %v6914, %v6943
          %v6960 = vadd.f32 %v6916, %v6944
          %v6961 = vadd.f32 %v6918, %v6945
          %v6962 = vadd.f32 %v6920, %v6946
          %v6963 = vadd.f32 %v6922, %v6947
          %v6964 = vadd.f32 %v6924, %v6948
          %v6965 = vadd.f32 %v6926, %v6949
          %v6966 = vadd.f32 %v6928, %v6950
          %v6967 = vadd.f32 %v6930, %v6951
          %v6968 = vadd.f32 %v6932, %v6952
          %v6969 = vadd.f32 %v6934, %v6953
          %v6970 = vadd.f32 %v6936, %v6954
          %v6971 = vadd.f32 %v6938, %v6955
          %v6972 = vadd.f32 %v6940, %v6956
          %v6973 = vld [vmem:[#allocation4] sm:$0xff]
          %v6974 = vld [vmem:[#allocation4 + $0x8] sm:$0xff]
          %v6975 = vld [vmem:[#allocation4 + $0x10] sm:$0xff]
          %v6976 = vld [vmem:[#allocation4 + $0x18] sm:$0xff]
          %v6977 = vld [vmem:[#allocation4 + $0x20] sm:$0xff]
          %v6978 = vld [vmem:[#allocation4 + $0x28] sm:$0xff]
          %v6979 = vld [vmem:[#allocation4 + $0x30] sm:$0xff]
          %v6980 = vld [vmem:[#allocation4 + $0x38] sm:$0xff]
          %v6981 = vld [vmem:[#allocation4 + $0x40] sm:$0xff]
          %v6982 = vld [vmem:[#allocation4 + $0x48] sm:$0xff]
          %v6983 = vld [vmem:[#allocation4 + $0x50] sm:$0xff]
          %v6984 = vld [vmem:[#allocation4 + $0x58] sm:$0xff]
          %v6985 = vld [vmem:[#allocation4 + $0x60] sm:$0xff]
          %v6986 = vld [vmem:[#allocation4 + $0x68] sm:$0xff]
          %v6987 = vld [vmem:[#allocation4 + $0x70] sm:$0xff]
          %v6988 = vld [vmem:[#allocation4 + $0x78] sm:$0xff]
          %v6989 = vsub.f32 %v6957, %v6973
          %v6990 = vsub.f32 %v6958, %v6974
          %v6991 = vsub.f32 %v6959, %v6975
          %v6992 = vsub.f32 %v6960, %v6976
          %v6993 = vsub.f32 %v6961, %v6977
          %v6994 = vsub.f32 %v6962, %v6978
          %v6995 = vsub.f32 %v6963, %v6979
          %v6996 = vsub.f32 %v6964, %v6980
          %v6997 = vsub.f32 %v6965, %v6981
          %v6998 = vsub.f32 %v6966, %v6982
          %v6999 = vsub.f32 %v6967, %v6983
          %v7000 = vsub.f32 %v6968, %v6984
          %v7001 = vsub.f32 %v6969, %v6985
          %v7002 = vsub.f32 %v6970, %v6986
          %v7003 = vsub.f32 %v6971, %v6987
          %v7004 = vsub.f32 %v6972, %v6988
          %v7005 = vld [vmem:[#allocation8] sm:$0xff]
          %v7006 = vld [vmem:[#allocation8 + $0x8] sm:$0xff]
          %v7007 = vld [vmem:[#allocation8 + $0x10] sm:$0xff]
          %v7008 = vld [vmem:[#allocation8 + $0x18] sm:$0xff]
          %v7009 = vld [vmem:[#allocation8 + $0x20] sm:$0xff]
          %v7010 = vld [vmem:[#allocation8 + $0x28] sm:$0xff]
          %v7011 = vld [vmem:[#allocation8 + $0x30] sm:$0xff]
          %v7012 = vld [vmem:[#allocation8 + $0x38] sm:$0xff]
          %v7013 = vld [vmem:[#allocation8 + $0x40] sm:$0xff]
          %v7014 = vld [vmem:[#allocation8 + $0x48] sm:$0xff]
          %v7015 = vld [vmem:[#allocation8 + $0x50] sm:$0xff]
          %v7016 = vld [vmem:[#allocation8 + $0x58] sm:$0xff]
          %v7017 = vld [vmem:[#allocation8 + $0x60] sm:$0xff]
          %v7018 = vld [vmem:[#allocation8 + $0x68] sm:$0xff]
          %v7019 = vld [vmem:[#allocation8 + $0x70] sm:$0xff]
          %v7020 = vld [vmem:[#allocation8 + $0x78] sm:$0xff]
          %v7021 = vmul.f32 %v7005, 20.0
          %v7022 = vmul.f32 %v7006, 20.0
          %v7023 = vmul.f32 %v7007, 20.0
          %v7024 = vmul.f32 %v7008, 20.0
          %v7025 = vmul.f32 %v7009, 20.0
          %v7026 = vmul.f32 %v7010, 20.0
          %v7027 = vmul.f32 %v7011, 20.0
          %v7028 = vmul.f32 %v7012, 20.0
          %v7029 = vmul.f32 %v7013, 20.0
          %v7030 = vmul.f32 %v7014, 20.0
          %v7031 = vmul.f32 %v7015, 20.0
          %v7032 = vmul.f32 %v7016, 20.0
          %v7033 = vmul.f32 %v7017, 20.0
          %v7034 = vmul.f32 %v7018, 20.0
          %v7035 = vmul.f32 %v7019, 20.0
          %v7036 = vmul.f32 %v7020, 20.0
          %v7037 = vadd.f32 %v6989, %v7021
          %v7038 = vadd.f32 %v6990, %v7022
          %v7039 = vadd.f32 %v6991, %v7023
          %v7040 = vadd.f32 %v6992, %v7024
          %v7041 = vadd.f32 %v6993, %v7025
          %v7042 = vadd.f32 %v6994, %v7026
          %v7043 = vadd.f32 %v6995, %v7027
          %v7044 = vadd.f32 %v6996, %v7028
          %v7045 = vadd.f32 %v6997, %v7029
          %v7046 = vadd.f32 %v6998, %v7030
          %v7047 = vadd.f32 %v6999, %v7031
          %v7048 = vadd.f32 %v7000, %v7032
          %v7049 = vadd.f32 %v7001, %v7033
          %v7050 = vadd.f32 %v7002, %v7034
          %v7051 = vadd.f32 %v7003, %v7035
          %v7052 = vadd.f32 %v7004, %v7036
          %7053 = vst.msk [vmem:[%s277] sm:$0xff] %vm6664, %v7037
          %7054 = vst.msk [vmem:[%s277 + $0x8] sm:$0xff] %vm6664, %v7038
          %7055 = vst.msk [vmem:[%s277 + $0x10] sm:$0xff] %vm6664, %v7039
          %7056 = vst.msk [vmem:[%s277 + $0x18] sm:$0xff] %vm6664, %v7040
          %7057 = vst.msk [vmem:[%s277 + $0x20] sm:$0xff] %vm6664, %v7041
          %7058 = vst.msk [vmem:[%s277 + $0x28] sm:$0xff] %vm6664, %v7042
          %7059 = vst.msk [vmem:[%s277 + $0x30] sm:$0xff] %vm6664, %v7043
          %7060 = vst.msk [vmem:[%s277 + $0x38] sm:$0xff] %vm6664, %v7044
          %7061 = vst.msk [vmem:[%s277 + $0x40] sm:$0xff] %vm6664, %v7045
          %7062 = vst.msk [vmem:[%s277 + $0x48] sm:$0xff] %vm6664, %v7046
          %7063 = vst.msk [vmem:[%s277 + $0x50] sm:$0xff] %vm6664, %v7047
          %7064 = vst.msk [vmem:[%s277 + $0x58] sm:$0xff] %vm6664, %v7048
          %7065 = vst.msk [vmem:[%s277 + $0x60] sm:$0xff] %vm6664, %v7049
          %7066 = vst.msk [vmem:[%s277 + $0x68] sm:$0xff] %vm6664, %v7050
          %7067 = vst.msk [vmem:[%s277 + $0x70] sm:$0xff] %vm6664, %v7051
          %7068 = vst.msk [vmem:[%s277 + $0x78] sm:$0xff] %vm6664, %v7052
        $region63: #{magface_loss.1} parent=50 // pred_fallthru
          _
        %s7069 = smul.u32 16, %s18
        %p7070 = scmp.lt.s32.totalorder %s7069, 31
        %s7071 = scalar_select %p7070, %s7069, 31
        %s7072 = smul.addr %s7071, 8
        %s7073 = scalar_lea.vmem %s3, %s7072
        // Predicated region
        $region64: #{magface_loss.1} parent=50 // pred_check
          %p7074 = pneg %p122
        $region65: #{magface_loss.1} parent=50 // pred_check_branch
          %7076 = sbr.rel (%p7074) target = $region67
        $region66: #{magface_loss.1} parent=50 // pred_region
          %s7077 = smul.u32 16, %s18
        $region67: #{magface_loss.1} parent=50 // pred_fallthru
          _
      $region51: #{magface_loss.1} parent=5 // pred_fallthru
        _
      %p7078 = scmp.le.s32.totalorder 2, %s9
      // Predicated region
      $region68: #{magface_loss.1} parent=5 // pred_check
        %p7079 = pneg %p7078
      $region69: #{magface_loss.1} parent=5 // pred_check_branch
        %7081 = sbr.rel (%p7079) target = $region71
      $region70: #{magface_loss.1} parent=5 // pred_region
        %s7082 = ssub.s32 %s9, 2
        // Predicated region
        $region72: #{magface_loss.1} parent=70 // pred_check
          %p7083 = pneg %p128
        $region73: #{magface_loss.1} parent=70 // pred_check_branch
          %7085 = sbr.rel (%p7083) target = $region75
        $region74: #{magface_loss.1} parent=70 // pred_region
          %s7086 = smul.u32 16, %s20
          %p7087 = scmp.lt.s32.totalorder %s7086, 31
          %s7088 = scalar_select %p7087, %s7086, 31
          %s7089 = smul.addr %s7088, 8
          %s7090 = scalar_lea.vmem %s3, %s7089
        $region75: #{magface_loss.1} parent=70 // pred_fallthru
          _
      $region71: #{magface_loss.1} parent=5 // pred_fallthru
        _
    $region6: #{magface_loss.1} parent=1 // loop_footer
      %s13 = sadd.s32 1, %s9
    $region7: #{magface_loss.1} parent=1 // loop_footer_branch
      %8 = sbr.rel target = $region3
    $region8: #{magface_loss.1} parent=1 // loop_exit
      _

</llo_original>
